<compile_context>
chip_gen: v5e
topology: v5e:2x2
jax: 0.10.0
libtpu: 0.0.40
codegen_flags: <defaults>
</compile_context>

<pallas_src>
import functools
from itertools import combinations

import numpy as np

import jax
import jax.numpy as jnp
from jax.experimental import pallas as pl
from jax.experimental.pallas import tpu as pltpu


def _next_pow2(x):
    x = int(x)
    return 1 if x <= 1 else 1 << (x - 1).bit_length()


def _round_up(x, m):
    return ((x + m - 1) // m) * m


def _online_triplet_kernel(*refs, margin, tile, n_rows, has_peer):
    """One grid step = one tile of `tile` triplets.

    refs (no peer):   meta_ref(SMEM[1]), trip_ref[tile,3], emb_ref[N,D], out_ref[1,8,128]
    refs (with peer): meta_ref, trip_ref, emb_ref, peer_ref, out_ref

    out block lanes (sublane 0): lane0 = sum(loss), lane1 = sum(kd_ap), lane2 = sum(kd_an)
    """
    if has_peer:
        meta_ref, trip_ref, emb_ref, peer_ref, out_ref = refs
    else:
        meta_ref, trip_ref, emb_ref, out_ref = refs

    i = pl.program_id(0)
    n_valid = meta_ref[0]                               # runtime number of real triplets

    ids = trip_ref[...]                                 # [tile, 3] int32 (a, p, n)
    a_idx = ids[:, 0:1]                                 # [tile, 1]
    p_idx = ids[:, 1:2]
    n_idx = ids[:, 2:3]

    # Signed one-hot gather matrices: row t of oh_ap is e_{a_t} - e_{p_t}, so
    # oh_ap @ emb == emb[a] - emb[p] exactly (coefficients are 0/±1).
    col = jax.lax.broadcasted_iota(jnp.int32, (tile, n_rows), 1)
    oh_a = (col == a_idx).astype(jnp.float32)
    oh_ap = oh_a - (col == p_idx).astype(jnp.float32)   # [tile, N]
    oh_an = oh_a - (col == n_idx).astype(jnp.float32)   # [tile, N]

    hi = jax.lax.Precision.HIGHEST                      # exact f32 MXU gather
    emb = emb_ref[...].astype(jnp.float32)              # resident [N, D] table
    d_ap = jnp.dot(oh_ap, emb, precision=hi, preferred_element_type=jnp.float32)
    d_an = jnp.dot(oh_an, emb, precision=hi, preferred_element_type=jnp.float32)
    ap = jnp.sum(d_ap * d_ap, axis=-1, keepdims=True)   # [tile, 1]
    an = jnp.sum(d_an * d_an, axis=-1, keepdims=True)   # [tile, 1]

    # Rows >= n_valid are padding (indices 0,0,0) -> mask them out of the sums.
    row = i * tile + jax.lax.broadcasted_iota(jnp.int32, (tile, 1), 0)
    valid = row < n_valid

    zero = jnp.float32(0.0)
    losses = jnp.maximum(ap - an + jnp.float32(margin), zero)
    loss_sum = jnp.sum(jnp.where(valid, losses, zero))

    kd_ap_sum = zero
    kd_an_sum = zero
    if has_peer:
        peer = peer_ref[...].astype(jnp.float32)
        pd_ap = jnp.dot(oh_ap, peer, precision=hi, preferred_element_type=jnp.float32)
        pd_an = jnp.dot(oh_an, peer, precision=hi, preferred_element_type=jnp.float32)
        peer_ap = jnp.sum(pd_ap * pd_ap, axis=-1, keepdims=True)
        peer_an = jnp.sum(pd_an * pd_an, axis=-1, keepdims=True)
        kd_ap = jnp.maximum(ap - peer_ap, zero)          # relu(-peer_ap + ap)
        kd_an = jnp.maximum(peer_an - an, zero)          # relu(-an + peer_an)
        kd_ap_sum = jnp.sum(jnp.where(valid, kd_ap, zero))
        kd_an_sum = jnp.sum(jnp.where(valid, kd_an, zero))

    # Per-tile partial sums into this tile's own output block (no carried state ->
    # the grid axis can be "parallel" and v7x can split tiles across its 2 TCs).
    lane = jax.lax.broadcasted_iota(jnp.int32, (1, 8, 128), 2)
    zeros = jnp.zeros((1, 8, 128), jnp.float32)
    out = jnp.where(lane == 0, loss_sum, zeros)
    if has_peer:
        out = out + jnp.where(lane == 1, kd_ap_sum, zeros)
        out = out + jnp.where(lane == 2, kd_an_sum, zeros)
    out_ref[...] = out


def online_triplet_loss(embeddings, triplets, margin, rd=0.0,
                        peer_embeddings=None, tile=512):
    """Forward pass of OnlineTripletLoss given precomputed triplet indices.

    embeddings      : [N, D] float32
    triplets        : [T, 3] int (anchor, positive, negative) indices
    peer_embeddings : optional [N, D] float32
    returns         : (loss_scalar, num_triplets)
    """
    t = int(triplets.shape[0])
    if t == 0:
        # PyTorch path would divide by zero; guard and return 0 loss.
        return jnp.float32(0.0), 0

    n, d = int(embeddings.shape[0]), int(embeddings.shape[1])
    has_peer = peer_embeddings is not None

    tile = max(8, int(tile))
    num_tiles = max(1, _next_pow2(pl.cdiv(t, tile)))     # bucketed -> stable compiles
    t_pad = num_tiles * tile

    trip = jnp.asarray(triplets, dtype=jnp.int32)
    if t_pad > t:
        trip = jnp.pad(trip, ((0, t_pad - t), (0, 0)))    # pad with index 0, masked in-kernel
    meta = jnp.array([t], dtype=jnp.int32)                # runtime triplet count (SMEM)

    inputs = [trip, embeddings]
    in_specs = [
        pl.BlockSpec((tile, 3), lambda i, meta: (i, 0)),      # streamed index tiles
        pl.BlockSpec((n, d), lambda i, meta: (0, 0)),         # VMEM-resident table
    ]
    if has_peer:
        inputs.append(peer_embeddings)
        in_specs.append(pl.BlockSpec((n, d), lambda i, meta: (0, 0)))

    kernel = functools.partial(
        _online_triplet_kernel,
        margin=float(margin), tile=tile, n_rows=n, has_peer=has_peer)

    # VMEM budget from actual buffers (double-buffered) + kernel temporaries + headroom,
    # capped at 40 MiB so the request also fits v7x (64 MiB physical per TC).
    n_tables = 2 if has_peer else 1
    table_bytes = _round_up(n, 8) * _round_up(d, 128) * 4
    trip_bytes = _round_up(tile, 8) * 128 * 4
    out_bytes = 8 * 128 * 4
    buffers = 2 * (n_tables * table_bytes + trip_bytes + out_bytes)
    temps = (3 * tile * _round_up(n, 128) * 4                       # one-hot matrices
             + (4 if has_peer else 2) * tile * _round_up(d, 128) * 4)  # row-diff tiles
    vmem_limit = int(min(max(buffers + temps + (4 << 20), 8 << 20), 40 << 20))

    partials = pl.pallas_call(
        kernel,
        out_shape=jax.ShapeDtypeStruct((num_tiles, 8, 128), jnp.float32),
        grid_spec=pltpu.PrefetchScalarGridSpec(
            num_scalar_prefetch=1,
            grid=(num_tiles,),
            in_specs=in_specs,
            out_specs=pl.BlockSpec((1, 8, 128), lambda i, meta: (i, 0, 0)),
        ),
        compiler_params=pltpu.CompilerParams(
            dimension_semantics=("parallel",),   # per-tile outputs, no carried state
            vmem_limit_bytes=vmem_limit,
        ),
    )(meta, *inputs)

    # Tiny final reduction + means in the wrapper (keeps kernel recompile-free in T).
    sums = jnp.sum(partials[:, 0, :], axis=0)            # [128]; lanes 0..2 are the sums
    inv_t = jnp.float32(1.0 / t)
    loss = sums[0] * inv_t
    if has_peer:
        loss = loss + rd * (sums[1] * inv_t) + rd * (sums[2] * inv_t)
    return loss, t


def _reference_loss(embeddings, triplets, margin, rd=0.0, peer=None):
    """Pure-JAX reference mirroring the PyTorch forward."""
    a = embeddings[triplets[:, 0]]
    p = embeddings[triplets[:, 1]]
    n = embeddings[triplets[:, 2]]
    ap = jnp.sum((a - p) ** 2, axis=1)
    an = jnp.sum((a - n) ** 2, axis=1)
    losses = jnp.maximum(ap - an + margin, 0.0)
    if peer is None:
        return losses.mean(), triplets.shape[0]
    pa = peer[triplets[:, 0]]
    pp = peer[triplets[:, 1]]
    pn = peer[triplets[:, 2]]
    peer_ap = jnp.sum((pa - pp) ** 2, axis=1)
    peer_an = jnp.sum((pa - pn) ** 2, axis=1)
    kd_ap = jnp.maximum(ap - peer_ap, 0.0)
    kd_an = jnp.maximum(peer_an - an, 0.0)
    return losses.mean() + rd * kd_ap.mean() + rd * kd_an.mean(), triplets.shape[0]


def _simple_triplet_selector(labels):
    """Deterministic stand-in for triplet_selector.get_triplets: for every same-label
    (anchor, positive) pair, pick a different-label negative (cycled)."""
    labels = np.asarray(labels)
    triplets = []
    for c in np.unique(labels):
        idx = np.where(labels == c)[0]
        neg = np.where(labels != c)[0]
        if len(idx) < 2 or len(neg) == 0:
            continue
        k = 0
        for a, p in combinations(idx, 2):
            triplets.append((a, p, neg[k % len(neg)]))
            k += 1
    return np.asarray(triplets, dtype=np.int32)


if __name__ == "__main__":
    # Small shapes consistent with the module: a batch of embeddings + labels.
    N, D = 64, 128                      # D lane-dense (multiple of 128)
    NUM_CLASSES = 4
    MARGIN = 1.0
    RD = 0.5

    key = jax.random.PRNGKey(0)
    k_emb, k_peer = jax.random.split(key, 2)

    embeddings = jax.random.normal(k_emb, (N, D), dtype=jnp.float32)
    peer_embeddings = jax.random.normal(k_peer, (N, D), dtype=jnp.float32)
    labels = np.arange(N) % NUM_CLASSES                 # deterministic: 16 per class

    triplets = _simple_triplet_selector(labels)         # [T, 3], T = 4 * C(16, 2) = 480

    # Branch 1: no peer embeddings.
    loss0, n0 = online_triplet_loss(embeddings, triplets, MARGIN)
    # Branch 2: with peer embeddings (knowledge-distillation terms).
    loss1, n1 = online_triplet_loss(embeddings, triplets, MARGIN,
                                    rd=RD, peer_embeddings=peer_embeddings)
    loss0, loss1 = jax.block_until_ready((loss0, loss1))

    ref0, _ = _reference_loss(embeddings, triplets, MARGIN)
    ref1, _ = _reference_loss(embeddings, triplets, MARGIN, rd=RD, peer=peer_embeddings)

    assert n0 == triplets.shape[0] and n1 == triplets.shape[0]
    assert jnp.allclose(loss0, ref0, atol=5e-3, rtol=5e-3), (loss0, ref0)
    assert jnp.allclose(loss1, ref1, atol=5e-3, rtol=5e-3), (loss1, ref1)

    print("KERNEL_OK")
</pallas_src>

<mosaic_0001>
module attributes {stable_mosaic.version = 11 : i64} {
  func.func @_online_triplet_kernel(%arg0: i32, %arg1: memref<1xi32, #tpu.memory_space<smem>>, %arg2: memref<512x3xi32, #tpu.memory_space<vmem>>, %arg3: memref<64x128xf32, #tpu.memory_space<vmem>>, %arg4: memref<1x8x128xf32, #tpu.memory_space<vmem>>) attributes {dimension_semantics = [#tpu.dimension_semantics<parallel>], iteration_bounds = array<i64: 1>, scalar_prefetch = 1 : i64, scratch_operands = 0 : i64, tpu.core_type = #tpu.core_type<tc>, window_params = [{transform_indices = @transform_0, window_bounds = array<i64: 512, 3>}, {pipeline_mode = #tpu.pipeline_mode<synchronous>, transform_indices = @transform_1, window_bounds = array<i64: 64, 128>}, {transform_indices = @transform_2, window_bounds = array<i64: 1, 8, 128>}]} {
    %c0 = arith.constant 0 : index
    %0 = memref.load %arg1[%c0] : memref<1xi32, #tpu.memory_space<smem>>
    %c0_0 = arith.constant 0 : index
    %c0_1 = arith.constant 0 : index
    %1 = vector.load %arg2[%c0_0, %c0_1] : memref<512x3xi32, #tpu.memory_space<vmem>>, vector<512x3xi32>
    %2 = vector.extract_strided_slice %1 {offsets = [0, 0], sizes = [512, 1], strides = [1, 1]} : vector<512x3xi32> to vector<512x1xi32>
    %3 = vector.extract_strided_slice %1 {offsets = [0, 1], sizes = [512, 1], strides = [1, 1]} : vector<512x3xi32> to vector<512x1xi32>
    %4 = vector.extract_strided_slice %1 {offsets = [0, 2], sizes = [512, 1], strides = [1, 1]} : vector<512x3xi32> to vector<512x1xi32>
    %5 = tpu.iota {dimensions = array<i32: 1>} : vector<512x64xi32>
    %6 = vector.broadcast %2 : vector<512x1xi32> to vector<512x64xi32>
    %7 = arith.cmpi eq, %5, %6 : vector<512x64xi32>
    %8 = arith.extui %7 : vector<512x64xi1> to vector<512x64xi32>
    %9 = arith.sitofp %8 : vector<512x64xi32> to vector<512x64xf32>
    %10 = vector.broadcast %3 : vector<512x1xi32> to vector<512x64xi32>
    %11 = arith.cmpi eq, %5, %10 : vector<512x64xi32>
    %12 = arith.extui %11 : vector<512x64xi1> to vector<512x64xi32>
    %13 = arith.sitofp %12 : vector<512x64xi32> to vector<512x64xf32>
    %14 = arith.subf %9, %13 : vector<512x64xf32>
    %15 = vector.broadcast %4 : vector<512x1xi32> to vector<512x64xi32>
    %16 = arith.cmpi eq, %5, %15 : vector<512x64xi32>
    %17 = arith.extui %16 : vector<512x64xi1> to vector<512x64xi32>
    %18 = arith.sitofp %17 : vector<512x64xi32> to vector<512x64xf32>
    %19 = arith.subf %9, %18 : vector<512x64xf32>
    %c0_2 = arith.constant 0 : index
    %c0_3 = arith.constant 0 : index
    %20 = vector.load %arg3[%c0_2, %c0_3] : memref<64x128xf32, #tpu.memory_space<vmem>>, vector<64x128xf32>
    %cst = arith.constant dense<0.000000e+00> : vector<512x128xf32>
    %21 = tpu.matmul %14, %20, %cst {dimension_numbers = #tpu.dot_dimension_numbers<[1], [0], [0], [1], [0, 0, 1, 1], [], []>, precision = #tpu.contract_precision<fp32>} : vector<512x64xf32>, vector<64x128xf32>, vector<512x128xf32> -> vector<512x128xf32>
    %cst_4 = arith.constant dense<0.000000e+00> : vector<512x128xf32>
    %22 = tpu.matmul %19, %20, %cst_4 {dimension_numbers = #tpu.dot_dimension_numbers<[1], [0], [0], [1], [0, 0, 1, 1], [], []>, precision = #tpu.contract_precision<fp32>} : vector<512x64xf32>, vector<64x128xf32>, vector<512x128xf32> -> vector<512x128xf32>
    %23 = arith.mulf %21, %21 : vector<512x128xf32>
    %cst_5 = arith.constant dense<0.000000e+00> : vector<512xf32>
    %24 = vector.multi_reduction <add>, %23, %cst_5 [1] : vector<512x128xf32> to vector<512xf32>
    %25 = vector.shape_cast %24 : vector<512xf32> to vector<512x1xf32>
    %26 = arith.mulf %22, %22 : vector<512x128xf32>
    %cst_6 = arith.constant dense<0.000000e+00> : vector<512xf32>
    %27 = vector.multi_reduction <add>, %26, %cst_6 [1] : vector<512x128xf32> to vector<512xf32>
    %28 = vector.shape_cast %27 : vector<512xf32> to vector<512x1xf32>
    %c512_i32 = arith.constant 512 : i32
    %29 = arith.muli %arg0, %c512_i32 : i32
    %30 = tpu.iota {dimensions = array<i32: 0>} : vector<512x1xi32>
    %31 = vector.broadcast %29 : i32 to vector<512x1xi32>
    %32 = arith.addi %31, %30 : vector<512x1xi32>
    %33 = vector.broadcast %0 : i32 to vector<512x1xi32>
    %34 = arith.cmpi slt, %32, %33 : vector<512x1xi32>
    %35 = arith.subf %25, %28 : vector<512x1xf32>
    %cst_7 = arith.constant 1.000000e+00 : f32
    %36 = vector.broadcast %cst_7 : f32 to vector<512x1xf32>
    %37 = arith.addf %35, %36 : vector<512x1xf32>
    %cst_8 = arith.constant 0.000000e+00 : f32
    %38 = vector.broadcast %cst_8 : f32 to vector<512x1xf32>
    %39 = arith.maximumf %37, %38 : vector<512x1xf32>
    %cst_9 = arith.constant 0.000000e+00 : f32
    %40 = vector.broadcast %cst_9 : f32 to vector<512x1xf32>
    %41 = arith.select %34, %39, %40 : vector<512x1xi1>, vector<512x1xf32>
    %42 = vector.shape_cast %41 : vector<512x1xf32> to vector<1x512x1xf32>
    %cst_10 = arith.constant dense<0.000000e+00> : vector<1xf32>
    %43 = vector.multi_reduction <add>, %42, %cst_10 [1, 2] : vector<1x512x1xf32> to vector<1xf32>
    %44 = vector.shape_cast %43 : vector<1xf32> to vector<1x1x1xf32>
    %45 = vector.extract %44[0, 0, 0] : f32 from vector<1x1x1xf32>
    %46 = tpu.iota {dimensions = array<i32: 2>} : vector<1x8x128xi32>
    %cst_11 = arith.constant 0.000000e+00 : f32
    %47 = vector.broadcast %cst_11 : f32 to vector<1x8x128xf32>
    %c0_i32 = arith.constant 0 : i32
    %48 = vector.broadcast %c0_i32 : i32 to vector<1x8x128xi32>
    %49 = arith.cmpi eq, %46, %48 : vector<1x8x128xi32>
    %50 = vector.broadcast %45 : f32 to vector<1x8x128xf32>
    %51 = arith.select %49, %50, %47 : vector<1x8x128xi1>, vector<1x8x128xf32>
    %c0_12 = arith.constant 0 : index
    %c0_13 = arith.constant 0 : index
    %c0_14 = arith.constant 0 : index
    %52 = vector.load %arg4[%c0_12, %c0_13, %c0_14] : memref<1x8x128xf32, #tpu.memory_space<vmem>>, vector<1x8x128xf32>
    tpu.vector_store %arg4[%c0_12, %c0_13, %c0_14], %51 {strides = array<i32>} : memref<1x8x128xf32, #tpu.memory_space<vmem>>, vector<1x8x128xf32>,
    return
  }
  func.func @transform_0(%arg0: i32, %arg1: memref<1xi32, #tpu.memory_space<smem>>) -> (i32, i32) {
    %c0_i32 = arith.constant 0 : i32
    %c0_i32_0 = arith.constant 0 : i32
    return %arg0, %c0_i32 : i32, i32
  }
  func.func @transform_1(%arg0: i32, %arg1: memref<1xi32, #tpu.memory_space<smem>>) -> (i32, i32) {
    %c0_i32 = arith.constant 0 : i32
    %c0_i32_0 = arith.constant 0 : i32
    %c0_i32_1 = arith.constant 0 : i32
    return %c0_i32, %c0_i32_0 : i32, i32
  }
  func.func @transform_2(%arg0: i32, %arg1: memref<1xi32, #tpu.memory_space<smem>>) -> (i32, i32, i32) {
    %c0_i32 = arith.constant 0 : i32
    %c0_i32_0 = arith.constant 0 : i32
    %c0_i32_1 = arith.constant 0 : i32
    return %arg0, %c0_i32, %c0_i32_0 : i32, i32, i32
  }
}

</mosaic_0001>

<llo_original>
// kernel: tpu_custom_call.1
$region0: #{tpu_custom_call.1}
  #allocation0 [shape = 'u32[]', space=smem, size = 0x4, offset = 0x4, fixed_abs, tag = 'smem constant byte address 0x4 - core index']
  #allocation1 [shape = 'u32[72,128]{1,0:T(1,128)}', space=vmem, size = 0x9000, scoped, tag = 'internal scratch']
  #allocation2 [shape = 's32[1]{0}', space=sflag, size = 0x4, scoped, tag = 'scoped memory for tpu_custom_call.1']
  #allocation3 [shape = 's32[1]{0:T(128)S(6)}', space=smem, size = 0x200, scoped, tag = 'prefetched SMEM operand 0']
  %s0 = inlined_call_operand.<no memory space> [shape: s32[1], index: 0, kind: input, shape index: {}]
  %s1 = inlined_call_operand.vmem [shape: s32[512,3], index: 1, kind: input, shape index: {}]
  %s2 = inlined_call_operand.vmem [shape: f32[64,128], index: 2, kind: input, shape index: {}]
  %s3 = inlined_call_operand.hbm [shape: f32[1,8,128], index: 3, kind: output, shape index: {}]
  %s4 = sld [smem:[#allocation0]]
  $region18: #{tpu_custom_call.1} parent=0
    _
  %s6 = ssub.s32 1, %s4
  %s7 = scalar_select 0, %s6, %s4
  %8 = sst [smem:[#allocation3]] %s0
  $region1: #{tpu_custom_call.1} parent=0
    #allocation4 [shape = 'u8[4096]{0}', space=vmem, size = 0x1000, scoped, tag = 'output window, operand 0, single buffered']
    #allocation5 [shape = 's32[1]{0}', space=sflag, size = 0x4, scoped, tag = 'scoped memory for tpu_custom_call.1']
    %9 = vsyncpa [#allocation5], 0
    // Predicated region
    $region2: #{tpu_custom_call.1} parent=1 // pred_check
      _
    $region3: #{tpu_custom_call.1} parent=1 // pred_check_branch
      %11 = sbr.rel (0) target = $region5
    $region4: #{tpu_custom_call.1} parent=1 // pred_region
      _
    $region5: #{tpu_custom_call.1} parent=1 // pred_fallthru
      _
    // Predicated region
    $region6: #{tpu_custom_call.1} parent=1 // pred_check
      _
    $region7: #{tpu_custom_call.1} parent=1 // pred_check_branch
      %13 = sbr.rel (0) target = $region9
    $region8: #{tpu_custom_call.1} parent=1 // pred_region
      _
    $region9: #{tpu_custom_call.1} parent=1 // pred_fallthru
      _
    %s14 = sld [smem:[#allocation3]]
    %v15 = vld [vmem:[%s1] sm:$0xff]
    %v16 = vld [vmem:[%s1 + $0x8] sm:$0xff]
    %v17 = vld [vmem:[%s1 + $0x10] sm:$0xff]
    %v18 = vld [vmem:[%s1 + $0x18] sm:$0xff]
    %v19 = vld [vmem:[%s1 + $0x20] sm:$0xff]
    %v20 = vld [vmem:[%s1 + $0x28] sm:$0xff]
    %v21 = vld [vmem:[%s1 + $0x30] sm:$0xff]
    %v22 = vld [vmem:[%s1 + $0x38] sm:$0xff]
    %v23 = vld [vmem:[%s1 + $0x40] sm:$0xff]
    %v24 = vld [vmem:[%s1 + $0x48] sm:$0xff]
    %v25 = vld [vmem:[%s1 + $0x50] sm:$0xff]
    %v26 = vld [vmem:[%s1 + $0x58] sm:$0xff]
    %v27 = vld [vmem:[%s1 + $0x60] sm:$0xff]
    %v28 = vld [vmem:[%s1 + $0x68] sm:$0xff]
    %v29 = vld [vmem:[%s1 + $0x70] sm:$0xff]
    %v30 = vld [vmem:[%s1 + $0x78] sm:$0xff]
    %v31 = vld [vmem:[%s1 + $0x80] sm:$0xff]
    %v32 = vld [vmem:[%s1 + $0x88] sm:$0xff]
    %v33 = vld [vmem:[%s1 + $0x90] sm:$0xff]
    %v34 = vld [vmem:[%s1 + $0x98] sm:$0xff]
    %v35 = vld [vmem:[%s1 + $0xa0] sm:$0xff]
    %v36 = vld [vmem:[%s1 + $0xa8] sm:$0xff]
    %v37 = vld [vmem:[%s1 + $0xb0] sm:$0xff]
    %v38 = vld [vmem:[%s1 + $0xb8] sm:$0xff]
    %v39 = vld [vmem:[%s1 + $0xc0] sm:$0xff]
    %v40 = vld [vmem:[%s1 + $0xc8] sm:$0xff]
    %v41 = vld [vmem:[%s1 + $0xd0] sm:$0xff]
    %v42 = vld [vmem:[%s1 + $0xd8] sm:$0xff]
    %v43 = vld [vmem:[%s1 + $0xe0] sm:$0xff]
    %v44 = vld [vmem:[%s1 + $0xe8] sm:$0xff]
    %v45 = vld [vmem:[%s1 + $0xf0] sm:$0xff]
    %v46 = vld [vmem:[%s1 + $0xf8] sm:$0xff]
    %v47 = vld [vmem:[%s1 + $0x100] sm:$0xff]
    %v48 = vld [vmem:[%s1 + $0x108] sm:$0xff]
    %v49 = vld [vmem:[%s1 + $0x110] sm:$0xff]
    %v50 = vld [vmem:[%s1 + $0x118] sm:$0xff]
    %v51 = vld [vmem:[%s1 + $0x120] sm:$0xff]
    %v52 = vld [vmem:[%s1 + $0x128] sm:$0xff]
    %v53 = vld [vmem:[%s1 + $0x130] sm:$0xff]
    %v54 = vld [vmem:[%s1 + $0x138] sm:$0xff]
    %v55 = vld [vmem:[%s1 + $0x140] sm:$0xff]
    %v56 = vld [vmem:[%s1 + $0x148] sm:$0xff]
    %v57 = vld [vmem:[%s1 + $0x150] sm:$0xff]
    %v58 = vld [vmem:[%s1 + $0x158] sm:$0xff]
    %v59 = vld [vmem:[%s1 + $0x160] sm:$0xff]
    %v60 = vld [vmem:[%s1 + $0x168] sm:$0xff]
    %v61 = vld [vmem:[%s1 + $0x170] sm:$0xff]
    %v62 = vld [vmem:[%s1 + $0x178] sm:$0xff]
    %v63 = vld [vmem:[%s1 + $0x180] sm:$0xff]
    %v64 = vld [vmem:[%s1 + $0x188] sm:$0xff]
    %v65 = vld [vmem:[%s1 + $0x190] sm:$0xff]
    %v66 = vld [vmem:[%s1 + $0x198] sm:$0xff]
    %v67 = vld [vmem:[%s1 + $0x1a0] sm:$0xff]
    %v68 = vld [vmem:[%s1 + $0x1a8] sm:$0xff]
    %v69 = vld [vmem:[%s1 + $0x1b0] sm:$0xff]
    %v70 = vld [vmem:[%s1 + $0x1b8] sm:$0xff]
    %v71 = vld [vmem:[%s1 + $0x1c0] sm:$0xff]
    %v72 = vld [vmem:[%s1 + $0x1c8] sm:$0xff]
    %v73 = vld [vmem:[%s1 + $0x1d0] sm:$0xff]
    %v74 = vld [vmem:[%s1 + $0x1d8] sm:$0xff]
    %v75 = vld [vmem:[%s1 + $0x1e0] sm:$0xff]
    %v76 = vld [vmem:[%s1 + $0x1e8] sm:$0xff]
    %v77 = vld [vmem:[%s1 + $0x1f0] sm:$0xff]
    %v78 = vld [vmem:[%s1 + $0x1f8] sm:$0xff]
    %v79 = vlaneseq
    %v80 = vand.u32 %v79, 127
    %81 = vset.pattern.permute.xlu0 0
    %82 = vperm.xlu0 %81, %v15
    %v83 = vpop.permute.xlu0 %82
    %84 = vset.pattern.permute.xlu0 0
    %85 = vperm.xlu0 %84, %v16
    %v86 = vpop.permute.xlu0 %85
    %87 = vset.pattern.permute.xlu0 0
    %88 = vperm.xlu0 %87, %v17
    %v89 = vpop.permute.xlu0 %88
    %90 = vset.pattern.permute.xlu0 0
    %91 = vperm.xlu0 %90, %v18
    %v92 = vpop.permute.xlu0 %91
    %93 = vset.pattern.permute.xlu0 0
    %94 = vperm.xlu0 %93, %v19
    %v95 = vpop.permute.xlu0 %94
    %96 = vset.pattern.permute.xlu0 0
    %97 = vperm.xlu0 %96, %v20
    %v98 = vpop.permute.xlu0 %97
    %99 = vset.pattern.permute.xlu0 0
    %100 = vperm.xlu0 %99, %v21
    %v101 = vpop.permute.xlu0 %100
    %102 = vset.pattern.permute.xlu0 0
    %103 = vperm.xlu0 %102, %v22
    %v104 = vpop.permute.xlu0 %103
    %105 = vset.pattern.permute.xlu0 0
    %106 = vperm.xlu0 %105, %v23
    %v107 = vpop.permute.xlu0 %106
    %108 = vset.pattern.permute.xlu0 0
    %109 = vperm.xlu0 %108, %v24
    %v110 = vpop.permute.xlu0 %109
    %111 = vset.pattern.permute.xlu0 0
    %112 = vperm.xlu0 %111, %v25
    %v113 = vpop.permute.xlu0 %112
    %114 = vset.pattern.permute.xlu0 0
    %115 = vperm.xlu0 %114, %v26
    %v116 = vpop.permute.xlu0 %115
    %117 = vset.pattern.permute.xlu0 0
    %118 = vperm.xlu0 %117, %v27
    %v119 = vpop.permute.xlu0 %118
    %120 = vset.pattern.permute.xlu0 0
    %121 = vperm.xlu0 %120, %v28
    %v122 = vpop.permute.xlu0 %121
    %123 = vset.pattern.permute.xlu0 0
    %124 = vperm.xlu0 %123, %v29
    %v125 = vpop.permute.xlu0 %124
    %126 = vset.pattern.permute.xlu0 0
    %127 = vperm.xlu0 %126, %v30
    %v128 = vpop.permute.xlu0 %127
    %129 = vset.pattern.permute.xlu0 0
    %130 = vperm.xlu0 %129, %v31
    %v131 = vpop.permute.xlu0 %130
    %132 = vset.pattern.permute.xlu0 0
    %133 = vperm.xlu0 %132, %v32
    %v134 = vpop.permute.xlu0 %133
    %135 = vset.pattern.permute.xlu0 0
    %136 = vperm.xlu0 %135, %v33
    %v137 = vpop.permute.xlu0 %136
    %138 = vset.pattern.permute.xlu0 0
    %139 = vperm.xlu0 %138, %v34
    %v140 = vpop.permute.xlu0 %139
    %141 = vset.pattern.permute.xlu0 0
    %142 = vperm.xlu0 %141, %v35
    %v143 = vpop.permute.xlu0 %142
    %144 = vset.pattern.permute.xlu0 0
    %145 = vperm.xlu0 %144, %v36
    %v146 = vpop.permute.xlu0 %145
    %147 = vset.pattern.permute.xlu0 0
    %148 = vperm.xlu0 %147, %v37
    %v149 = vpop.permute.xlu0 %148
    %150 = vset.pattern.permute.xlu0 0
    %151 = vperm.xlu0 %150, %v38
    %v152 = vpop.permute.xlu0 %151
    %153 = vset.pattern.permute.xlu0 0
    %154 = vperm.xlu0 %153, %v39
    %v155 = vpop.permute.xlu0 %154
    %156 = vset.pattern.permute.xlu0 0
    %157 = vperm.xlu0 %156, %v40
    %v158 = vpop.permute.xlu0 %157
    %159 = vset.pattern.permute.xlu0 0
    %160 = vperm.xlu0 %159, %v41
    %v161 = vpop.permute.xlu0 %160
    %162 = vset.pattern.permute.xlu0 0
    %163 = vperm.xlu0 %162, %v42
    %v164 = vpop.permute.xlu0 %163
    %165 = vset.pattern.permute.xlu0 0
    %166 = vperm.xlu0 %165, %v43
    %v167 = vpop.permute.xlu0 %166
    %168 = vset.pattern.permute.xlu0 0
    %169 = vperm.xlu0 %168, %v44
    %v170 = vpop.permute.xlu0 %169
    %171 = vset.pattern.permute.xlu0 0
    %172 = vperm.xlu0 %171, %v45
    %v173 = vpop.permute.xlu0 %172
    %174 = vset.pattern.permute.xlu0 0
    %175 = vperm.xlu0 %174, %v46
    %v176 = vpop.permute.xlu0 %175
    %177 = vset.pattern.permute.xlu0 0
    %178 = vperm.xlu0 %177, %v47
    %v179 = vpop.permute.xlu0 %178
    %180 = vset.pattern.permute.xlu0 0
    %181 = vperm.xlu0 %180, %v48
    %v182 = vpop.permute.xlu0 %181
    %183 = vset.pattern.permute.xlu0 0
    %184 = vperm.xlu0 %183, %v49
    %v185 = vpop.permute.xlu0 %184
    %186 = vset.pattern.permute.xlu0 0
    %187 = vperm.xlu0 %186, %v50
    %v188 = vpop.permute.xlu0 %187
    %189 = vset.pattern.permute.xlu0 0
    %190 = vperm.xlu0 %189, %v51
    %v191 = vpop.permute.xlu0 %190
    %192 = vset.pattern.permute.xlu0 0
    %193 = vperm.xlu0 %192, %v52
    %v194 = vpop.permute.xlu0 %193
    %195 = vset.pattern.permute.xlu0 0
    %196 = vperm.xlu0 %195, %v53
    %v197 = vpop.permute.xlu0 %196
    %198 = vset.pattern.permute.xlu0 0
    %199 = vperm.xlu0 %198, %v54
    %v200 = vpop.permute.xlu0 %199
    %201 = vset.pattern.permute.xlu0 0
    %202 = vperm.xlu0 %201, %v55
    %v203 = vpop.permute.xlu0 %202
    %204 = vset.pattern.permute.xlu0 0
    %205 = vperm.xlu0 %204, %v56
    %v206 = vpop.permute.xlu0 %205
    %207 = vset.pattern.permute.xlu0 0
    %208 = vperm.xlu0 %207, %v57
    %v209 = vpop.permute.xlu0 %208
    %210 = vset.pattern.permute.xlu0 0
    %211 = vperm.xlu0 %210, %v58
    %v212 = vpop.permute.xlu0 %211
    %213 = vset.pattern.permute.xlu0 0
    %214 = vperm.xlu0 %213, %v59
    %v215 = vpop.permute.xlu0 %214
    %216 = vset.pattern.permute.xlu0 0
    %217 = vperm.xlu0 %216, %v60
    %v218 = vpop.permute.xlu0 %217
    %219 = vset.pattern.permute.xlu0 0
    %220 = vperm.xlu0 %219, %v61
    %v221 = vpop.permute.xlu0 %220
    %222 = vset.pattern.permute.xlu0 0
    %223 = vperm.xlu0 %222, %v62
    %v224 = vpop.permute.xlu0 %223
    %225 = vset.pattern.permute.xlu0 0
    %226 = vperm.xlu0 %225, %v63
    %v227 = vpop.permute.xlu0 %226
    %228 = vset.pattern.permute.xlu0 0
    %229 = vperm.xlu0 %228, %v64
    %v230 = vpop.permute.xlu0 %229
    %231 = vset.pattern.permute.xlu0 0
    %232 = vperm.xlu0 %231, %v65
    %v233 = vpop.permute.xlu0 %232
    %234 = vset.pattern.permute.xlu0 0
    %235 = vperm.xlu0 %234, %v66
    %v236 = vpop.permute.xlu0 %235
    %237 = vset.pattern.permute.xlu0 0
    %238 = vperm.xlu0 %237, %v67
    %v239 = vpop.permute.xlu0 %238
    %240 = vset.pattern.permute.xlu0 0
    %241 = vperm.xlu0 %240, %v68
    %v242 = vpop.permute.xlu0 %241
    %243 = vset.pattern.permute.xlu0 0
    %244 = vperm.xlu0 %243, %v69
    %v245 = vpop.permute.xlu0 %244
    %246 = vset.pattern.permute.xlu0 0
    %247 = vperm.xlu0 %246, %v70
    %v248 = vpop.permute.xlu0 %247
    %249 = vset.pattern.permute.xlu0 0
    %250 = vperm.xlu0 %249, %v71
    %v251 = vpop.permute.xlu0 %250
    %252 = vset.pattern.permute.xlu0 0
    %253 = vperm.xlu0 %252, %v72
    %v254 = vpop.permute.xlu0 %253
    %255 = vset.pattern.permute.xlu0 0
    %256 = vperm.xlu0 %255, %v73
    %v257 = vpop.permute.xlu0 %256
    %258 = vset.pattern.permute.xlu0 0
    %259 = vperm.xlu0 %258, %v74
    %v260 = vpop.permute.xlu0 %259
    %261 = vset.pattern.permute.xlu0 0
    %262 = vperm.xlu0 %261, %v75
    %v263 = vpop.permute.xlu0 %262
    %264 = vset.pattern.permute.xlu0 0
    %265 = vperm.xlu0 %264, %v76
    %v266 = vpop.permute.xlu0 %265
    %267 = vset.pattern.permute.xlu0 0
    %268 = vperm.xlu0 %267, %v77
    %v269 = vpop.permute.xlu0 %268
    %270 = vset.pattern.permute.xlu0 0
    %271 = vperm.xlu0 %270, %v78
    %v272 = vpop.permute.xlu0 %271
    %vm273 = vcmp.eq.s32.totalorder %v80, %v83
    %vm274 = vcmp.eq.s32.totalorder %v80, %v86
    %vm275 = vcmp.eq.s32.totalorder %v80, %v89
    %vm276 = vcmp.eq.s32.totalorder %v80, %v92
    %vm277 = vcmp.eq.s32.totalorder %v80, %v95
    %vm278 = vcmp.eq.s32.totalorder %v80, %v98
    %vm279 = vcmp.eq.s32.totalorder %v80, %v101
    %vm280 = vcmp.eq.s32.totalorder %v80, %v104
    %vm281 = vcmp.eq.s32.totalorder %v80, %v107
    %vm282 = vcmp.eq.s32.totalorder %v80, %v110
    %vm283 = vcmp.eq.s32.totalorder %v80, %v113
    %vm284 = vcmp.eq.s32.totalorder %v80, %v116
    %vm285 = vcmp.eq.s32.totalorder %v80, %v119
    %vm286 = vcmp.eq.s32.totalorder %v80, %v122
    %vm287 = vcmp.eq.s32.totalorder %v80, %v125
    %vm288 = vcmp.eq.s32.totalorder %v80, %v128
    %vm289 = vcmp.eq.s32.totalorder %v80, %v131
    %vm290 = vcmp.eq.s32.totalorder %v80, %v134
    %vm291 = vcmp.eq.s32.totalorder %v80, %v137
    %vm292 = vcmp.eq.s32.totalorder %v80, %v140
    %vm293 = vcmp.eq.s32.totalorder %v80, %v143
    %vm294 = vcmp.eq.s32.totalorder %v80, %v146
    %vm295 = vcmp.eq.s32.totalorder %v80, %v149
    %vm296 = vcmp.eq.s32.totalorder %v80, %v152
    %vm297 = vcmp.eq.s32.totalorder %v80, %v155
    %vm298 = vcmp.eq.s32.totalorder %v80, %v158
    %vm299 = vcmp.eq.s32.totalorder %v80, %v161
    %vm300 = vcmp.eq.s32.totalorder %v80, %v164
    %vm301 = vcmp.eq.s32.totalorder %v80, %v167
    %vm302 = vcmp.eq.s32.totalorder %v80, %v170
    %vm303 = vcmp.eq.s32.totalorder %v80, %v173
    %vm304 = vcmp.eq.s32.totalorder %v80, %v176
    %vm305 = vcmp.eq.s32.totalorder %v80, %v179
    %vm306 = vcmp.eq.s32.totalorder %v80, %v182
    %vm307 = vcmp.eq.s32.totalorder %v80, %v185
    %vm308 = vcmp.eq.s32.totalorder %v80, %v188
    %vm309 = vcmp.eq.s32.totalorder %v80, %v191
    %vm310 = vcmp.eq.s32.totalorder %v80, %v194
    %vm311 = vcmp.eq.s32.totalorder %v80, %v197
    %vm312 = vcmp.eq.s32.totalorder %v80, %v200
    %vm313 = vcmp.eq.s32.totalorder %v80, %v203
    %vm314 = vcmp.eq.s32.totalorder %v80, %v206
    %vm315 = vcmp.eq.s32.totalorder %v80, %v209
    %vm316 = vcmp.eq.s32.totalorder %v80, %v212
    %vm317 = vcmp.eq.s32.totalorder %v80, %v215
    %vm318 = vcmp.eq.s32.totalorder %v80, %v218
    %vm319 = vcmp.eq.s32.totalorder %v80, %v221
    %vm320 = vcmp.eq.s32.totalorder %v80, %v224
    %vm321 = vcmp.eq.s32.totalorder %v80, %v227
    %vm322 = vcmp.eq.s32.totalorder %v80, %v230
    %vm323 = vcmp.eq.s32.totalorder %v80, %v233
    %vm324 = vcmp.eq.s32.totalorder %v80, %v236
    %vm325 = vcmp.eq.s32.totalorder %v80, %v239
    %vm326 = vcmp.eq.s32.totalorder %v80, %v242
    %vm327 = vcmp.eq.s32.totalorder %v80, %v245
    %vm328 = vcmp.eq.s32.totalorder %v80, %v248
    %vm329 = vcmp.eq.s32.totalorder %v80, %v251
    %vm330 = vcmp.eq.s32.totalorder %v80, %v254
    %vm331 = vcmp.eq.s32.totalorder %v80, %v257
    %vm332 = vcmp.eq.s32.totalorder %v80, %v260
    %vm333 = vcmp.eq.s32.totalorder %v80, %v263
    %vm334 = vcmp.eq.s32.totalorder %v80, %v266
    %vm335 = vcmp.eq.s32.totalorder %v80, %v269
    %vm336 = vcmp.eq.s32.totalorder %v80, %v272
    %v337 = vsel %vm273, 1, 0
    %v338 = vsel %vm274, 1, 0
    %v339 = vsel %vm275, 1, 0
    %v340 = vsel %vm276, 1, 0
    %v341 = vsel %vm277, 1, 0
    %v342 = vsel %vm278, 1, 0
    %v343 = vsel %vm279, 1, 0
    %v344 = vsel %vm280, 1, 0
    %v345 = vsel %vm281, 1, 0
    %v346 = vsel %vm282, 1, 0
    %v347 = vsel %vm283, 1, 0
    %v348 = vsel %vm284, 1, 0
    %v349 = vsel %vm285, 1, 0
    %v350 = vsel %vm286, 1, 0
    %v351 = vsel %vm287, 1, 0
    %v352 = vsel %vm288, 1, 0
    %v353 = vsel %vm289, 1, 0
    %v354 = vsel %vm290, 1, 0
    %v355 = vsel %vm291, 1, 0
    %v356 = vsel %vm292, 1, 0
    %v357 = vsel %vm293, 1, 0
    %v358 = vsel %vm294, 1, 0
    %v359 = vsel %vm295, 1, 0
    %v360 = vsel %vm296, 1, 0
    %v361 = vsel %vm297, 1, 0
    %v362 = vsel %vm298, 1, 0
    %v363 = vsel %vm299, 1, 0
    %v364 = vsel %vm300, 1, 0
    %v365 = vsel %vm301, 1, 0
    %v366 = vsel %vm302, 1, 0
    %v367 = vsel %vm303, 1, 0
    %v368 = vsel %vm304, 1, 0
    %v369 = vsel %vm305, 1, 0
    %v370 = vsel %vm306, 1, 0
    %v371 = vsel %vm307, 1, 0
    %v372 = vsel %vm308, 1, 0
    %v373 = vsel %vm309, 1, 0
    %v374 = vsel %vm310, 1, 0
    %v375 = vsel %vm311, 1, 0
    %v376 = vsel %vm312, 1, 0
    %v377 = vsel %vm313, 1, 0
    %v378 = vsel %vm314, 1, 0
    %v379 = vsel %vm315, 1, 0
    %v380 = vsel %vm316, 1, 0
    %v381 = vsel %vm317, 1, 0
    %v382 = vsel %vm318, 1, 0
    %v383 = vsel %vm319, 1, 0
    %v384 = vsel %vm320, 1, 0
    %v385 = vsel %vm321, 1, 0
    %v386 = vsel %vm322, 1, 0
    %v387 = vsel %vm323, 1, 0
    %v388 = vsel %vm324, 1, 0
    %v389 = vsel %vm325, 1, 0
    %v390 = vsel %vm326, 1, 0
    %v391 = vsel %vm327, 1, 0
    %v392 = vsel %vm328, 1, 0
    %v393 = vsel %vm329, 1, 0
    %v394 = vsel %vm330, 1, 0
    %v395 = vsel %vm331, 1, 0
    %v396 = vsel %vm332, 1, 0
    %v397 = vsel %vm333, 1, 0
    %v398 = vsel %vm334, 1, 0
    %v399 = vsel %vm335, 1, 0
    %v400 = vsel %vm336, 1, 0
    %v401 = vcvt.s32.f32 %v337
    %v402 = vcvt.s32.f32 %v338
    %v403 = vcvt.s32.f32 %v339
    %v404 = vcvt.s32.f32 %v340
    %v405 = vcvt.s32.f32 %v341
    %v406 = vcvt.s32.f32 %v342
    %v407 = vcvt.s32.f32 %v343
    %v408 = vcvt.s32.f32 %v344
    %v409 = vcvt.s32.f32 %v345
    %v410 = vcvt.s32.f32 %v346
    %v411 = vcvt.s32.f32 %v347
    %v412 = vcvt.s32.f32 %v348
    %v413 = vcvt.s32.f32 %v349
    %v414 = vcvt.s32.f32 %v350
    %v415 = vcvt.s32.f32 %v351
    %v416 = vcvt.s32.f32 %v352
    %v417 = vcvt.s32.f32 %v353
    %v418 = vcvt.s32.f32 %v354
    %v419 = vcvt.s32.f32 %v355
    %v420 = vcvt.s32.f32 %v356
    %v421 = vcvt.s32.f32 %v357
    %v422 = vcvt.s32.f32 %v358
    %v423 = vcvt.s32.f32 %v359
    %v424 = vcvt.s32.f32 %v360
    %v425 = vcvt.s32.f32 %v361
    %v426 = vcvt.s32.f32 %v362
    %v427 = vcvt.s32.f32 %v363
    %v428 = vcvt.s32.f32 %v364
    %v429 = vcvt.s32.f32 %v365
    %v430 = vcvt.s32.f32 %v366
    %v431 = vcvt.s32.f32 %v367
    %v432 = vcvt.s32.f32 %v368
    %v433 = vcvt.s32.f32 %v369
    %v434 = vcvt.s32.f32 %v370
    %v435 = vcvt.s32.f32 %v371
    %v436 = vcvt.s32.f32 %v372
    %v437 = vcvt.s32.f32 %v373
    %v438 = vcvt.s32.f32 %v374
    %v439 = vcvt.s32.f32 %v375
    %v440 = vcvt.s32.f32 %v376
    %v441 = vcvt.s32.f32 %v377
    %v442 = vcvt.s32.f32 %v378
    %v443 = vcvt.s32.f32 %v379
    %v444 = vcvt.s32.f32 %v380
    %v445 = vcvt.s32.f32 %v381
    %v446 = vcvt.s32.f32 %v382
    %v447 = vcvt.s32.f32 %v383
    %v448 = vcvt.s32.f32 %v384
    %v449 = vcvt.s32.f32 %v385
    %v450 = vcvt.s32.f32 %v386
    %v451 = vcvt.s32.f32 %v387
    %v452 = vcvt.s32.f32 %v388
    %v453 = vcvt.s32.f32 %v389
    %v454 = vcvt.s32.f32 %v390
    %v455 = vcvt.s32.f32 %v391
    %v456 = vcvt.s32.f32 %v392
    %v457 = vcvt.s32.f32 %v393
    %v458 = vcvt.s32.f32 %v394
    %v459 = vcvt.s32.f32 %v395
    %v460 = vcvt.s32.f32 %v396
    %v461 = vcvt.s32.f32 %v397
    %v462 = vcvt.s32.f32 %v398
    %v463 = vcvt.s32.f32 %v399
    %v464 = vcvt.s32.f32 %v400
    %465 = vset.pattern.permute.xlu0 1
    %466 = vperm.xlu0 %465, %v15
    %v467 = vpop.permute.xlu0 %466
    %468 = vset.pattern.permute.xlu0 1
    %469 = vperm.xlu0 %468, %v16
    %v470 = vpop.permute.xlu0 %469
    %471 = vset.pattern.permute.xlu0 1
    %472 = vperm.xlu0 %471, %v17
    %v473 = vpop.permute.xlu0 %472
    %474 = vset.pattern.permute.xlu0 1
    %475 = vperm.xlu0 %474, %v18
    %v476 = vpop.permute.xlu0 %475
    %477 = vset.pattern.permute.xlu0 1
    %478 = vperm.xlu0 %477, %v19
    %v479 = vpop.permute.xlu0 %478
    %480 = vset.pattern.permute.xlu0 1
    %481 = vperm.xlu0 %480, %v20
    %v482 = vpop.permute.xlu0 %481
    %483 = vset.pattern.permute.xlu0 1
    %484 = vperm.xlu0 %483, %v21
    %v485 = vpop.permute.xlu0 %484
    %486 = vset.pattern.permute.xlu0 1
    %487 = vperm.xlu0 %486, %v22
    %v488 = vpop.permute.xlu0 %487
    %489 = vset.pattern.permute.xlu0 1
    %490 = vperm.xlu0 %489, %v23
    %v491 = vpop.permute.xlu0 %490
    %492 = vset.pattern.permute.xlu0 1
    %493 = vperm.xlu0 %492, %v24
    %v494 = vpop.permute.xlu0 %493
    %495 = vset.pattern.permute.xlu0 1
    %496 = vperm.xlu0 %495, %v25
    %v497 = vpop.permute.xlu0 %496
    %498 = vset.pattern.permute.xlu0 1
    %499 = vperm.xlu0 %498, %v26
    %v500 = vpop.permute.xlu0 %499
    %501 = vset.pattern.permute.xlu0 1
    %502 = vperm.xlu0 %501, %v27
    %v503 = vpop.permute.xlu0 %502
    %504 = vset.pattern.permute.xlu0 1
    %505 = vperm.xlu0 %504, %v28
    %v506 = vpop.permute.xlu0 %505
    %507 = vset.pattern.permute.xlu0 1
    %508 = vperm.xlu0 %507, %v29
    %v509 = vpop.permute.xlu0 %508
    %510 = vset.pattern.permute.xlu0 1
    %511 = vperm.xlu0 %510, %v30
    %v512 = vpop.permute.xlu0 %511
    %513 = vset.pattern.permute.xlu0 1
    %514 = vperm.xlu0 %513, %v31
    %v515 = vpop.permute.xlu0 %514
    %516 = vset.pattern.permute.xlu0 1
    %517 = vperm.xlu0 %516, %v32
    %v518 = vpop.permute.xlu0 %517
    %519 = vset.pattern.permute.xlu0 1
    %520 = vperm.xlu0 %519, %v33
    %v521 = vpop.permute.xlu0 %520
    %522 = vset.pattern.permute.xlu0 1
    %523 = vperm.xlu0 %522, %v34
    %v524 = vpop.permute.xlu0 %523
    %525 = vset.pattern.permute.xlu0 1
    %526 = vperm.xlu0 %525, %v35
    %v527 = vpop.permute.xlu0 %526
    %528 = vset.pattern.permute.xlu0 1
    %529 = vperm.xlu0 %528, %v36
    %v530 = vpop.permute.xlu0 %529
    %531 = vset.pattern.permute.xlu0 1
    %532 = vperm.xlu0 %531, %v37
    %v533 = vpop.permute.xlu0 %532
    %534 = vset.pattern.permute.xlu0 1
    %535 = vperm.xlu0 %534, %v38
    %v536 = vpop.permute.xlu0 %535
    %537 = vset.pattern.permute.xlu0 1
    %538 = vperm.xlu0 %537, %v39
    %v539 = vpop.permute.xlu0 %538
    %540 = vset.pattern.permute.xlu0 1
    %541 = vperm.xlu0 %540, %v40
    %v542 = vpop.permute.xlu0 %541
    %543 = vset.pattern.permute.xlu0 1
    %544 = vperm.xlu0 %543, %v41
    %v545 = vpop.permute.xlu0 %544
    %546 = vset.pattern.permute.xlu0 1
    %547 = vperm.xlu0 %546, %v42
    %v548 = vpop.permute.xlu0 %547
    %549 = vset.pattern.permute.xlu0 1
    %550 = vperm.xlu0 %549, %v43
    %v551 = vpop.permute.xlu0 %550
    %552 = vset.pattern.permute.xlu0 1
    %553 = vperm.xlu0 %552, %v44
    %v554 = vpop.permute.xlu0 %553
    %555 = vset.pattern.permute.xlu0 1
    %556 = vperm.xlu0 %555, %v45
    %v557 = vpop.permute.xlu0 %556
    %558 = vset.pattern.permute.xlu0 1
    %559 = vperm.xlu0 %558, %v46
    %v560 = vpop.permute.xlu0 %559
    %561 = vset.pattern.permute.xlu0 1
    %562 = vperm.xlu0 %561, %v47
    %v563 = vpop.permute.xlu0 %562
    %564 = vset.pattern.permute.xlu0 1
    %565 = vperm.xlu0 %564, %v48
    %v566 = vpop.permute.xlu0 %565
    %567 = vset.pattern.permute.xlu0 1
    %568 = vperm.xlu0 %567, %v49
    %v569 = vpop.permute.xlu0 %568
    %570 = vset.pattern.permute.xlu0 1
    %571 = vperm.xlu0 %570, %v50
    %v572 = vpop.permute.xlu0 %571
    %573 = vset.pattern.permute.xlu0 1
    %574 = vperm.xlu0 %573, %v51
    %v575 = vpop.permute.xlu0 %574
    %576 = vset.pattern.permute.xlu0 1
    %577 = vperm.xlu0 %576, %v52
    %v578 = vpop.permute.xlu0 %577
    %579 = vset.pattern.permute.xlu0 1
    %580 = vperm.xlu0 %579, %v53
    %v581 = vpop.permute.xlu0 %580
    %582 = vset.pattern.permute.xlu0 1
    %583 = vperm.xlu0 %582, %v54
    %v584 = vpop.permute.xlu0 %583
    %585 = vset.pattern.permute.xlu0 1
    %586 = vperm.xlu0 %585, %v55
    %v587 = vpop.permute.xlu0 %586
    %588 = vset.pattern.permute.xlu0 1
    %589 = vperm.xlu0 %588, %v56
    %v590 = vpop.permute.xlu0 %589
    %591 = vset.pattern.permute.xlu0 1
    %592 = vperm.xlu0 %591, %v57
    %v593 = vpop.permute.xlu0 %592
    %594 = vset.pattern.permute.xlu0 1
    %595 = vperm.xlu0 %594, %v58
    %v596 = vpop.permute.xlu0 %595
    %597 = vset.pattern.permute.xlu0 1
    %598 = vperm.xlu0 %597, %v59
    %v599 = vpop.permute.xlu0 %598
    %600 = vset.pattern.permute.xlu0 1
    %601 = vperm.xlu0 %600, %v60
    %v602 = vpop.permute.xlu0 %601
    %603 = vset.pattern.permute.xlu0 1
    %604 = vperm.xlu0 %603, %v61
    %v605 = vpop.permute.xlu0 %604
    %606 = vset.pattern.permute.xlu0 1
    %607 = vperm.xlu0 %606, %v62
    %v608 = vpop.permute.xlu0 %607
    %609 = vset.pattern.permute.xlu0 1
    %610 = vperm.xlu0 %609, %v63
    %v611 = vpop.permute.xlu0 %610
    %612 = vset.pattern.permute.xlu0 1
    %613 = vperm.xlu0 %612, %v64
    %v614 = vpop.permute.xlu0 %613
    %615 = vset.pattern.permute.xlu0 1
    %616 = vperm.xlu0 %615, %v65
    %v617 = vpop.permute.xlu0 %616
    %618 = vset.pattern.permute.xlu0 1
    %619 = vperm.xlu0 %618, %v66
    %v620 = vpop.permute.xlu0 %619
    %621 = vset.pattern.permute.xlu0 1
    %622 = vperm.xlu0 %621, %v67
    %v623 = vpop.permute.xlu0 %622
    %624 = vset.pattern.permute.xlu0 1
    %625 = vperm.xlu0 %624, %v68
    %v626 = vpop.permute.xlu0 %625
    %627 = vset.pattern.permute.xlu0 1
    %628 = vperm.xlu0 %627, %v69
    %v629 = vpop.permute.xlu0 %628
    %630 = vset.pattern.permute.xlu0 1
    %631 = vperm.xlu0 %630, %v70
    %v632 = vpop.permute.xlu0 %631
    %633 = vset.pattern.permute.xlu0 1
    %634 = vperm.xlu0 %633, %v71
    %v635 = vpop.permute.xlu0 %634
    %636 = vset.pattern.permute.xlu0 1
    %637 = vperm.xlu0 %636, %v72
    %v638 = vpop.permute.xlu0 %637
    %639 = vset.pattern.permute.xlu0 1
    %640 = vperm.xlu0 %639, %v73
    %v641 = vpop.permute.xlu0 %640
    %642 = vset.pattern.permute.xlu0 1
    %643 = vperm.xlu0 %642, %v74
    %v644 = vpop.permute.xlu0 %643
    %645 = vset.pattern.permute.xlu0 1
    %646 = vperm.xlu0 %645, %v75
    %v647 = vpop.permute.xlu0 %646
    %648 = vset.pattern.permute.xlu0 1
    %649 = vperm.xlu0 %648, %v76
    %v650 = vpop.permute.xlu0 %649
    %651 = vset.pattern.permute.xlu0 1
    %652 = vperm.xlu0 %651, %v77
    %v653 = vpop.permute.xlu0 %652
    %654 = vset.pattern.permute.xlu0 1
    %655 = vperm.xlu0 %654, %v78
    %v656 = vpop.permute.xlu0 %655
    %vm657 = vcmp.eq.s32.totalorder %v80, %v467
    %vm658 = vcmp.eq.s32.totalorder %v80, %v470
    %vm659 = vcmp.eq.s32.totalorder %v80, %v473
    %vm660 = vcmp.eq.s32.totalorder %v80, %v476
    %vm661 = vcmp.eq.s32.totalorder %v80, %v479
    %vm662 = vcmp.eq.s32.totalorder %v80, %v482
    %vm663 = vcmp.eq.s32.totalorder %v80, %v485
    %vm664 = vcmp.eq.s32.totalorder %v80, %v488
    %vm665 = vcmp.eq.s32.totalorder %v80, %v491
    %vm666 = vcmp.eq.s32.totalorder %v80, %v494
    %vm667 = vcmp.eq.s32.totalorder %v80, %v497
    %vm668 = vcmp.eq.s32.totalorder %v80, %v500
    %vm669 = vcmp.eq.s32.totalorder %v80, %v503
    %vm670 = vcmp.eq.s32.totalorder %v80, %v506
    %vm671 = vcmp.eq.s32.totalorder %v80, %v509
    %vm672 = vcmp.eq.s32.totalorder %v80, %v512
    %vm673 = vcmp.eq.s32.totalorder %v80, %v515
    %vm674 = vcmp.eq.s32.totalorder %v80, %v518
    %vm675 = vcmp.eq.s32.totalorder %v80, %v521
    %vm676 = vcmp.eq.s32.totalorder %v80, %v524
    %vm677 = vcmp.eq.s32.totalorder %v80, %v527
    %vm678 = vcmp.eq.s32.totalorder %v80, %v530
    %vm679 = vcmp.eq.s32.totalorder %v80, %v533
    %vm680 = vcmp.eq.s32.totalorder %v80, %v536
    %vm681 = vcmp.eq.s32.totalorder %v80, %v539
    %vm682 = vcmp.eq.s32.totalorder %v80, %v542
    %vm683 = vcmp.eq.s32.totalorder %v80, %v545
    %vm684 = vcmp.eq.s32.totalorder %v80, %v548
    %vm685 = vcmp.eq.s32.totalorder %v80, %v551
    %vm686 = vcmp.eq.s32.totalorder %v80, %v554
    %vm687 = vcmp.eq.s32.totalorder %v80, %v557
    %vm688 = vcmp.eq.s32.totalorder %v80, %v560
    %vm689 = vcmp.eq.s32.totalorder %v80, %v563
    %vm690 = vcmp.eq.s32.totalorder %v80, %v566
    %vm691 = vcmp.eq.s32.totalorder %v80, %v569
    %vm692 = vcmp.eq.s32.totalorder %v80, %v572
    %vm693 = vcmp.eq.s32.totalorder %v80, %v575
    %vm694 = vcmp.eq.s32.totalorder %v80, %v578
    %vm695 = vcmp.eq.s32.totalorder %v80, %v581
    %vm696 = vcmp.eq.s32.totalorder %v80, %v584
    %vm697 = vcmp.eq.s32.totalorder %v80, %v587
    %vm698 = vcmp.eq.s32.totalorder %v80, %v590
    %vm699 = vcmp.eq.s32.totalorder %v80, %v593
    %vm700 = vcmp.eq.s32.totalorder %v80, %v596
    %vm701 = vcmp.eq.s32.totalorder %v80, %v599
    %vm702 = vcmp.eq.s32.totalorder %v80, %v602
    %vm703 = vcmp.eq.s32.totalorder %v80, %v605
    %vm704 = vcmp.eq.s32.totalorder %v80, %v608
    %vm705 = vcmp.eq.s32.totalorder %v80, %v611
    %vm706 = vcmp.eq.s32.totalorder %v80, %v614
    %vm707 = vcmp.eq.s32.totalorder %v80, %v617
    %vm708 = vcmp.eq.s32.totalorder %v80, %v620
    %vm709 = vcmp.eq.s32.totalorder %v80, %v623
    %vm710 = vcmp.eq.s32.totalorder %v80, %v626
    %vm711 = vcmp.eq.s32.totalorder %v80, %v629
    %vm712 = vcmp.eq.s32.totalorder %v80, %v632
    %vm713 = vcmp.eq.s32.totalorder %v80, %v635
    %vm714 = vcmp.eq.s32.totalorder %v80, %v638
    %vm715 = vcmp.eq.s32.totalorder %v80, %v641
    %vm716 = vcmp.eq.s32.totalorder %v80, %v644
    %vm717 = vcmp.eq.s32.totalorder %v80, %v647
    %vm718 = vcmp.eq.s32.totalorder %v80, %v650
    %vm719 = vcmp.eq.s32.totalorder %v80, %v653
    %vm720 = vcmp.eq.s32.totalorder %v80, %v656
    %v721 = vsel %vm657, 1, 0
    %v722 = vsel %vm658, 1, 0
    %v723 = vsel %vm659, 1, 0
    %v724 = vsel %vm660, 1, 0
    %v725 = vsel %vm661, 1, 0
    %v726 = vsel %vm662, 1, 0
    %v727 = vsel %vm663, 1, 0
    %v728 = vsel %vm664, 1, 0
    %v729 = vsel %vm665, 1, 0
    %v730 = vsel %vm666, 1, 0
    %v731 = vsel %vm667, 1, 0
    %v732 = vsel %vm668, 1, 0
    %v733 = vsel %vm669, 1, 0
    %v734 = vsel %vm670, 1, 0
    %v735 = vsel %vm671, 1, 0
    %v736 = vsel %vm672, 1, 0
    %v737 = vsel %vm673, 1, 0
    %v738 = vsel %vm674, 1, 0
    %v739 = vsel %vm675, 1, 0
    %v740 = vsel %vm676, 1, 0
    %v741 = vsel %vm677, 1, 0
    %v742 = vsel %vm678, 1, 0
    %v743 = vsel %vm679, 1, 0
    %v744 = vsel %vm680, 1, 0
    %v745 = vsel %vm681, 1, 0
    %v746 = vsel %vm682, 1, 0
    %v747 = vsel %vm683, 1, 0
    %v748 = vsel %vm684, 1, 0
    %v749 = vsel %vm685, 1, 0
    %v750 = vsel %vm686, 1, 0
    %v751 = vsel %vm687, 1, 0
    %v752 = vsel %vm688, 1, 0
    %v753 = vsel %vm689, 1, 0
    %v754 = vsel %vm690, 1, 0
    %v755 = vsel %vm691, 1, 0
    %v756 = vsel %vm692, 1, 0
    %v757 = vsel %vm693, 1, 0
    %v758 = vsel %vm694, 1, 0
    %v759 = vsel %vm695, 1, 0
    %v760 = vsel %vm696, 1, 0
    %v761 = vsel %vm697, 1, 0
    %v762 = vsel %vm698, 1, 0
    %v763 = vsel %vm699, 1, 0
    %v764 = vsel %vm700, 1, 0
    %v765 = vsel %vm701, 1, 0
    %v766 = vsel %vm702, 1, 0
    %v767 = vsel %vm703, 1, 0
    %v768 = vsel %vm704, 1, 0
    %v769 = vsel %vm705, 1, 0
    %v770 = vsel %vm706, 1, 0
    %v771 = vsel %vm707, 1, 0
    %v772 = vsel %vm708, 1, 0
    %v773 = vsel %vm709, 1, 0
    %v774 = vsel %vm710, 1, 0
    %v775 = vsel %vm711, 1, 0
    %v776 = vsel %vm712, 1, 0
    %v777 = vsel %vm713, 1, 0
    %v778 = vsel %vm714, 1, 0
    %v779 = vsel %vm715, 1, 0
    %v780 = vsel %vm716, 1, 0
    %v781 = vsel %vm717, 1, 0
    %v782 = vsel %vm718, 1, 0
    %v783 = vsel %vm719, 1, 0
    %v784 = vsel %vm720, 1, 0
    %v785 = vcvt.s32.f32 %v721
    %v786 = vcvt.s32.f32 %v722
    %v787 = vcvt.s32.f32 %v723
    %v788 = vcvt.s32.f32 %v724
    %v789 = vcvt.s32.f32 %v725
    %v790 = vcvt.s32.f32 %v726
    %v791 = vcvt.s32.f32 %v727
    %v792 = vcvt.s32.f32 %v728
    %v793 = vcvt.s32.f32 %v729
    %v794 = vcvt.s32.f32 %v730
    %v795 = vcvt.s32.f32 %v731
    %v796 = vcvt.s32.f32 %v732
    %v797 = vcvt.s32.f32 %v733
    %v798 = vcvt.s32.f32 %v734
    %v799 = vcvt.s32.f32 %v735
    %v800 = vcvt.s32.f32 %v736
    %v801 = vcvt.s32.f32 %v737
    %v802 = vcvt.s32.f32 %v738
    %v803 = vcvt.s32.f32 %v739
    %v804 = vcvt.s32.f32 %v740
    %v805 = vcvt.s32.f32 %v741
    %v806 = vcvt.s32.f32 %v742
    %v807 = vcvt.s32.f32 %v743
    %v808 = vcvt.s32.f32 %v744
    %v809 = vcvt.s32.f32 %v745
    %v810 = vcvt.s32.f32 %v746
    %v811 = vcvt.s32.f32 %v747
    %v812 = vcvt.s32.f32 %v748
    %v813 = vcvt.s32.f32 %v749
    %v814 = vcvt.s32.f32 %v750
    %v815 = vcvt.s32.f32 %v751
    %v816 = vcvt.s32.f32 %v752
    %v817 = vcvt.s32.f32 %v753
    %v818 = vcvt.s32.f32 %v754
    %v819 = vcvt.s32.f32 %v755
    %v820 = vcvt.s32.f32 %v756
    %v821 = vcvt.s32.f32 %v757
    %v822 = vcvt.s32.f32 %v758
    %v823 = vcvt.s32.f32 %v759
    %v824 = vcvt.s32.f32 %v760
    %v825 = vcvt.s32.f32 %v761
    %v826 = vcvt.s32.f32 %v762
    %v827 = vcvt.s32.f32 %v763
    %v828 = vcvt.s32.f32 %v764
    %v829 = vcvt.s32.f32 %v765
    %v830 = vcvt.s32.f32 %v766
    %v831 = vcvt.s32.f32 %v767
    %v832 = vcvt.s32.f32 %v768
    %v833 = vcvt.s32.f32 %v769
    %v834 = vcvt.s32.f32 %v770
    %v835 = vcvt.s32.f32 %v771
    %v836 = vcvt.s32.f32 %v772
    %v837 = vcvt.s32.f32 %v773
    %v838 = vcvt.s32.f32 %v774
    %v839 = vcvt.s32.f32 %v775
    %v840 = vcvt.s32.f32 %v776
    %v841 = vcvt.s32.f32 %v777
    %v842 = vcvt.s32.f32 %v778
    %v843 = vcvt.s32.f32 %v779
    %v844 = vcvt.s32.f32 %v780
    %v845 = vcvt.s32.f32 %v781
    %v846 = vcvt.s32.f32 %v782
    %v847 = vcvt.s32.f32 %v783
    %v848 = vcvt.s32.f32 %v784
    %v849 = vsub.f32 %v401, %v785
    %v850 = vsub.f32 %v402, %v786
    %v851 = vsub.f32 %v403, %v787
    %v852 = vsub.f32 %v404, %v788
    %v853 = vsub.f32 %v405, %v789
    %v854 = vsub.f32 %v406, %v790
    %v855 = vsub.f32 %v407, %v791
    %v856 = vsub.f32 %v408, %v792
    %v857 = vsub.f32 %v409, %v793
    %v858 = vsub.f32 %v410, %v794
    %v859 = vsub.f32 %v411, %v795
    %v860 = vsub.f32 %v412, %v796
    %v861 = vsub.f32 %v413, %v797
    %v862 = vsub.f32 %v414, %v798
    %v863 = vsub.f32 %v415, %v799
    %v864 = vsub.f32 %v416, %v800
    %v865 = vsub.f32 %v417, %v801
    %v866 = vsub.f32 %v418, %v802
    %v867 = vsub.f32 %v419, %v803
    %v868 = vsub.f32 %v420, %v804
    %v869 = vsub.f32 %v421, %v805
    %v870 = vsub.f32 %v422, %v806
    %v871 = vsub.f32 %v423, %v807
    %v872 = vsub.f32 %v424, %v808
    %v873 = vsub.f32 %v425, %v809
    %v874 = vsub.f32 %v426, %v810
    %v875 = vsub.f32 %v427, %v811
    %v876 = vsub.f32 %v428, %v812
    %v877 = vsub.f32 %v429, %v813
    %v878 = vsub.f32 %v430, %v814
    %v879 = vsub.f32 %v431, %v815
    %v880 = vsub.f32 %v432, %v816
    %v881 = vsub.f32 %v433, %v817
    %v882 = vsub.f32 %v434, %v818
    %v883 = vsub.f32 %v435, %v819
    %v884 = vsub.f32 %v436, %v820
    %v885 = vsub.f32 %v437, %v821
    %v886 = vsub.f32 %v438, %v822
    %v887 = vsub.f32 %v439, %v823
    %v888 = vsub.f32 %v440, %v824
    %v889 = vsub.f32 %v441, %v825
    %v890 = vsub.f32 %v442, %v826
    %v891 = vsub.f32 %v443, %v827
    %v892 = vsub.f32 %v444, %v828
    %v893 = vsub.f32 %v445, %v829
    %v894 = vsub.f32 %v446, %v830
    %v895 = vsub.f32 %v447, %v831
    %v896 = vsub.f32 %v448, %v832
    %v897 = vsub.f32 %v449, %v833
    %v898 = vsub.f32 %v450, %v834
    %v899 = vsub.f32 %v451, %v835
    %v900 = vsub.f32 %v452, %v836
    %v901 = vsub.f32 %v453, %v837
    %v902 = vsub.f32 %v454, %v838
    %v903 = vsub.f32 %v455, %v839
    %v904 = vsub.f32 %v456, %v840
    %v905 = vsub.f32 %v457, %v841
    %v906 = vsub.f32 %v458, %v842
    %v907 = vsub.f32 %v459, %v843
    %v908 = vsub.f32 %v460, %v844
    %v909 = vsub.f32 %v461, %v845
    %v910 = vsub.f32 %v462, %v846
    %v911 = vsub.f32 %v463, %v847
    %v912 = vsub.f32 %v464, %v848
    %913 = vset.pattern.permute.xlu0 2
    %914 = vperm.xlu0 %913, %v15
    %v915 = vpop.permute.xlu0 %914
    %916 = vset.pattern.permute.xlu0 2
    %917 = vperm.xlu0 %916, %v16
    %v918 = vpop.permute.xlu0 %917
    %919 = vset.pattern.permute.xlu0 2
    %920 = vperm.xlu0 %919, %v17
    %v921 = vpop.permute.xlu0 %920
    %922 = vset.pattern.permute.xlu0 2
    %923 = vperm.xlu0 %922, %v18
    %v924 = vpop.permute.xlu0 %923
    %925 = vset.pattern.permute.xlu0 2
    %926 = vperm.xlu0 %925, %v19
    %v927 = vpop.permute.xlu0 %926
    %928 = vset.pattern.permute.xlu0 2
    %929 = vperm.xlu0 %928, %v20
    %v930 = vpop.permute.xlu0 %929
    %931 = vset.pattern.permute.xlu0 2
    %932 = vperm.xlu0 %931, %v21
    %v933 = vpop.permute.xlu0 %932
    %934 = vset.pattern.permute.xlu0 2
    %935 = vperm.xlu0 %934, %v22
    %v936 = vpop.permute.xlu0 %935
    %937 = vset.pattern.permute.xlu0 2
    %938 = vperm.xlu0 %937, %v23
    %v939 = vpop.permute.xlu0 %938
    %940 = vset.pattern.permute.xlu0 2
    %941 = vperm.xlu0 %940, %v24
    %v942 = vpop.permute.xlu0 %941
    %943 = vset.pattern.permute.xlu0 2
    %944 = vperm.xlu0 %943, %v25
    %v945 = vpop.permute.xlu0 %944
    %946 = vset.pattern.permute.xlu0 2
    %947 = vperm.xlu0 %946, %v26
    %v948 = vpop.permute.xlu0 %947
    %949 = vset.pattern.permute.xlu0 2
    %950 = vperm.xlu0 %949, %v27
    %v951 = vpop.permute.xlu0 %950
    %952 = vset.pattern.permute.xlu0 2
    %953 = vperm.xlu0 %952, %v28
    %v954 = vpop.permute.xlu0 %953
    %955 = vset.pattern.permute.xlu0 2
    %956 = vperm.xlu0 %955, %v29
    %v957 = vpop.permute.xlu0 %956
    %958 = vset.pattern.permute.xlu0 2
    %959 = vperm.xlu0 %958, %v30
    %v960 = vpop.permute.xlu0 %959
    %961 = vset.pattern.permute.xlu0 2
    %962 = vperm.xlu0 %961, %v31
    %v963 = vpop.permute.xlu0 %962
    %964 = vset.pattern.permute.xlu0 2
    %965 = vperm.xlu0 %964, %v32
    %v966 = vpop.permute.xlu0 %965
    %967 = vset.pattern.permute.xlu0 2
    %968 = vperm.xlu0 %967, %v33
    %v969 = vpop.permute.xlu0 %968
    %970 = vset.pattern.permute.xlu0 2
    %971 = vperm.xlu0 %970, %v34
    %v972 = vpop.permute.xlu0 %971
    %973 = vset.pattern.permute.xlu0 2
    %974 = vperm.xlu0 %973, %v35
    %v975 = vpop.permute.xlu0 %974
    %976 = vset.pattern.permute.xlu0 2
    %977 = vperm.xlu0 %976, %v36
    %v978 = vpop.permute.xlu0 %977
    %979 = vset.pattern.permute.xlu0 2
    %980 = vperm.xlu0 %979, %v37
    %v981 = vpop.permute.xlu0 %980
    %982 = vset.pattern.permute.xlu0 2
    %983 = vperm.xlu0 %982, %v38
    %v984 = vpop.permute.xlu0 %983
    %985 = vset.pattern.permute.xlu0 2
    %986 = vperm.xlu0 %985, %v39
    %v987 = vpop.permute.xlu0 %986
    %988 = vset.pattern.permute.xlu0 2
    %989 = vperm.xlu0 %988, %v40
    %v990 = vpop.permute.xlu0 %989
    %991 = vset.pattern.permute.xlu0 2
    %992 = vperm.xlu0 %991, %v41
    %v993 = vpop.permute.xlu0 %992
    %994 = vset.pattern.permute.xlu0 2
    %995 = vperm.xlu0 %994, %v42
    %v996 = vpop.permute.xlu0 %995
    %997 = vset.pattern.permute.xlu0 2
    %998 = vperm.xlu0 %997, %v43
    %v999 = vpop.permute.xlu0 %998
    %1000 = vset.pattern.permute.xlu0 2
    %1001 = vperm.xlu0 %1000, %v44
    %v1002 = vpop.permute.xlu0 %1001
    %1003 = vset.pattern.permute.xlu0 2
    %1004 = vperm.xlu0 %1003, %v45
    %v1005 = vpop.permute.xlu0 %1004
    %1006 = vset.pattern.permute.xlu0 2
    %1007 = vperm.xlu0 %1006, %v46
    %v1008 = vpop.permute.xlu0 %1007
    %1009 = vset.pattern.permute.xlu0 2
    %1010 = vperm.xlu0 %1009, %v47
    %v1011 = vpop.permute.xlu0 %1010
    %1012 = vset.pattern.permute.xlu0 2
    %1013 = vperm.xlu0 %1012, %v48
    %v1014 = vpop.permute.xlu0 %1013
    %1015 = vset.pattern.permute.xlu0 2
    %1016 = vperm.xlu0 %1015, %v49
    %v1017 = vpop.permute.xlu0 %1016
    %1018 = vset.pattern.permute.xlu0 2
    %1019 = vperm.xlu0 %1018, %v50
    %v1020 = vpop.permute.xlu0 %1019
    %1021 = vset.pattern.permute.xlu0 2
    %1022 = vperm.xlu0 %1021, %v51
    %v1023 = vpop.permute.xlu0 %1022
    %1024 = vset.pattern.permute.xlu0 2
    %1025 = vperm.xlu0 %1024, %v52
    %v1026 = vpop.permute.xlu0 %1025
    %1027 = vset.pattern.permute.xlu0 2
    %1028 = vperm.xlu0 %1027, %v53
    %v1029 = vpop.permute.xlu0 %1028
    %1030 = vset.pattern.permute.xlu0 2
    %1031 = vperm.xlu0 %1030, %v54
    %v1032 = vpop.permute.xlu0 %1031
    %1033 = vset.pattern.permute.xlu0 2
    %1034 = vperm.xlu0 %1033, %v55
    %v1035 = vpop.permute.xlu0 %1034
    %1036 = vset.pattern.permute.xlu0 2
    %1037 = vperm.xlu0 %1036, %v56
    %v1038 = vpop.permute.xlu0 %1037
    %1039 = vset.pattern.permute.xlu0 2
    %1040 = vperm.xlu0 %1039, %v57
    %v1041 = vpop.permute.xlu0 %1040
    %1042 = vset.pattern.permute.xlu0 2
    %1043 = vperm.xlu0 %1042, %v58
    %v1044 = vpop.permute.xlu0 %1043
    %1045 = vset.pattern.permute.xlu0 2
    %1046 = vperm.xlu0 %1045, %v59
    %v1047 = vpop.permute.xlu0 %1046
    %1048 = vset.pattern.permute.xlu0 2
    %1049 = vperm.xlu0 %1048, %v60
    %v1050 = vpop.permute.xlu0 %1049
    %1051 = vset.pattern.permute.xlu0 2
    %1052 = vperm.xlu0 %1051, %v61
    %v1053 = vpop.permute.xlu0 %1052
    %1054 = vset.pattern.permute.xlu0 2
    %1055 = vperm.xlu0 %1054, %v62
    %v1056 = vpop.permute.xlu0 %1055
    %1057 = vset.pattern.permute.xlu0 2
    %1058 = vperm.xlu0 %1057, %v63
    %v1059 = vpop.permute.xlu0 %1058
    %1060 = vset.pattern.permute.xlu0 2
    %1061 = vperm.xlu0 %1060, %v64
    %v1062 = vpop.permute.xlu0 %1061
    %1063 = vset.pattern.permute.xlu0 2
    %1064 = vperm.xlu0 %1063, %v65
    %v1065 = vpop.permute.xlu0 %1064
    %1066 = vset.pattern.permute.xlu0 2
    %1067 = vperm.xlu0 %1066, %v66
    %v1068 = vpop.permute.xlu0 %1067
    %1069 = vset.pattern.permute.xlu0 2
    %1070 = vperm.xlu0 %1069, %v67
    %v1071 = vpop.permute.xlu0 %1070
    %1072 = vset.pattern.permute.xlu0 2
    %1073 = vperm.xlu0 %1072, %v68
    %v1074 = vpop.permute.xlu0 %1073
    %1075 = vset.pattern.permute.xlu0 2
    %1076 = vperm.xlu0 %1075, %v69
    %v1077 = vpop.permute.xlu0 %1076
    %1078 = vset.pattern.permute.xlu0 2
    %1079 = vperm.xlu0 %1078, %v70
    %v1080 = vpop.permute.xlu0 %1079
    %1081 = vset.pattern.permute.xlu0 2
    %1082 = vperm.xlu0 %1081, %v71
    %v1083 = vpop.permute.xlu0 %1082
    %1084 = vset.pattern.permute.xlu0 2
    %1085 = vperm.xlu0 %1084, %v72
    %v1086 = vpop.permute.xlu0 %1085
    %1087 = vset.pattern.permute.xlu0 2
    %1088 = vperm.xlu0 %1087, %v73
    %v1089 = vpop.permute.xlu0 %1088
    %1090 = vset.pattern.permute.xlu0 2
    %1091 = vperm.xlu0 %1090, %v74
    %v1092 = vpop.permute.xlu0 %1091
    %1093 = vset.pattern.permute.xlu0 2
    %1094 = vperm.xlu0 %1093, %v75
    %v1095 = vpop.permute.xlu0 %1094
    %1096 = vset.pattern.permute.xlu0 2
    %1097 = vperm.xlu0 %1096, %v76
    %v1098 = vpop.permute.xlu0 %1097
    %1099 = vset.pattern.permute.xlu0 2
    %1100 = vperm.xlu0 %1099, %v77
    %v1101 = vpop.permute.xlu0 %1100
    %1102 = vset.pattern.permute.xlu0 2
    %1103 = vperm.xlu0 %1102, %v78
    %v1104 = vpop.permute.xlu0 %1103
    %vm1105 = vcmp.eq.s32.totalorder %v80, %v915
    %vm1106 = vcmp.eq.s32.totalorder %v80, %v918
    %vm1107 = vcmp.eq.s32.totalorder %v80, %v921
    %vm1108 = vcmp.eq.s32.totalorder %v80, %v924
    %vm1109 = vcmp.eq.s32.totalorder %v80, %v927
    %vm1110 = vcmp.eq.s32.totalorder %v80, %v930
    %vm1111 = vcmp.eq.s32.totalorder %v80, %v933
    %vm1112 = vcmp.eq.s32.totalorder %v80, %v936
    %vm1113 = vcmp.eq.s32.totalorder %v80, %v939
    %vm1114 = vcmp.eq.s32.totalorder %v80, %v942
    %vm1115 = vcmp.eq.s32.totalorder %v80, %v945
    %vm1116 = vcmp.eq.s32.totalorder %v80, %v948
    %vm1117 = vcmp.eq.s32.totalorder %v80, %v951
    %vm1118 = vcmp.eq.s32.totalorder %v80, %v954
    %vm1119 = vcmp.eq.s32.totalorder %v80, %v957
    %vm1120 = vcmp.eq.s32.totalorder %v80, %v960
    %vm1121 = vcmp.eq.s32.totalorder %v80, %v963
    %vm1122 = vcmp.eq.s32.totalorder %v80, %v966
    %vm1123 = vcmp.eq.s32.totalorder %v80, %v969
    %vm1124 = vcmp.eq.s32.totalorder %v80, %v972
    %vm1125 = vcmp.eq.s32.totalorder %v80, %v975
    %vm1126 = vcmp.eq.s32.totalorder %v80, %v978
    %vm1127 = vcmp.eq.s32.totalorder %v80, %v981
    %vm1128 = vcmp.eq.s32.totalorder %v80, %v984
    %vm1129 = vcmp.eq.s32.totalorder %v80, %v987
    %vm1130 = vcmp.eq.s32.totalorder %v80, %v990
    %vm1131 = vcmp.eq.s32.totalorder %v80, %v993
    %vm1132 = vcmp.eq.s32.totalorder %v80, %v996
    %vm1133 = vcmp.eq.s32.totalorder %v80, %v999
    %vm1134 = vcmp.eq.s32.totalorder %v80, %v1002
    %vm1135 = vcmp.eq.s32.totalorder %v80, %v1005
    %vm1136 = vcmp.eq.s32.totalorder %v80, %v1008
    %vm1137 = vcmp.eq.s32.totalorder %v80, %v1011
    %vm1138 = vcmp.eq.s32.totalorder %v80, %v1014
    %vm1139 = vcmp.eq.s32.totalorder %v80, %v1017
    %vm1140 = vcmp.eq.s32.totalorder %v80, %v1020
    %vm1141 = vcmp.eq.s32.totalorder %v80, %v1023
    %vm1142 = vcmp.eq.s32.totalorder %v80, %v1026
    %vm1143 = vcmp.eq.s32.totalorder %v80, %v1029
    %vm1144 = vcmp.eq.s32.totalorder %v80, %v1032
    %vm1145 = vcmp.eq.s32.totalorder %v80, %v1035
    %vm1146 = vcmp.eq.s32.totalorder %v80, %v1038
    %vm1147 = vcmp.eq.s32.totalorder %v80, %v1041
    %vm1148 = vcmp.eq.s32.totalorder %v80, %v1044
    %vm1149 = vcmp.eq.s32.totalorder %v80, %v1047
    %vm1150 = vcmp.eq.s32.totalorder %v80, %v1050
    %vm1151 = vcmp.eq.s32.totalorder %v80, %v1053
    %vm1152 = vcmp.eq.s32.totalorder %v80, %v1056
    %vm1153 = vcmp.eq.s32.totalorder %v80, %v1059
    %vm1154 = vcmp.eq.s32.totalorder %v80, %v1062
    %vm1155 = vcmp.eq.s32.totalorder %v80, %v1065
    %vm1156 = vcmp.eq.s32.totalorder %v80, %v1068
    %vm1157 = vcmp.eq.s32.totalorder %v80, %v1071
    %vm1158 = vcmp.eq.s32.totalorder %v80, %v1074
    %vm1159 = vcmp.eq.s32.totalorder %v80, %v1077
    %vm1160 = vcmp.eq.s32.totalorder %v80, %v1080
    %vm1161 = vcmp.eq.s32.totalorder %v80, %v1083
    %vm1162 = vcmp.eq.s32.totalorder %v80, %v1086
    %vm1163 = vcmp.eq.s32.totalorder %v80, %v1089
    %vm1164 = vcmp.eq.s32.totalorder %v80, %v1092
    %vm1165 = vcmp.eq.s32.totalorder %v80, %v1095
    %vm1166 = vcmp.eq.s32.totalorder %v80, %v1098
    %vm1167 = vcmp.eq.s32.totalorder %v80, %v1101
    %vm1168 = vcmp.eq.s32.totalorder %v80, %v1104
    %v1169 = vsel %vm1105, 1, 0
    %v1170 = vsel %vm1106, 1, 0
    %v1171 = vsel %vm1107, 1, 0
    %v1172 = vsel %vm1108, 1, 0
    %v1173 = vsel %vm1109, 1, 0
    %v1174 = vsel %vm1110, 1, 0
    %v1175 = vsel %vm1111, 1, 0
    %v1176 = vsel %vm1112, 1, 0
    %v1177 = vsel %vm1113, 1, 0
    %v1178 = vsel %vm1114, 1, 0
    %v1179 = vsel %vm1115, 1, 0
    %v1180 = vsel %vm1116, 1, 0
    %v1181 = vsel %vm1117, 1, 0
    %v1182 = vsel %vm1118, 1, 0
    %v1183 = vsel %vm1119, 1, 0
    %v1184 = vsel %vm1120, 1, 0
    %v1185 = vsel %vm1121, 1, 0
    %v1186 = vsel %vm1122, 1, 0
    %v1187 = vsel %vm1123, 1, 0
    %v1188 = vsel %vm1124, 1, 0
    %v1189 = vsel %vm1125, 1, 0
    %v1190 = vsel %vm1126, 1, 0
    %v1191 = vsel %vm1127, 1, 0
    %v1192 = vsel %vm1128, 1, 0
    %v1193 = vsel %vm1129, 1, 0
    %v1194 = vsel %vm1130, 1, 0
    %v1195 = vsel %vm1131, 1, 0
    %v1196 = vsel %vm1132, 1, 0
    %v1197 = vsel %vm1133, 1, 0
    %v1198 = vsel %vm1134, 1, 0
    %v1199 = vsel %vm1135, 1, 0
    %v1200 = vsel %vm1136, 1, 0
    %v1201 = vsel %vm1137, 1, 0
    %v1202 = vsel %vm1138, 1, 0
    %v1203 = vsel %vm1139, 1, 0
    %v1204 = vsel %vm1140, 1, 0
    %v1205 = vsel %vm1141, 1, 0
    %v1206 = vsel %vm1142, 1, 0
    %v1207 = vsel %vm1143, 1, 0
    %v1208 = vsel %vm1144, 1, 0
    %v1209 = vsel %vm1145, 1, 0
    %v1210 = vsel %vm1146, 1, 0
    %v1211 = vsel %vm1147, 1, 0
    %v1212 = vsel %vm1148, 1, 0
    %v1213 = vsel %vm1149, 1, 0
    %v1214 = vsel %vm1150, 1, 0
    %v1215 = vsel %vm1151, 1, 0
    %v1216 = vsel %vm1152, 1, 0
    %v1217 = vsel %vm1153, 1, 0
    %v1218 = vsel %vm1154, 1, 0
    %v1219 = vsel %vm1155, 1, 0
    %v1220 = vsel %vm1156, 1, 0
    %v1221 = vsel %vm1157, 1, 0
    %v1222 = vsel %vm1158, 1, 0
    %v1223 = vsel %vm1159, 1, 0
    %v1224 = vsel %vm1160, 1, 0
    %v1225 = vsel %vm1161, 1, 0
    %v1226 = vsel %vm1162, 1, 0
    %v1227 = vsel %vm1163, 1, 0
    %v1228 = vsel %vm1164, 1, 0
    %v1229 = vsel %vm1165, 1, 0
    %v1230 = vsel %vm1166, 1, 0
    %v1231 = vsel %vm1167, 1, 0
    %v1232 = vsel %vm1168, 1, 0
    %v1233 = vcvt.s32.f32 %v1169
    %v1234 = vcvt.s32.f32 %v1170
    %v1235 = vcvt.s32.f32 %v1171
    %v1236 = vcvt.s32.f32 %v1172
    %v1237 = vcvt.s32.f32 %v1173
    %v1238 = vcvt.s32.f32 %v1174
    %v1239 = vcvt.s32.f32 %v1175
    %v1240 = vcvt.s32.f32 %v1176
    %v1241 = vcvt.s32.f32 %v1177
    %v1242 = vcvt.s32.f32 %v1178
    %v1243 = vcvt.s32.f32 %v1179
    %v1244 = vcvt.s32.f32 %v1180
    %v1245 = vcvt.s32.f32 %v1181
    %v1246 = vcvt.s32.f32 %v1182
    %v1247 = vcvt.s32.f32 %v1183
    %v1248 = vcvt.s32.f32 %v1184
    %v1249 = vcvt.s32.f32 %v1185
    %v1250 = vcvt.s32.f32 %v1186
    %v1251 = vcvt.s32.f32 %v1187
    %v1252 = vcvt.s32.f32 %v1188
    %v1253 = vcvt.s32.f32 %v1189
    %v1254 = vcvt.s32.f32 %v1190
    %v1255 = vcvt.s32.f32 %v1191
    %v1256 = vcvt.s32.f32 %v1192
    %v1257 = vcvt.s32.f32 %v1193
    %v1258 = vcvt.s32.f32 %v1194
    %v1259 = vcvt.s32.f32 %v1195
    %v1260 = vcvt.s32.f32 %v1196
    %v1261 = vcvt.s32.f32 %v1197
    %v1262 = vcvt.s32.f32 %v1198
    %v1263 = vcvt.s32.f32 %v1199
    %v1264 = vcvt.s32.f32 %v1200
    %v1265 = vcvt.s32.f32 %v1201
    %v1266 = vcvt.s32.f32 %v1202
    %v1267 = vcvt.s32.f32 %v1203
    %v1268 = vcvt.s32.f32 %v1204
    %v1269 = vcvt.s32.f32 %v1205
    %v1270 = vcvt.s32.f32 %v1206
    %v1271 = vcvt.s32.f32 %v1207
    %v1272 = vcvt.s32.f32 %v1208
    %v1273 = vcvt.s32.f32 %v1209
    %v1274 = vcvt.s32.f32 %v1210
    %v1275 = vcvt.s32.f32 %v1211
    %v1276 = vcvt.s32.f32 %v1212
    %v1277 = vcvt.s32.f32 %v1213
    %v1278 = vcvt.s32.f32 %v1214
    %v1279 = vcvt.s32.f32 %v1215
    %v1280 = vcvt.s32.f32 %v1216
    %v1281 = vcvt.s32.f32 %v1217
    %v1282 = vcvt.s32.f32 %v1218
    %v1283 = vcvt.s32.f32 %v1219
    %v1284 = vcvt.s32.f32 %v1220
    %v1285 = vcvt.s32.f32 %v1221
    %v1286 = vcvt.s32.f32 %v1222
    %v1287 = vcvt.s32.f32 %v1223
    %v1288 = vcvt.s32.f32 %v1224
    %v1289 = vcvt.s32.f32 %v1225
    %v1290 = vcvt.s32.f32 %v1226
    %v1291 = vcvt.s32.f32 %v1227
    %v1292 = vcvt.s32.f32 %v1228
    %v1293 = vcvt.s32.f32 %v1229
    %v1294 = vcvt.s32.f32 %v1230
    %v1295 = vcvt.s32.f32 %v1231
    %v1296 = vcvt.s32.f32 %v1232
    %v1297 = vsub.f32 %v401, %v1233
    %v1298 = vsub.f32 %v402, %v1234
    %v1299 = vsub.f32 %v403, %v1235
    %v1300 = vsub.f32 %v404, %v1236
    %v1301 = vsub.f32 %v405, %v1237
    %v1302 = vsub.f32 %v406, %v1238
    %v1303 = vsub.f32 %v407, %v1239
    %v1304 = vsub.f32 %v408, %v1240
    %v1305 = vsub.f32 %v409, %v1241
    %v1306 = vsub.f32 %v410, %v1242
    %v1307 = vsub.f32 %v411, %v1243
    %v1308 = vsub.f32 %v412, %v1244
    %v1309 = vsub.f32 %v413, %v1245
    %v1310 = vsub.f32 %v414, %v1246
    %v1311 = vsub.f32 %v415, %v1247
    %v1312 = vsub.f32 %v416, %v1248
    %v1313 = vsub.f32 %v417, %v1249
    %v1314 = vsub.f32 %v418, %v1250
    %v1315 = vsub.f32 %v419, %v1251
    %v1316 = vsub.f32 %v420, %v1252
    %v1317 = vsub.f32 %v421, %v1253
    %v1318 = vsub.f32 %v422, %v1254
    %v1319 = vsub.f32 %v423, %v1255
    %v1320 = vsub.f32 %v424, %v1256
    %v1321 = vsub.f32 %v425, %v1257
    %v1322 = vsub.f32 %v426, %v1258
    %v1323 = vsub.f32 %v427, %v1259
    %v1324 = vsub.f32 %v428, %v1260
    %v1325 = vsub.f32 %v429, %v1261
    %v1326 = vsub.f32 %v430, %v1262
    %v1327 = vsub.f32 %v431, %v1263
    %v1328 = vsub.f32 %v432, %v1264
    %v1329 = vsub.f32 %v433, %v1265
    %v1330 = vsub.f32 %v434, %v1266
    %v1331 = vsub.f32 %v435, %v1267
    %v1332 = vsub.f32 %v436, %v1268
    %v1333 = vsub.f32 %v437, %v1269
    %v1334 = vsub.f32 %v438, %v1270
    %v1335 = vsub.f32 %v439, %v1271
    %v1336 = vsub.f32 %v440, %v1272
    %v1337 = vsub.f32 %v441, %v1273
    %v1338 = vsub.f32 %v442, %v1274
    %v1339 = vsub.f32 %v443, %v1275
    %v1340 = vsub.f32 %v444, %v1276
    %v1341 = vsub.f32 %v445, %v1277
    %v1342 = vsub.f32 %v446, %v1278
    %v1343 = vsub.f32 %v447, %v1279
    %v1344 = vsub.f32 %v448, %v1280
    %v1345 = vsub.f32 %v449, %v1281
    %v1346 = vsub.f32 %v450, %v1282
    %v1347 = vsub.f32 %v451, %v1283
    %v1348 = vsub.f32 %v452, %v1284
    %v1349 = vsub.f32 %v453, %v1285
    %v1350 = vsub.f32 %v454, %v1286
    %v1351 = vsub.f32 %v455, %v1287
    %v1352 = vsub.f32 %v456, %v1288
    %v1353 = vsub.f32 %v457, %v1289
    %v1354 = vsub.f32 %v458, %v1290
    %v1355 = vsub.f32 %v459, %v1291
    %v1356 = vsub.f32 %v460, %v1292
    %v1357 = vsub.f32 %v461, %v1293
    %v1358 = vsub.f32 %v462, %v1294
    %v1359 = vsub.f32 %v463, %v1295
    %v1360 = vsub.f32 %v464, %v1296
    %v1361 = vld [vmem:[%s2] sm:$0xff]
    %v1362 = vld [vmem:[%s2 + $0x8] sm:$0xff]
    %v1363 = vld [vmem:[%s2 + $0x10] sm:$0xff]
    %v1364 = vld [vmem:[%s2 + $0x18] sm:$0xff]
    %v1365 = vld [vmem:[%s2 + $0x20] sm:$0xff]
    %v1366 = vld [vmem:[%s2 + $0x28] sm:$0xff]
    %v1367 = vld [vmem:[%s2 + $0x30] sm:$0xff]
    %v1368 = vld [vmem:[%s2 + $0x38] sm:$0xff]
    %vm1369 = vcmask 523264
    %v1371 = vsel %vm1369, %v849, 0
    %v1374 = vsel %vm1369, %v850, 0
    %v1377 = vsel %vm1369, %v851, 0
    %v1380 = vsel %vm1369, %v852, 0
    %v1383 = vsel %vm1369, %v853, 0
    %v1386 = vsel %vm1369, %v854, 0
    %v1389 = vsel %vm1369, %v855, 0
    %v1392 = vsel %vm1369, %v856, 0
    %v1395 = vsel %vm1369, %v857, 0
    %v1398 = vsel %vm1369, %v858, 0
    %v1401 = vsel %vm1369, %v859, 0
    %v1404 = vsel %vm1369, %v860, 0
    %v1407 = vsel %vm1369, %v861, 0
    %v1410 = vsel %vm1369, %v862, 0
    %v1413 = vsel %vm1369, %v863, 0
    %v1416 = vsel %vm1369, %v864, 0
    %v1419 = vsel %vm1369, %v865, 0
    %v1422 = vsel %vm1369, %v866, 0
    %v1425 = vsel %vm1369, %v867, 0
    %v1428 = vsel %vm1369, %v868, 0
    %v1431 = vsel %vm1369, %v869, 0
    %v1434 = vsel %vm1369, %v870, 0
    %v1437 = vsel %vm1369, %v871, 0
    %v1440 = vsel %vm1369, %v872, 0
    %v1443 = vsel %vm1369, %v873, 0
    %v1446 = vsel %vm1369, %v874, 0
    %v1449 = vsel %vm1369, %v875, 0
    %v1452 = vsel %vm1369, %v876, 0
    %v1455 = vsel %vm1369, %v877, 0
    %v1458 = vsel %vm1369, %v878, 0
    %v1461 = vsel %vm1369, %v879, 0
    %v1464 = vsel %vm1369, %v880, 0
    %v1467 = vsel %vm1369, %v881, 0
    %v1470 = vsel %vm1369, %v882, 0
    %v1473 = vsel %vm1369, %v883, 0
    %v1476 = vsel %vm1369, %v884, 0
    %v1479 = vsel %vm1369, %v885, 0
    %v1482 = vsel %vm1369, %v886, 0
    %v1485 = vsel %vm1369, %v887, 0
    %v1488 = vsel %vm1369, %v888, 0
    %v1491 = vsel %vm1369, %v889, 0
    %v1494 = vsel %vm1369, %v890, 0
    %v1497 = vsel %vm1369, %v891, 0
    %v1500 = vsel %vm1369, %v892, 0
    %v1503 = vsel %vm1369, %v893, 0
    %v1506 = vsel %vm1369, %v894, 0
    %v1509 = vsel %vm1369, %v895, 0
    %v1512 = vsel %vm1369, %v896, 0
    %v1515 = vsel %vm1369, %v897, 0
    %v1518 = vsel %vm1369, %v898, 0
    %v1521 = vsel %vm1369, %v899, 0
    %v1524 = vsel %vm1369, %v900, 0
    %v1527 = vsel %vm1369, %v901, 0
    %v1530 = vsel %vm1369, %v902, 0
    %v1533 = vsel %vm1369, %v903, 0
    %v1536 = vsel %vm1369, %v904, 0
    %v1539 = vsel %vm1369, %v905, 0
    %v1542 = vsel %vm1369, %v906, 0
    %v1545 = vsel %vm1369, %v907, 0
    %v1548 = vsel %vm1369, %v908, 0
    %v1551 = vsel %vm1369, %v909, 0
    %v1554 = vsel %vm1369, %v910, 0
    %v1557 = vsel %vm1369, %v911, 0
    %v1560 = vsel %vm1369, %v912, 0
    %1562 = vmatpush.msra.mxu0 0.0
    %1563 = vmatpush.msra.mxu0 0.0
    %1564 = vmatpush.msra.mxu0 0.0
    %1565 = vmatpush.msra.mxu0 0.0
    %1566 = vmatpush.msra.mxu0 0.0
    %1567 = vmatpush.msra.mxu0 0.0
    %1568 = vmatpush.msra.mxu0 0.0
    %1569 = vmatpush.msra.mxu0 0.0
    %v1570 = vand.u32 %v1368, 4294901760
    %1571 = vmatpush.msra.mxu0 %v1570
    %v1572 = vand.u32 %v1367, 4294901760
    %1573 = vmatpush.msra.mxu0 %v1572
    %v1574 = vand.u32 %v1366, 4294901760
    %1575 = vmatpush.msra.mxu0 %v1574
    %v1576 = vand.u32 %v1365, 4294901760
    %1577 = vmatpush.msra.mxu0 %v1576
    %v1578 = vand.u32 %v1364, 4294901760
    %1579 = vmatpush.msra.mxu0 %v1578
    %v1580 = vand.u32 %v1363, 4294901760
    %1581 = vmatpush.msra.mxu0 %v1580
    %v1582 = vand.u32 %v1362, 4294901760
    %1583 = vmatpush.msra.mxu0 %v1582
    %v1584 = vand.u32 %v1361, 4294901760
    %1585 = vmatpush.msra.mxu0 %v1584
    %v1586 = vand.u32 %v1371, 4294901760
    %v1587 = vsub.f32 %v1371, %v1586
    %v1588 = vand.u32 %v1587, 4294901760
    %v1589 = vsub.f32 %v1587, %v1588
    %v1590 = vand.u32 %v1589, 4294901760
    %1591 = vmatmul.f32.gmra.mxu0 %v1590
    %v1592 = vpop.f32.mrf.mxu0
    %v1593 = vadd.f32 0.0, %v1592
    %v1594 = vand.u32 %v1374, 4294901760
    %v1595 = vsub.f32 %v1374, %v1594
    %v1596 = vand.u32 %v1595, 4294901760
    %v1597 = vsub.f32 %v1595, %v1596
    %v1598 = vand.u32 %v1597, 4294901760
    %1599 = vmatmul.f32.gmra.mxu0 %v1598
    %v1600 = vpop.f32.mrf.mxu0
    %v1601 = vadd.f32 0.0, %v1600
    %v1602 = vand.u32 %v1377, 4294901760
    %v1603 = vsub.f32 %v1377, %v1602
    %v1604 = vand.u32 %v1603, 4294901760
    %v1605 = vsub.f32 %v1603, %v1604
    %v1606 = vand.u32 %v1605, 4294901760
    %1607 = vmatmul.f32.gmra.mxu0 %v1606
    %v1608 = vpop.f32.mrf.mxu0
    %v1609 = vadd.f32 0.0, %v1608
    %v1610 = vand.u32 %v1380, 4294901760
    %v1611 = vsub.f32 %v1380, %v1610
    %v1612 = vand.u32 %v1611, 4294901760
    %v1613 = vsub.f32 %v1611, %v1612
    %v1614 = vand.u32 %v1613, 4294901760
    %1615 = vmatmul.f32.gmra.mxu0 %v1614
    %v1616 = vpop.f32.mrf.mxu0
    %v1617 = vadd.f32 0.0, %v1616
    %v1618 = vand.u32 %v1383, 4294901760
    %v1619 = vsub.f32 %v1383, %v1618
    %v1620 = vand.u32 %v1619, 4294901760
    %v1621 = vsub.f32 %v1619, %v1620
    %v1622 = vand.u32 %v1621, 4294901760
    %1623 = vmatmul.f32.gmra.mxu0 %v1622
    %v1624 = vpop.f32.mrf.mxu0
    %v1625 = vadd.f32 0.0, %v1624
    %v1626 = vand.u32 %v1386, 4294901760
    %v1627 = vsub.f32 %v1386, %v1626
    %v1628 = vand.u32 %v1627, 4294901760
    %v1629 = vsub.f32 %v1627, %v1628
    %v1630 = vand.u32 %v1629, 4294901760
    %1631 = vmatmul.f32.gmra.mxu0 %v1630
    %v1632 = vpop.f32.mrf.mxu0
    %v1633 = vadd.f32 0.0, %v1632
    %v1634 = vand.u32 %v1389, 4294901760
    %v1635 = vsub.f32 %v1389, %v1634
    %v1636 = vand.u32 %v1635, 4294901760
    %v1637 = vsub.f32 %v1635, %v1636
    %v1638 = vand.u32 %v1637, 4294901760
    %1639 = vmatmul.f32.gmra.mxu0 %v1638
    %v1640 = vpop.f32.mrf.mxu0
    %v1641 = vadd.f32 0.0, %v1640
    %v1642 = vand.u32 %v1392, 4294901760
    %v1643 = vsub.f32 %v1392, %v1642
    %v1644 = vand.u32 %v1643, 4294901760
    %v1645 = vsub.f32 %v1643, %v1644
    %v1646 = vand.u32 %v1645, 4294901760
    %1647 = vmatmul.f32.gmra.mxu0 %v1646
    %v1648 = vpop.f32.mrf.mxu0
    %v1649 = vadd.f32 0.0, %v1648
    %v1650 = vand.u32 %v1395, 4294901760
    %v1651 = vsub.f32 %v1395, %v1650
    %v1652 = vand.u32 %v1651, 4294901760
    %v1653 = vsub.f32 %v1651, %v1652
    %v1654 = vand.u32 %v1653, 4294901760
    %1655 = vmatmul.f32.gmra.mxu0 %v1654
    %v1656 = vpop.f32.mrf.mxu0
    %v1657 = vadd.f32 0.0, %v1656
    %v1658 = vand.u32 %v1398, 4294901760
    %v1659 = vsub.f32 %v1398, %v1658
    %v1660 = vand.u32 %v1659, 4294901760
    %v1661 = vsub.f32 %v1659, %v1660
    %v1662 = vand.u32 %v1661, 4294901760
    %1663 = vmatmul.f32.gmra.mxu0 %v1662
    %v1664 = vpop.f32.mrf.mxu0
    %v1665 = vadd.f32 0.0, %v1664
    %v1666 = vand.u32 %v1401, 4294901760
    %v1667 = vsub.f32 %v1401, %v1666
    %v1668 = vand.u32 %v1667, 4294901760
    %v1669 = vsub.f32 %v1667, %v1668
    %v1670 = vand.u32 %v1669, 4294901760
    %1671 = vmatmul.f32.gmra.mxu0 %v1670
    %v1672 = vpop.f32.mrf.mxu0
    %v1673 = vadd.f32 0.0, %v1672
    %v1674 = vand.u32 %v1404, 4294901760
    %v1675 = vsub.f32 %v1404, %v1674
    %v1676 = vand.u32 %v1675, 4294901760
    %v1677 = vsub.f32 %v1675, %v1676
    %v1678 = vand.u32 %v1677, 4294901760
    %1679 = vmatmul.f32.gmra.mxu0 %v1678
    %v1680 = vpop.f32.mrf.mxu0
    %v1681 = vadd.f32 0.0, %v1680
    %v1682 = vand.u32 %v1407, 4294901760
    %v1683 = vsub.f32 %v1407, %v1682
    %v1684 = vand.u32 %v1683, 4294901760
    %v1685 = vsub.f32 %v1683, %v1684
    %v1686 = vand.u32 %v1685, 4294901760
    %1687 = vmatmul.f32.gmra.mxu0 %v1686
    %v1688 = vpop.f32.mrf.mxu0
    %v1689 = vadd.f32 0.0, %v1688
    %v1690 = vand.u32 %v1410, 4294901760
    %v1691 = vsub.f32 %v1410, %v1690
    %v1692 = vand.u32 %v1691, 4294901760
    %v1693 = vsub.f32 %v1691, %v1692
    %v1694 = vand.u32 %v1693, 4294901760
    %1695 = vmatmul.f32.gmra.mxu0 %v1694
    %v1696 = vpop.f32.mrf.mxu0
    %v1697 = vadd.f32 0.0, %v1696
    %v1698 = vand.u32 %v1413, 4294901760
    %v1699 = vsub.f32 %v1413, %v1698
    %v1700 = vand.u32 %v1699, 4294901760
    %v1701 = vsub.f32 %v1699, %v1700
    %v1702 = vand.u32 %v1701, 4294901760
    %1703 = vmatmul.f32.gmra.mxu0 %v1702
    %v1704 = vpop.f32.mrf.mxu0
    %v1705 = vadd.f32 0.0, %v1704
    %v1706 = vand.u32 %v1416, 4294901760
    %v1707 = vsub.f32 %v1416, %v1706
    %v1708 = vand.u32 %v1707, 4294901760
    %v1709 = vsub.f32 %v1707, %v1708
    %v1710 = vand.u32 %v1709, 4294901760
    %1711 = vmatmul.f32.gmra.mxu0 %v1710
    %v1712 = vpop.f32.mrf.mxu0
    %v1713 = vadd.f32 0.0, %v1712
    %v1714 = vand.u32 %v1419, 4294901760
    %v1715 = vsub.f32 %v1419, %v1714
    %v1716 = vand.u32 %v1715, 4294901760
    %v1717 = vsub.f32 %v1715, %v1716
    %v1718 = vand.u32 %v1717, 4294901760
    %1719 = vmatmul.f32.gmra.mxu0 %v1718
    %v1720 = vpop.f32.mrf.mxu0
    %v1721 = vadd.f32 0.0, %v1720
    %v1722 = vand.u32 %v1422, 4294901760
    %v1723 = vsub.f32 %v1422, %v1722
    %v1724 = vand.u32 %v1723, 4294901760
    %v1725 = vsub.f32 %v1723, %v1724
    %v1726 = vand.u32 %v1725, 4294901760
    %1727 = vmatmul.f32.gmra.mxu0 %v1726
    %v1728 = vpop.f32.mrf.mxu0
    %v1729 = vadd.f32 0.0, %v1728
    %v1730 = vand.u32 %v1425, 4294901760
    %v1731 = vsub.f32 %v1425, %v1730
    %v1732 = vand.u32 %v1731, 4294901760
    %v1733 = vsub.f32 %v1731, %v1732
    %v1734 = vand.u32 %v1733, 4294901760
    %1735 = vmatmul.f32.gmra.mxu0 %v1734
    %v1736 = vpop.f32.mrf.mxu0
    %v1737 = vadd.f32 0.0, %v1736
    %v1738 = vand.u32 %v1428, 4294901760
    %v1739 = vsub.f32 %v1428, %v1738
    %v1740 = vand.u32 %v1739, 4294901760
    %v1741 = vsub.f32 %v1739, %v1740
    %v1742 = vand.u32 %v1741, 4294901760
    %1743 = vmatmul.f32.gmra.mxu0 %v1742
    %v1744 = vpop.f32.mrf.mxu0
    %v1745 = vadd.f32 0.0, %v1744
    %v1746 = vand.u32 %v1431, 4294901760
    %v1747 = vsub.f32 %v1431, %v1746
    %v1748 = vand.u32 %v1747, 4294901760
    %v1749 = vsub.f32 %v1747, %v1748
    %v1750 = vand.u32 %v1749, 4294901760
    %1751 = vmatmul.f32.gmra.mxu0 %v1750
    %v1752 = vpop.f32.mrf.mxu0
    %v1753 = vadd.f32 0.0, %v1752
    %v1754 = vand.u32 %v1434, 4294901760
    %v1755 = vsub.f32 %v1434, %v1754
    %v1756 = vand.u32 %v1755, 4294901760
    %v1757 = vsub.f32 %v1755, %v1756
    %v1758 = vand.u32 %v1757, 4294901760
    %1759 = vmatmul.f32.gmra.mxu0 %v1758
    %v1760 = vpop.f32.mrf.mxu0
    %v1761 = vadd.f32 0.0, %v1760
    %v1762 = vand.u32 %v1437, 4294901760
    %v1763 = vsub.f32 %v1437, %v1762
    %v1764 = vand.u32 %v1763, 4294901760
    %v1765 = vsub.f32 %v1763, %v1764
    %v1766 = vand.u32 %v1765, 4294901760
    %1767 = vmatmul.f32.gmra.mxu0 %v1766
    %v1768 = vpop.f32.mrf.mxu0
    %v1769 = vadd.f32 0.0, %v1768
    %v1770 = vand.u32 %v1440, 4294901760
    %v1771 = vsub.f32 %v1440, %v1770
    %v1772 = vand.u32 %v1771, 4294901760
    %v1773 = vsub.f32 %v1771, %v1772
    %v1774 = vand.u32 %v1773, 4294901760
    %1775 = vmatmul.f32.gmra.mxu0 %v1774
    %v1776 = vpop.f32.mrf.mxu0
    %v1777 = vadd.f32 0.0, %v1776
    %v1778 = vand.u32 %v1443, 4294901760
    %v1779 = vsub.f32 %v1443, %v1778
    %v1780 = vand.u32 %v1779, 4294901760
    %v1781 = vsub.f32 %v1779, %v1780
    %v1782 = vand.u32 %v1781, 4294901760
    %1783 = vmatmul.f32.gmra.mxu0 %v1782
    %v1784 = vpop.f32.mrf.mxu0
    %v1785 = vadd.f32 0.0, %v1784
    %v1786 = vand.u32 %v1446, 4294901760
    %v1787 = vsub.f32 %v1446, %v1786
    %v1788 = vand.u32 %v1787, 4294901760
    %v1789 = vsub.f32 %v1787, %v1788
    %v1790 = vand.u32 %v1789, 4294901760
    %1791 = vmatmul.f32.gmra.mxu0 %v1790
    %v1792 = vpop.f32.mrf.mxu0
    %v1793 = vadd.f32 0.0, %v1792
    %v1794 = vand.u32 %v1449, 4294901760
    %v1795 = vsub.f32 %v1449, %v1794
    %v1796 = vand.u32 %v1795, 4294901760
    %v1797 = vsub.f32 %v1795, %v1796
    %v1798 = vand.u32 %v1797, 4294901760
    %1799 = vmatmul.f32.gmra.mxu0 %v1798
    %v1800 = vpop.f32.mrf.mxu0
    %v1801 = vadd.f32 0.0, %v1800
    %v1802 = vand.u32 %v1452, 4294901760
    %v1803 = vsub.f32 %v1452, %v1802
    %v1804 = vand.u32 %v1803, 4294901760
    %v1805 = vsub.f32 %v1803, %v1804
    %v1806 = vand.u32 %v1805, 4294901760
    %1807 = vmatmul.f32.gmra.mxu0 %v1806
    %v1808 = vpop.f32.mrf.mxu0
    %v1809 = vadd.f32 0.0, %v1808
    %v1810 = vand.u32 %v1455, 4294901760
    %v1811 = vsub.f32 %v1455, %v1810
    %v1812 = vand.u32 %v1811, 4294901760
    %v1813 = vsub.f32 %v1811, %v1812
    %v1814 = vand.u32 %v1813, 4294901760
    %1815 = vmatmul.f32.gmra.mxu0 %v1814
    %v1816 = vpop.f32.mrf.mxu0
    %v1817 = vadd.f32 0.0, %v1816
    %v1818 = vand.u32 %v1458, 4294901760
    %v1819 = vsub.f32 %v1458, %v1818
    %v1820 = vand.u32 %v1819, 4294901760
    %v1821 = vsub.f32 %v1819, %v1820
    %v1822 = vand.u32 %v1821, 4294901760
    %1823 = vmatmul.f32.gmra.mxu0 %v1822
    %v1824 = vpop.f32.mrf.mxu0
    %v1825 = vadd.f32 0.0, %v1824
    %v1826 = vand.u32 %v1461, 4294901760
    %v1827 = vsub.f32 %v1461, %v1826
    %v1828 = vand.u32 %v1827, 4294901760
    %v1829 = vsub.f32 %v1827, %v1828
    %v1830 = vand.u32 %v1829, 4294901760
    %1831 = vmatmul.f32.gmra.mxu0 %v1830
    %v1832 = vpop.f32.mrf.mxu0
    %v1833 = vadd.f32 0.0, %v1832
    %v1834 = vand.u32 %v1464, 4294901760
    %v1835 = vsub.f32 %v1464, %v1834
    %v1836 = vand.u32 %v1835, 4294901760
    %v1837 = vsub.f32 %v1835, %v1836
    %v1838 = vand.u32 %v1837, 4294901760
    %1839 = vmatmul.f32.gmra.mxu0 %v1838
    %v1840 = vpop.f32.mrf.mxu0
    %v1841 = vadd.f32 0.0, %v1840
    %v1842 = vand.u32 %v1467, 4294901760
    %v1843 = vsub.f32 %v1467, %v1842
    %v1844 = vand.u32 %v1843, 4294901760
    %v1845 = vsub.f32 %v1843, %v1844
    %v1846 = vand.u32 %v1845, 4294901760
    %1847 = vmatmul.f32.gmra.mxu0 %v1846
    %v1848 = vpop.f32.mrf.mxu0
    %v1849 = vadd.f32 0.0, %v1848
    %v1850 = vand.u32 %v1470, 4294901760
    %v1851 = vsub.f32 %v1470, %v1850
    %v1852 = vand.u32 %v1851, 4294901760
    %v1853 = vsub.f32 %v1851, %v1852
    %v1854 = vand.u32 %v1853, 4294901760
    %1855 = vmatmul.f32.gmra.mxu0 %v1854
    %v1856 = vpop.f32.mrf.mxu0
    %v1857 = vadd.f32 0.0, %v1856
    %v1858 = vand.u32 %v1473, 4294901760
    %v1859 = vsub.f32 %v1473, %v1858
    %v1860 = vand.u32 %v1859, 4294901760
    %v1861 = vsub.f32 %v1859, %v1860
    %v1862 = vand.u32 %v1861, 4294901760
    %1863 = vmatmul.f32.gmra.mxu0 %v1862
    %v1864 = vpop.f32.mrf.mxu0
    %v1865 = vadd.f32 0.0, %v1864
    %v1866 = vand.u32 %v1476, 4294901760
    %v1867 = vsub.f32 %v1476, %v1866
    %v1868 = vand.u32 %v1867, 4294901760
    %v1869 = vsub.f32 %v1867, %v1868
    %v1870 = vand.u32 %v1869, 4294901760
    %1871 = vmatmul.f32.gmra.mxu0 %v1870
    %v1872 = vpop.f32.mrf.mxu0
    %v1873 = vadd.f32 0.0, %v1872
    %v1874 = vand.u32 %v1479, 4294901760
    %v1875 = vsub.f32 %v1479, %v1874
    %v1876 = vand.u32 %v1875, 4294901760
    %v1877 = vsub.f32 %v1875, %v1876
    %v1878 = vand.u32 %v1877, 4294901760
    %1879 = vmatmul.f32.gmra.mxu0 %v1878
    %v1880 = vpop.f32.mrf.mxu0
    %v1881 = vadd.f32 0.0, %v1880
    %v1882 = vand.u32 %v1482, 4294901760
    %v1883 = vsub.f32 %v1482, %v1882
    %v1884 = vand.u32 %v1883, 4294901760
    %v1885 = vsub.f32 %v1883, %v1884
    %v1886 = vand.u32 %v1885, 4294901760
    %1887 = vmatmul.f32.gmra.mxu0 %v1886
    %v1888 = vpop.f32.mrf.mxu0
    %v1889 = vadd.f32 0.0, %v1888
    %v1890 = vand.u32 %v1485, 4294901760
    %v1891 = vsub.f32 %v1485, %v1890
    %v1892 = vand.u32 %v1891, 4294901760
    %v1893 = vsub.f32 %v1891, %v1892
    %v1894 = vand.u32 %v1893, 4294901760
    %1895 = vmatmul.f32.gmra.mxu0 %v1894
    %v1896 = vpop.f32.mrf.mxu0
    %v1897 = vadd.f32 0.0, %v1896
    %v1898 = vand.u32 %v1488, 4294901760
    %v1899 = vsub.f32 %v1488, %v1898
    %v1900 = vand.u32 %v1899, 4294901760
    %v1901 = vsub.f32 %v1899, %v1900
    %v1902 = vand.u32 %v1901, 4294901760
    %1903 = vmatmul.f32.gmra.mxu0 %v1902
    %v1904 = vpop.f32.mrf.mxu0
    %v1905 = vadd.f32 0.0, %v1904
    %v1906 = vand.u32 %v1491, 4294901760
    %v1907 = vsub.f32 %v1491, %v1906
    %v1908 = vand.u32 %v1907, 4294901760
    %v1909 = vsub.f32 %v1907, %v1908
    %v1910 = vand.u32 %v1909, 4294901760
    %1911 = vmatmul.f32.gmra.mxu0 %v1910
    %v1912 = vpop.f32.mrf.mxu0
    %v1913 = vadd.f32 0.0, %v1912
    %v1914 = vand.u32 %v1494, 4294901760
    %v1915 = vsub.f32 %v1494, %v1914
    %v1916 = vand.u32 %v1915, 4294901760
    %v1917 = vsub.f32 %v1915, %v1916
    %v1918 = vand.u32 %v1917, 4294901760
    %1919 = vmatmul.f32.gmra.mxu0 %v1918
    %v1920 = vpop.f32.mrf.mxu0
    %v1921 = vadd.f32 0.0, %v1920
    %v1922 = vand.u32 %v1497, 4294901760
    %v1923 = vsub.f32 %v1497, %v1922
    %v1924 = vand.u32 %v1923, 4294901760
    %v1925 = vsub.f32 %v1923, %v1924
    %v1926 = vand.u32 %v1925, 4294901760
    %1927 = vmatmul.f32.gmra.mxu0 %v1926
    %v1928 = vpop.f32.mrf.mxu0
    %v1929 = vadd.f32 0.0, %v1928
    %v1930 = vand.u32 %v1500, 4294901760
    %v1931 = vsub.f32 %v1500, %v1930
    %v1932 = vand.u32 %v1931, 4294901760
    %v1933 = vsub.f32 %v1931, %v1932
    %v1934 = vand.u32 %v1933, 4294901760
    %1935 = vmatmul.f32.gmra.mxu0 %v1934
    %v1936 = vpop.f32.mrf.mxu0
    %v1937 = vadd.f32 0.0, %v1936
    %v1938 = vand.u32 %v1503, 4294901760
    %v1939 = vsub.f32 %v1503, %v1938
    %v1940 = vand.u32 %v1939, 4294901760
    %v1941 = vsub.f32 %v1939, %v1940
    %v1942 = vand.u32 %v1941, 4294901760
    %1943 = vmatmul.f32.gmra.mxu0 %v1942
    %v1944 = vpop.f32.mrf.mxu0
    %v1945 = vadd.f32 0.0, %v1944
    %v1946 = vand.u32 %v1506, 4294901760
    %v1947 = vsub.f32 %v1506, %v1946
    %v1948 = vand.u32 %v1947, 4294901760
    %v1949 = vsub.f32 %v1947, %v1948
    %v1950 = vand.u32 %v1949, 4294901760
    %1951 = vmatmul.f32.gmra.mxu0 %v1950
    %v1952 = vpop.f32.mrf.mxu0
    %v1953 = vadd.f32 0.0, %v1952
    %v1954 = vand.u32 %v1509, 4294901760
    %v1955 = vsub.f32 %v1509, %v1954
    %v1956 = vand.u32 %v1955, 4294901760
    %v1957 = vsub.f32 %v1955, %v1956
    %v1958 = vand.u32 %v1957, 4294901760
    %1959 = vmatmul.f32.gmra.mxu0 %v1958
    %v1960 = vpop.f32.mrf.mxu0
    %v1961 = vadd.f32 0.0, %v1960
    %v1962 = vand.u32 %v1512, 4294901760
    %v1963 = vsub.f32 %v1512, %v1962
    %v1964 = vand.u32 %v1963, 4294901760
    %v1965 = vsub.f32 %v1963, %v1964
    %v1966 = vand.u32 %v1965, 4294901760
    %1967 = vmatmul.f32.gmra.mxu0 %v1966
    %v1968 = vpop.f32.mrf.mxu0
    %v1969 = vadd.f32 0.0, %v1968
    %v1970 = vand.u32 %v1515, 4294901760
    %v1971 = vsub.f32 %v1515, %v1970
    %v1972 = vand.u32 %v1971, 4294901760
    %v1973 = vsub.f32 %v1971, %v1972
    %v1974 = vand.u32 %v1973, 4294901760
    %1975 = vmatmul.f32.gmra.mxu0 %v1974
    %v1976 = vpop.f32.mrf.mxu0
    %v1977 = vadd.f32 0.0, %v1976
    %v1978 = vand.u32 %v1518, 4294901760
    %v1979 = vsub.f32 %v1518, %v1978
    %v1980 = vand.u32 %v1979, 4294901760
    %v1981 = vsub.f32 %v1979, %v1980
    %v1982 = vand.u32 %v1981, 4294901760
    %1983 = vmatmul.f32.gmra.mxu0 %v1982
    %v1984 = vpop.f32.mrf.mxu0
    %v1985 = vadd.f32 0.0, %v1984
    %v1986 = vand.u32 %v1521, 4294901760
    %v1987 = vsub.f32 %v1521, %v1986
    %v1988 = vand.u32 %v1987, 4294901760
    %v1989 = vsub.f32 %v1987, %v1988
    %v1990 = vand.u32 %v1989, 4294901760
    %1991 = vmatmul.f32.gmra.mxu0 %v1990
    %v1992 = vpop.f32.mrf.mxu0
    %v1993 = vadd.f32 0.0, %v1992
    %v1994 = vand.u32 %v1524, 4294901760
    %v1995 = vsub.f32 %v1524, %v1994
    %v1996 = vand.u32 %v1995, 4294901760
    %v1997 = vsub.f32 %v1995, %v1996
    %v1998 = vand.u32 %v1997, 4294901760
    %1999 = vmatmul.f32.gmra.mxu0 %v1998
    %v2000 = vpop.f32.mrf.mxu0
    %v2001 = vadd.f32 0.0, %v2000
    %v2002 = vand.u32 %v1527, 4294901760
    %v2003 = vsub.f32 %v1527, %v2002
    %v2004 = vand.u32 %v2003, 4294901760
    %v2005 = vsub.f32 %v2003, %v2004
    %v2006 = vand.u32 %v2005, 4294901760
    %2007 = vmatmul.f32.gmra.mxu0 %v2006
    %v2008 = vpop.f32.mrf.mxu0
    %v2009 = vadd.f32 0.0, %v2008
    %v2010 = vand.u32 %v1530, 4294901760
    %v2011 = vsub.f32 %v1530, %v2010
    %v2012 = vand.u32 %v2011, 4294901760
    %v2013 = vsub.f32 %v2011, %v2012
    %v2014 = vand.u32 %v2013, 4294901760
    %2015 = vmatmul.f32.gmra.mxu0 %v2014
    %v2016 = vpop.f32.mrf.mxu0
    %v2017 = vadd.f32 0.0, %v2016
    %v2018 = vand.u32 %v1533, 4294901760
    %v2019 = vsub.f32 %v1533, %v2018
    %v2020 = vand.u32 %v2019, 4294901760
    %v2021 = vsub.f32 %v2019, %v2020
    %v2022 = vand.u32 %v2021, 4294901760
    %2023 = vmatmul.f32.gmra.mxu0 %v2022
    %v2024 = vpop.f32.mrf.mxu0
    %v2025 = vadd.f32 0.0, %v2024
    %v2026 = vand.u32 %v1536, 4294901760
    %v2027 = vsub.f32 %v1536, %v2026
    %v2028 = vand.u32 %v2027, 4294901760
    %v2029 = vsub.f32 %v2027, %v2028
    %v2030 = vand.u32 %v2029, 4294901760
    %2031 = vmatmul.f32.gmra.mxu0 %v2030
    %v2032 = vpop.f32.mrf.mxu0
    %v2033 = vadd.f32 0.0, %v2032
    %v2034 = vand.u32 %v1539, 4294901760
    %v2035 = vsub.f32 %v1539, %v2034
    %v2036 = vand.u32 %v2035, 4294901760
    %v2037 = vsub.f32 %v2035, %v2036
    %v2038 = vand.u32 %v2037, 4294901760
    %2039 = vmatmul.f32.gmra.mxu0 %v2038
    %v2040 = vpop.f32.mrf.mxu0
    %v2041 = vadd.f32 0.0, %v2040
    %v2042 = vand.u32 %v1542, 4294901760
    %v2043 = vsub.f32 %v1542, %v2042
    %v2044 = vand.u32 %v2043, 4294901760
    %v2045 = vsub.f32 %v2043, %v2044
    %v2046 = vand.u32 %v2045, 4294901760
    %2047 = vmatmul.f32.gmra.mxu0 %v2046
    %v2048 = vpop.f32.mrf.mxu0
    %v2049 = vadd.f32 0.0, %v2048
    %v2050 = vand.u32 %v1545, 4294901760
    %v2051 = vsub.f32 %v1545, %v2050
    %v2052 = vand.u32 %v2051, 4294901760
    %v2053 = vsub.f32 %v2051, %v2052
    %v2054 = vand.u32 %v2053, 4294901760
    %2055 = vmatmul.f32.gmra.mxu0 %v2054
    %v2056 = vpop.f32.mrf.mxu0
    %v2057 = vadd.f32 0.0, %v2056
    %v2058 = vand.u32 %v1548, 4294901760
    %v2059 = vsub.f32 %v1548, %v2058
    %v2060 = vand.u32 %v2059, 4294901760
    %v2061 = vsub.f32 %v2059, %v2060
    %v2062 = vand.u32 %v2061, 4294901760
    %2063 = vmatmul.f32.gmra.mxu0 %v2062
    %v2064 = vpop.f32.mrf.mxu0
    %v2065 = vadd.f32 0.0, %v2064
    %v2066 = vand.u32 %v1551, 4294901760
    %v2067 = vsub.f32 %v1551, %v2066
    %v2068 = vand.u32 %v2067, 4294901760
    %v2069 = vsub.f32 %v2067, %v2068
    %v2070 = vand.u32 %v2069, 4294901760
    %2071 = vmatmul.f32.gmra.mxu0 %v2070
    %v2072 = vpop.f32.mrf.mxu0
    %v2073 = vadd.f32 0.0, %v2072
    %v2074 = vand.u32 %v1554, 4294901760
    %v2075 = vsub.f32 %v1554, %v2074
    %v2076 = vand.u32 %v2075, 4294901760
    %v2077 = vsub.f32 %v2075, %v2076
    %v2078 = vand.u32 %v2077, 4294901760
    %2079 = vmatmul.f32.gmra.mxu0 %v2078
    %v2080 = vpop.f32.mrf.mxu0
    %v2081 = vadd.f32 0.0, %v2080
    %v2082 = vand.u32 %v1557, 4294901760
    %v2083 = vsub.f32 %v1557, %v2082
    %v2084 = vand.u32 %v2083, 4294901760
    %v2085 = vsub.f32 %v2083, %v2084
    %v2086 = vand.u32 %v2085, 4294901760
    %2087 = vmatmul.f32.gmra.mxu0 %v2086
    %v2088 = vpop.f32.mrf.mxu0
    %v2089 = vadd.f32 0.0, %v2088
    %v2090 = vand.u32 %v1560, 4294901760
    %v2091 = vsub.f32 %v1560, %v2090
    %v2092 = vand.u32 %v2091, 4294901760
    %v2093 = vsub.f32 %v2091, %v2092
    %v2094 = vand.u32 %v2093, 4294901760
    %2095 = vmatmul.f32.gmra.mxu0 %v2094
    %v2096 = vpop.f32.mrf.mxu0
    %v2097 = vadd.f32 0.0, %v2096
    %2098 = vdwg.mxu0
    %2099 = vmatpush.msra.mxu0 0.0
    %2100 = vmatpush.msra.mxu0 0.0
    %2101 = vmatpush.msra.mxu0 0.0
    %2102 = vmatpush.msra.mxu0 0.0
    %2103 = vmatpush.msra.mxu0 0.0
    %2104 = vmatpush.msra.mxu0 0.0
    %2105 = vmatpush.msra.mxu0 0.0
    %2106 = vmatpush.msra.mxu0 0.0
    %v2107 = vand.u32 %v1368, 4294901760
    %v2108 = vsub.f32 %v1368, %v2107
    %v2109 = vand.u32 %v2108, 4294901760
    %v2110 = vsub.f32 %v2108, %v2109
    %v2111 = vand.u32 %v2110, 4294901760
    %2112 = vmatpush.msra.mxu0 %v2111
    %v2113 = vand.u32 %v1367, 4294901760
    %v2114 = vsub.f32 %v1367, %v2113
    %v2115 = vand.u32 %v2114, 4294901760
    %v2116 = vsub.f32 %v2114, %v2115
    %v2117 = vand.u32 %v2116, 4294901760
    %2118 = vmatpush.msra.mxu0 %v2117
    %v2119 = vand.u32 %v1366, 4294901760
    %v2120 = vsub.f32 %v1366, %v2119
    %v2121 = vand.u32 %v2120, 4294901760
    %v2122 = vsub.f32 %v2120, %v2121
    %v2123 = vand.u32 %v2122, 4294901760
    %2124 = vmatpush.msra.mxu0 %v2123
    %v2125 = vand.u32 %v1365, 4294901760
    %v2126 = vsub.f32 %v1365, %v2125
    %v2127 = vand.u32 %v2126, 4294901760
    %v2128 = vsub.f32 %v2126, %v2127
    %v2129 = vand.u32 %v2128, 4294901760
    %2130 = vmatpush.msra.mxu0 %v2129
    %v2131 = vand.u32 %v1364, 4294901760
    %v2132 = vsub.f32 %v1364, %v2131
    %v2133 = vand.u32 %v2132, 4294901760
    %v2134 = vsub.f32 %v2132, %v2133
    %v2135 = vand.u32 %v2134, 4294901760
    %2136 = vmatpush.msra.mxu0 %v2135
    %v2137 = vand.u32 %v1363, 4294901760
    %v2138 = vsub.f32 %v1363, %v2137
    %v2139 = vand.u32 %v2138, 4294901760
    %v2140 = vsub.f32 %v2138, %v2139
    %v2141 = vand.u32 %v2140, 4294901760
    %2142 = vmatpush.msra.mxu0 %v2141
    %v2143 = vand.u32 %v1362, 4294901760
    %v2144 = vsub.f32 %v1362, %v2143
    %v2145 = vand.u32 %v2144, 4294901760
    %v2146 = vsub.f32 %v2144, %v2145
    %v2147 = vand.u32 %v2146, 4294901760
    %2148 = vmatpush.msra.mxu0 %v2147
    %v2149 = vand.u32 %v1361, 4294901760
    %v2150 = vsub.f32 %v1361, %v2149
    %v2151 = vand.u32 %v2150, 4294901760
    %v2152 = vsub.f32 %v2150, %v2151
    %v2153 = vand.u32 %v2152, 4294901760
    %2154 = vmatpush.msra.mxu0 %v2153
    %v2155 = vand.u32 %v1371, 4294901760
    %2156 = vmatmul.f32.gmra.mxu0 %v2155
    %v2157 = vpop.f32.mrf.mxu0
    %v2158 = vadd.f32 %v1593, %v2157
    %v2159 = vand.u32 %v1374, 4294901760
    %2160 = vmatmul.f32.gmra.mxu0 %v2159
    %v2161 = vpop.f32.mrf.mxu0
    %v2162 = vadd.f32 %v1601, %v2161
    %v2163 = vand.u32 %v1377, 4294901760
    %2164 = vmatmul.f32.gmra.mxu0 %v2163
    %v2165 = vpop.f32.mrf.mxu0
    %v2166 = vadd.f32 %v1609, %v2165
    %v2167 = vand.u32 %v1380, 4294901760
    %2168 = vmatmul.f32.gmra.mxu0 %v2167
    %v2169 = vpop.f32.mrf.mxu0
    %v2170 = vadd.f32 %v1617, %v2169
    %v2171 = vand.u32 %v1383, 4294901760
    %2172 = vmatmul.f32.gmra.mxu0 %v2171
    %v2173 = vpop.f32.mrf.mxu0
    %v2174 = vadd.f32 %v1625, %v2173
    %v2175 = vand.u32 %v1386, 4294901760
    %2176 = vmatmul.f32.gmra.mxu0 %v2175
    %v2177 = vpop.f32.mrf.mxu0
    %v2178 = vadd.f32 %v1633, %v2177
    %v2179 = vand.u32 %v1389, 4294901760
    %2180 = vmatmul.f32.gmra.mxu0 %v2179
    %v2181 = vpop.f32.mrf.mxu0
    %v2182 = vadd.f32 %v1641, %v2181
    %v2183 = vand.u32 %v1392, 4294901760
    %2184 = vmatmul.f32.gmra.mxu0 %v2183
    %v2185 = vpop.f32.mrf.mxu0
    %v2186 = vadd.f32 %v1649, %v2185
    %v2187 = vand.u32 %v1395, 4294901760
    %2188 = vmatmul.f32.gmra.mxu0 %v2187
    %v2189 = vpop.f32.mrf.mxu0
    %v2190 = vadd.f32 %v1657, %v2189
    %v2191 = vand.u32 %v1398, 4294901760
    %2192 = vmatmul.f32.gmra.mxu0 %v2191
    %v2193 = vpop.f32.mrf.mxu0
    %v2194 = vadd.f32 %v1665, %v2193
    %v2195 = vand.u32 %v1401, 4294901760
    %2196 = vmatmul.f32.gmra.mxu0 %v2195
    %v2197 = vpop.f32.mrf.mxu0
    %v2198 = vadd.f32 %v1673, %v2197
    %v2199 = vand.u32 %v1404, 4294901760
    %2200 = vmatmul.f32.gmra.mxu0 %v2199
    %v2201 = vpop.f32.mrf.mxu0
    %v2202 = vadd.f32 %v1681, %v2201
    %v2203 = vand.u32 %v1407, 4294901760
    %2204 = vmatmul.f32.gmra.mxu0 %v2203
    %v2205 = vpop.f32.mrf.mxu0
    %v2206 = vadd.f32 %v1689, %v2205
    %v2207 = vand.u32 %v1410, 4294901760
    %2208 = vmatmul.f32.gmra.mxu0 %v2207
    %v2209 = vpop.f32.mrf.mxu0
    %v2210 = vadd.f32 %v1697, %v2209
    %v2211 = vand.u32 %v1413, 4294901760
    %2212 = vmatmul.f32.gmra.mxu0 %v2211
    %v2213 = vpop.f32.mrf.mxu0
    %v2214 = vadd.f32 %v1705, %v2213
    %v2215 = vand.u32 %v1416, 4294901760
    %2216 = vmatmul.f32.gmra.mxu0 %v2215
    %v2217 = vpop.f32.mrf.mxu0
    %v2218 = vadd.f32 %v1713, %v2217
    %v2219 = vand.u32 %v1419, 4294901760
    %2220 = vmatmul.f32.gmra.mxu0 %v2219
    %v2221 = vpop.f32.mrf.mxu0
    %v2222 = vadd.f32 %v1721, %v2221
    %v2223 = vand.u32 %v1422, 4294901760
    %2224 = vmatmul.f32.gmra.mxu0 %v2223
    %v2225 = vpop.f32.mrf.mxu0
    %v2226 = vadd.f32 %v1729, %v2225
    %v2227 = vand.u32 %v1425, 4294901760
    %2228 = vmatmul.f32.gmra.mxu0 %v2227
    %v2229 = vpop.f32.mrf.mxu0
    %v2230 = vadd.f32 %v1737, %v2229
    %v2231 = vand.u32 %v1428, 4294901760
    %2232 = vmatmul.f32.gmra.mxu0 %v2231
    %v2233 = vpop.f32.mrf.mxu0
    %v2234 = vadd.f32 %v1745, %v2233
    %v2235 = vand.u32 %v1431, 4294901760
    %2236 = vmatmul.f32.gmra.mxu0 %v2235
    %v2237 = vpop.f32.mrf.mxu0
    %v2238 = vadd.f32 %v1753, %v2237
    %v2239 = vand.u32 %v1434, 4294901760
    %2240 = vmatmul.f32.gmra.mxu0 %v2239
    %v2241 = vpop.f32.mrf.mxu0
    %v2242 = vadd.f32 %v1761, %v2241
    %v2243 = vand.u32 %v1437, 4294901760
    %2244 = vmatmul.f32.gmra.mxu0 %v2243
    %v2245 = vpop.f32.mrf.mxu0
    %v2246 = vadd.f32 %v1769, %v2245
    %v2247 = vand.u32 %v1440, 4294901760
    %2248 = vmatmul.f32.gmra.mxu0 %v2247
    %v2249 = vpop.f32.mrf.mxu0
    %v2250 = vadd.f32 %v1777, %v2249
    %v2251 = vand.u32 %v1443, 4294901760
    %2252 = vmatmul.f32.gmra.mxu0 %v2251
    %v2253 = vpop.f32.mrf.mxu0
    %v2254 = vadd.f32 %v1785, %v2253
    %v2255 = vand.u32 %v1446, 4294901760
    %2256 = vmatmul.f32.gmra.mxu0 %v2255
    %v2257 = vpop.f32.mrf.mxu0
    %v2258 = vadd.f32 %v1793, %v2257
    %v2259 = vand.u32 %v1449, 4294901760
    %2260 = vmatmul.f32.gmra.mxu0 %v2259
    %v2261 = vpop.f32.mrf.mxu0
    %v2262 = vadd.f32 %v1801, %v2261
    %v2263 = vand.u32 %v1452, 4294901760
    %2264 = vmatmul.f32.gmra.mxu0 %v2263
    %v2265 = vpop.f32.mrf.mxu0
    %v2266 = vadd.f32 %v1809, %v2265
    %v2267 = vand.u32 %v1455, 4294901760
    %2268 = vmatmul.f32.gmra.mxu0 %v2267
    %v2269 = vpop.f32.mrf.mxu0
    %v2270 = vadd.f32 %v1817, %v2269
    %v2271 = vand.u32 %v1458, 4294901760
    %2272 = vmatmul.f32.gmra.mxu0 %v2271
    %v2273 = vpop.f32.mrf.mxu0
    %v2274 = vadd.f32 %v1825, %v2273
    %v2275 = vand.u32 %v1461, 4294901760
    %2276 = vmatmul.f32.gmra.mxu0 %v2275
    %v2277 = vpop.f32.mrf.mxu0
    %v2278 = vadd.f32 %v1833, %v2277
    %v2279 = vand.u32 %v1464, 4294901760
    %2280 = vmatmul.f32.gmra.mxu0 %v2279
    %v2281 = vpop.f32.mrf.mxu0
    %v2282 = vadd.f32 %v1841, %v2281
    %v2283 = vand.u32 %v1467, 4294901760
    %2284 = vmatmul.f32.gmra.mxu0 %v2283
    %v2285 = vpop.f32.mrf.mxu0
    %v2286 = vadd.f32 %v1849, %v2285
    %v2287 = vand.u32 %v1470, 4294901760
    %2288 = vmatmul.f32.gmra.mxu0 %v2287
    %v2289 = vpop.f32.mrf.mxu0
    %v2290 = vadd.f32 %v1857, %v2289
    %v2291 = vand.u32 %v1473, 4294901760
    %2292 = vmatmul.f32.gmra.mxu0 %v2291
    %v2293 = vpop.f32.mrf.mxu0
    %v2294 = vadd.f32 %v1865, %v2293
    %v2295 = vand.u32 %v1476, 4294901760
    %2296 = vmatmul.f32.gmra.mxu0 %v2295
    %v2297 = vpop.f32.mrf.mxu0
    %v2298 = vadd.f32 %v1873, %v2297
    %v2299 = vand.u32 %v1479, 4294901760
    %2300 = vmatmul.f32.gmra.mxu0 %v2299
    %v2301 = vpop.f32.mrf.mxu0
    %v2302 = vadd.f32 %v1881, %v2301
    %v2303 = vand.u32 %v1482, 4294901760
    %2304 = vmatmul.f32.gmra.mxu0 %v2303
    %v2305 = vpop.f32.mrf.mxu0
    %v2306 = vadd.f32 %v1889, %v2305
    %v2307 = vand.u32 %v1485, 4294901760
    %2308 = vmatmul.f32.gmra.mxu0 %v2307
    %v2309 = vpop.f32.mrf.mxu0
    %v2310 = vadd.f32 %v1897, %v2309
    %v2311 = vand.u32 %v1488, 4294901760
    %2312 = vmatmul.f32.gmra.mxu0 %v2311
    %v2313 = vpop.f32.mrf.mxu0
    %v2314 = vadd.f32 %v1905, %v2313
    %v2315 = vand.u32 %v1491, 4294901760
    %2316 = vmatmul.f32.gmra.mxu0 %v2315
    %v2317 = vpop.f32.mrf.mxu0
    %v2318 = vadd.f32 %v1913, %v2317
    %v2319 = vand.u32 %v1494, 4294901760
    %2320 = vmatmul.f32.gmra.mxu0 %v2319
    %v2321 = vpop.f32.mrf.mxu0
    %v2322 = vadd.f32 %v1921, %v2321
    %v2323 = vand.u32 %v1497, 4294901760
    %2324 = vmatmul.f32.gmra.mxu0 %v2323
    %v2325 = vpop.f32.mrf.mxu0
    %v2326 = vadd.f32 %v1929, %v2325
    %v2327 = vand.u32 %v1500, 4294901760
    %2328 = vmatmul.f32.gmra.mxu0 %v2327
    %v2329 = vpop.f32.mrf.mxu0
    %v2330 = vadd.f32 %v1937, %v2329
    %v2331 = vand.u32 %v1503, 4294901760
    %2332 = vmatmul.f32.gmra.mxu0 %v2331
    %v2333 = vpop.f32.mrf.mxu0
    %v2334 = vadd.f32 %v1945, %v2333
    %v2335 = vand.u32 %v1506, 4294901760
    %2336 = vmatmul.f32.gmra.mxu0 %v2335
    %v2337 = vpop.f32.mrf.mxu0
    %v2338 = vadd.f32 %v1953, %v2337
    %v2339 = vand.u32 %v1509, 4294901760
    %2340 = vmatmul.f32.gmra.mxu0 %v2339
    %v2341 = vpop.f32.mrf.mxu0
    %v2342 = vadd.f32 %v1961, %v2341
    %v2343 = vand.u32 %v1512, 4294901760
    %2344 = vmatmul.f32.gmra.mxu0 %v2343
    %v2345 = vpop.f32.mrf.mxu0
    %v2346 = vadd.f32 %v1969, %v2345
    %v2347 = vand.u32 %v1515, 4294901760
    %2348 = vmatmul.f32.gmra.mxu0 %v2347
    %v2349 = vpop.f32.mrf.mxu0
    %v2350 = vadd.f32 %v1977, %v2349
    %v2351 = vand.u32 %v1518, 4294901760
    %2352 = vmatmul.f32.gmra.mxu0 %v2351
    %v2353 = vpop.f32.mrf.mxu0
    %v2354 = vadd.f32 %v1985, %v2353
    %v2355 = vand.u32 %v1521, 4294901760
    %2356 = vmatmul.f32.gmra.mxu0 %v2355
    %v2357 = vpop.f32.mrf.mxu0
    %v2358 = vadd.f32 %v1993, %v2357
    %v2359 = vand.u32 %v1524, 4294901760
    %2360 = vmatmul.f32.gmra.mxu0 %v2359
    %v2361 = vpop.f32.mrf.mxu0
    %v2362 = vadd.f32 %v2001, %v2361
    %v2363 = vand.u32 %v1527, 4294901760
    %2364 = vmatmul.f32.gmra.mxu0 %v2363
    %v2365 = vpop.f32.mrf.mxu0
    %v2366 = vadd.f32 %v2009, %v2365
    %v2367 = vand.u32 %v1530, 4294901760
    %2368 = vmatmul.f32.gmra.mxu0 %v2367
    %v2369 = vpop.f32.mrf.mxu0
    %v2370 = vadd.f32 %v2017, %v2369
    %v2371 = vand.u32 %v1533, 4294901760
    %2372 = vmatmul.f32.gmra.mxu0 %v2371
    %v2373 = vpop.f32.mrf.mxu0
    %v2374 = vadd.f32 %v2025, %v2373
    %v2375 = vand.u32 %v1536, 4294901760
    %2376 = vmatmul.f32.gmra.mxu0 %v2375
    %v2377 = vpop.f32.mrf.mxu0
    %v2378 = vadd.f32 %v2033, %v2377
    %v2379 = vand.u32 %v1539, 4294901760
    %2380 = vmatmul.f32.gmra.mxu0 %v2379
    %v2381 = vpop.f32.mrf.mxu0
    %v2382 = vadd.f32 %v2041, %v2381
    %v2383 = vand.u32 %v1542, 4294901760
    %2384 = vmatmul.f32.gmra.mxu0 %v2383
    %v2385 = vpop.f32.mrf.mxu0
    %v2386 = vadd.f32 %v2049, %v2385
    %v2387 = vand.u32 %v1545, 4294901760
    %2388 = vmatmul.f32.gmra.mxu0 %v2387
    %v2389 = vpop.f32.mrf.mxu0
    %v2390 = vadd.f32 %v2057, %v2389
    %v2391 = vand.u32 %v1548, 4294901760
    %2392 = vmatmul.f32.gmra.mxu0 %v2391
    %v2393 = vpop.f32.mrf.mxu0
    %v2394 = vadd.f32 %v2065, %v2393
    %v2395 = vand.u32 %v1551, 4294901760
    %2396 = vmatmul.f32.gmra.mxu0 %v2395
    %v2397 = vpop.f32.mrf.mxu0
    %v2398 = vadd.f32 %v2073, %v2397
    %v2399 = vand.u32 %v1554, 4294901760
    %2400 = vmatmul.f32.gmra.mxu0 %v2399
    %v2401 = vpop.f32.mrf.mxu0
    %v2402 = vadd.f32 %v2081, %v2401
    %v2403 = vand.u32 %v1557, 4294901760
    %2404 = vmatmul.f32.gmra.mxu0 %v2403
    %v2405 = vpop.f32.mrf.mxu0
    %v2406 = vadd.f32 %v2089, %v2405
    %v2407 = vand.u32 %v1560, 4294901760
    %2408 = vmatmul.f32.gmra.mxu0 %v2407
    %v2409 = vpop.f32.mrf.mxu0
    %v2410 = vadd.f32 %v2097, %v2409
    %2411 = vdwg.mxu0
    %2412 = vmatpush.msra.mxu0 0.0
    %2413 = vmatpush.msra.mxu0 0.0
    %2414 = vmatpush.msra.mxu0 0.0
    %2415 = vmatpush.msra.mxu0 0.0
    %2416 = vmatpush.msra.mxu0 0.0
    %2417 = vmatpush.msra.mxu0 0.0
    %2418 = vmatpush.msra.mxu0 0.0
    %2419 = vmatpush.msra.mxu0 0.0
    %v2420 = vand.u32 %v1368, 4294901760
    %v2421 = vsub.f32 %v1368, %v2420
    %2422 = vmatpush.msra.mxu0 %v2421
    %v2423 = vand.u32 %v1367, 4294901760
    %v2424 = vsub.f32 %v1367, %v2423
    %2425 = vmatpush.msra.mxu0 %v2424
    %v2426 = vand.u32 %v1366, 4294901760
    %v2427 = vsub.f32 %v1366, %v2426
    %2428 = vmatpush.msra.mxu0 %v2427
    %v2429 = vand.u32 %v1365, 4294901760
    %v2430 = vsub.f32 %v1365, %v2429
    %2431 = vmatpush.msra.mxu0 %v2430
    %v2432 = vand.u32 %v1364, 4294901760
    %v2433 = vsub.f32 %v1364, %v2432
    %2434 = vmatpush.msra.mxu0 %v2433
    %v2435 = vand.u32 %v1363, 4294901760
    %v2436 = vsub.f32 %v1363, %v2435
    %2437 = vmatpush.msra.mxu0 %v2436
    %v2438 = vand.u32 %v1362, 4294901760
    %v2439 = vsub.f32 %v1362, %v2438
    %2440 = vmatpush.msra.mxu0 %v2439
    %v2441 = vand.u32 %v1361, 4294901760
    %v2442 = vsub.f32 %v1361, %v2441
    %2443 = vmatpush.msra.mxu0 %v2442
    %v2444 = vand.u32 %v1371, 4294901760
    %v2445 = vsub.f32 %v1371, %v2444
    %2446 = vmatmul.f32.gmra.mxu0 %v2445
    %v2447 = vpop.f32.mrf.mxu0
    %v2448 = vadd.f32 %v2158, %v2447
    %v2449 = vand.u32 %v1374, 4294901760
    %v2450 = vsub.f32 %v1374, %v2449
    %2451 = vmatmul.f32.gmra.mxu0 %v2450
    %v2452 = vpop.f32.mrf.mxu0
    %v2453 = vadd.f32 %v2162, %v2452
    %v2454 = vand.u32 %v1377, 4294901760
    %v2455 = vsub.f32 %v1377, %v2454
    %2456 = vmatmul.f32.gmra.mxu0 %v2455
    %v2457 = vpop.f32.mrf.mxu0
    %v2458 = vadd.f32 %v2166, %v2457
    %v2459 = vand.u32 %v1380, 4294901760
    %v2460 = vsub.f32 %v1380, %v2459
    %2461 = vmatmul.f32.gmra.mxu0 %v2460
    %v2462 = vpop.f32.mrf.mxu0
    %v2463 = vadd.f32 %v2170, %v2462
    %v2464 = vand.u32 %v1383, 4294901760
    %v2465 = vsub.f32 %v1383, %v2464
    %2466 = vmatmul.f32.gmra.mxu0 %v2465
    %v2467 = vpop.f32.mrf.mxu0
    %v2468 = vadd.f32 %v2174, %v2467
    %v2469 = vand.u32 %v1386, 4294901760
    %v2470 = vsub.f32 %v1386, %v2469
    %2471 = vmatmul.f32.gmra.mxu0 %v2470
    %v2472 = vpop.f32.mrf.mxu0
    %v2473 = vadd.f32 %v2178, %v2472
    %v2474 = vand.u32 %v1389, 4294901760
    %v2475 = vsub.f32 %v1389, %v2474
    %2476 = vmatmul.f32.gmra.mxu0 %v2475
    %v2477 = vpop.f32.mrf.mxu0
    %v2478 = vadd.f32 %v2182, %v2477
    %v2479 = vand.u32 %v1392, 4294901760
    %v2480 = vsub.f32 %v1392, %v2479
    %2481 = vmatmul.f32.gmra.mxu0 %v2480
    %v2482 = vpop.f32.mrf.mxu0
    %v2483 = vadd.f32 %v2186, %v2482
    %v2484 = vand.u32 %v1395, 4294901760
    %v2485 = vsub.f32 %v1395, %v2484
    %2486 = vmatmul.f32.gmra.mxu0 %v2485
    %v2487 = vpop.f32.mrf.mxu0
    %v2488 = vadd.f32 %v2190, %v2487
    %v2489 = vand.u32 %v1398, 4294901760
    %v2490 = vsub.f32 %v1398, %v2489
    %2491 = vmatmul.f32.gmra.mxu0 %v2490
    %v2492 = vpop.f32.mrf.mxu0
    %v2493 = vadd.f32 %v2194, %v2492
    %v2494 = vand.u32 %v1401, 4294901760
    %v2495 = vsub.f32 %v1401, %v2494
    %2496 = vmatmul.f32.gmra.mxu0 %v2495
    %v2497 = vpop.f32.mrf.mxu0
    %v2498 = vadd.f32 %v2198, %v2497
    %v2499 = vand.u32 %v1404, 4294901760
    %v2500 = vsub.f32 %v1404, %v2499
    %2501 = vmatmul.f32.gmra.mxu0 %v2500
    %v2502 = vpop.f32.mrf.mxu0
    %v2503 = vadd.f32 %v2202, %v2502
    %v2504 = vand.u32 %v1407, 4294901760
    %v2505 = vsub.f32 %v1407, %v2504
    %2506 = vmatmul.f32.gmra.mxu0 %v2505
    %v2507 = vpop.f32.mrf.mxu0
    %v2508 = vadd.f32 %v2206, %v2507
    %v2509 = vand.u32 %v1410, 4294901760
    %v2510 = vsub.f32 %v1410, %v2509
    %2511 = vmatmul.f32.gmra.mxu0 %v2510
    %v2512 = vpop.f32.mrf.mxu0
    %v2513 = vadd.f32 %v2210, %v2512
    %v2514 = vand.u32 %v1413, 4294901760
    %v2515 = vsub.f32 %v1413, %v2514
    %2516 = vmatmul.f32.gmra.mxu0 %v2515
    %v2517 = vpop.f32.mrf.mxu0
    %v2518 = vadd.f32 %v2214, %v2517
    %v2519 = vand.u32 %v1416, 4294901760
    %v2520 = vsub.f32 %v1416, %v2519
    %2521 = vmatmul.f32.gmra.mxu0 %v2520
    %v2522 = vpop.f32.mrf.mxu0
    %v2523 = vadd.f32 %v2218, %v2522
    %v2524 = vand.u32 %v1419, 4294901760
    %v2525 = vsub.f32 %v1419, %v2524
    %2526 = vmatmul.f32.gmra.mxu0 %v2525
    %v2527 = vpop.f32.mrf.mxu0
    %v2528 = vadd.f32 %v2222, %v2527
    %v2529 = vand.u32 %v1422, 4294901760
    %v2530 = vsub.f32 %v1422, %v2529
    %2531 = vmatmul.f32.gmra.mxu0 %v2530
    %v2532 = vpop.f32.mrf.mxu0
    %v2533 = vadd.f32 %v2226, %v2532
    %v2534 = vand.u32 %v1425, 4294901760
    %v2535 = vsub.f32 %v1425, %v2534
    %2536 = vmatmul.f32.gmra.mxu0 %v2535
    %v2537 = vpop.f32.mrf.mxu0
    %v2538 = vadd.f32 %v2230, %v2537
    %v2539 = vand.u32 %v1428, 4294901760
    %v2540 = vsub.f32 %v1428, %v2539
    %2541 = vmatmul.f32.gmra.mxu0 %v2540
    %v2542 = vpop.f32.mrf.mxu0
    %v2543 = vadd.f32 %v2234, %v2542
    %v2544 = vand.u32 %v1431, 4294901760
    %v2545 = vsub.f32 %v1431, %v2544
    %2546 = vmatmul.f32.gmra.mxu0 %v2545
    %v2547 = vpop.f32.mrf.mxu0
    %v2548 = vadd.f32 %v2238, %v2547
    %v2549 = vand.u32 %v1434, 4294901760
    %v2550 = vsub.f32 %v1434, %v2549
    %2551 = vmatmul.f32.gmra.mxu0 %v2550
    %v2552 = vpop.f32.mrf.mxu0
    %v2553 = vadd.f32 %v2242, %v2552
    %v2554 = vand.u32 %v1437, 4294901760
    %v2555 = vsub.f32 %v1437, %v2554
    %2556 = vmatmul.f32.gmra.mxu0 %v2555
    %v2557 = vpop.f32.mrf.mxu0
    %v2558 = vadd.f32 %v2246, %v2557
    %v2559 = vand.u32 %v1440, 4294901760
    %v2560 = vsub.f32 %v1440, %v2559
    %2561 = vmatmul.f32.gmra.mxu0 %v2560
    %v2562 = vpop.f32.mrf.mxu0
    %v2563 = vadd.f32 %v2250, %v2562
    %v2564 = vand.u32 %v1443, 4294901760
    %v2565 = vsub.f32 %v1443, %v2564
    %2566 = vmatmul.f32.gmra.mxu0 %v2565
    %v2567 = vpop.f32.mrf.mxu0
    %v2568 = vadd.f32 %v2254, %v2567
    %v2569 = vand.u32 %v1446, 4294901760
    %v2570 = vsub.f32 %v1446, %v2569
    %2571 = vmatmul.f32.gmra.mxu0 %v2570
    %v2572 = vpop.f32.mrf.mxu0
    %v2573 = vadd.f32 %v2258, %v2572
    %v2574 = vand.u32 %v1449, 4294901760
    %v2575 = vsub.f32 %v1449, %v2574
    %2576 = vmatmul.f32.gmra.mxu0 %v2575
    %v2577 = vpop.f32.mrf.mxu0
    %v2578 = vadd.f32 %v2262, %v2577
    %v2579 = vand.u32 %v1452, 4294901760
    %v2580 = vsub.f32 %v1452, %v2579
    %2581 = vmatmul.f32.gmra.mxu0 %v2580
    %v2582 = vpop.f32.mrf.mxu0
    %v2583 = vadd.f32 %v2266, %v2582
    %v2584 = vand.u32 %v1455, 4294901760
    %v2585 = vsub.f32 %v1455, %v2584
    %2586 = vmatmul.f32.gmra.mxu0 %v2585
    %v2587 = vpop.f32.mrf.mxu0
    %v2588 = vadd.f32 %v2270, %v2587
    %v2589 = vand.u32 %v1458, 4294901760
    %v2590 = vsub.f32 %v1458, %v2589
    %2591 = vmatmul.f32.gmra.mxu0 %v2590
    %v2592 = vpop.f32.mrf.mxu0
    %v2593 = vadd.f32 %v2274, %v2592
    %v2594 = vand.u32 %v1461, 4294901760
    %v2595 = vsub.f32 %v1461, %v2594
    %2596 = vmatmul.f32.gmra.mxu0 %v2595
    %v2597 = vpop.f32.mrf.mxu0
    %v2598 = vadd.f32 %v2278, %v2597
    %v2599 = vand.u32 %v1464, 4294901760
    %v2600 = vsub.f32 %v1464, %v2599
    %2601 = vmatmul.f32.gmra.mxu0 %v2600
    %v2602 = vpop.f32.mrf.mxu0
    %v2603 = vadd.f32 %v2282, %v2602
    %v2604 = vand.u32 %v1467, 4294901760
    %v2605 = vsub.f32 %v1467, %v2604
    %2606 = vmatmul.f32.gmra.mxu0 %v2605
    %v2607 = vpop.f32.mrf.mxu0
    %v2608 = vadd.f32 %v2286, %v2607
    %v2609 = vand.u32 %v1470, 4294901760
    %v2610 = vsub.f32 %v1470, %v2609
    %2611 = vmatmul.f32.gmra.mxu0 %v2610
    %v2612 = vpop.f32.mrf.mxu0
    %v2613 = vadd.f32 %v2290, %v2612
    %v2614 = vand.u32 %v1473, 4294901760
    %v2615 = vsub.f32 %v1473, %v2614
    %2616 = vmatmul.f32.gmra.mxu0 %v2615
    %v2617 = vpop.f32.mrf.mxu0
    %v2618 = vadd.f32 %v2294, %v2617
    %v2619 = vand.u32 %v1476, 4294901760
    %v2620 = vsub.f32 %v1476, %v2619
    %2621 = vmatmul.f32.gmra.mxu0 %v2620
    %v2622 = vpop.f32.mrf.mxu0
    %v2623 = vadd.f32 %v2298, %v2622
    %v2624 = vand.u32 %v1479, 4294901760
    %v2625 = vsub.f32 %v1479, %v2624
    %2626 = vmatmul.f32.gmra.mxu0 %v2625
    %v2627 = vpop.f32.mrf.mxu0
    %v2628 = vadd.f32 %v2302, %v2627
    %v2629 = vand.u32 %v1482, 4294901760
    %v2630 = vsub.f32 %v1482, %v2629
    %2631 = vmatmul.f32.gmra.mxu0 %v2630
    %v2632 = vpop.f32.mrf.mxu0
    %v2633 = vadd.f32 %v2306, %v2632
    %v2634 = vand.u32 %v1485, 4294901760
    %v2635 = vsub.f32 %v1485, %v2634
    %2636 = vmatmul.f32.gmra.mxu0 %v2635
    %v2637 = vpop.f32.mrf.mxu0
    %v2638 = vadd.f32 %v2310, %v2637
    %v2639 = vand.u32 %v1488, 4294901760
    %v2640 = vsub.f32 %v1488, %v2639
    %2641 = vmatmul.f32.gmra.mxu0 %v2640
    %v2642 = vpop.f32.mrf.mxu0
    %v2643 = vadd.f32 %v2314, %v2642
    %v2644 = vand.u32 %v1491, 4294901760
    %v2645 = vsub.f32 %v1491, %v2644
    %2646 = vmatmul.f32.gmra.mxu0 %v2645
    %v2647 = vpop.f32.mrf.mxu0
    %v2648 = vadd.f32 %v2318, %v2647
    %v2649 = vand.u32 %v1494, 4294901760
    %v2650 = vsub.f32 %v1494, %v2649
    %2651 = vmatmul.f32.gmra.mxu0 %v2650
    %v2652 = vpop.f32.mrf.mxu0
    %v2653 = vadd.f32 %v2322, %v2652
    %v2654 = vand.u32 %v1497, 4294901760
    %v2655 = vsub.f32 %v1497, %v2654
    %2656 = vmatmul.f32.gmra.mxu0 %v2655
    %v2657 = vpop.f32.mrf.mxu0
    %v2658 = vadd.f32 %v2326, %v2657
    %v2659 = vand.u32 %v1500, 4294901760
    %v2660 = vsub.f32 %v1500, %v2659
    %2661 = vmatmul.f32.gmra.mxu0 %v2660
    %v2662 = vpop.f32.mrf.mxu0
    %v2663 = vadd.f32 %v2330, %v2662
    %v2664 = vand.u32 %v1503, 4294901760
    %v2665 = vsub.f32 %v1503, %v2664
    %2666 = vmatmul.f32.gmra.mxu0 %v2665
    %v2667 = vpop.f32.mrf.mxu0
    %v2668 = vadd.f32 %v2334, %v2667
    %v2669 = vand.u32 %v1506, 4294901760
    %v2670 = vsub.f32 %v1506, %v2669
    %2671 = vmatmul.f32.gmra.mxu0 %v2670
    %v2672 = vpop.f32.mrf.mxu0
    %v2673 = vadd.f32 %v2338, %v2672
    %v2674 = vand.u32 %v1509, 4294901760
    %v2675 = vsub.f32 %v1509, %v2674
    %2676 = vmatmul.f32.gmra.mxu0 %v2675
    %v2677 = vpop.f32.mrf.mxu0
    %v2678 = vadd.f32 %v2342, %v2677
    %v2679 = vand.u32 %v1512, 4294901760
    %v2680 = vsub.f32 %v1512, %v2679
    %2681 = vmatmul.f32.gmra.mxu0 %v2680
    %v2682 = vpop.f32.mrf.mxu0
    %v2683 = vadd.f32 %v2346, %v2682
    %v2684 = vand.u32 %v1515, 4294901760
    %v2685 = vsub.f32 %v1515, %v2684
    %2686 = vmatmul.f32.gmra.mxu0 %v2685
    %v2687 = vpop.f32.mrf.mxu0
    %v2688 = vadd.f32 %v2350, %v2687
    %v2689 = vand.u32 %v1518, 4294901760
    %v2690 = vsub.f32 %v1518, %v2689
    %2691 = vmatmul.f32.gmra.mxu0 %v2690
    %v2692 = vpop.f32.mrf.mxu0
    %v2693 = vadd.f32 %v2354, %v2692
    %v2694 = vand.u32 %v1521, 4294901760
    %v2695 = vsub.f32 %v1521, %v2694
    %2696 = vmatmul.f32.gmra.mxu0 %v2695
    %v2697 = vpop.f32.mrf.mxu0
    %v2698 = vadd.f32 %v2358, %v2697
    %v2699 = vand.u32 %v1524, 4294901760
    %v2700 = vsub.f32 %v1524, %v2699
    %2701 = vmatmul.f32.gmra.mxu0 %v2700
    %v2702 = vpop.f32.mrf.mxu0
    %v2703 = vadd.f32 %v2362, %v2702
    %v2704 = vand.u32 %v1527, 4294901760
    %v2705 = vsub.f32 %v1527, %v2704
    %2706 = vmatmul.f32.gmra.mxu0 %v2705
    %v2707 = vpop.f32.mrf.mxu0
    %v2708 = vadd.f32 %v2366, %v2707
    %v2709 = vand.u32 %v1530, 4294901760
    %v2710 = vsub.f32 %v1530, %v2709
    %2711 = vmatmul.f32.gmra.mxu0 %v2710
    %v2712 = vpop.f32.mrf.mxu0
    %v2713 = vadd.f32 %v2370, %v2712
    %v2714 = vand.u32 %v1533, 4294901760
    %v2715 = vsub.f32 %v1533, %v2714
    %2716 = vmatmul.f32.gmra.mxu0 %v2715
    %v2717 = vpop.f32.mrf.mxu0
    %v2718 = vadd.f32 %v2374, %v2717
    %v2719 = vand.u32 %v1536, 4294901760
    %v2720 = vsub.f32 %v1536, %v2719
    %2721 = vmatmul.f32.gmra.mxu0 %v2720
    %v2722 = vpop.f32.mrf.mxu0
    %v2723 = vadd.f32 %v2378, %v2722
    %v2724 = vand.u32 %v1539, 4294901760
    %v2725 = vsub.f32 %v1539, %v2724
    %2726 = vmatmul.f32.gmra.mxu0 %v2725
    %v2727 = vpop.f32.mrf.mxu0
    %v2728 = vadd.f32 %v2382, %v2727
    %v2729 = vand.u32 %v1542, 4294901760
    %v2730 = vsub.f32 %v1542, %v2729
    %2731 = vmatmul.f32.gmra.mxu0 %v2730
    %v2732 = vpop.f32.mrf.mxu0
    %v2733 = vadd.f32 %v2386, %v2732
    %v2734 = vand.u32 %v1545, 4294901760
    %v2735 = vsub.f32 %v1545, %v2734
    %2736 = vmatmul.f32.gmra.mxu0 %v2735
    %v2737 = vpop.f32.mrf.mxu0
    %v2738 = vadd.f32 %v2390, %v2737
    %v2739 = vand.u32 %v1548, 4294901760
    %v2740 = vsub.f32 %v1548, %v2739
    %2741 = vmatmul.f32.gmra.mxu0 %v2740
    %v2742 = vpop.f32.mrf.mxu0
    %v2743 = vadd.f32 %v2394, %v2742
    %v2744 = vand.u32 %v1551, 4294901760
    %v2745 = vsub.f32 %v1551, %v2744
    %2746 = vmatmul.f32.gmra.mxu0 %v2745
    %v2747 = vpop.f32.mrf.mxu0
    %v2748 = vadd.f32 %v2398, %v2747
    %v2749 = vand.u32 %v1554, 4294901760
    %v2750 = vsub.f32 %v1554, %v2749
    %2751 = vmatmul.f32.gmra.mxu0 %v2750
    %v2752 = vpop.f32.mrf.mxu0
    %v2753 = vadd.f32 %v2402, %v2752
    %v2754 = vand.u32 %v1557, 4294901760
    %v2755 = vsub.f32 %v1557, %v2754
    %2756 = vmatmul.f32.gmra.mxu0 %v2755
    %v2757 = vpop.f32.mrf.mxu0
    %v2758 = vadd.f32 %v2406, %v2757
    %v2759 = vand.u32 %v1560, 4294901760
    %v2760 = vsub.f32 %v1560, %v2759
    %2761 = vmatmul.f32.gmra.mxu0 %v2760
    %v2762 = vpop.f32.mrf.mxu0
    %v2763 = vadd.f32 %v2410, %v2762
    %2764 = vdwg.mxu0
    %2765 = vmatpush.msra.mxu0 0.0
    %2766 = vmatpush.msra.mxu0 0.0
    %2767 = vmatpush.msra.mxu0 0.0
    %2768 = vmatpush.msra.mxu0 0.0
    %2769 = vmatpush.msra.mxu0 0.0
    %2770 = vmatpush.msra.mxu0 0.0
    %2771 = vmatpush.msra.mxu0 0.0
    %2772 = vmatpush.msra.mxu0 0.0
    %v2773 = vand.u32 %v1368, 4294901760
    %2774 = vmatpush.msra.mxu0 %v2773
    %v2775 = vand.u32 %v1367, 4294901760
    %2776 = vmatpush.msra.mxu0 %v2775
    %v2777 = vand.u32 %v1366, 4294901760
    %2778 = vmatpush.msra.mxu0 %v2777
    %v2779 = vand.u32 %v1365, 4294901760
    %2780 = vmatpush.msra.mxu0 %v2779
    %v2781 = vand.u32 %v1364, 4294901760
    %2782 = vmatpush.msra.mxu0 %v2781
    %v2783 = vand.u32 %v1363, 4294901760
    %2784 = vmatpush.msra.mxu0 %v2783
    %v2785 = vand.u32 %v1362, 4294901760
    %2786 = vmatpush.msra.mxu0 %v2785
    %v2787 = vand.u32 %v1361, 4294901760
    %2788 = vmatpush.msra.mxu0 %v2787
    %v2789 = vand.u32 %v1371, 4294901760
    %v2790 = vsub.f32 %v1371, %v2789
    %v2791 = vand.u32 %v2790, 4294901760
    %2792 = vmatmul.f32.gmra.mxu0 %v2791
    %v2793 = vpop.f32.mrf.mxu0
    %v2794 = vadd.f32 %v2448, %v2793
    %v2795 = vand.u32 %v1374, 4294901760
    %v2796 = vsub.f32 %v1374, %v2795
    %v2797 = vand.u32 %v2796, 4294901760
    %2798 = vmatmul.f32.gmra.mxu0 %v2797
    %v2799 = vpop.f32.mrf.mxu0
    %v2800 = vadd.f32 %v2453, %v2799
    %v2801 = vand.u32 %v1377, 4294901760
    %v2802 = vsub.f32 %v1377, %v2801
    %v2803 = vand.u32 %v2802, 4294901760
    %2804 = vmatmul.f32.gmra.mxu0 %v2803
    %v2805 = vpop.f32.mrf.mxu0
    %v2806 = vadd.f32 %v2458, %v2805
    %v2807 = vand.u32 %v1380, 4294901760
    %v2808 = vsub.f32 %v1380, %v2807
    %v2809 = vand.u32 %v2808, 4294901760
    %2810 = vmatmul.f32.gmra.mxu0 %v2809
    %v2811 = vpop.f32.mrf.mxu0
    %v2812 = vadd.f32 %v2463, %v2811
    %v2813 = vand.u32 %v1383, 4294901760
    %v2814 = vsub.f32 %v1383, %v2813
    %v2815 = vand.u32 %v2814, 4294901760
    %2816 = vmatmul.f32.gmra.mxu0 %v2815
    %v2817 = vpop.f32.mrf.mxu0
    %v2818 = vadd.f32 %v2468, %v2817
    %v2819 = vand.u32 %v1386, 4294901760
    %v2820 = vsub.f32 %v1386, %v2819
    %v2821 = vand.u32 %v2820, 4294901760
    %2822 = vmatmul.f32.gmra.mxu0 %v2821
    %v2823 = vpop.f32.mrf.mxu0
    %v2824 = vadd.f32 %v2473, %v2823
    %v2825 = vand.u32 %v1389, 4294901760
    %v2826 = vsub.f32 %v1389, %v2825
    %v2827 = vand.u32 %v2826, 4294901760
    %2828 = vmatmul.f32.gmra.mxu0 %v2827
    %v2829 = vpop.f32.mrf.mxu0
    %v2830 = vadd.f32 %v2478, %v2829
    %v2831 = vand.u32 %v1392, 4294901760
    %v2832 = vsub.f32 %v1392, %v2831
    %v2833 = vand.u32 %v2832, 4294901760
    %2834 = vmatmul.f32.gmra.mxu0 %v2833
    %v2835 = vpop.f32.mrf.mxu0
    %v2836 = vadd.f32 %v2483, %v2835
    %v2837 = vand.u32 %v1395, 4294901760
    %v2838 = vsub.f32 %v1395, %v2837
    %v2839 = vand.u32 %v2838, 4294901760
    %2840 = vmatmul.f32.gmra.mxu0 %v2839
    %v2841 = vpop.f32.mrf.mxu0
    %v2842 = vadd.f32 %v2488, %v2841
    %v2843 = vand.u32 %v1398, 4294901760
    %v2844 = vsub.f32 %v1398, %v2843
    %v2845 = vand.u32 %v2844, 4294901760
    %2846 = vmatmul.f32.gmra.mxu0 %v2845
    %v2847 = vpop.f32.mrf.mxu0
    %v2848 = vadd.f32 %v2493, %v2847
    %v2849 = vand.u32 %v1401, 4294901760
    %v2850 = vsub.f32 %v1401, %v2849
    %v2851 = vand.u32 %v2850, 4294901760
    %2852 = vmatmul.f32.gmra.mxu0 %v2851
    %v2853 = vpop.f32.mrf.mxu0
    %v2854 = vadd.f32 %v2498, %v2853
    %v2855 = vand.u32 %v1404, 4294901760
    %v2856 = vsub.f32 %v1404, %v2855
    %v2857 = vand.u32 %v2856, 4294901760
    %2858 = vmatmul.f32.gmra.mxu0 %v2857
    %v2859 = vpop.f32.mrf.mxu0
    %v2860 = vadd.f32 %v2503, %v2859
    %v2861 = vand.u32 %v1407, 4294901760
    %v2862 = vsub.f32 %v1407, %v2861
    %v2863 = vand.u32 %v2862, 4294901760
    %2864 = vmatmul.f32.gmra.mxu0 %v2863
    %v2865 = vpop.f32.mrf.mxu0
    %v2866 = vadd.f32 %v2508, %v2865
    %v2867 = vand.u32 %v1410, 4294901760
    %v2868 = vsub.f32 %v1410, %v2867
    %v2869 = vand.u32 %v2868, 4294901760
    %2870 = vmatmul.f32.gmra.mxu0 %v2869
    %v2871 = vpop.f32.mrf.mxu0
    %v2872 = vadd.f32 %v2513, %v2871
    %v2873 = vand.u32 %v1413, 4294901760
    %v2874 = vsub.f32 %v1413, %v2873
    %v2875 = vand.u32 %v2874, 4294901760
    %2876 = vmatmul.f32.gmra.mxu0 %v2875
    %v2877 = vpop.f32.mrf.mxu0
    %v2878 = vadd.f32 %v2518, %v2877
    %v2879 = vand.u32 %v1416, 4294901760
    %v2880 = vsub.f32 %v1416, %v2879
    %v2881 = vand.u32 %v2880, 4294901760
    %2882 = vmatmul.f32.gmra.mxu0 %v2881
    %v2883 = vpop.f32.mrf.mxu0
    %v2884 = vadd.f32 %v2523, %v2883
    %v2885 = vand.u32 %v1419, 4294901760
    %v2886 = vsub.f32 %v1419, %v2885
    %v2887 = vand.u32 %v2886, 4294901760
    %2888 = vmatmul.f32.gmra.mxu0 %v2887
    %v2889 = vpop.f32.mrf.mxu0
    %v2890 = vadd.f32 %v2528, %v2889
    %v2891 = vand.u32 %v1422, 4294901760
    %v2892 = vsub.f32 %v1422, %v2891
    %v2893 = vand.u32 %v2892, 4294901760
    %2894 = vmatmul.f32.gmra.mxu0 %v2893
    %v2895 = vpop.f32.mrf.mxu0
    %v2896 = vadd.f32 %v2533, %v2895
    %v2897 = vand.u32 %v1425, 4294901760
    %v2898 = vsub.f32 %v1425, %v2897
    %v2899 = vand.u32 %v2898, 4294901760
    %2900 = vmatmul.f32.gmra.mxu0 %v2899
    %v2901 = vpop.f32.mrf.mxu0
    %v2902 = vadd.f32 %v2538, %v2901
    %v2903 = vand.u32 %v1428, 4294901760
    %v2904 = vsub.f32 %v1428, %v2903
    %v2905 = vand.u32 %v2904, 4294901760
    %2906 = vmatmul.f32.gmra.mxu0 %v2905
    %v2907 = vpop.f32.mrf.mxu0
    %v2908 = vadd.f32 %v2543, %v2907
    %v2909 = vand.u32 %v1431, 4294901760
    %v2910 = vsub.f32 %v1431, %v2909
    %v2911 = vand.u32 %v2910, 4294901760
    %2912 = vmatmul.f32.gmra.mxu0 %v2911
    %v2913 = vpop.f32.mrf.mxu0
    %v2914 = vadd.f32 %v2548, %v2913
    %v2915 = vand.u32 %v1434, 4294901760
    %v2916 = vsub.f32 %v1434, %v2915
    %v2917 = vand.u32 %v2916, 4294901760
    %2918 = vmatmul.f32.gmra.mxu0 %v2917
    %v2919 = vpop.f32.mrf.mxu0
    %v2920 = vadd.f32 %v2553, %v2919
    %v2921 = vand.u32 %v1437, 4294901760
    %v2922 = vsub.f32 %v1437, %v2921
    %v2923 = vand.u32 %v2922, 4294901760
    %2924 = vmatmul.f32.gmra.mxu0 %v2923
    %v2925 = vpop.f32.mrf.mxu0
    %v2926 = vadd.f32 %v2558, %v2925
    %v2927 = vand.u32 %v1440, 4294901760
    %v2928 = vsub.f32 %v1440, %v2927
    %v2929 = vand.u32 %v2928, 4294901760
    %2930 = vmatmul.f32.gmra.mxu0 %v2929
    %v2931 = vpop.f32.mrf.mxu0
    %v2932 = vadd.f32 %v2563, %v2931
    %v2933 = vand.u32 %v1443, 4294901760
    %v2934 = vsub.f32 %v1443, %v2933
    %v2935 = vand.u32 %v2934, 4294901760
    %2936 = vmatmul.f32.gmra.mxu0 %v2935
    %v2937 = vpop.f32.mrf.mxu0
    %v2938 = vadd.f32 %v2568, %v2937
    %v2939 = vand.u32 %v1446, 4294901760
    %v2940 = vsub.f32 %v1446, %v2939
    %v2941 = vand.u32 %v2940, 4294901760
    %2942 = vmatmul.f32.gmra.mxu0 %v2941
    %v2943 = vpop.f32.mrf.mxu0
    %v2944 = vadd.f32 %v2573, %v2943
    %v2945 = vand.u32 %v1449, 4294901760
    %v2946 = vsub.f32 %v1449, %v2945
    %v2947 = vand.u32 %v2946, 4294901760
    %2948 = vmatmul.f32.gmra.mxu0 %v2947
    %v2949 = vpop.f32.mrf.mxu0
    %v2950 = vadd.f32 %v2578, %v2949
    %v2951 = vand.u32 %v1452, 4294901760
    %v2952 = vsub.f32 %v1452, %v2951
    %v2953 = vand.u32 %v2952, 4294901760
    %2954 = vmatmul.f32.gmra.mxu0 %v2953
    %v2955 = vpop.f32.mrf.mxu0
    %v2956 = vadd.f32 %v2583, %v2955
    %v2957 = vand.u32 %v1455, 4294901760
    %v2958 = vsub.f32 %v1455, %v2957
    %v2959 = vand.u32 %v2958, 4294901760
    %2960 = vmatmul.f32.gmra.mxu0 %v2959
    %v2961 = vpop.f32.mrf.mxu0
    %v2962 = vadd.f32 %v2588, %v2961
    %v2963 = vand.u32 %v1458, 4294901760
    %v2964 = vsub.f32 %v1458, %v2963
    %v2965 = vand.u32 %v2964, 4294901760
    %2966 = vmatmul.f32.gmra.mxu0 %v2965
    %v2967 = vpop.f32.mrf.mxu0
    %v2968 = vadd.f32 %v2593, %v2967
    %v2969 = vand.u32 %v1461, 4294901760
    %v2970 = vsub.f32 %v1461, %v2969
    %v2971 = vand.u32 %v2970, 4294901760
    %2972 = vmatmul.f32.gmra.mxu0 %v2971
    %v2973 = vpop.f32.mrf.mxu0
    %v2974 = vadd.f32 %v2598, %v2973
    %v2975 = vand.u32 %v1464, 4294901760
    %v2976 = vsub.f32 %v1464, %v2975
    %v2977 = vand.u32 %v2976, 4294901760
    %2978 = vmatmul.f32.gmra.mxu0 %v2977
    %v2979 = vpop.f32.mrf.mxu0
    %v2980 = vadd.f32 %v2603, %v2979
    %v2981 = vand.u32 %v1467, 4294901760
    %v2982 = vsub.f32 %v1467, %v2981
    %v2983 = vand.u32 %v2982, 4294901760
    %2984 = vmatmul.f32.gmra.mxu0 %v2983
    %v2985 = vpop.f32.mrf.mxu0
    %v2986 = vadd.f32 %v2608, %v2985
    %v2987 = vand.u32 %v1470, 4294901760
    %v2988 = vsub.f32 %v1470, %v2987
    %v2989 = vand.u32 %v2988, 4294901760
    %2990 = vmatmul.f32.gmra.mxu0 %v2989
    %v2991 = vpop.f32.mrf.mxu0
    %v2992 = vadd.f32 %v2613, %v2991
    %v2993 = vand.u32 %v1473, 4294901760
    %v2994 = vsub.f32 %v1473, %v2993
    %v2995 = vand.u32 %v2994, 4294901760
    %2996 = vmatmul.f32.gmra.mxu0 %v2995
    %v2997 = vpop.f32.mrf.mxu0
    %v2998 = vadd.f32 %v2618, %v2997
    %v2999 = vand.u32 %v1476, 4294901760
    %v3000 = vsub.f32 %v1476, %v2999
    %v3001 = vand.u32 %v3000, 4294901760
    %3002 = vmatmul.f32.gmra.mxu0 %v3001
    %v3003 = vpop.f32.mrf.mxu0
    %v3004 = vadd.f32 %v2623, %v3003
    %v3005 = vand.u32 %v1479, 4294901760
    %v3006 = vsub.f32 %v1479, %v3005
    %v3007 = vand.u32 %v3006, 4294901760
    %3008 = vmatmul.f32.gmra.mxu0 %v3007
    %v3009 = vpop.f32.mrf.mxu0
    %v3010 = vadd.f32 %v2628, %v3009
    %v3011 = vand.u32 %v1482, 4294901760
    %v3012 = vsub.f32 %v1482, %v3011
    %v3013 = vand.u32 %v3012, 4294901760
    %3014 = vmatmul.f32.gmra.mxu0 %v3013
    %v3015 = vpop.f32.mrf.mxu0
    %v3016 = vadd.f32 %v2633, %v3015
    %v3017 = vand.u32 %v1485, 4294901760
    %v3018 = vsub.f32 %v1485, %v3017
    %v3019 = vand.u32 %v3018, 4294901760
    %3020 = vmatmul.f32.gmra.mxu0 %v3019
    %v3021 = vpop.f32.mrf.mxu0
    %v3022 = vadd.f32 %v2638, %v3021
    %v3023 = vand.u32 %v1488, 4294901760
    %v3024 = vsub.f32 %v1488, %v3023
    %v3025 = vand.u32 %v3024, 4294901760
    %3026 = vmatmul.f32.gmra.mxu0 %v3025
    %v3027 = vpop.f32.mrf.mxu0
    %v3028 = vadd.f32 %v2643, %v3027
    %v3029 = vand.u32 %v1491, 4294901760
    %v3030 = vsub.f32 %v1491, %v3029
    %v3031 = vand.u32 %v3030, 4294901760
    %3032 = vmatmul.f32.gmra.mxu0 %v3031
    %v3033 = vpop.f32.mrf.mxu0
    %v3034 = vadd.f32 %v2648, %v3033
    %v3035 = vand.u32 %v1494, 4294901760
    %v3036 = vsub.f32 %v1494, %v3035
    %v3037 = vand.u32 %v3036, 4294901760
    %3038 = vmatmul.f32.gmra.mxu0 %v3037
    %v3039 = vpop.f32.mrf.mxu0
    %v3040 = vadd.f32 %v2653, %v3039
    %v3041 = vand.u32 %v1497, 4294901760
    %v3042 = vsub.f32 %v1497, %v3041
    %v3043 = vand.u32 %v3042, 4294901760
    %3044 = vmatmul.f32.gmra.mxu0 %v3043
    %v3045 = vpop.f32.mrf.mxu0
    %v3046 = vadd.f32 %v2658, %v3045
    %v3047 = vand.u32 %v1500, 4294901760
    %v3048 = vsub.f32 %v1500, %v3047
    %v3049 = vand.u32 %v3048, 4294901760
    %3050 = vmatmul.f32.gmra.mxu0 %v3049
    %v3051 = vpop.f32.mrf.mxu0
    %v3052 = vadd.f32 %v2663, %v3051
    %v3053 = vand.u32 %v1503, 4294901760
    %v3054 = vsub.f32 %v1503, %v3053
    %v3055 = vand.u32 %v3054, 4294901760
    %3056 = vmatmul.f32.gmra.mxu0 %v3055
    %v3057 = vpop.f32.mrf.mxu0
    %v3058 = vadd.f32 %v2668, %v3057
    %v3059 = vand.u32 %v1506, 4294901760
    %v3060 = vsub.f32 %v1506, %v3059
    %v3061 = vand.u32 %v3060, 4294901760
    %3062 = vmatmul.f32.gmra.mxu0 %v3061
    %v3063 = vpop.f32.mrf.mxu0
    %v3064 = vadd.f32 %v2673, %v3063
    %v3065 = vand.u32 %v1509, 4294901760
    %v3066 = vsub.f32 %v1509, %v3065
    %v3067 = vand.u32 %v3066, 4294901760
    %3068 = vmatmul.f32.gmra.mxu0 %v3067
    %v3069 = vpop.f32.mrf.mxu0
    %v3070 = vadd.f32 %v2678, %v3069
    %v3071 = vand.u32 %v1512, 4294901760
    %v3072 = vsub.f32 %v1512, %v3071
    %v3073 = vand.u32 %v3072, 4294901760
    %3074 = vmatmul.f32.gmra.mxu0 %v3073
    %v3075 = vpop.f32.mrf.mxu0
    %v3076 = vadd.f32 %v2683, %v3075
    %v3077 = vand.u32 %v1515, 4294901760
    %v3078 = vsub.f32 %v1515, %v3077
    %v3079 = vand.u32 %v3078, 4294901760
    %3080 = vmatmul.f32.gmra.mxu0 %v3079
    %v3081 = vpop.f32.mrf.mxu0
    %v3082 = vadd.f32 %v2688, %v3081
    %v3083 = vand.u32 %v1518, 4294901760
    %v3084 = vsub.f32 %v1518, %v3083
    %v3085 = vand.u32 %v3084, 4294901760
    %3086 = vmatmul.f32.gmra.mxu0 %v3085
    %v3087 = vpop.f32.mrf.mxu0
    %v3088 = vadd.f32 %v2693, %v3087
    %v3089 = vand.u32 %v1521, 4294901760
    %v3090 = vsub.f32 %v1521, %v3089
    %v3091 = vand.u32 %v3090, 4294901760
    %3092 = vmatmul.f32.gmra.mxu0 %v3091
    %v3093 = vpop.f32.mrf.mxu0
    %v3094 = vadd.f32 %v2698, %v3093
    %v3095 = vand.u32 %v1524, 4294901760
    %v3096 = vsub.f32 %v1524, %v3095
    %v3097 = vand.u32 %v3096, 4294901760
    %3098 = vmatmul.f32.gmra.mxu0 %v3097
    %v3099 = vpop.f32.mrf.mxu0
    %v3100 = vadd.f32 %v2703, %v3099
    %v3101 = vand.u32 %v1527, 4294901760
    %v3102 = vsub.f32 %v1527, %v3101
    %v3103 = vand.u32 %v3102, 4294901760
    %3104 = vmatmul.f32.gmra.mxu0 %v3103
    %v3105 = vpop.f32.mrf.mxu0
    %v3106 = vadd.f32 %v2708, %v3105
    %v3107 = vand.u32 %v1530, 4294901760
    %v3108 = vsub.f32 %v1530, %v3107
    %v3109 = vand.u32 %v3108, 4294901760
    %3110 = vmatmul.f32.gmra.mxu0 %v3109
    %v3111 = vpop.f32.mrf.mxu0
    %v3112 = vadd.f32 %v2713, %v3111
    %v3113 = vand.u32 %v1533, 4294901760
    %v3114 = vsub.f32 %v1533, %v3113
    %v3115 = vand.u32 %v3114, 4294901760
    %3116 = vmatmul.f32.gmra.mxu0 %v3115
    %v3117 = vpop.f32.mrf.mxu0
    %v3118 = vadd.f32 %v2718, %v3117
    %v3119 = vand.u32 %v1536, 4294901760
    %v3120 = vsub.f32 %v1536, %v3119
    %v3121 = vand.u32 %v3120, 4294901760
    %3122 = vmatmul.f32.gmra.mxu0 %v3121
    %v3123 = vpop.f32.mrf.mxu0
    %v3124 = vadd.f32 %v2723, %v3123
    %v3125 = vand.u32 %v1539, 4294901760
    %v3126 = vsub.f32 %v1539, %v3125
    %v3127 = vand.u32 %v3126, 4294901760
    %3128 = vmatmul.f32.gmra.mxu0 %v3127
    %v3129 = vpop.f32.mrf.mxu0
    %v3130 = vadd.f32 %v2728, %v3129
    %v3131 = vand.u32 %v1542, 4294901760
    %v3132 = vsub.f32 %v1542, %v3131
    %v3133 = vand.u32 %v3132, 4294901760
    %3134 = vmatmul.f32.gmra.mxu0 %v3133
    %v3135 = vpop.f32.mrf.mxu0
    %v3136 = vadd.f32 %v2733, %v3135
    %v3137 = vand.u32 %v1545, 4294901760
    %v3138 = vsub.f32 %v1545, %v3137
    %v3139 = vand.u32 %v3138, 4294901760
    %3140 = vmatmul.f32.gmra.mxu0 %v3139
    %v3141 = vpop.f32.mrf.mxu0
    %v3142 = vadd.f32 %v2738, %v3141
    %v3143 = vand.u32 %v1548, 4294901760
    %v3144 = vsub.f32 %v1548, %v3143
    %v3145 = vand.u32 %v3144, 4294901760
    %3146 = vmatmul.f32.gmra.mxu0 %v3145
    %v3147 = vpop.f32.mrf.mxu0
    %v3148 = vadd.f32 %v2743, %v3147
    %v3149 = vand.u32 %v1551, 4294901760
    %v3150 = vsub.f32 %v1551, %v3149
    %v3151 = vand.u32 %v3150, 4294901760
    %3152 = vmatmul.f32.gmra.mxu0 %v3151
    %v3153 = vpop.f32.mrf.mxu0
    %v3154 = vadd.f32 %v2748, %v3153
    %v3155 = vand.u32 %v1554, 4294901760
    %v3156 = vsub.f32 %v1554, %v3155
    %v3157 = vand.u32 %v3156, 4294901760
    %3158 = vmatmul.f32.gmra.mxu0 %v3157
    %v3159 = vpop.f32.mrf.mxu0
    %v3160 = vadd.f32 %v2753, %v3159
    %v3161 = vand.u32 %v1557, 4294901760
    %v3162 = vsub.f32 %v1557, %v3161
    %v3163 = vand.u32 %v3162, 4294901760
    %3164 = vmatmul.f32.gmra.mxu0 %v3163
    %v3165 = vpop.f32.mrf.mxu0
    %v3166 = vadd.f32 %v2758, %v3165
    %v3167 = vand.u32 %v1560, 4294901760
    %v3168 = vsub.f32 %v1560, %v3167
    %v3169 = vand.u32 %v3168, 4294901760
    %3170 = vmatmul.f32.gmra.mxu0 %v3169
    %v3171 = vpop.f32.mrf.mxu0
    %v3172 = vadd.f32 %v2763, %v3171
    %3173 = vdwg.mxu0
    %3174 = vmatpush.msra.mxu0 0.0
    %3175 = vmatpush.msra.mxu0 0.0
    %3176 = vmatpush.msra.mxu0 0.0
    %3177 = vmatpush.msra.mxu0 0.0
    %3178 = vmatpush.msra.mxu0 0.0
    %3179 = vmatpush.msra.mxu0 0.0
    %3180 = vmatpush.msra.mxu0 0.0
    %3181 = vmatpush.msra.mxu0 0.0
    %v3182 = vand.u32 %v1368, 4294901760
    %v3183 = vsub.f32 %v1368, %v3182
    %v3184 = vand.u32 %v3183, 4294901760
    %3185 = vmatpush.msra.mxu0 %v3184
    %v3186 = vand.u32 %v1367, 4294901760
    %v3187 = vsub.f32 %v1367, %v3186
    %v3188 = vand.u32 %v3187, 4294901760
    %3189 = vmatpush.msra.mxu0 %v3188
    %v3190 = vand.u32 %v1366, 4294901760
    %v3191 = vsub.f32 %v1366, %v3190
    %v3192 = vand.u32 %v3191, 4294901760
    %3193 = vmatpush.msra.mxu0 %v3192
    %v3194 = vand.u32 %v1365, 4294901760
    %v3195 = vsub.f32 %v1365, %v3194
    %v3196 = vand.u32 %v3195, 4294901760
    %3197 = vmatpush.msra.mxu0 %v3196
    %v3198 = vand.u32 %v1364, 4294901760
    %v3199 = vsub.f32 %v1364, %v3198
    %v3200 = vand.u32 %v3199, 4294901760
    %3201 = vmatpush.msra.mxu0 %v3200
    %v3202 = vand.u32 %v1363, 4294901760
    %v3203 = vsub.f32 %v1363, %v3202
    %v3204 = vand.u32 %v3203, 4294901760
    %3205 = vmatpush.msra.mxu0 %v3204
    %v3206 = vand.u32 %v1362, 4294901760
    %v3207 = vsub.f32 %v1362, %v3206
    %v3208 = vand.u32 %v3207, 4294901760
    %3209 = vmatpush.msra.mxu0 %v3208
    %v3210 = vand.u32 %v1361, 4294901760
    %v3211 = vsub.f32 %v1361, %v3210
    %v3212 = vand.u32 %v3211, 4294901760
    %3213 = vmatpush.msra.mxu0 %v3212
    %v3214 = vand.u32 %v1371, 4294901760
    %3215 = vmatmul.f32.gmra.mxu0 %v3214
    %v3216 = vpop.f32.mrf.mxu0
    %v3217 = vadd.f32 %v2794, %v3216
    %v3218 = vand.u32 %v1374, 4294901760
    %3219 = vmatmul.f32.gmra.mxu0 %v3218
    %v3220 = vpop.f32.mrf.mxu0
    %v3221 = vadd.f32 %v2800, %v3220
    %v3222 = vand.u32 %v1377, 4294901760
    %3223 = vmatmul.f32.gmra.mxu0 %v3222
    %v3224 = vpop.f32.mrf.mxu0
    %v3225 = vadd.f32 %v2806, %v3224
    %v3226 = vand.u32 %v1380, 4294901760
    %3227 = vmatmul.f32.gmra.mxu0 %v3226
    %v3228 = vpop.f32.mrf.mxu0
    %v3229 = vadd.f32 %v2812, %v3228
    %v3230 = vand.u32 %v1383, 4294901760
    %3231 = vmatmul.f32.gmra.mxu0 %v3230
    %v3232 = vpop.f32.mrf.mxu0
    %v3233 = vadd.f32 %v2818, %v3232
    %v3234 = vand.u32 %v1386, 4294901760
    %3235 = vmatmul.f32.gmra.mxu0 %v3234
    %v3236 = vpop.f32.mrf.mxu0
    %v3237 = vadd.f32 %v2824, %v3236
    %v3238 = vand.u32 %v1389, 4294901760
    %3239 = vmatmul.f32.gmra.mxu0 %v3238
    %v3240 = vpop.f32.mrf.mxu0
    %v3241 = vadd.f32 %v2830, %v3240
    %v3242 = vand.u32 %v1392, 4294901760
    %3243 = vmatmul.f32.gmra.mxu0 %v3242
    %v3244 = vpop.f32.mrf.mxu0
    %v3245 = vadd.f32 %v2836, %v3244
    %v3246 = vand.u32 %v1395, 4294901760
    %3247 = vmatmul.f32.gmra.mxu0 %v3246
    %v3248 = vpop.f32.mrf.mxu0
    %v3249 = vadd.f32 %v2842, %v3248
    %v3250 = vand.u32 %v1398, 4294901760
    %3251 = vmatmul.f32.gmra.mxu0 %v3250
    %v3252 = vpop.f32.mrf.mxu0
    %v3253 = vadd.f32 %v2848, %v3252
    %v3254 = vand.u32 %v1401, 4294901760
    %3255 = vmatmul.f32.gmra.mxu0 %v3254
    %v3256 = vpop.f32.mrf.mxu0
    %v3257 = vadd.f32 %v2854, %v3256
    %v3258 = vand.u32 %v1404, 4294901760
    %3259 = vmatmul.f32.gmra.mxu0 %v3258
    %v3260 = vpop.f32.mrf.mxu0
    %v3261 = vadd.f32 %v2860, %v3260
    %v3262 = vand.u32 %v1407, 4294901760
    %3263 = vmatmul.f32.gmra.mxu0 %v3262
    %v3264 = vpop.f32.mrf.mxu0
    %v3265 = vadd.f32 %v2866, %v3264
    %v3266 = vand.u32 %v1410, 4294901760
    %3267 = vmatmul.f32.gmra.mxu0 %v3266
    %v3268 = vpop.f32.mrf.mxu0
    %v3269 = vadd.f32 %v2872, %v3268
    %v3270 = vand.u32 %v1413, 4294901760
    %3271 = vmatmul.f32.gmra.mxu0 %v3270
    %v3272 = vpop.f32.mrf.mxu0
    %v3273 = vadd.f32 %v2878, %v3272
    %v3274 = vand.u32 %v1416, 4294901760
    %3275 = vmatmul.f32.gmra.mxu0 %v3274
    %v3276 = vpop.f32.mrf.mxu0
    %v3277 = vadd.f32 %v2884, %v3276
    %v3278 = vand.u32 %v1419, 4294901760
    %3279 = vmatmul.f32.gmra.mxu0 %v3278
    %v3280 = vpop.f32.mrf.mxu0
    %v3281 = vadd.f32 %v2890, %v3280
    %v3282 = vand.u32 %v1422, 4294901760
    %3283 = vmatmul.f32.gmra.mxu0 %v3282
    %v3284 = vpop.f32.mrf.mxu0
    %v3285 = vadd.f32 %v2896, %v3284
    %v3286 = vand.u32 %v1425, 4294901760
    %3287 = vmatmul.f32.gmra.mxu0 %v3286
    %v3288 = vpop.f32.mrf.mxu0
    %v3289 = vadd.f32 %v2902, %v3288
    %v3290 = vand.u32 %v1428, 4294901760
    %3291 = vmatmul.f32.gmra.mxu0 %v3290
    %v3292 = vpop.f32.mrf.mxu0
    %v3293 = vadd.f32 %v2908, %v3292
    %v3294 = vand.u32 %v1431, 4294901760
    %3295 = vmatmul.f32.gmra.mxu0 %v3294
    %v3296 = vpop.f32.mrf.mxu0
    %v3297 = vadd.f32 %v2914, %v3296
    %v3298 = vand.u32 %v1434, 4294901760
    %3299 = vmatmul.f32.gmra.mxu0 %v3298
    %v3300 = vpop.f32.mrf.mxu0
    %v3301 = vadd.f32 %v2920, %v3300
    %v3302 = vand.u32 %v1437, 4294901760
    %3303 = vmatmul.f32.gmra.mxu0 %v3302
    %v3304 = vpop.f32.mrf.mxu0
    %v3305 = vadd.f32 %v2926, %v3304
    %v3306 = vand.u32 %v1440, 4294901760
    %3307 = vmatmul.f32.gmra.mxu0 %v3306
    %v3308 = vpop.f32.mrf.mxu0
    %v3309 = vadd.f32 %v2932, %v3308
    %v3310 = vand.u32 %v1443, 4294901760
    %3311 = vmatmul.f32.gmra.mxu0 %v3310
    %v3312 = vpop.f32.mrf.mxu0
    %v3313 = vadd.f32 %v2938, %v3312
    %v3314 = vand.u32 %v1446, 4294901760
    %3315 = vmatmul.f32.gmra.mxu0 %v3314
    %v3316 = vpop.f32.mrf.mxu0
    %v3317 = vadd.f32 %v2944, %v3316
    %v3318 = vand.u32 %v1449, 4294901760
    %3319 = vmatmul.f32.gmra.mxu0 %v3318
    %v3320 = vpop.f32.mrf.mxu0
    %v3321 = vadd.f32 %v2950, %v3320
    %v3322 = vand.u32 %v1452, 4294901760
    %3323 = vmatmul.f32.gmra.mxu0 %v3322
    %v3324 = vpop.f32.mrf.mxu0
    %v3325 = vadd.f32 %v2956, %v3324
    %v3326 = vand.u32 %v1455, 4294901760
    %3327 = vmatmul.f32.gmra.mxu0 %v3326
    %v3328 = vpop.f32.mrf.mxu0
    %v3329 = vadd.f32 %v2962, %v3328
    %v3330 = vand.u32 %v1458, 4294901760
    %3331 = vmatmul.f32.gmra.mxu0 %v3330
    %v3332 = vpop.f32.mrf.mxu0
    %v3333 = vadd.f32 %v2968, %v3332
    %v3334 = vand.u32 %v1461, 4294901760
    %3335 = vmatmul.f32.gmra.mxu0 %v3334
    %v3336 = vpop.f32.mrf.mxu0
    %v3337 = vadd.f32 %v2974, %v3336
    %v3338 = vand.u32 %v1464, 4294901760
    %3339 = vmatmul.f32.gmra.mxu0 %v3338
    %v3340 = vpop.f32.mrf.mxu0
    %v3341 = vadd.f32 %v2980, %v3340
    %v3342 = vand.u32 %v1467, 4294901760
    %3343 = vmatmul.f32.gmra.mxu0 %v3342
    %v3344 = vpop.f32.mrf.mxu0
    %v3345 = vadd.f32 %v2986, %v3344
    %v3346 = vand.u32 %v1470, 4294901760
    %3347 = vmatmul.f32.gmra.mxu0 %v3346
    %v3348 = vpop.f32.mrf.mxu0
    %v3349 = vadd.f32 %v2992, %v3348
    %v3350 = vand.u32 %v1473, 4294901760
    %3351 = vmatmul.f32.gmra.mxu0 %v3350
    %v3352 = vpop.f32.mrf.mxu0
    %v3353 = vadd.f32 %v2998, %v3352
    %v3354 = vand.u32 %v1476, 4294901760
    %3355 = vmatmul.f32.gmra.mxu0 %v3354
    %v3356 = vpop.f32.mrf.mxu0
    %v3357 = vadd.f32 %v3004, %v3356
    %v3358 = vand.u32 %v1479, 4294901760
    %3359 = vmatmul.f32.gmra.mxu0 %v3358
    %v3360 = vpop.f32.mrf.mxu0
    %v3361 = vadd.f32 %v3010, %v3360
    %v3362 = vand.u32 %v1482, 4294901760
    %3363 = vmatmul.f32.gmra.mxu0 %v3362
    %v3364 = vpop.f32.mrf.mxu0
    %v3365 = vadd.f32 %v3016, %v3364
    %v3366 = vand.u32 %v1485, 4294901760
    %3367 = vmatmul.f32.gmra.mxu0 %v3366
    %v3368 = vpop.f32.mrf.mxu0
    %v3369 = vadd.f32 %v3022, %v3368
    %v3370 = vand.u32 %v1488, 4294901760
    %3371 = vmatmul.f32.gmra.mxu0 %v3370
    %v3372 = vpop.f32.mrf.mxu0
    %v3373 = vadd.f32 %v3028, %v3372
    %v3374 = vand.u32 %v1491, 4294901760
    %3375 = vmatmul.f32.gmra.mxu0 %v3374
    %v3376 = vpop.f32.mrf.mxu0
    %v3377 = vadd.f32 %v3034, %v3376
    %v3378 = vand.u32 %v1494, 4294901760
    %3379 = vmatmul.f32.gmra.mxu0 %v3378
    %v3380 = vpop.f32.mrf.mxu0
    %v3381 = vadd.f32 %v3040, %v3380
    %v3382 = vand.u32 %v1497, 4294901760
    %3383 = vmatmul.f32.gmra.mxu0 %v3382
    %v3384 = vpop.f32.mrf.mxu0
    %v3385 = vadd.f32 %v3046, %v3384
    %v3386 = vand.u32 %v1500, 4294901760
    %3387 = vmatmul.f32.gmra.mxu0 %v3386
    %v3388 = vpop.f32.mrf.mxu0
    %v3389 = vadd.f32 %v3052, %v3388
    %v3390 = vand.u32 %v1503, 4294901760
    %3391 = vmatmul.f32.gmra.mxu0 %v3390
    %v3392 = vpop.f32.mrf.mxu0
    %v3393 = vadd.f32 %v3058, %v3392
    %v3394 = vand.u32 %v1506, 4294901760
    %3395 = vmatmul.f32.gmra.mxu0 %v3394
    %v3396 = vpop.f32.mrf.mxu0
    %v3397 = vadd.f32 %v3064, %v3396
    %v3398 = vand.u32 %v1509, 4294901760
    %3399 = vmatmul.f32.gmra.mxu0 %v3398
    %v3400 = vpop.f32.mrf.mxu0
    %v3401 = vadd.f32 %v3070, %v3400
    %v3402 = vand.u32 %v1512, 4294901760
    %3403 = vmatmul.f32.gmra.mxu0 %v3402
    %v3404 = vpop.f32.mrf.mxu0
    %v3405 = vadd.f32 %v3076, %v3404
    %v3406 = vand.u32 %v1515, 4294901760
    %3407 = vmatmul.f32.gmra.mxu0 %v3406
    %v3408 = vpop.f32.mrf.mxu0
    %v3409 = vadd.f32 %v3082, %v3408
    %v3410 = vand.u32 %v1518, 4294901760
    %3411 = vmatmul.f32.gmra.mxu0 %v3410
    %v3412 = vpop.f32.mrf.mxu0
    %v3413 = vadd.f32 %v3088, %v3412
    %v3414 = vand.u32 %v1521, 4294901760
    %3415 = vmatmul.f32.gmra.mxu0 %v3414
    %v3416 = vpop.f32.mrf.mxu0
    %v3417 = vadd.f32 %v3094, %v3416
    %v3418 = vand.u32 %v1524, 4294901760
    %3419 = vmatmul.f32.gmra.mxu0 %v3418
    %v3420 = vpop.f32.mrf.mxu0
    %v3421 = vadd.f32 %v3100, %v3420
    %v3422 = vand.u32 %v1527, 4294901760
    %3423 = vmatmul.f32.gmra.mxu0 %v3422
    %v3424 = vpop.f32.mrf.mxu0
    %v3425 = vadd.f32 %v3106, %v3424
    %v3426 = vand.u32 %v1530, 4294901760
    %3427 = vmatmul.f32.gmra.mxu0 %v3426
    %v3428 = vpop.f32.mrf.mxu0
    %v3429 = vadd.f32 %v3112, %v3428
    %v3430 = vand.u32 %v1533, 4294901760
    %3431 = vmatmul.f32.gmra.mxu0 %v3430
    %v3432 = vpop.f32.mrf.mxu0
    %v3433 = vadd.f32 %v3118, %v3432
    %v3434 = vand.u32 %v1536, 4294901760
    %3435 = vmatmul.f32.gmra.mxu0 %v3434
    %v3436 = vpop.f32.mrf.mxu0
    %v3437 = vadd.f32 %v3124, %v3436
    %v3438 = vand.u32 %v1539, 4294901760
    %3439 = vmatmul.f32.gmra.mxu0 %v3438
    %v3440 = vpop.f32.mrf.mxu0
    %v3441 = vadd.f32 %v3130, %v3440
    %v3442 = vand.u32 %v1542, 4294901760
    %3443 = vmatmul.f32.gmra.mxu0 %v3442
    %v3444 = vpop.f32.mrf.mxu0
    %v3445 = vadd.f32 %v3136, %v3444
    %v3446 = vand.u32 %v1545, 4294901760
    %3447 = vmatmul.f32.gmra.mxu0 %v3446
    %v3448 = vpop.f32.mrf.mxu0
    %v3449 = vadd.f32 %v3142, %v3448
    %v3450 = vand.u32 %v1548, 4294901760
    %3451 = vmatmul.f32.gmra.mxu0 %v3450
    %v3452 = vpop.f32.mrf.mxu0
    %v3453 = vadd.f32 %v3148, %v3452
    %v3454 = vand.u32 %v1551, 4294901760
    %3455 = vmatmul.f32.gmra.mxu0 %v3454
    %v3456 = vpop.f32.mrf.mxu0
    %v3457 = vadd.f32 %v3154, %v3456
    %v3458 = vand.u32 %v1554, 4294901760
    %3459 = vmatmul.f32.gmra.mxu0 %v3458
    %v3460 = vpop.f32.mrf.mxu0
    %v3461 = vadd.f32 %v3160, %v3460
    %v3462 = vand.u32 %v1557, 4294901760
    %3463 = vmatmul.f32.gmra.mxu0 %v3462
    %v3464 = vpop.f32.mrf.mxu0
    %v3465 = vadd.f32 %v3166, %v3464
    %v3466 = vand.u32 %v1560, 4294901760
    %3467 = vmatmul.f32.gmra.mxu0 %v3466
    %v3468 = vpop.f32.mrf.mxu0
    %v3469 = vadd.f32 %v3172, %v3468
    %3470 = vdwg.mxu0
    %3471 = vmatpush.msra.mxu0 0.0
    %3472 = vmatpush.msra.mxu0 0.0
    %3473 = vmatpush.msra.mxu0 0.0
    %3474 = vmatpush.msra.mxu0 0.0
    %3475 = vmatpush.msra.mxu0 0.0
    %3476 = vmatpush.msra.mxu0 0.0
    %3477 = vmatpush.msra.mxu0 0.0
    %3478 = vmatpush.msra.mxu0 0.0
    %v3479 = vand.u32 %v1368, 4294901760
    %3480 = vmatpush.msra.mxu0 %v3479
    %v3481 = vand.u32 %v1367, 4294901760
    %3482 = vmatpush.msra.mxu0 %v3481
    %v3483 = vand.u32 %v1366, 4294901760
    %3484 = vmatpush.msra.mxu0 %v3483
    %v3485 = vand.u32 %v1365, 4294901760
    %3486 = vmatpush.msra.mxu0 %v3485
    %v3487 = vand.u32 %v1364, 4294901760
    %3488 = vmatpush.msra.mxu0 %v3487
    %v3489 = vand.u32 %v1363, 4294901760
    %3490 = vmatpush.msra.mxu0 %v3489
    %v3491 = vand.u32 %v1362, 4294901760
    %3492 = vmatpush.msra.mxu0 %v3491
    %v3493 = vand.u32 %v1361, 4294901760
    %3494 = vmatpush.msra.mxu0 %v3493
    %v3495 = vand.u32 %v1371, 4294901760
    %3496 = vmatmul.f32.gmra.mxu0 %v3495
    %v3497 = vpop.f32.mrf.mxu0
    %v3498 = vadd.f32 %v3217, %v3497
    %v3499 = vand.u32 %v1374, 4294901760
    %3500 = vmatmul.f32.gmra.mxu0 %v3499
    %v3501 = vpop.f32.mrf.mxu0
    %v3502 = vadd.f32 %v3221, %v3501
    %v3503 = vand.u32 %v1377, 4294901760
    %3504 = vmatmul.f32.gmra.mxu0 %v3503
    %v3505 = vpop.f32.mrf.mxu0
    %v3506 = vadd.f32 %v3225, %v3505
    %v3507 = vand.u32 %v1380, 4294901760
    %3508 = vmatmul.f32.gmra.mxu0 %v3507
    %v3509 = vpop.f32.mrf.mxu0
    %v3510 = vadd.f32 %v3229, %v3509
    %v3511 = vand.u32 %v1383, 4294901760
    %3512 = vmatmul.f32.gmra.mxu0 %v3511
    %v3513 = vpop.f32.mrf.mxu0
    %v3514 = vadd.f32 %v3233, %v3513
    %v3515 = vand.u32 %v1386, 4294901760
    %3516 = vmatmul.f32.gmra.mxu0 %v3515
    %v3517 = vpop.f32.mrf.mxu0
    %v3518 = vadd.f32 %v3237, %v3517
    %v3519 = vand.u32 %v1389, 4294901760
    %3520 = vmatmul.f32.gmra.mxu0 %v3519
    %v3521 = vpop.f32.mrf.mxu0
    %v3522 = vadd.f32 %v3241, %v3521
    %v3523 = vand.u32 %v1392, 4294901760
    %3524 = vmatmul.f32.gmra.mxu0 %v3523
    %v3525 = vpop.f32.mrf.mxu0
    %v3526 = vadd.f32 %v3245, %v3525
    %v3527 = vand.u32 %v1395, 4294901760
    %3528 = vmatmul.f32.gmra.mxu0 %v3527
    %v3529 = vpop.f32.mrf.mxu0
    %v3530 = vadd.f32 %v3249, %v3529
    %v3531 = vand.u32 %v1398, 4294901760
    %3532 = vmatmul.f32.gmra.mxu0 %v3531
    %v3533 = vpop.f32.mrf.mxu0
    %v3534 = vadd.f32 %v3253, %v3533
    %v3535 = vand.u32 %v1401, 4294901760
    %3536 = vmatmul.f32.gmra.mxu0 %v3535
    %v3537 = vpop.f32.mrf.mxu0
    %v3538 = vadd.f32 %v3257, %v3537
    %v3539 = vand.u32 %v1404, 4294901760
    %3540 = vmatmul.f32.gmra.mxu0 %v3539
    %v3541 = vpop.f32.mrf.mxu0
    %v3542 = vadd.f32 %v3261, %v3541
    %v3543 = vand.u32 %v1407, 4294901760
    %3544 = vmatmul.f32.gmra.mxu0 %v3543
    %v3545 = vpop.f32.mrf.mxu0
    %v3546 = vadd.f32 %v3265, %v3545
    %v3547 = vand.u32 %v1410, 4294901760
    %3548 = vmatmul.f32.gmra.mxu0 %v3547
    %v3549 = vpop.f32.mrf.mxu0
    %v3550 = vadd.f32 %v3269, %v3549
    %v3551 = vand.u32 %v1413, 4294901760
    %3552 = vmatmul.f32.gmra.mxu0 %v3551
    %v3553 = vpop.f32.mrf.mxu0
    %v3554 = vadd.f32 %v3273, %v3553
    %v3555 = vand.u32 %v1416, 4294901760
    %3556 = vmatmul.f32.gmra.mxu0 %v3555
    %v3557 = vpop.f32.mrf.mxu0
    %v3558 = vadd.f32 %v3277, %v3557
    %v3559 = vand.u32 %v1419, 4294901760
    %3560 = vmatmul.f32.gmra.mxu0 %v3559
    %v3561 = vpop.f32.mrf.mxu0
    %v3562 = vadd.f32 %v3281, %v3561
    %v3563 = vand.u32 %v1422, 4294901760
    %3564 = vmatmul.f32.gmra.mxu0 %v3563
    %v3565 = vpop.f32.mrf.mxu0
    %v3566 = vadd.f32 %v3285, %v3565
    %v3567 = vand.u32 %v1425, 4294901760
    %3568 = vmatmul.f32.gmra.mxu0 %v3567
    %v3569 = vpop.f32.mrf.mxu0
    %v3570 = vadd.f32 %v3289, %v3569
    %v3571 = vand.u32 %v1428, 4294901760
    %3572 = vmatmul.f32.gmra.mxu0 %v3571
    %v3573 = vpop.f32.mrf.mxu0
    %v3574 = vadd.f32 %v3293, %v3573
    %v3575 = vand.u32 %v1431, 4294901760
    %3576 = vmatmul.f32.gmra.mxu0 %v3575
    %v3577 = vpop.f32.mrf.mxu0
    %v3578 = vadd.f32 %v3297, %v3577
    %v3579 = vand.u32 %v1434, 4294901760
    %3580 = vmatmul.f32.gmra.mxu0 %v3579
    %v3581 = vpop.f32.mrf.mxu0
    %v3582 = vadd.f32 %v3301, %v3581
    %v3583 = vand.u32 %v1437, 4294901760
    %3584 = vmatmul.f32.gmra.mxu0 %v3583
    %v3585 = vpop.f32.mrf.mxu0
    %v3586 = vadd.f32 %v3305, %v3585
    %v3587 = vand.u32 %v1440, 4294901760
    %3588 = vmatmul.f32.gmra.mxu0 %v3587
    %v3589 = vpop.f32.mrf.mxu0
    %v3590 = vadd.f32 %v3309, %v3589
    %v3591 = vand.u32 %v1443, 4294901760
    %3592 = vmatmul.f32.gmra.mxu0 %v3591
    %v3593 = vpop.f32.mrf.mxu0
    %v3594 = vadd.f32 %v3313, %v3593
    %v3595 = vand.u32 %v1446, 4294901760
    %3596 = vmatmul.f32.gmra.mxu0 %v3595
    %v3597 = vpop.f32.mrf.mxu0
    %v3598 = vadd.f32 %v3317, %v3597
    %v3599 = vand.u32 %v1449, 4294901760
    %3600 = vmatmul.f32.gmra.mxu0 %v3599
    %v3601 = vpop.f32.mrf.mxu0
    %v3602 = vadd.f32 %v3321, %v3601
    %v3603 = vand.u32 %v1452, 4294901760
    %3604 = vmatmul.f32.gmra.mxu0 %v3603
    %v3605 = vpop.f32.mrf.mxu0
    %v3606 = vadd.f32 %v3325, %v3605
    %v3607 = vand.u32 %v1455, 4294901760
    %3608 = vmatmul.f32.gmra.mxu0 %v3607
    %v3609 = vpop.f32.mrf.mxu0
    %v3610 = vadd.f32 %v3329, %v3609
    %v3611 = vand.u32 %v1458, 4294901760
    %3612 = vmatmul.f32.gmra.mxu0 %v3611
    %v3613 = vpop.f32.mrf.mxu0
    %v3614 = vadd.f32 %v3333, %v3613
    %v3615 = vand.u32 %v1461, 4294901760
    %3616 = vmatmul.f32.gmra.mxu0 %v3615
    %v3617 = vpop.f32.mrf.mxu0
    %v3618 = vadd.f32 %v3337, %v3617
    %v3619 = vand.u32 %v1464, 4294901760
    %3620 = vmatmul.f32.gmra.mxu0 %v3619
    %v3621 = vpop.f32.mrf.mxu0
    %v3622 = vadd.f32 %v3341, %v3621
    %v3623 = vand.u32 %v1467, 4294901760
    %3624 = vmatmul.f32.gmra.mxu0 %v3623
    %v3625 = vpop.f32.mrf.mxu0
    %v3626 = vadd.f32 %v3345, %v3625
    %v3627 = vand.u32 %v1470, 4294901760
    %3628 = vmatmul.f32.gmra.mxu0 %v3627
    %v3629 = vpop.f32.mrf.mxu0
    %v3630 = vadd.f32 %v3349, %v3629
    %v3631 = vand.u32 %v1473, 4294901760
    %3632 = vmatmul.f32.gmra.mxu0 %v3631
    %v3633 = vpop.f32.mrf.mxu0
    %v3634 = vadd.f32 %v3353, %v3633
    %v3635 = vand.u32 %v1476, 4294901760
    %3636 = vmatmul.f32.gmra.mxu0 %v3635
    %v3637 = vpop.f32.mrf.mxu0
    %v3638 = vadd.f32 %v3357, %v3637
    %v3639 = vand.u32 %v1479, 4294901760
    %3640 = vmatmul.f32.gmra.mxu0 %v3639
    %v3641 = vpop.f32.mrf.mxu0
    %v3642 = vadd.f32 %v3361, %v3641
    %v3643 = vand.u32 %v1482, 4294901760
    %3644 = vmatmul.f32.gmra.mxu0 %v3643
    %v3645 = vpop.f32.mrf.mxu0
    %v3646 = vadd.f32 %v3365, %v3645
    %v3647 = vand.u32 %v1485, 4294901760
    %3648 = vmatmul.f32.gmra.mxu0 %v3647
    %v3649 = vpop.f32.mrf.mxu0
    %v3650 = vadd.f32 %v3369, %v3649
    %v3651 = vand.u32 %v1488, 4294901760
    %3652 = vmatmul.f32.gmra.mxu0 %v3651
    %v3653 = vpop.f32.mrf.mxu0
    %v3654 = vadd.f32 %v3373, %v3653
    %v3655 = vand.u32 %v1491, 4294901760
    %3656 = vmatmul.f32.gmra.mxu0 %v3655
    %v3657 = vpop.f32.mrf.mxu0
    %v3658 = vadd.f32 %v3377, %v3657
    %v3659 = vand.u32 %v1494, 4294901760
    %3660 = vmatmul.f32.gmra.mxu0 %v3659
    %v3661 = vpop.f32.mrf.mxu0
    %v3662 = vadd.f32 %v3381, %v3661
    %v3663 = vand.u32 %v1497, 4294901760
    %3664 = vmatmul.f32.gmra.mxu0 %v3663
    %v3665 = vpop.f32.mrf.mxu0
    %v3666 = vadd.f32 %v3385, %v3665
    %v3667 = vand.u32 %v1500, 4294901760
    %3668 = vmatmul.f32.gmra.mxu0 %v3667
    %v3669 = vpop.f32.mrf.mxu0
    %v3670 = vadd.f32 %v3389, %v3669
    %v3671 = vand.u32 %v1503, 4294901760
    %3672 = vmatmul.f32.gmra.mxu0 %v3671
    %v3673 = vpop.f32.mrf.mxu0
    %v3674 = vadd.f32 %v3393, %v3673
    %v3675 = vand.u32 %v1506, 4294901760
    %3676 = vmatmul.f32.gmra.mxu0 %v3675
    %v3677 = vpop.f32.mrf.mxu0
    %v3678 = vadd.f32 %v3397, %v3677
    %v3679 = vand.u32 %v1509, 4294901760
    %3680 = vmatmul.f32.gmra.mxu0 %v3679
    %v3681 = vpop.f32.mrf.mxu0
    %v3682 = vadd.f32 %v3401, %v3681
    %v3683 = vand.u32 %v1512, 4294901760
    %3684 = vmatmul.f32.gmra.mxu0 %v3683
    %v3685 = vpop.f32.mrf.mxu0
    %v3686 = vadd.f32 %v3405, %v3685
    %v3687 = vand.u32 %v1515, 4294901760
    %3688 = vmatmul.f32.gmra.mxu0 %v3687
    %v3689 = vpop.f32.mrf.mxu0
    %v3690 = vadd.f32 %v3409, %v3689
    %v3691 = vand.u32 %v1518, 4294901760
    %3692 = vmatmul.f32.gmra.mxu0 %v3691
    %v3693 = vpop.f32.mrf.mxu0
    %v3694 = vadd.f32 %v3413, %v3693
    %v3695 = vand.u32 %v1521, 4294901760
    %3696 = vmatmul.f32.gmra.mxu0 %v3695
    %v3697 = vpop.f32.mrf.mxu0
    %v3698 = vadd.f32 %v3417, %v3697
    %v3699 = vand.u32 %v1524, 4294901760
    %3700 = vmatmul.f32.gmra.mxu0 %v3699
    %v3701 = vpop.f32.mrf.mxu0
    %v3702 = vadd.f32 %v3421, %v3701
    %v3703 = vand.u32 %v1527, 4294901760
    %3704 = vmatmul.f32.gmra.mxu0 %v3703
    %v3705 = vpop.f32.mrf.mxu0
    %v3706 = vadd.f32 %v3425, %v3705
    %v3707 = vand.u32 %v1530, 4294901760
    %3708 = vmatmul.f32.gmra.mxu0 %v3707
    %v3709 = vpop.f32.mrf.mxu0
    %v3710 = vadd.f32 %v3429, %v3709
    %v3711 = vand.u32 %v1533, 4294901760
    %3712 = vmatmul.f32.gmra.mxu0 %v3711
    %v3713 = vpop.f32.mrf.mxu0
    %v3714 = vadd.f32 %v3433, %v3713
    %v3715 = vand.u32 %v1536, 4294901760
    %3716 = vmatmul.f32.gmra.mxu0 %v3715
    %v3717 = vpop.f32.mrf.mxu0
    %v3718 = vadd.f32 %v3437, %v3717
    %v3719 = vand.u32 %v1539, 4294901760
    %3720 = vmatmul.f32.gmra.mxu0 %v3719
    %v3721 = vpop.f32.mrf.mxu0
    %v3722 = vadd.f32 %v3441, %v3721
    %v3723 = vand.u32 %v1542, 4294901760
    %3724 = vmatmul.f32.gmra.mxu0 %v3723
    %v3725 = vpop.f32.mrf.mxu0
    %v3726 = vadd.f32 %v3445, %v3725
    %v3727 = vand.u32 %v1545, 4294901760
    %3728 = vmatmul.f32.gmra.mxu0 %v3727
    %v3729 = vpop.f32.mrf.mxu0
    %v3730 = vadd.f32 %v3449, %v3729
    %v3731 = vand.u32 %v1548, 4294901760
    %3732 = vmatmul.f32.gmra.mxu0 %v3731
    %v3733 = vpop.f32.mrf.mxu0
    %v3734 = vadd.f32 %v3453, %v3733
    %v3735 = vand.u32 %v1551, 4294901760
    %3736 = vmatmul.f32.gmra.mxu0 %v3735
    %v3737 = vpop.f32.mrf.mxu0
    %v3738 = vadd.f32 %v3457, %v3737
    %v3739 = vand.u32 %v1554, 4294901760
    %3740 = vmatmul.f32.gmra.mxu0 %v3739
    %v3741 = vpop.f32.mrf.mxu0
    %v3742 = vadd.f32 %v3461, %v3741
    %v3743 = vand.u32 %v1557, 4294901760
    %3744 = vmatmul.f32.gmra.mxu0 %v3743
    %v3745 = vpop.f32.mrf.mxu0
    %v3746 = vadd.f32 %v3465, %v3745
    %v3747 = vand.u32 %v1560, 4294901760
    %3748 = vmatmul.f32.gmra.mxu0 %v3747
    %v3749 = vpop.f32.mrf.mxu0
    %v3750 = vadd.f32 %v3469, %v3749
    %3751 = vdwg.mxu0
    %v3753 = vsel %vm1369, %v1297, 0
    %v3756 = vsel %vm1369, %v1298, 0
    %v3759 = vsel %vm1369, %v1299, 0
    %v3762 = vsel %vm1369, %v1300, 0
    %v3765 = vsel %vm1369, %v1301, 0
    %v3768 = vsel %vm1369, %v1302, 0
    %v3771 = vsel %vm1369, %v1303, 0
    %v3774 = vsel %vm1369, %v1304, 0
    %v3777 = vsel %vm1369, %v1305, 0
    %v3780 = vsel %vm1369, %v1306, 0
    %v3783 = vsel %vm1369, %v1307, 0
    %v3786 = vsel %vm1369, %v1308, 0
    %v3789 = vsel %vm1369, %v1309, 0
    %v3792 = vsel %vm1369, %v1310, 0
    %v3795 = vsel %vm1369, %v1311, 0
    %v3798 = vsel %vm1369, %v1312, 0
    %v3801 = vsel %vm1369, %v1313, 0
    %v3804 = vsel %vm1369, %v1314, 0
    %v3807 = vsel %vm1369, %v1315, 0
    %v3810 = vsel %vm1369, %v1316, 0
    %v3813 = vsel %vm1369, %v1317, 0
    %v3816 = vsel %vm1369, %v1318, 0
    %v3819 = vsel %vm1369, %v1319, 0
    %v3822 = vsel %vm1369, %v1320, 0
    %v3825 = vsel %vm1369, %v1321, 0
    %v3828 = vsel %vm1369, %v1322, 0
    %v3831 = vsel %vm1369, %v1323, 0
    %v3834 = vsel %vm1369, %v1324, 0
    %v3837 = vsel %vm1369, %v1325, 0
    %v3840 = vsel %vm1369, %v1326, 0
    %v3843 = vsel %vm1369, %v1327, 0
    %v3846 = vsel %vm1369, %v1328, 0
    %v3849 = vsel %vm1369, %v1329, 0
    %v3852 = vsel %vm1369, %v1330, 0
    %v3855 = vsel %vm1369, %v1331, 0
    %v3858 = vsel %vm1369, %v1332, 0
    %v3861 = vsel %vm1369, %v1333, 0
    %v3864 = vsel %vm1369, %v1334, 0
    %v3867 = vsel %vm1369, %v1335, 0
    %v3870 = vsel %vm1369, %v1336, 0
    %v3873 = vsel %vm1369, %v1337, 0
    %v3876 = vsel %vm1369, %v1338, 0
    %v3879 = vsel %vm1369, %v1339, 0
    %v3882 = vsel %vm1369, %v1340, 0
    %v3885 = vsel %vm1369, %v1341, 0
    %v3888 = vsel %vm1369, %v1342, 0
    %v3891 = vsel %vm1369, %v1343, 0
    %v3894 = vsel %vm1369, %v1344, 0
    %v3897 = vsel %vm1369, %v1345, 0
    %v3900 = vsel %vm1369, %v1346, 0
    %v3903 = vsel %vm1369, %v1347, 0
    %v3906 = vsel %vm1369, %v1348, 0
    %v3909 = vsel %vm1369, %v1349, 0
    %v3912 = vsel %vm1369, %v1350, 0
    %v3915 = vsel %vm1369, %v1351, 0
    %v3918 = vsel %vm1369, %v1352, 0
    %v3921 = vsel %vm1369, %v1353, 0
    %v3924 = vsel %vm1369, %v1354, 0
    %v3927 = vsel %vm1369, %v1355, 0
    %v3930 = vsel %vm1369, %v1356, 0
    %v3933 = vsel %vm1369, %v1357, 0
    %v3936 = vsel %vm1369, %v1358, 0
    %v3939 = vsel %vm1369, %v1359, 0
    %v3942 = vsel %vm1369, %v1360, 0
    %3944 = vmatpush.msra.mxu0 0.0
    %3945 = vmatpush.msra.mxu0 0.0
    %3946 = vmatpush.msra.mxu0 0.0
    %3947 = vmatpush.msra.mxu0 0.0
    %3948 = vmatpush.msra.mxu0 0.0
    %3949 = vmatpush.msra.mxu0 0.0
    %3950 = vmatpush.msra.mxu0 0.0
    %3951 = vmatpush.msra.mxu0 0.0
    %v3952 = vand.u32 %v1368, 4294901760
    %3953 = vmatpush.msra.mxu0 %v3952
    %v3954 = vand.u32 %v1367, 4294901760
    %3955 = vmatpush.msra.mxu0 %v3954
    %v3956 = vand.u32 %v1366, 4294901760
    %3957 = vmatpush.msra.mxu0 %v3956
    %v3958 = vand.u32 %v1365, 4294901760
    %3959 = vmatpush.msra.mxu0 %v3958
    %v3960 = vand.u32 %v1364, 4294901760
    %3961 = vmatpush.msra.mxu0 %v3960
    %v3962 = vand.u32 %v1363, 4294901760
    %3963 = vmatpush.msra.mxu0 %v3962
    %v3964 = vand.u32 %v1362, 4294901760
    %3965 = vmatpush.msra.mxu0 %v3964
    %v3966 = vand.u32 %v1361, 4294901760
    %3967 = vmatpush.msra.mxu0 %v3966
    %v3968 = vand.u32 %v3753, 4294901760
    %v3969 = vsub.f32 %v3753, %v3968
    %v3970 = vand.u32 %v3969, 4294901760
    %v3971 = vsub.f32 %v3969, %v3970
    %v3972 = vand.u32 %v3971, 4294901760
    %3973 = vmatmul.f32.gmra.mxu0 %v3972
    %v3974 = vpop.f32.mrf.mxu0
    %v3975 = vadd.f32 0.0, %v3974
    %v3976 = vand.u32 %v3756, 4294901760
    %v3977 = vsub.f32 %v3756, %v3976
    %v3978 = vand.u32 %v3977, 4294901760
    %v3979 = vsub.f32 %v3977, %v3978
    %v3980 = vand.u32 %v3979, 4294901760
    %3981 = vmatmul.f32.gmra.mxu0 %v3980
    %v3982 = vpop.f32.mrf.mxu0
    %v3983 = vadd.f32 0.0, %v3982
    %v3984 = vand.u32 %v3759, 4294901760
    %v3985 = vsub.f32 %v3759, %v3984
    %v3986 = vand.u32 %v3985, 4294901760
    %v3987 = vsub.f32 %v3985, %v3986
    %v3988 = vand.u32 %v3987, 4294901760
    %3989 = vmatmul.f32.gmra.mxu0 %v3988
    %v3990 = vpop.f32.mrf.mxu0
    %v3991 = vadd.f32 0.0, %v3990
    %v3992 = vand.u32 %v3762, 4294901760
    %v3993 = vsub.f32 %v3762, %v3992
    %v3994 = vand.u32 %v3993, 4294901760
    %v3995 = vsub.f32 %v3993, %v3994
    %v3996 = vand.u32 %v3995, 4294901760
    %3997 = vmatmul.f32.gmra.mxu0 %v3996
    %v3998 = vpop.f32.mrf.mxu0
    %v3999 = vadd.f32 0.0, %v3998
    %v4000 = vand.u32 %v3765, 4294901760
    %v4001 = vsub.f32 %v3765, %v4000
    %v4002 = vand.u32 %v4001, 4294901760
    %v4003 = vsub.f32 %v4001, %v4002
    %v4004 = vand.u32 %v4003, 4294901760
    %4005 = vmatmul.f32.gmra.mxu0 %v4004
    %v4006 = vpop.f32.mrf.mxu0
    %v4007 = vadd.f32 0.0, %v4006
    %v4008 = vand.u32 %v3768, 4294901760
    %v4009 = vsub.f32 %v3768, %v4008
    %v4010 = vand.u32 %v4009, 4294901760
    %v4011 = vsub.f32 %v4009, %v4010
    %v4012 = vand.u32 %v4011, 4294901760
    %4013 = vmatmul.f32.gmra.mxu0 %v4012
    %v4014 = vpop.f32.mrf.mxu0
    %v4015 = vadd.f32 0.0, %v4014
    %v4016 = vand.u32 %v3771, 4294901760
    %v4017 = vsub.f32 %v3771, %v4016
    %v4018 = vand.u32 %v4017, 4294901760
    %v4019 = vsub.f32 %v4017, %v4018
    %v4020 = vand.u32 %v4019, 4294901760
    %4021 = vmatmul.f32.gmra.mxu0 %v4020
    %v4022 = vpop.f32.mrf.mxu0
    %v4023 = vadd.f32 0.0, %v4022
    %v4024 = vand.u32 %v3774, 4294901760
    %v4025 = vsub.f32 %v3774, %v4024
    %v4026 = vand.u32 %v4025, 4294901760
    %v4027 = vsub.f32 %v4025, %v4026
    %v4028 = vand.u32 %v4027, 4294901760
    %4029 = vmatmul.f32.gmra.mxu0 %v4028
    %v4030 = vpop.f32.mrf.mxu0
    %v4031 = vadd.f32 0.0, %v4030
    %v4032 = vand.u32 %v3777, 4294901760
    %v4033 = vsub.f32 %v3777, %v4032
    %v4034 = vand.u32 %v4033, 4294901760
    %v4035 = vsub.f32 %v4033, %v4034
    %v4036 = vand.u32 %v4035, 4294901760
    %4037 = vmatmul.f32.gmra.mxu0 %v4036
    %v4038 = vpop.f32.mrf.mxu0
    %v4039 = vadd.f32 0.0, %v4038
    %v4040 = vand.u32 %v3780, 4294901760
    %v4041 = vsub.f32 %v3780, %v4040
    %v4042 = vand.u32 %v4041, 4294901760
    %v4043 = vsub.f32 %v4041, %v4042
    %v4044 = vand.u32 %v4043, 4294901760
    %4045 = vmatmul.f32.gmra.mxu0 %v4044
    %v4046 = vpop.f32.mrf.mxu0
    %v4047 = vadd.f32 0.0, %v4046
    %v4048 = vand.u32 %v3783, 4294901760
    %v4049 = vsub.f32 %v3783, %v4048
    %v4050 = vand.u32 %v4049, 4294901760
    %v4051 = vsub.f32 %v4049, %v4050
    %v4052 = vand.u32 %v4051, 4294901760
    %4053 = vmatmul.f32.gmra.mxu0 %v4052
    %v4054 = vpop.f32.mrf.mxu0
    %v4055 = vadd.f32 0.0, %v4054
    %v4056 = vand.u32 %v3786, 4294901760
    %v4057 = vsub.f32 %v3786, %v4056
    %v4058 = vand.u32 %v4057, 4294901760
    %v4059 = vsub.f32 %v4057, %v4058
    %v4060 = vand.u32 %v4059, 4294901760
    %4061 = vmatmul.f32.gmra.mxu0 %v4060
    %v4062 = vpop.f32.mrf.mxu0
    %v4063 = vadd.f32 0.0, %v4062
    %v4064 = vand.u32 %v3789, 4294901760
    %v4065 = vsub.f32 %v3789, %v4064
    %v4066 = vand.u32 %v4065, 4294901760
    %v4067 = vsub.f32 %v4065, %v4066
    %v4068 = vand.u32 %v4067, 4294901760
    %4069 = vmatmul.f32.gmra.mxu0 %v4068
    %v4070 = vpop.f32.mrf.mxu0
    %v4071 = vadd.f32 0.0, %v4070
    %v4072 = vand.u32 %v3792, 4294901760
    %v4073 = vsub.f32 %v3792, %v4072
    %v4074 = vand.u32 %v4073, 4294901760
    %v4075 = vsub.f32 %v4073, %v4074
    %v4076 = vand.u32 %v4075, 4294901760
    %4077 = vmatmul.f32.gmra.mxu0 %v4076
    %v4078 = vpop.f32.mrf.mxu0
    %v4079 = vadd.f32 0.0, %v4078
    %v4080 = vand.u32 %v3795, 4294901760
    %v4081 = vsub.f32 %v3795, %v4080
    %v4082 = vand.u32 %v4081, 4294901760
    %v4083 = vsub.f32 %v4081, %v4082
    %v4084 = vand.u32 %v4083, 4294901760
    %4085 = vmatmul.f32.gmra.mxu0 %v4084
    %v4086 = vpop.f32.mrf.mxu0
    %v4087 = vadd.f32 0.0, %v4086
    %v4088 = vand.u32 %v3798, 4294901760
    %v4089 = vsub.f32 %v3798, %v4088
    %v4090 = vand.u32 %v4089, 4294901760
    %v4091 = vsub.f32 %v4089, %v4090
    %v4092 = vand.u32 %v4091, 4294901760
    %4093 = vmatmul.f32.gmra.mxu0 %v4092
    %v4094 = vpop.f32.mrf.mxu0
    %v4095 = vadd.f32 0.0, %v4094
    %v4096 = vand.u32 %v3801, 4294901760
    %v4097 = vsub.f32 %v3801, %v4096
    %v4098 = vand.u32 %v4097, 4294901760
    %v4099 = vsub.f32 %v4097, %v4098
    %v4100 = vand.u32 %v4099, 4294901760
    %4101 = vmatmul.f32.gmra.mxu0 %v4100
    %v4102 = vpop.f32.mrf.mxu0
    %v4103 = vadd.f32 0.0, %v4102
    %v4104 = vand.u32 %v3804, 4294901760
    %v4105 = vsub.f32 %v3804, %v4104
    %v4106 = vand.u32 %v4105, 4294901760
    %v4107 = vsub.f32 %v4105, %v4106
    %v4108 = vand.u32 %v4107, 4294901760
    %4109 = vmatmul.f32.gmra.mxu0 %v4108
    %v4110 = vpop.f32.mrf.mxu0
    %v4111 = vadd.f32 0.0, %v4110
    %v4112 = vand.u32 %v3807, 4294901760
    %v4113 = vsub.f32 %v3807, %v4112
    %v4114 = vand.u32 %v4113, 4294901760
    %v4115 = vsub.f32 %v4113, %v4114
    %v4116 = vand.u32 %v4115, 4294901760
    %4117 = vmatmul.f32.gmra.mxu0 %v4116
    %v4118 = vpop.f32.mrf.mxu0
    %v4119 = vadd.f32 0.0, %v4118
    %v4120 = vand.u32 %v3810, 4294901760
    %v4121 = vsub.f32 %v3810, %v4120
    %v4122 = vand.u32 %v4121, 4294901760
    %v4123 = vsub.f32 %v4121, %v4122
    %v4124 = vand.u32 %v4123, 4294901760
    %4125 = vmatmul.f32.gmra.mxu0 %v4124
    %v4126 = vpop.f32.mrf.mxu0
    %v4127 = vadd.f32 0.0, %v4126
    %v4128 = vand.u32 %v3813, 4294901760
    %v4129 = vsub.f32 %v3813, %v4128
    %v4130 = vand.u32 %v4129, 4294901760
    %v4131 = vsub.f32 %v4129, %v4130
    %v4132 = vand.u32 %v4131, 4294901760
    %4133 = vmatmul.f32.gmra.mxu0 %v4132
    %v4134 = vpop.f32.mrf.mxu0
    %v4135 = vadd.f32 0.0, %v4134
    %v4136 = vand.u32 %v3816, 4294901760
    %v4137 = vsub.f32 %v3816, %v4136
    %v4138 = vand.u32 %v4137, 4294901760
    %v4139 = vsub.f32 %v4137, %v4138
    %v4140 = vand.u32 %v4139, 4294901760
    %4141 = vmatmul.f32.gmra.mxu0 %v4140
    %v4142 = vpop.f32.mrf.mxu0
    %v4143 = vadd.f32 0.0, %v4142
    %v4144 = vand.u32 %v3819, 4294901760
    %v4145 = vsub.f32 %v3819, %v4144
    %v4146 = vand.u32 %v4145, 4294901760
    %v4147 = vsub.f32 %v4145, %v4146
    %v4148 = vand.u32 %v4147, 4294901760
    %4149 = vmatmul.f32.gmra.mxu0 %v4148
    %v4150 = vpop.f32.mrf.mxu0
    %v4151 = vadd.f32 0.0, %v4150
    %v4152 = vand.u32 %v3822, 4294901760
    %v4153 = vsub.f32 %v3822, %v4152
    %v4154 = vand.u32 %v4153, 4294901760
    %v4155 = vsub.f32 %v4153, %v4154
    %v4156 = vand.u32 %v4155, 4294901760
    %4157 = vmatmul.f32.gmra.mxu0 %v4156
    %v4158 = vpop.f32.mrf.mxu0
    %v4159 = vadd.f32 0.0, %v4158
    %v4160 = vand.u32 %v3825, 4294901760
    %v4161 = vsub.f32 %v3825, %v4160
    %v4162 = vand.u32 %v4161, 4294901760
    %v4163 = vsub.f32 %v4161, %v4162
    %v4164 = vand.u32 %v4163, 4294901760
    %4165 = vmatmul.f32.gmra.mxu0 %v4164
    %v4166 = vpop.f32.mrf.mxu0
    %v4167 = vadd.f32 0.0, %v4166
    %v4168 = vand.u32 %v3828, 4294901760
    %v4169 = vsub.f32 %v3828, %v4168
    %v4170 = vand.u32 %v4169, 4294901760
    %v4171 = vsub.f32 %v4169, %v4170
    %v4172 = vand.u32 %v4171, 4294901760
    %4173 = vmatmul.f32.gmra.mxu0 %v4172
    %v4174 = vpop.f32.mrf.mxu0
    %v4175 = vadd.f32 0.0, %v4174
    %v4176 = vand.u32 %v3831, 4294901760
    %v4177 = vsub.f32 %v3831, %v4176
    %v4178 = vand.u32 %v4177, 4294901760
    %v4179 = vsub.f32 %v4177, %v4178
    %v4180 = vand.u32 %v4179, 4294901760
    %4181 = vmatmul.f32.gmra.mxu0 %v4180
    %v4182 = vpop.f32.mrf.mxu0
    %v4183 = vadd.f32 0.0, %v4182
    %v4184 = vand.u32 %v3834, 4294901760
    %v4185 = vsub.f32 %v3834, %v4184
    %v4186 = vand.u32 %v4185, 4294901760
    %v4187 = vsub.f32 %v4185, %v4186
    %v4188 = vand.u32 %v4187, 4294901760
    %4189 = vmatmul.f32.gmra.mxu0 %v4188
    %v4190 = vpop.f32.mrf.mxu0
    %v4191 = vadd.f32 0.0, %v4190
    %v4192 = vand.u32 %v3837, 4294901760
    %v4193 = vsub.f32 %v3837, %v4192
    %v4194 = vand.u32 %v4193, 4294901760
    %v4195 = vsub.f32 %v4193, %v4194
    %v4196 = vand.u32 %v4195, 4294901760
    %4197 = vmatmul.f32.gmra.mxu0 %v4196
    %v4198 = vpop.f32.mrf.mxu0
    %v4199 = vadd.f32 0.0, %v4198
    %v4200 = vand.u32 %v3840, 4294901760
    %v4201 = vsub.f32 %v3840, %v4200
    %v4202 = vand.u32 %v4201, 4294901760
    %v4203 = vsub.f32 %v4201, %v4202
    %v4204 = vand.u32 %v4203, 4294901760
    %4205 = vmatmul.f32.gmra.mxu0 %v4204
    %v4206 = vpop.f32.mrf.mxu0
    %v4207 = vadd.f32 0.0, %v4206
    %v4208 = vand.u32 %v3843, 4294901760
    %v4209 = vsub.f32 %v3843, %v4208
    %v4210 = vand.u32 %v4209, 4294901760
    %v4211 = vsub.f32 %v4209, %v4210
    %v4212 = vand.u32 %v4211, 4294901760
    %4213 = vmatmul.f32.gmra.mxu0 %v4212
    %v4214 = vpop.f32.mrf.mxu0
    %v4215 = vadd.f32 0.0, %v4214
    %v4216 = vand.u32 %v3846, 4294901760
    %v4217 = vsub.f32 %v3846, %v4216
    %v4218 = vand.u32 %v4217, 4294901760
    %v4219 = vsub.f32 %v4217, %v4218
    %v4220 = vand.u32 %v4219, 4294901760
    %4221 = vmatmul.f32.gmra.mxu0 %v4220
    %v4222 = vpop.f32.mrf.mxu0
    %v4223 = vadd.f32 0.0, %v4222
    %v4224 = vand.u32 %v3849, 4294901760
    %v4225 = vsub.f32 %v3849, %v4224
    %v4226 = vand.u32 %v4225, 4294901760
    %v4227 = vsub.f32 %v4225, %v4226
    %v4228 = vand.u32 %v4227, 4294901760
    %4229 = vmatmul.f32.gmra.mxu0 %v4228
    %v4230 = vpop.f32.mrf.mxu0
    %v4231 = vadd.f32 0.0, %v4230
    %v4232 = vand.u32 %v3852, 4294901760
    %v4233 = vsub.f32 %v3852, %v4232
    %v4234 = vand.u32 %v4233, 4294901760
    %v4235 = vsub.f32 %v4233, %v4234
    %v4236 = vand.u32 %v4235, 4294901760
    %4237 = vmatmul.f32.gmra.mxu0 %v4236
    %v4238 = vpop.f32.mrf.mxu0
    %v4239 = vadd.f32 0.0, %v4238
    %v4240 = vand.u32 %v3855, 4294901760
    %v4241 = vsub.f32 %v3855, %v4240
    %v4242 = vand.u32 %v4241, 4294901760
    %v4243 = vsub.f32 %v4241, %v4242
    %v4244 = vand.u32 %v4243, 4294901760
    %4245 = vmatmul.f32.gmra.mxu0 %v4244
    %v4246 = vpop.f32.mrf.mxu0
    %v4247 = vadd.f32 0.0, %v4246
    %v4248 = vand.u32 %v3858, 4294901760
    %v4249 = vsub.f32 %v3858, %v4248
    %v4250 = vand.u32 %v4249, 4294901760
    %v4251 = vsub.f32 %v4249, %v4250
    %v4252 = vand.u32 %v4251, 4294901760
    %4253 = vmatmul.f32.gmra.mxu0 %v4252
    %v4254 = vpop.f32.mrf.mxu0
    %v4255 = vadd.f32 0.0, %v4254
    %v4256 = vand.u32 %v3861, 4294901760
    %v4257 = vsub.f32 %v3861, %v4256
    %v4258 = vand.u32 %v4257, 4294901760
    %v4259 = vsub.f32 %v4257, %v4258
    %v4260 = vand.u32 %v4259, 4294901760
    %4261 = vmatmul.f32.gmra.mxu0 %v4260
    %v4262 = vpop.f32.mrf.mxu0
    %v4263 = vadd.f32 0.0, %v4262
    %v4264 = vand.u32 %v3864, 4294901760
    %v4265 = vsub.f32 %v3864, %v4264
    %v4266 = vand.u32 %v4265, 4294901760
    %v4267 = vsub.f32 %v4265, %v4266
    %v4268 = vand.u32 %v4267, 4294901760
    %4269 = vmatmul.f32.gmra.mxu0 %v4268
    %v4270 = vpop.f32.mrf.mxu0
    %v4271 = vadd.f32 0.0, %v4270
    %v4272 = vand.u32 %v3867, 4294901760
    %v4273 = vsub.f32 %v3867, %v4272
    %v4274 = vand.u32 %v4273, 4294901760
    %v4275 = vsub.f32 %v4273, %v4274
    %v4276 = vand.u32 %v4275, 4294901760
    %4277 = vmatmul.f32.gmra.mxu0 %v4276
    %v4278 = vpop.f32.mrf.mxu0
    %v4279 = vadd.f32 0.0, %v4278
    %v4280 = vand.u32 %v3870, 4294901760
    %v4281 = vsub.f32 %v3870, %v4280
    %v4282 = vand.u32 %v4281, 4294901760
    %v4283 = vsub.f32 %v4281, %v4282
    %v4284 = vand.u32 %v4283, 4294901760
    %4285 = vmatmul.f32.gmra.mxu0 %v4284
    %v4286 = vpop.f32.mrf.mxu0
    %v4287 = vadd.f32 0.0, %v4286
    %v4288 = vand.u32 %v3873, 4294901760
    %v4289 = vsub.f32 %v3873, %v4288
    %v4290 = vand.u32 %v4289, 4294901760
    %v4291 = vsub.f32 %v4289, %v4290
    %v4292 = vand.u32 %v4291, 4294901760
    %4293 = vmatmul.f32.gmra.mxu0 %v4292
    %v4294 = vpop.f32.mrf.mxu0
    %v4295 = vadd.f32 0.0, %v4294
    %v4296 = vand.u32 %v3876, 4294901760
    %v4297 = vsub.f32 %v3876, %v4296
    %v4298 = vand.u32 %v4297, 4294901760
    %v4299 = vsub.f32 %v4297, %v4298
    %v4300 = vand.u32 %v4299, 4294901760
    %4301 = vmatmul.f32.gmra.mxu0 %v4300
    %v4302 = vpop.f32.mrf.mxu0
    %v4303 = vadd.f32 0.0, %v4302
    %v4304 = vand.u32 %v3879, 4294901760
    %v4305 = vsub.f32 %v3879, %v4304
    %v4306 = vand.u32 %v4305, 4294901760
    %v4307 = vsub.f32 %v4305, %v4306
    %v4308 = vand.u32 %v4307, 4294901760
    %4309 = vmatmul.f32.gmra.mxu0 %v4308
    %v4310 = vpop.f32.mrf.mxu0
    %v4311 = vadd.f32 0.0, %v4310
    %v4312 = vand.u32 %v3882, 4294901760
    %v4313 = vsub.f32 %v3882, %v4312
    %v4314 = vand.u32 %v4313, 4294901760
    %v4315 = vsub.f32 %v4313, %v4314
    %v4316 = vand.u32 %v4315, 4294901760
    %4317 = vmatmul.f32.gmra.mxu0 %v4316
    %v4318 = vpop.f32.mrf.mxu0
    %v4319 = vadd.f32 0.0, %v4318
    %v4320 = vand.u32 %v3885, 4294901760
    %v4321 = vsub.f32 %v3885, %v4320
    %v4322 = vand.u32 %v4321, 4294901760
    %v4323 = vsub.f32 %v4321, %v4322
    %v4324 = vand.u32 %v4323, 4294901760
    %4325 = vmatmul.f32.gmra.mxu0 %v4324
    %v4326 = vpop.f32.mrf.mxu0
    %v4327 = vadd.f32 0.0, %v4326
    %v4328 = vand.u32 %v3888, 4294901760
    %v4329 = vsub.f32 %v3888, %v4328
    %v4330 = vand.u32 %v4329, 4294901760
    %v4331 = vsub.f32 %v4329, %v4330
    %v4332 = vand.u32 %v4331, 4294901760
    %4333 = vmatmul.f32.gmra.mxu0 %v4332
    %v4334 = vpop.f32.mrf.mxu0
    %v4335 = vadd.f32 0.0, %v4334
    %v4336 = vand.u32 %v3891, 4294901760
    %v4337 = vsub.f32 %v3891, %v4336
    %v4338 = vand.u32 %v4337, 4294901760
    %v4339 = vsub.f32 %v4337, %v4338
    %v4340 = vand.u32 %v4339, 4294901760
    %4341 = vmatmul.f32.gmra.mxu0 %v4340
    %v4342 = vpop.f32.mrf.mxu0
    %v4343 = vadd.f32 0.0, %v4342
    %v4344 = vand.u32 %v3894, 4294901760
    %v4345 = vsub.f32 %v3894, %v4344
    %v4346 = vand.u32 %v4345, 4294901760
    %v4347 = vsub.f32 %v4345, %v4346
    %v4348 = vand.u32 %v4347, 4294901760
    %4349 = vmatmul.f32.gmra.mxu0 %v4348
    %v4350 = vpop.f32.mrf.mxu0
    %v4351 = vadd.f32 0.0, %v4350
    %v4352 = vand.u32 %v3897, 4294901760
    %v4353 = vsub.f32 %v3897, %v4352
    %v4354 = vand.u32 %v4353, 4294901760
    %v4355 = vsub.f32 %v4353, %v4354
    %v4356 = vand.u32 %v4355, 4294901760
    %4357 = vmatmul.f32.gmra.mxu0 %v4356
    %v4358 = vpop.f32.mrf.mxu0
    %v4359 = vadd.f32 0.0, %v4358
    %v4360 = vand.u32 %v3900, 4294901760
    %v4361 = vsub.f32 %v3900, %v4360
    %v4362 = vand.u32 %v4361, 4294901760
    %v4363 = vsub.f32 %v4361, %v4362
    %v4364 = vand.u32 %v4363, 4294901760
    %4365 = vmatmul.f32.gmra.mxu0 %v4364
    %v4366 = vpop.f32.mrf.mxu0
    %v4367 = vadd.f32 0.0, %v4366
    %v4368 = vand.u32 %v3903, 4294901760
    %v4369 = vsub.f32 %v3903, %v4368
    %v4370 = vand.u32 %v4369, 4294901760
    %v4371 = vsub.f32 %v4369, %v4370
    %v4372 = vand.u32 %v4371, 4294901760
    %4373 = vmatmul.f32.gmra.mxu0 %v4372
    %v4374 = vpop.f32.mrf.mxu0
    %v4375 = vadd.f32 0.0, %v4374
    %v4376 = vand.u32 %v3906, 4294901760
    %v4377 = vsub.f32 %v3906, %v4376
    %v4378 = vand.u32 %v4377, 4294901760
    %v4379 = vsub.f32 %v4377, %v4378
    %v4380 = vand.u32 %v4379, 4294901760
    %4381 = vmatmul.f32.gmra.mxu0 %v4380
    %v4382 = vpop.f32.mrf.mxu0
    %v4383 = vadd.f32 0.0, %v4382
    %v4384 = vand.u32 %v3909, 4294901760
    %v4385 = vsub.f32 %v3909, %v4384
    %v4386 = vand.u32 %v4385, 4294901760
    %v4387 = vsub.f32 %v4385, %v4386
    %v4388 = vand.u32 %v4387, 4294901760
    %4389 = vmatmul.f32.gmra.mxu0 %v4388
    %v4390 = vpop.f32.mrf.mxu0
    %v4391 = vadd.f32 0.0, %v4390
    %v4392 = vand.u32 %v3912, 4294901760
    %v4393 = vsub.f32 %v3912, %v4392
    %v4394 = vand.u32 %v4393, 4294901760
    %v4395 = vsub.f32 %v4393, %v4394
    %v4396 = vand.u32 %v4395, 4294901760
    %4397 = vmatmul.f32.gmra.mxu0 %v4396
    %v4398 = vpop.f32.mrf.mxu0
    %v4399 = vadd.f32 0.0, %v4398
    %v4400 = vand.u32 %v3915, 4294901760
    %v4401 = vsub.f32 %v3915, %v4400
    %v4402 = vand.u32 %v4401, 4294901760
    %v4403 = vsub.f32 %v4401, %v4402
    %v4404 = vand.u32 %v4403, 4294901760
    %4405 = vmatmul.f32.gmra.mxu0 %v4404
    %v4406 = vpop.f32.mrf.mxu0
    %v4407 = vadd.f32 0.0, %v4406
    %v4408 = vand.u32 %v3918, 4294901760
    %v4409 = vsub.f32 %v3918, %v4408
    %v4410 = vand.u32 %v4409, 4294901760
    %v4411 = vsub.f32 %v4409, %v4410
    %v4412 = vand.u32 %v4411, 4294901760
    %4413 = vmatmul.f32.gmra.mxu0 %v4412
    %v4414 = vpop.f32.mrf.mxu0
    %v4415 = vadd.f32 0.0, %v4414
    %v4416 = vand.u32 %v3921, 4294901760
    %v4417 = vsub.f32 %v3921, %v4416
    %v4418 = vand.u32 %v4417, 4294901760
    %v4419 = vsub.f32 %v4417, %v4418
    %v4420 = vand.u32 %v4419, 4294901760
    %4421 = vmatmul.f32.gmra.mxu0 %v4420
    %v4422 = vpop.f32.mrf.mxu0
    %v4423 = vadd.f32 0.0, %v4422
    %v4424 = vand.u32 %v3924, 4294901760
    %v4425 = vsub.f32 %v3924, %v4424
    %v4426 = vand.u32 %v4425, 4294901760
    %v4427 = vsub.f32 %v4425, %v4426
    %v4428 = vand.u32 %v4427, 4294901760
    %4429 = vmatmul.f32.gmra.mxu0 %v4428
    %v4430 = vpop.f32.mrf.mxu0
    %v4431 = vadd.f32 0.0, %v4430
    %v4432 = vand.u32 %v3927, 4294901760
    %v4433 = vsub.f32 %v3927, %v4432
    %v4434 = vand.u32 %v4433, 4294901760
    %v4435 = vsub.f32 %v4433, %v4434
    %v4436 = vand.u32 %v4435, 4294901760
    %4437 = vmatmul.f32.gmra.mxu0 %v4436
    %v4438 = vpop.f32.mrf.mxu0
    %v4439 = vadd.f32 0.0, %v4438
    %v4440 = vand.u32 %v3930, 4294901760
    %v4441 = vsub.f32 %v3930, %v4440
    %v4442 = vand.u32 %v4441, 4294901760
    %v4443 = vsub.f32 %v4441, %v4442
    %v4444 = vand.u32 %v4443, 4294901760
    %4445 = vmatmul.f32.gmra.mxu0 %v4444
    %v4446 = vpop.f32.mrf.mxu0
    %v4447 = vadd.f32 0.0, %v4446
    %v4448 = vand.u32 %v3933, 4294901760
    %v4449 = vsub.f32 %v3933, %v4448
    %v4450 = vand.u32 %v4449, 4294901760
    %v4451 = vsub.f32 %v4449, %v4450
    %v4452 = vand.u32 %v4451, 4294901760
    %4453 = vmatmul.f32.gmra.mxu0 %v4452
    %v4454 = vpop.f32.mrf.mxu0
    %v4455 = vadd.f32 0.0, %v4454
    %v4456 = vand.u32 %v3936, 4294901760
    %v4457 = vsub.f32 %v3936, %v4456
    %v4458 = vand.u32 %v4457, 4294901760
    %v4459 = vsub.f32 %v4457, %v4458
    %v4460 = vand.u32 %v4459, 4294901760
    %4461 = vmatmul.f32.gmra.mxu0 %v4460
    %v4462 = vpop.f32.mrf.mxu0
    %v4463 = vadd.f32 0.0, %v4462
    %v4464 = vand.u32 %v3939, 4294901760
    %v4465 = vsub.f32 %v3939, %v4464
    %v4466 = vand.u32 %v4465, 4294901760
    %v4467 = vsub.f32 %v4465, %v4466
    %v4468 = vand.u32 %v4467, 4294901760
    %4469 = vmatmul.f32.gmra.mxu0 %v4468
    %v4470 = vpop.f32.mrf.mxu0
    %v4471 = vadd.f32 0.0, %v4470
    %v4472 = vand.u32 %v3942, 4294901760
    %v4473 = vsub.f32 %v3942, %v4472
    %v4474 = vand.u32 %v4473, 4294901760
    %v4475 = vsub.f32 %v4473, %v4474
    %v4476 = vand.u32 %v4475, 4294901760
    %4477 = vmatmul.f32.gmra.mxu0 %v4476
    %v4478 = vpop.f32.mrf.mxu0
    %v4479 = vadd.f32 0.0, %v4478
    %4480 = vdwg.mxu0
    %4481 = vmatpush.msra.mxu0 0.0
    %4482 = vmatpush.msra.mxu0 0.0
    %4483 = vmatpush.msra.mxu0 0.0
    %4484 = vmatpush.msra.mxu0 0.0
    %4485 = vmatpush.msra.mxu0 0.0
    %4486 = vmatpush.msra.mxu0 0.0
    %4487 = vmatpush.msra.mxu0 0.0
    %4488 = vmatpush.msra.mxu0 0.0
    %v4489 = vand.u32 %v1368, 4294901760
    %v4490 = vsub.f32 %v1368, %v4489
    %v4491 = vand.u32 %v4490, 4294901760
    %v4492 = vsub.f32 %v4490, %v4491
    %v4493 = vand.u32 %v4492, 4294901760
    %4494 = vmatpush.msra.mxu0 %v4493
    %v4495 = vand.u32 %v1367, 4294901760
    %v4496 = vsub.f32 %v1367, %v4495
    %v4497 = vand.u32 %v4496, 4294901760
    %v4498 = vsub.f32 %v4496, %v4497
    %v4499 = vand.u32 %v4498, 4294901760
    %4500 = vmatpush.msra.mxu0 %v4499
    %v4501 = vand.u32 %v1366, 4294901760
    %v4502 = vsub.f32 %v1366, %v4501
    %v4503 = vand.u32 %v4502, 4294901760
    %v4504 = vsub.f32 %v4502, %v4503
    %v4505 = vand.u32 %v4504, 4294901760
    %4506 = vmatpush.msra.mxu0 %v4505
    %v4507 = vand.u32 %v1365, 4294901760
    %v4508 = vsub.f32 %v1365, %v4507
    %v4509 = vand.u32 %v4508, 4294901760
    %v4510 = vsub.f32 %v4508, %v4509
    %v4511 = vand.u32 %v4510, 4294901760
    %4512 = vmatpush.msra.mxu0 %v4511
    %v4513 = vand.u32 %v1364, 4294901760
    %v4514 = vsub.f32 %v1364, %v4513
    %v4515 = vand.u32 %v4514, 4294901760
    %v4516 = vsub.f32 %v4514, %v4515
    %v4517 = vand.u32 %v4516, 4294901760
    %4518 = vmatpush.msra.mxu0 %v4517
    %v4519 = vand.u32 %v1363, 4294901760
    %v4520 = vsub.f32 %v1363, %v4519
    %v4521 = vand.u32 %v4520, 4294901760
    %v4522 = vsub.f32 %v4520, %v4521
    %v4523 = vand.u32 %v4522, 4294901760
    %4524 = vmatpush.msra.mxu0 %v4523
    %v4525 = vand.u32 %v1362, 4294901760
    %v4526 = vsub.f32 %v1362, %v4525
    %v4527 = vand.u32 %v4526, 4294901760
    %v4528 = vsub.f32 %v4526, %v4527
    %v4529 = vand.u32 %v4528, 4294901760
    %4530 = vmatpush.msra.mxu0 %v4529
    %v4531 = vand.u32 %v1361, 4294901760
    %v4532 = vsub.f32 %v1361, %v4531
    %v4533 = vand.u32 %v4532, 4294901760
    %v4534 = vsub.f32 %v4532, %v4533
    %v4535 = vand.u32 %v4534, 4294901760
    %4536 = vmatpush.msra.mxu0 %v4535
    %v4537 = vand.u32 %v3753, 4294901760
    %4538 = vmatmul.f32.gmra.mxu0 %v4537
    %v4539 = vpop.f32.mrf.mxu0
    %v4540 = vadd.f32 %v3975, %v4539
    %v4541 = vand.u32 %v3756, 4294901760
    %4542 = vmatmul.f32.gmra.mxu0 %v4541
    %v4543 = vpop.f32.mrf.mxu0
    %v4544 = vadd.f32 %v3983, %v4543
    %v4545 = vand.u32 %v3759, 4294901760
    %4546 = vmatmul.f32.gmra.mxu0 %v4545
    %v4547 = vpop.f32.mrf.mxu0
    %v4548 = vadd.f32 %v3991, %v4547
    %v4549 = vand.u32 %v3762, 4294901760
    %4550 = vmatmul.f32.gmra.mxu0 %v4549
    %v4551 = vpop.f32.mrf.mxu0
    %v4552 = vadd.f32 %v3999, %v4551
    %v4553 = vand.u32 %v3765, 4294901760
    %4554 = vmatmul.f32.gmra.mxu0 %v4553
    %v4555 = vpop.f32.mrf.mxu0
    %v4556 = vadd.f32 %v4007, %v4555
    %v4557 = vand.u32 %v3768, 4294901760
    %4558 = vmatmul.f32.gmra.mxu0 %v4557
    %v4559 = vpop.f32.mrf.mxu0
    %v4560 = vadd.f32 %v4015, %v4559
    %v4561 = vand.u32 %v3771, 4294901760
    %4562 = vmatmul.f32.gmra.mxu0 %v4561
    %v4563 = vpop.f32.mrf.mxu0
    %v4564 = vadd.f32 %v4023, %v4563
    %v4565 = vand.u32 %v3774, 4294901760
    %4566 = vmatmul.f32.gmra.mxu0 %v4565
    %v4567 = vpop.f32.mrf.mxu0
    %v4568 = vadd.f32 %v4031, %v4567
    %v4569 = vand.u32 %v3777, 4294901760
    %4570 = vmatmul.f32.gmra.mxu0 %v4569
    %v4571 = vpop.f32.mrf.mxu0
    %v4572 = vadd.f32 %v4039, %v4571
    %v4573 = vand.u32 %v3780, 4294901760
    %4574 = vmatmul.f32.gmra.mxu0 %v4573
    %v4575 = vpop.f32.mrf.mxu0
    %v4576 = vadd.f32 %v4047, %v4575
    %v4577 = vand.u32 %v3783, 4294901760
    %4578 = vmatmul.f32.gmra.mxu0 %v4577
    %v4579 = vpop.f32.mrf.mxu0
    %v4580 = vadd.f32 %v4055, %v4579
    %v4581 = vand.u32 %v3786, 4294901760
    %4582 = vmatmul.f32.gmra.mxu0 %v4581
    %v4583 = vpop.f32.mrf.mxu0
    %v4584 = vadd.f32 %v4063, %v4583
    %v4585 = vand.u32 %v3789, 4294901760
    %4586 = vmatmul.f32.gmra.mxu0 %v4585
    %v4587 = vpop.f32.mrf.mxu0
    %v4588 = vadd.f32 %v4071, %v4587
    %v4589 = vand.u32 %v3792, 4294901760
    %4590 = vmatmul.f32.gmra.mxu0 %v4589
    %v4591 = vpop.f32.mrf.mxu0
    %v4592 = vadd.f32 %v4079, %v4591
    %v4593 = vand.u32 %v3795, 4294901760
    %4594 = vmatmul.f32.gmra.mxu0 %v4593
    %v4595 = vpop.f32.mrf.mxu0
    %v4596 = vadd.f32 %v4087, %v4595
    %v4597 = vand.u32 %v3798, 4294901760
    %4598 = vmatmul.f32.gmra.mxu0 %v4597
    %v4599 = vpop.f32.mrf.mxu0
    %v4600 = vadd.f32 %v4095, %v4599
    %v4601 = vand.u32 %v3801, 4294901760
    %4602 = vmatmul.f32.gmra.mxu0 %v4601
    %v4603 = vpop.f32.mrf.mxu0
    %v4604 = vadd.f32 %v4103, %v4603
    %v4605 = vand.u32 %v3804, 4294901760
    %4606 = vmatmul.f32.gmra.mxu0 %v4605
    %v4607 = vpop.f32.mrf.mxu0
    %v4608 = vadd.f32 %v4111, %v4607
    %v4609 = vand.u32 %v3807, 4294901760
    %4610 = vmatmul.f32.gmra.mxu0 %v4609
    %v4611 = vpop.f32.mrf.mxu0
    %v4612 = vadd.f32 %v4119, %v4611
    %v4613 = vand.u32 %v3810, 4294901760
    %4614 = vmatmul.f32.gmra.mxu0 %v4613
    %v4615 = vpop.f32.mrf.mxu0
    %v4616 = vadd.f32 %v4127, %v4615
    %v4617 = vand.u32 %v3813, 4294901760
    %4618 = vmatmul.f32.gmra.mxu0 %v4617
    %v4619 = vpop.f32.mrf.mxu0
    %v4620 = vadd.f32 %v4135, %v4619
    %v4621 = vand.u32 %v3816, 4294901760
    %4622 = vmatmul.f32.gmra.mxu0 %v4621
    %v4623 = vpop.f32.mrf.mxu0
    %v4624 = vadd.f32 %v4143, %v4623
    %v4625 = vand.u32 %v3819, 4294901760
    %4626 = vmatmul.f32.gmra.mxu0 %v4625
    %v4627 = vpop.f32.mrf.mxu0
    %v4628 = vadd.f32 %v4151, %v4627
    %v4629 = vand.u32 %v3822, 4294901760
    %4630 = vmatmul.f32.gmra.mxu0 %v4629
    %v4631 = vpop.f32.mrf.mxu0
    %v4632 = vadd.f32 %v4159, %v4631
    %v4633 = vand.u32 %v3825, 4294901760
    %4634 = vmatmul.f32.gmra.mxu0 %v4633
    %v4635 = vpop.f32.mrf.mxu0
    %v4636 = vadd.f32 %v4167, %v4635
    %v4637 = vand.u32 %v3828, 4294901760
    %4638 = vmatmul.f32.gmra.mxu0 %v4637
    %v4639 = vpop.f32.mrf.mxu0
    %v4640 = vadd.f32 %v4175, %v4639
    %v4641 = vand.u32 %v3831, 4294901760
    %4642 = vmatmul.f32.gmra.mxu0 %v4641
    %v4643 = vpop.f32.mrf.mxu0
    %v4644 = vadd.f32 %v4183, %v4643
    %v4645 = vand.u32 %v3834, 4294901760
    %4646 = vmatmul.f32.gmra.mxu0 %v4645
    %v4647 = vpop.f32.mrf.mxu0
    %v4648 = vadd.f32 %v4191, %v4647
    %v4649 = vand.u32 %v3837, 4294901760
    %4650 = vmatmul.f32.gmra.mxu0 %v4649
    %v4651 = vpop.f32.mrf.mxu0
    %v4652 = vadd.f32 %v4199, %v4651
    %v4653 = vand.u32 %v3840, 4294901760
    %4654 = vmatmul.f32.gmra.mxu0 %v4653
    %v4655 = vpop.f32.mrf.mxu0
    %v4656 = vadd.f32 %v4207, %v4655
    %v4657 = vand.u32 %v3843, 4294901760
    %4658 = vmatmul.f32.gmra.mxu0 %v4657
    %v4659 = vpop.f32.mrf.mxu0
    %v4660 = vadd.f32 %v4215, %v4659
    %v4661 = vand.u32 %v3846, 4294901760
    %4662 = vmatmul.f32.gmra.mxu0 %v4661
    %v4663 = vpop.f32.mrf.mxu0
    %v4664 = vadd.f32 %v4223, %v4663
    %v4665 = vand.u32 %v3849, 4294901760
    %4666 = vmatmul.f32.gmra.mxu0 %v4665
    %v4667 = vpop.f32.mrf.mxu0
    %v4668 = vadd.f32 %v4231, %v4667
    %v4669 = vand.u32 %v3852, 4294901760
    %4670 = vmatmul.f32.gmra.mxu0 %v4669
    %v4671 = vpop.f32.mrf.mxu0
    %v4672 = vadd.f32 %v4239, %v4671
    %v4673 = vand.u32 %v3855, 4294901760
    %4674 = vmatmul.f32.gmra.mxu0 %v4673
    %v4675 = vpop.f32.mrf.mxu0
    %v4676 = vadd.f32 %v4247, %v4675
    %v4677 = vand.u32 %v3858, 4294901760
    %4678 = vmatmul.f32.gmra.mxu0 %v4677
    %v4679 = vpop.f32.mrf.mxu0
    %v4680 = vadd.f32 %v4255, %v4679
    %v4681 = vand.u32 %v3861, 4294901760
    %4682 = vmatmul.f32.gmra.mxu0 %v4681
    %v4683 = vpop.f32.mrf.mxu0
    %v4684 = vadd.f32 %v4263, %v4683
    %v4685 = vand.u32 %v3864, 4294901760
    %4686 = vmatmul.f32.gmra.mxu0 %v4685
    %v4687 = vpop.f32.mrf.mxu0
    %v4688 = vadd.f32 %v4271, %v4687
    %v4689 = vand.u32 %v3867, 4294901760
    %4690 = vmatmul.f32.gmra.mxu0 %v4689
    %v4691 = vpop.f32.mrf.mxu0
    %v4692 = vadd.f32 %v4279, %v4691
    %v4693 = vand.u32 %v3870, 4294901760
    %4694 = vmatmul.f32.gmra.mxu0 %v4693
    %v4695 = vpop.f32.mrf.mxu0
    %v4696 = vadd.f32 %v4287, %v4695
    %v4697 = vand.u32 %v3873, 4294901760
    %4698 = vmatmul.f32.gmra.mxu0 %v4697
    %v4699 = vpop.f32.mrf.mxu0
    %v4700 = vadd.f32 %v4295, %v4699
    %v4701 = vand.u32 %v3876, 4294901760
    %4702 = vmatmul.f32.gmra.mxu0 %v4701
    %v4703 = vpop.f32.mrf.mxu0
    %v4704 = vadd.f32 %v4303, %v4703
    %v4705 = vand.u32 %v3879, 4294901760
    %4706 = vmatmul.f32.gmra.mxu0 %v4705
    %v4707 = vpop.f32.mrf.mxu0
    %v4708 = vadd.f32 %v4311, %v4707
    %v4709 = vand.u32 %v3882, 4294901760
    %4710 = vmatmul.f32.gmra.mxu0 %v4709
    %v4711 = vpop.f32.mrf.mxu0
    %v4712 = vadd.f32 %v4319, %v4711
    %v4713 = vand.u32 %v3885, 4294901760
    %4714 = vmatmul.f32.gmra.mxu0 %v4713
    %v4715 = vpop.f32.mrf.mxu0
    %v4716 = vadd.f32 %v4327, %v4715
    %v4717 = vand.u32 %v3888, 4294901760
    %4718 = vmatmul.f32.gmra.mxu0 %v4717
    %v4719 = vpop.f32.mrf.mxu0
    %v4720 = vadd.f32 %v4335, %v4719
    %v4721 = vand.u32 %v3891, 4294901760
    %4722 = vmatmul.f32.gmra.mxu0 %v4721
    %v4723 = vpop.f32.mrf.mxu0
    %v4724 = vadd.f32 %v4343, %v4723
    %v4725 = vand.u32 %v3894, 4294901760
    %4726 = vmatmul.f32.gmra.mxu0 %v4725
    %v4727 = vpop.f32.mrf.mxu0
    %v4728 = vadd.f32 %v4351, %v4727
    %v4729 = vand.u32 %v3897, 4294901760
    %4730 = vmatmul.f32.gmra.mxu0 %v4729
    %v4731 = vpop.f32.mrf.mxu0
    %v4732 = vadd.f32 %v4359, %v4731
    %v4733 = vand.u32 %v3900, 4294901760
    %4734 = vmatmul.f32.gmra.mxu0 %v4733
    %v4735 = vpop.f32.mrf.mxu0
    %v4736 = vadd.f32 %v4367, %v4735
    %v4737 = vand.u32 %v3903, 4294901760
    %4738 = vmatmul.f32.gmra.mxu0 %v4737
    %v4739 = vpop.f32.mrf.mxu0
    %v4740 = vadd.f32 %v4375, %v4739
    %v4741 = vand.u32 %v3906, 4294901760
    %4742 = vmatmul.f32.gmra.mxu0 %v4741
    %v4743 = vpop.f32.mrf.mxu0
    %v4744 = vadd.f32 %v4383, %v4743
    %v4745 = vand.u32 %v3909, 4294901760
    %4746 = vmatmul.f32.gmra.mxu0 %v4745
    %v4747 = vpop.f32.mrf.mxu0
    %v4748 = vadd.f32 %v4391, %v4747
    %v4749 = vand.u32 %v3912, 4294901760
    %4750 = vmatmul.f32.gmra.mxu0 %v4749
    %v4751 = vpop.f32.mrf.mxu0
    %v4752 = vadd.f32 %v4399, %v4751
    %v4753 = vand.u32 %v3915, 4294901760
    %4754 = vmatmul.f32.gmra.mxu0 %v4753
    %v4755 = vpop.f32.mrf.mxu0
    %v4756 = vadd.f32 %v4407, %v4755
    %v4757 = vand.u32 %v3918, 4294901760
    %4758 = vmatmul.f32.gmra.mxu0 %v4757
    %v4759 = vpop.f32.mrf.mxu0
    %v4760 = vadd.f32 %v4415, %v4759
    %v4761 = vand.u32 %v3921, 4294901760
    %4762 = vmatmul.f32.gmra.mxu0 %v4761
    %v4763 = vpop.f32.mrf.mxu0
    %v4764 = vadd.f32 %v4423, %v4763
    %v4765 = vand.u32 %v3924, 4294901760
    %4766 = vmatmul.f32.gmra.mxu0 %v4765
    %v4767 = vpop.f32.mrf.mxu0
    %v4768 = vadd.f32 %v4431, %v4767
    %v4769 = vand.u32 %v3927, 4294901760
    %4770 = vmatmul.f32.gmra.mxu0 %v4769
    %v4771 = vpop.f32.mrf.mxu0
    %v4772 = vadd.f32 %v4439, %v4771
    %v4773 = vand.u32 %v3930, 4294901760
    %4774 = vmatmul.f32.gmra.mxu0 %v4773
    %v4775 = vpop.f32.mrf.mxu0
    %v4776 = vadd.f32 %v4447, %v4775
    %v4777 = vand.u32 %v3933, 4294901760
    %4778 = vmatmul.f32.gmra.mxu0 %v4777
    %v4779 = vpop.f32.mrf.mxu0
    %v4780 = vadd.f32 %v4455, %v4779
    %v4781 = vand.u32 %v3936, 4294901760
    %4782 = vmatmul.f32.gmra.mxu0 %v4781
    %v4783 = vpop.f32.mrf.mxu0
    %v4784 = vadd.f32 %v4463, %v4783
    %v4785 = vand.u32 %v3939, 4294901760
    %4786 = vmatmul.f32.gmra.mxu0 %v4785
    %v4787 = vpop.f32.mrf.mxu0
    %v4788 = vadd.f32 %v4471, %v4787
    %v4789 = vand.u32 %v3942, 4294901760
    %4790 = vmatmul.f32.gmra.mxu0 %v4789
    %v4791 = vpop.f32.mrf.mxu0
    %v4792 = vadd.f32 %v4479, %v4791
    %4793 = vdwg.mxu0
    %4794 = vmatpush.msra.mxu0 0.0
    %4795 = vmatpush.msra.mxu0 0.0
    %4796 = vmatpush.msra.mxu0 0.0
    %4797 = vmatpush.msra.mxu0 0.0
    %4798 = vmatpush.msra.mxu0 0.0
    %4799 = vmatpush.msra.mxu0 0.0
    %4800 = vmatpush.msra.mxu0 0.0
    %4801 = vmatpush.msra.mxu0 0.0
    %v4802 = vand.u32 %v1368, 4294901760
    %v4803 = vsub.f32 %v1368, %v4802
    %4804 = vmatpush.msra.mxu0 %v4803
    %v4805 = vand.u32 %v1367, 4294901760
    %v4806 = vsub.f32 %v1367, %v4805
    %4807 = vmatpush.msra.mxu0 %v4806
    %v4808 = vand.u32 %v1366, 4294901760
    %v4809 = vsub.f32 %v1366, %v4808
    %4810 = vmatpush.msra.mxu0 %v4809
    %v4811 = vand.u32 %v1365, 4294901760
    %v4812 = vsub.f32 %v1365, %v4811
    %4813 = vmatpush.msra.mxu0 %v4812
    %v4814 = vand.u32 %v1364, 4294901760
    %v4815 = vsub.f32 %v1364, %v4814
    %4816 = vmatpush.msra.mxu0 %v4815
    %v4817 = vand.u32 %v1363, 4294901760
    %v4818 = vsub.f32 %v1363, %v4817
    %4819 = vmatpush.msra.mxu0 %v4818
    %v4820 = vand.u32 %v1362, 4294901760
    %v4821 = vsub.f32 %v1362, %v4820
    %4822 = vmatpush.msra.mxu0 %v4821
    %v4823 = vand.u32 %v1361, 4294901760
    %v4824 = vsub.f32 %v1361, %v4823
    %4825 = vmatpush.msra.mxu0 %v4824
    %v4826 = vand.u32 %v3753, 4294901760
    %v4827 = vsub.f32 %v3753, %v4826
    %4828 = vmatmul.f32.gmra.mxu0 %v4827
    %v4829 = vpop.f32.mrf.mxu0
    %v4830 = vadd.f32 %v4540, %v4829
    %v4831 = vand.u32 %v3756, 4294901760
    %v4832 = vsub.f32 %v3756, %v4831
    %4833 = vmatmul.f32.gmra.mxu0 %v4832
    %v4834 = vpop.f32.mrf.mxu0
    %v4835 = vadd.f32 %v4544, %v4834
    %v4836 = vand.u32 %v3759, 4294901760
    %v4837 = vsub.f32 %v3759, %v4836
    %4838 = vmatmul.f32.gmra.mxu0 %v4837
    %v4839 = vpop.f32.mrf.mxu0
    %v4840 = vadd.f32 %v4548, %v4839
    %v4841 = vand.u32 %v3762, 4294901760
    %v4842 = vsub.f32 %v3762, %v4841
    %4843 = vmatmul.f32.gmra.mxu0 %v4842
    %v4844 = vpop.f32.mrf.mxu0
    %v4845 = vadd.f32 %v4552, %v4844
    %v4846 = vand.u32 %v3765, 4294901760
    %v4847 = vsub.f32 %v3765, %v4846
    %4848 = vmatmul.f32.gmra.mxu0 %v4847
    %v4849 = vpop.f32.mrf.mxu0
    %v4850 = vadd.f32 %v4556, %v4849
    %v4851 = vand.u32 %v3768, 4294901760
    %v4852 = vsub.f32 %v3768, %v4851
    %4853 = vmatmul.f32.gmra.mxu0 %v4852
    %v4854 = vpop.f32.mrf.mxu0
    %v4855 = vadd.f32 %v4560, %v4854
    %v4856 = vand.u32 %v3771, 4294901760
    %v4857 = vsub.f32 %v3771, %v4856
    %4858 = vmatmul.f32.gmra.mxu0 %v4857
    %v4859 = vpop.f32.mrf.mxu0
    %v4860 = vadd.f32 %v4564, %v4859
    %v4861 = vand.u32 %v3774, 4294901760
    %v4862 = vsub.f32 %v3774, %v4861
    %4863 = vmatmul.f32.gmra.mxu0 %v4862
    %v4864 = vpop.f32.mrf.mxu0
    %v4865 = vadd.f32 %v4568, %v4864
    %v4866 = vand.u32 %v3777, 4294901760
    %v4867 = vsub.f32 %v3777, %v4866
    %4868 = vmatmul.f32.gmra.mxu0 %v4867
    %v4869 = vpop.f32.mrf.mxu0
    %v4870 = vadd.f32 %v4572, %v4869
    %v4871 = vand.u32 %v3780, 4294901760
    %v4872 = vsub.f32 %v3780, %v4871
    %4873 = vmatmul.f32.gmra.mxu0 %v4872
    %v4874 = vpop.f32.mrf.mxu0
    %v4875 = vadd.f32 %v4576, %v4874
    %v4876 = vand.u32 %v3783, 4294901760
    %v4877 = vsub.f32 %v3783, %v4876
    %4878 = vmatmul.f32.gmra.mxu0 %v4877
    %v4879 = vpop.f32.mrf.mxu0
    %v4880 = vadd.f32 %v4580, %v4879
    %v4881 = vand.u32 %v3786, 4294901760
    %v4882 = vsub.f32 %v3786, %v4881
    %4883 = vmatmul.f32.gmra.mxu0 %v4882
    %v4884 = vpop.f32.mrf.mxu0
    %v4885 = vadd.f32 %v4584, %v4884
    %v4886 = vand.u32 %v3789, 4294901760
    %v4887 = vsub.f32 %v3789, %v4886
    %4888 = vmatmul.f32.gmra.mxu0 %v4887
    %v4889 = vpop.f32.mrf.mxu0
    %v4890 = vadd.f32 %v4588, %v4889
    %v4891 = vand.u32 %v3792, 4294901760
    %v4892 = vsub.f32 %v3792, %v4891
    %4893 = vmatmul.f32.gmra.mxu0 %v4892
    %v4894 = vpop.f32.mrf.mxu0
    %v4895 = vadd.f32 %v4592, %v4894
    %v4896 = vand.u32 %v3795, 4294901760
    %v4897 = vsub.f32 %v3795, %v4896
    %4898 = vmatmul.f32.gmra.mxu0 %v4897
    %v4899 = vpop.f32.mrf.mxu0
    %v4900 = vadd.f32 %v4596, %v4899
    %v4901 = vand.u32 %v3798, 4294901760
    %v4902 = vsub.f32 %v3798, %v4901
    %4903 = vmatmul.f32.gmra.mxu0 %v4902
    %v4904 = vpop.f32.mrf.mxu0
    %v4905 = vadd.f32 %v4600, %v4904
    %v4906 = vand.u32 %v3801, 4294901760
    %v4907 = vsub.f32 %v3801, %v4906
    %4908 = vmatmul.f32.gmra.mxu0 %v4907
    %v4909 = vpop.f32.mrf.mxu0
    %v4910 = vadd.f32 %v4604, %v4909
    %v4911 = vand.u32 %v3804, 4294901760
    %v4912 = vsub.f32 %v3804, %v4911
    %4913 = vmatmul.f32.gmra.mxu0 %v4912
    %v4914 = vpop.f32.mrf.mxu0
    %v4915 = vadd.f32 %v4608, %v4914
    %v4916 = vand.u32 %v3807, 4294901760
    %v4917 = vsub.f32 %v3807, %v4916
    %4918 = vmatmul.f32.gmra.mxu0 %v4917
    %v4919 = vpop.f32.mrf.mxu0
    %v4920 = vadd.f32 %v4612, %v4919
    %v4921 = vand.u32 %v3810, 4294901760
    %v4922 = vsub.f32 %v3810, %v4921
    %4923 = vmatmul.f32.gmra.mxu0 %v4922
    %v4924 = vpop.f32.mrf.mxu0
    %v4925 = vadd.f32 %v4616, %v4924
    %v4926 = vand.u32 %v3813, 4294901760
    %v4927 = vsub.f32 %v3813, %v4926
    %4928 = vmatmul.f32.gmra.mxu0 %v4927
    %v4929 = vpop.f32.mrf.mxu0
    %v4930 = vadd.f32 %v4620, %v4929
    %v4931 = vand.u32 %v3816, 4294901760
    %v4932 = vsub.f32 %v3816, %v4931
    %4933 = vmatmul.f32.gmra.mxu0 %v4932
    %v4934 = vpop.f32.mrf.mxu0
    %v4935 = vadd.f32 %v4624, %v4934
    %v4936 = vand.u32 %v3819, 4294901760
    %v4937 = vsub.f32 %v3819, %v4936
    %4938 = vmatmul.f32.gmra.mxu0 %v4937
    %v4939 = vpop.f32.mrf.mxu0
    %v4940 = vadd.f32 %v4628, %v4939
    %v4941 = vand.u32 %v3822, 4294901760
    %v4942 = vsub.f32 %v3822, %v4941
    %4943 = vmatmul.f32.gmra.mxu0 %v4942
    %v4944 = vpop.f32.mrf.mxu0
    %v4945 = vadd.f32 %v4632, %v4944
    %v4946 = vand.u32 %v3825, 4294901760
    %v4947 = vsub.f32 %v3825, %v4946
    %4948 = vmatmul.f32.gmra.mxu0 %v4947
    %v4949 = vpop.f32.mrf.mxu0
    %v4950 = vadd.f32 %v4636, %v4949
    %v4951 = vand.u32 %v3828, 4294901760
    %v4952 = vsub.f32 %v3828, %v4951
    %4953 = vmatmul.f32.gmra.mxu0 %v4952
    %v4954 = vpop.f32.mrf.mxu0
    %v4955 = vadd.f32 %v4640, %v4954
    %v4956 = vand.u32 %v3831, 4294901760
    %v4957 = vsub.f32 %v3831, %v4956
    %4958 = vmatmul.f32.gmra.mxu0 %v4957
    %v4959 = vpop.f32.mrf.mxu0
    %v4960 = vadd.f32 %v4644, %v4959
    %v4961 = vand.u32 %v3834, 4294901760
    %v4962 = vsub.f32 %v3834, %v4961
    %4963 = vmatmul.f32.gmra.mxu0 %v4962
    %v4964 = vpop.f32.mrf.mxu0
    %v4965 = vadd.f32 %v4648, %v4964
    %v4966 = vand.u32 %v3837, 4294901760
    %v4967 = vsub.f32 %v3837, %v4966
    %4968 = vmatmul.f32.gmra.mxu0 %v4967
    %v4969 = vpop.f32.mrf.mxu0
    %v4970 = vadd.f32 %v4652, %v4969
    %v4971 = vand.u32 %v3840, 4294901760
    %v4972 = vsub.f32 %v3840, %v4971
    %4973 = vmatmul.f32.gmra.mxu0 %v4972
    %v4974 = vpop.f32.mrf.mxu0
    %v4975 = vadd.f32 %v4656, %v4974
    %v4976 = vand.u32 %v3843, 4294901760
    %v4977 = vsub.f32 %v3843, %v4976
    %4978 = vmatmul.f32.gmra.mxu0 %v4977
    %v4979 = vpop.f32.mrf.mxu0
    %v4980 = vadd.f32 %v4660, %v4979
    %v4981 = vand.u32 %v3846, 4294901760
    %v4982 = vsub.f32 %v3846, %v4981
    %4983 = vmatmul.f32.gmra.mxu0 %v4982
    %v4984 = vpop.f32.mrf.mxu0
    %v4985 = vadd.f32 %v4664, %v4984
    %v4986 = vand.u32 %v3849, 4294901760
    %v4987 = vsub.f32 %v3849, %v4986
    %4988 = vmatmul.f32.gmra.mxu0 %v4987
    %v4989 = vpop.f32.mrf.mxu0
    %v4990 = vadd.f32 %v4668, %v4989
    %v4991 = vand.u32 %v3852, 4294901760
    %v4992 = vsub.f32 %v3852, %v4991
    %4993 = vmatmul.f32.gmra.mxu0 %v4992
    %v4994 = vpop.f32.mrf.mxu0
    %v4995 = vadd.f32 %v4672, %v4994
    %v4996 = vand.u32 %v3855, 4294901760
    %v4997 = vsub.f32 %v3855, %v4996
    %4998 = vmatmul.f32.gmra.mxu0 %v4997
    %v4999 = vpop.f32.mrf.mxu0
    %v5000 = vadd.f32 %v4676, %v4999
    %v5001 = vand.u32 %v3858, 4294901760
    %v5002 = vsub.f32 %v3858, %v5001
    %5003 = vmatmul.f32.gmra.mxu0 %v5002
    %v5004 = vpop.f32.mrf.mxu0
    %v5005 = vadd.f32 %v4680, %v5004
    %v5006 = vand.u32 %v3861, 4294901760
    %v5007 = vsub.f32 %v3861, %v5006
    %5008 = vmatmul.f32.gmra.mxu0 %v5007
    %v5009 = vpop.f32.mrf.mxu0
    %v5010 = vadd.f32 %v4684, %v5009
    %v5011 = vand.u32 %v3864, 4294901760
    %v5012 = vsub.f32 %v3864, %v5011
    %5013 = vmatmul.f32.gmra.mxu0 %v5012
    %v5014 = vpop.f32.mrf.mxu0
    %v5015 = vadd.f32 %v4688, %v5014
    %v5016 = vand.u32 %v3867, 4294901760
    %v5017 = vsub.f32 %v3867, %v5016
    %5018 = vmatmul.f32.gmra.mxu0 %v5017
    %v5019 = vpop.f32.mrf.mxu0
    %v5020 = vadd.f32 %v4692, %v5019
    %v5021 = vand.u32 %v3870, 4294901760
    %v5022 = vsub.f32 %v3870, %v5021
    %5023 = vmatmul.f32.gmra.mxu0 %v5022
    %v5024 = vpop.f32.mrf.mxu0
    %v5025 = vadd.f32 %v4696, %v5024
    %v5026 = vand.u32 %v3873, 4294901760
    %v5027 = vsub.f32 %v3873, %v5026
    %5028 = vmatmul.f32.gmra.mxu0 %v5027
    %v5029 = vpop.f32.mrf.mxu0
    %v5030 = vadd.f32 %v4700, %v5029
    %v5031 = vand.u32 %v3876, 4294901760
    %v5032 = vsub.f32 %v3876, %v5031
    %5033 = vmatmul.f32.gmra.mxu0 %v5032
    %v5034 = vpop.f32.mrf.mxu0
    %v5035 = vadd.f32 %v4704, %v5034
    %v5036 = vand.u32 %v3879, 4294901760
    %v5037 = vsub.f32 %v3879, %v5036
    %5038 = vmatmul.f32.gmra.mxu0 %v5037
    %v5039 = vpop.f32.mrf.mxu0
    %v5040 = vadd.f32 %v4708, %v5039
    %v5041 = vand.u32 %v3882, 4294901760
    %v5042 = vsub.f32 %v3882, %v5041
    %5043 = vmatmul.f32.gmra.mxu0 %v5042
    %v5044 = vpop.f32.mrf.mxu0
    %v5045 = vadd.f32 %v4712, %v5044
    %v5046 = vand.u32 %v3885, 4294901760
    %v5047 = vsub.f32 %v3885, %v5046
    %5048 = vmatmul.f32.gmra.mxu0 %v5047
    %v5049 = vpop.f32.mrf.mxu0
    %v5050 = vadd.f32 %v4716, %v5049
    %v5051 = vand.u32 %v3888, 4294901760
    %v5052 = vsub.f32 %v3888, %v5051
    %5053 = vmatmul.f32.gmra.mxu0 %v5052
    %v5054 = vpop.f32.mrf.mxu0
    %v5055 = vadd.f32 %v4720, %v5054
    %v5056 = vand.u32 %v3891, 4294901760
    %v5057 = vsub.f32 %v3891, %v5056
    %5058 = vmatmul.f32.gmra.mxu0 %v5057
    %v5059 = vpop.f32.mrf.mxu0
    %v5060 = vadd.f32 %v4724, %v5059
    %v5061 = vand.u32 %v3894, 4294901760
    %v5062 = vsub.f32 %v3894, %v5061
    %5063 = vmatmul.f32.gmra.mxu0 %v5062
    %v5064 = vpop.f32.mrf.mxu0
    %v5065 = vadd.f32 %v4728, %v5064
    %v5066 = vand.u32 %v3897, 4294901760
    %v5067 = vsub.f32 %v3897, %v5066
    %5068 = vmatmul.f32.gmra.mxu0 %v5067
    %v5069 = vpop.f32.mrf.mxu0
    %v5070 = vadd.f32 %v4732, %v5069
    %v5071 = vand.u32 %v3900, 4294901760
    %v5072 = vsub.f32 %v3900, %v5071
    %5073 = vmatmul.f32.gmra.mxu0 %v5072
    %v5074 = vpop.f32.mrf.mxu0
    %v5075 = vadd.f32 %v4736, %v5074
    %v5076 = vand.u32 %v3903, 4294901760
    %v5077 = vsub.f32 %v3903, %v5076
    %5078 = vmatmul.f32.gmra.mxu0 %v5077
    %v5079 = vpop.f32.mrf.mxu0
    %v5080 = vadd.f32 %v4740, %v5079
    %v5081 = vand.u32 %v3906, 4294901760
    %v5082 = vsub.f32 %v3906, %v5081
    %5083 = vmatmul.f32.gmra.mxu0 %v5082
    %v5084 = vpop.f32.mrf.mxu0
    %v5085 = vadd.f32 %v4744, %v5084
    %v5086 = vand.u32 %v3909, 4294901760
    %v5087 = vsub.f32 %v3909, %v5086
    %5088 = vmatmul.f32.gmra.mxu0 %v5087
    %v5089 = vpop.f32.mrf.mxu0
    %v5090 = vadd.f32 %v4748, %v5089
    %v5091 = vand.u32 %v3912, 4294901760
    %v5092 = vsub.f32 %v3912, %v5091
    %5093 = vmatmul.f32.gmra.mxu0 %v5092
    %v5094 = vpop.f32.mrf.mxu0
    %v5095 = vadd.f32 %v4752, %v5094
    %v5096 = vand.u32 %v3915, 4294901760
    %v5097 = vsub.f32 %v3915, %v5096
    %5098 = vmatmul.f32.gmra.mxu0 %v5097
    %v5099 = vpop.f32.mrf.mxu0
    %v5100 = vadd.f32 %v4756, %v5099
    %v5101 = vand.u32 %v3918, 4294901760
    %v5102 = vsub.f32 %v3918, %v5101
    %5103 = vmatmul.f32.gmra.mxu0 %v5102
    %v5104 = vpop.f32.mrf.mxu0
    %v5105 = vadd.f32 %v4760, %v5104
    %v5106 = vand.u32 %v3921, 4294901760
    %v5107 = vsub.f32 %v3921, %v5106
    %5108 = vmatmul.f32.gmra.mxu0 %v5107
    %v5109 = vpop.f32.mrf.mxu0
    %v5110 = vadd.f32 %v4764, %v5109
    %v5111 = vand.u32 %v3924, 4294901760
    %v5112 = vsub.f32 %v3924, %v5111
    %5113 = vmatmul.f32.gmra.mxu0 %v5112
    %v5114 = vpop.f32.mrf.mxu0
    %v5115 = vadd.f32 %v4768, %v5114
    %v5116 = vand.u32 %v3927, 4294901760
    %v5117 = vsub.f32 %v3927, %v5116
    %5118 = vmatmul.f32.gmra.mxu0 %v5117
    %v5119 = vpop.f32.mrf.mxu0
    %v5120 = vadd.f32 %v4772, %v5119
    %v5121 = vand.u32 %v3930, 4294901760
    %v5122 = vsub.f32 %v3930, %v5121
    %5123 = vmatmul.f32.gmra.mxu0 %v5122
    %v5124 = vpop.f32.mrf.mxu0
    %v5125 = vadd.f32 %v4776, %v5124
    %v5126 = vand.u32 %v3933, 4294901760
    %v5127 = vsub.f32 %v3933, %v5126
    %5128 = vmatmul.f32.gmra.mxu0 %v5127
    %v5129 = vpop.f32.mrf.mxu0
    %v5130 = vadd.f32 %v4780, %v5129
    %v5131 = vand.u32 %v3936, 4294901760
    %v5132 = vsub.f32 %v3936, %v5131
    %5133 = vmatmul.f32.gmra.mxu0 %v5132
    %v5134 = vpop.f32.mrf.mxu0
    %v5135 = vadd.f32 %v4784, %v5134
    %v5136 = vand.u32 %v3939, 4294901760
    %v5137 = vsub.f32 %v3939, %v5136
    %5138 = vmatmul.f32.gmra.mxu0 %v5137
    %v5139 = vpop.f32.mrf.mxu0
    %v5140 = vadd.f32 %v4788, %v5139
    %v5141 = vand.u32 %v3942, 4294901760
    %v5142 = vsub.f32 %v3942, %v5141
    %5143 = vmatmul.f32.gmra.mxu0 %v5142
    %v5144 = vpop.f32.mrf.mxu0
    %v5145 = vadd.f32 %v4792, %v5144
    %5146 = vdwg.mxu0
    %5147 = vmatpush.msra.mxu0 0.0
    %5148 = vmatpush.msra.mxu0 0.0
    %5149 = vmatpush.msra.mxu0 0.0
    %5150 = vmatpush.msra.mxu0 0.0
    %5151 = vmatpush.msra.mxu0 0.0
    %5152 = vmatpush.msra.mxu0 0.0
    %5153 = vmatpush.msra.mxu0 0.0
    %5154 = vmatpush.msra.mxu0 0.0
    %v5155 = vand.u32 %v1368, 4294901760
    %5156 = vmatpush.msra.mxu0 %v5155
    %v5157 = vand.u32 %v1367, 4294901760
    %5158 = vmatpush.msra.mxu0 %v5157
    %v5159 = vand.u32 %v1366, 4294901760
    %5160 = vmatpush.msra.mxu0 %v5159
    %v5161 = vand.u32 %v1365, 4294901760
    %5162 = vmatpush.msra.mxu0 %v5161
    %v5163 = vand.u32 %v1364, 4294901760
    %5164 = vmatpush.msra.mxu0 %v5163
    %v5165 = vand.u32 %v1363, 4294901760
    %5166 = vmatpush.msra.mxu0 %v5165
    %v5167 = vand.u32 %v1362, 4294901760
    %5168 = vmatpush.msra.mxu0 %v5167
    %v5169 = vand.u32 %v1361, 4294901760
    %5170 = vmatpush.msra.mxu0 %v5169
    %v5171 = vand.u32 %v3753, 4294901760
    %v5172 = vsub.f32 %v3753, %v5171
    %v5173 = vand.u32 %v5172, 4294901760
    %5174 = vmatmul.f32.gmra.mxu0 %v5173
    %v5175 = vpop.f32.mrf.mxu0
    %v5176 = vadd.f32 %v4830, %v5175
    %v5177 = vand.u32 %v3756, 4294901760
    %v5178 = vsub.f32 %v3756, %v5177
    %v5179 = vand.u32 %v5178, 4294901760
    %5180 = vmatmul.f32.gmra.mxu0 %v5179
    %v5181 = vpop.f32.mrf.mxu0
    %v5182 = vadd.f32 %v4835, %v5181
    %v5183 = vand.u32 %v3759, 4294901760
    %v5184 = vsub.f32 %v3759, %v5183
    %v5185 = vand.u32 %v5184, 4294901760
    %5186 = vmatmul.f32.gmra.mxu0 %v5185
    %v5187 = vpop.f32.mrf.mxu0
    %v5188 = vadd.f32 %v4840, %v5187
    %v5189 = vand.u32 %v3762, 4294901760
    %v5190 = vsub.f32 %v3762, %v5189
    %v5191 = vand.u32 %v5190, 4294901760
    %5192 = vmatmul.f32.gmra.mxu0 %v5191
    %v5193 = vpop.f32.mrf.mxu0
    %v5194 = vadd.f32 %v4845, %v5193
    %v5195 = vand.u32 %v3765, 4294901760
    %v5196 = vsub.f32 %v3765, %v5195
    %v5197 = vand.u32 %v5196, 4294901760
    %5198 = vmatmul.f32.gmra.mxu0 %v5197
    %v5199 = vpop.f32.mrf.mxu0
    %v5200 = vadd.f32 %v4850, %v5199
    %v5201 = vand.u32 %v3768, 4294901760
    %v5202 = vsub.f32 %v3768, %v5201
    %v5203 = vand.u32 %v5202, 4294901760
    %5204 = vmatmul.f32.gmra.mxu0 %v5203
    %v5205 = vpop.f32.mrf.mxu0
    %v5206 = vadd.f32 %v4855, %v5205
    %v5207 = vand.u32 %v3771, 4294901760
    %v5208 = vsub.f32 %v3771, %v5207
    %v5209 = vand.u32 %v5208, 4294901760
    %5210 = vmatmul.f32.gmra.mxu0 %v5209
    %v5211 = vpop.f32.mrf.mxu0
    %v5212 = vadd.f32 %v4860, %v5211
    %v5213 = vand.u32 %v3774, 4294901760
    %v5214 = vsub.f32 %v3774, %v5213
    %v5215 = vand.u32 %v5214, 4294901760
    %5216 = vmatmul.f32.gmra.mxu0 %v5215
    %v5217 = vpop.f32.mrf.mxu0
    %v5218 = vadd.f32 %v4865, %v5217
    %v5219 = vand.u32 %v3777, 4294901760
    %v5220 = vsub.f32 %v3777, %v5219
    %v5221 = vand.u32 %v5220, 4294901760
    %5222 = vmatmul.f32.gmra.mxu0 %v5221
    %v5223 = vpop.f32.mrf.mxu0
    %v5224 = vadd.f32 %v4870, %v5223
    %v5225 = vand.u32 %v3780, 4294901760
    %v5226 = vsub.f32 %v3780, %v5225
    %v5227 = vand.u32 %v5226, 4294901760
    %5228 = vmatmul.f32.gmra.mxu0 %v5227
    %v5229 = vpop.f32.mrf.mxu0
    %v5230 = vadd.f32 %v4875, %v5229
    %v5231 = vand.u32 %v3783, 4294901760
    %v5232 = vsub.f32 %v3783, %v5231
    %v5233 = vand.u32 %v5232, 4294901760
    %5234 = vmatmul.f32.gmra.mxu0 %v5233
    %v5235 = vpop.f32.mrf.mxu0
    %v5236 = vadd.f32 %v4880, %v5235
    %v5237 = vand.u32 %v3786, 4294901760
    %v5238 = vsub.f32 %v3786, %v5237
    %v5239 = vand.u32 %v5238, 4294901760
    %5240 = vmatmul.f32.gmra.mxu0 %v5239
    %v5241 = vpop.f32.mrf.mxu0
    %v5242 = vadd.f32 %v4885, %v5241
    %v5243 = vand.u32 %v3789, 4294901760
    %v5244 = vsub.f32 %v3789, %v5243
    %v5245 = vand.u32 %v5244, 4294901760
    %5246 = vmatmul.f32.gmra.mxu0 %v5245
    %v5247 = vpop.f32.mrf.mxu0
    %v5248 = vadd.f32 %v4890, %v5247
    %v5249 = vand.u32 %v3792, 4294901760
    %v5250 = vsub.f32 %v3792, %v5249
    %v5251 = vand.u32 %v5250, 4294901760
    %5252 = vmatmul.f32.gmra.mxu0 %v5251
    %v5253 = vpop.f32.mrf.mxu0
    %v5254 = vadd.f32 %v4895, %v5253
    %v5255 = vand.u32 %v3795, 4294901760
    %v5256 = vsub.f32 %v3795, %v5255
    %v5257 = vand.u32 %v5256, 4294901760
    %5258 = vmatmul.f32.gmra.mxu0 %v5257
    %v5259 = vpop.f32.mrf.mxu0
    %v5260 = vadd.f32 %v4900, %v5259
    %v5261 = vand.u32 %v3798, 4294901760
    %v5262 = vsub.f32 %v3798, %v5261
    %v5263 = vand.u32 %v5262, 4294901760
    %5264 = vmatmul.f32.gmra.mxu0 %v5263
    %v5265 = vpop.f32.mrf.mxu0
    %v5266 = vadd.f32 %v4905, %v5265
    %v5267 = vand.u32 %v3801, 4294901760
    %v5268 = vsub.f32 %v3801, %v5267
    %v5269 = vand.u32 %v5268, 4294901760
    %5270 = vmatmul.f32.gmra.mxu0 %v5269
    %v5271 = vpop.f32.mrf.mxu0
    %v5272 = vadd.f32 %v4910, %v5271
    %v5273 = vand.u32 %v3804, 4294901760
    %v5274 = vsub.f32 %v3804, %v5273
    %v5275 = vand.u32 %v5274, 4294901760
    %5276 = vmatmul.f32.gmra.mxu0 %v5275
    %v5277 = vpop.f32.mrf.mxu0
    %v5278 = vadd.f32 %v4915, %v5277
    %v5279 = vand.u32 %v3807, 4294901760
    %v5280 = vsub.f32 %v3807, %v5279
    %v5281 = vand.u32 %v5280, 4294901760
    %5282 = vmatmul.f32.gmra.mxu0 %v5281
    %v5283 = vpop.f32.mrf.mxu0
    %v5284 = vadd.f32 %v4920, %v5283
    %v5285 = vand.u32 %v3810, 4294901760
    %v5286 = vsub.f32 %v3810, %v5285
    %v5287 = vand.u32 %v5286, 4294901760
    %5288 = vmatmul.f32.gmra.mxu0 %v5287
    %v5289 = vpop.f32.mrf.mxu0
    %v5290 = vadd.f32 %v4925, %v5289
    %v5291 = vand.u32 %v3813, 4294901760
    %v5292 = vsub.f32 %v3813, %v5291
    %v5293 = vand.u32 %v5292, 4294901760
    %5294 = vmatmul.f32.gmra.mxu0 %v5293
    %v5295 = vpop.f32.mrf.mxu0
    %v5296 = vadd.f32 %v4930, %v5295
    %v5297 = vand.u32 %v3816, 4294901760
    %v5298 = vsub.f32 %v3816, %v5297
    %v5299 = vand.u32 %v5298, 4294901760
    %5300 = vmatmul.f32.gmra.mxu0 %v5299
    %v5301 = vpop.f32.mrf.mxu0
    %v5302 = vadd.f32 %v4935, %v5301
    %v5303 = vand.u32 %v3819, 4294901760
    %v5304 = vsub.f32 %v3819, %v5303
    %v5305 = vand.u32 %v5304, 4294901760
    %5306 = vmatmul.f32.gmra.mxu0 %v5305
    %v5307 = vpop.f32.mrf.mxu0
    %v5308 = vadd.f32 %v4940, %v5307
    %v5309 = vand.u32 %v3822, 4294901760
    %v5310 = vsub.f32 %v3822, %v5309
    %v5311 = vand.u32 %v5310, 4294901760
    %5312 = vmatmul.f32.gmra.mxu0 %v5311
    %v5313 = vpop.f32.mrf.mxu0
    %v5314 = vadd.f32 %v4945, %v5313
    %v5315 = vand.u32 %v3825, 4294901760
    %v5316 = vsub.f32 %v3825, %v5315
    %v5317 = vand.u32 %v5316, 4294901760
    %5318 = vmatmul.f32.gmra.mxu0 %v5317
    %v5319 = vpop.f32.mrf.mxu0
    %v5320 = vadd.f32 %v4950, %v5319
    %v5321 = vand.u32 %v3828, 4294901760
    %v5322 = vsub.f32 %v3828, %v5321
    %v5323 = vand.u32 %v5322, 4294901760
    %5324 = vmatmul.f32.gmra.mxu0 %v5323
    %v5325 = vpop.f32.mrf.mxu0
    %v5326 = vadd.f32 %v4955, %v5325
    %v5327 = vand.u32 %v3831, 4294901760
    %v5328 = vsub.f32 %v3831, %v5327
    %v5329 = vand.u32 %v5328, 4294901760
    %5330 = vmatmul.f32.gmra.mxu0 %v5329
    %v5331 = vpop.f32.mrf.mxu0
    %v5332 = vadd.f32 %v4960, %v5331
    %v5333 = vand.u32 %v3834, 4294901760
    %v5334 = vsub.f32 %v3834, %v5333
    %v5335 = vand.u32 %v5334, 4294901760
    %5336 = vmatmul.f32.gmra.mxu0 %v5335
    %v5337 = vpop.f32.mrf.mxu0
    %v5338 = vadd.f32 %v4965, %v5337
    %v5339 = vand.u32 %v3837, 4294901760
    %v5340 = vsub.f32 %v3837, %v5339
    %v5341 = vand.u32 %v5340, 4294901760
    %5342 = vmatmul.f32.gmra.mxu0 %v5341
    %v5343 = vpop.f32.mrf.mxu0
    %v5344 = vadd.f32 %v4970, %v5343
    %v5345 = vand.u32 %v3840, 4294901760
    %v5346 = vsub.f32 %v3840, %v5345
    %v5347 = vand.u32 %v5346, 4294901760
    %5348 = vmatmul.f32.gmra.mxu0 %v5347
    %v5349 = vpop.f32.mrf.mxu0
    %v5350 = vadd.f32 %v4975, %v5349
    %v5351 = vand.u32 %v3843, 4294901760
    %v5352 = vsub.f32 %v3843, %v5351
    %v5353 = vand.u32 %v5352, 4294901760
    %5354 = vmatmul.f32.gmra.mxu0 %v5353
    %v5355 = vpop.f32.mrf.mxu0
    %v5356 = vadd.f32 %v4980, %v5355
    %v5357 = vand.u32 %v3846, 4294901760
    %v5358 = vsub.f32 %v3846, %v5357
    %v5359 = vand.u32 %v5358, 4294901760
    %5360 = vmatmul.f32.gmra.mxu0 %v5359
    %v5361 = vpop.f32.mrf.mxu0
    %v5362 = vadd.f32 %v4985, %v5361
    %v5363 = vand.u32 %v3849, 4294901760
    %v5364 = vsub.f32 %v3849, %v5363
    %v5365 = vand.u32 %v5364, 4294901760
    %5366 = vmatmul.f32.gmra.mxu0 %v5365
    %v5367 = vpop.f32.mrf.mxu0
    %v5368 = vadd.f32 %v4990, %v5367
    %v5369 = vand.u32 %v3852, 4294901760
    %v5370 = vsub.f32 %v3852, %v5369
    %v5371 = vand.u32 %v5370, 4294901760
    %5372 = vmatmul.f32.gmra.mxu0 %v5371
    %v5373 = vpop.f32.mrf.mxu0
    %v5374 = vadd.f32 %v4995, %v5373
    %v5375 = vand.u32 %v3855, 4294901760
    %v5376 = vsub.f32 %v3855, %v5375
    %v5377 = vand.u32 %v5376, 4294901760
    %5378 = vmatmul.f32.gmra.mxu0 %v5377
    %v5379 = vpop.f32.mrf.mxu0
    %v5380 = vadd.f32 %v5000, %v5379
    %v5381 = vand.u32 %v3858, 4294901760
    %v5382 = vsub.f32 %v3858, %v5381
    %v5383 = vand.u32 %v5382, 4294901760
    %5384 = vmatmul.f32.gmra.mxu0 %v5383
    %v5385 = vpop.f32.mrf.mxu0
    %v5386 = vadd.f32 %v5005, %v5385
    %v5387 = vand.u32 %v3861, 4294901760
    %v5388 = vsub.f32 %v3861, %v5387
    %v5389 = vand.u32 %v5388, 4294901760
    %5390 = vmatmul.f32.gmra.mxu0 %v5389
    %v5391 = vpop.f32.mrf.mxu0
    %v5392 = vadd.f32 %v5010, %v5391
    %v5393 = vand.u32 %v3864, 4294901760
    %v5394 = vsub.f32 %v3864, %v5393
    %v5395 = vand.u32 %v5394, 4294901760
    %5396 = vmatmul.f32.gmra.mxu0 %v5395
    %v5397 = vpop.f32.mrf.mxu0
    %v5398 = vadd.f32 %v5015, %v5397
    %v5399 = vand.u32 %v3867, 4294901760
    %v5400 = vsub.f32 %v3867, %v5399
    %v5401 = vand.u32 %v5400, 4294901760
    %5402 = vmatmul.f32.gmra.mxu0 %v5401
    %v5403 = vpop.f32.mrf.mxu0
    %v5404 = vadd.f32 %v5020, %v5403
    %v5405 = vand.u32 %v3870, 4294901760
    %v5406 = vsub.f32 %v3870, %v5405
    %v5407 = vand.u32 %v5406, 4294901760
    %5408 = vmatmul.f32.gmra.mxu0 %v5407
    %v5409 = vpop.f32.mrf.mxu0
    %v5410 = vadd.f32 %v5025, %v5409
    %v5411 = vand.u32 %v3873, 4294901760
    %v5412 = vsub.f32 %v3873, %v5411
    %v5413 = vand.u32 %v5412, 4294901760
    %5414 = vmatmul.f32.gmra.mxu0 %v5413
    %v5415 = vpop.f32.mrf.mxu0
    %v5416 = vadd.f32 %v5030, %v5415
    %v5417 = vand.u32 %v3876, 4294901760
    %v5418 = vsub.f32 %v3876, %v5417
    %v5419 = vand.u32 %v5418, 4294901760
    %5420 = vmatmul.f32.gmra.mxu0 %v5419
    %v5421 = vpop.f32.mrf.mxu0
    %v5422 = vadd.f32 %v5035, %v5421
    %v5423 = vand.u32 %v3879, 4294901760
    %v5424 = vsub.f32 %v3879, %v5423
    %v5425 = vand.u32 %v5424, 4294901760
    %5426 = vmatmul.f32.gmra.mxu0 %v5425
    %v5427 = vpop.f32.mrf.mxu0
    %v5428 = vadd.f32 %v5040, %v5427
    %v5429 = vand.u32 %v3882, 4294901760
    %v5430 = vsub.f32 %v3882, %v5429
    %v5431 = vand.u32 %v5430, 4294901760
    %5432 = vmatmul.f32.gmra.mxu0 %v5431
    %v5433 = vpop.f32.mrf.mxu0
    %v5434 = vadd.f32 %v5045, %v5433
    %v5435 = vand.u32 %v3885, 4294901760
    %v5436 = vsub.f32 %v3885, %v5435
    %v5437 = vand.u32 %v5436, 4294901760
    %5438 = vmatmul.f32.gmra.mxu0 %v5437
    %v5439 = vpop.f32.mrf.mxu0
    %v5440 = vadd.f32 %v5050, %v5439
    %v5441 = vand.u32 %v3888, 4294901760
    %v5442 = vsub.f32 %v3888, %v5441
    %v5443 = vand.u32 %v5442, 4294901760
    %5444 = vmatmul.f32.gmra.mxu0 %v5443
    %v5445 = vpop.f32.mrf.mxu0
    %v5446 = vadd.f32 %v5055, %v5445
    %v5447 = vand.u32 %v3891, 4294901760
    %v5448 = vsub.f32 %v3891, %v5447
    %v5449 = vand.u32 %v5448, 4294901760
    %5450 = vmatmul.f32.gmra.mxu0 %v5449
    %v5451 = vpop.f32.mrf.mxu0
    %v5452 = vadd.f32 %v5060, %v5451
    %v5453 = vand.u32 %v3894, 4294901760
    %v5454 = vsub.f32 %v3894, %v5453
    %v5455 = vand.u32 %v5454, 4294901760
    %5456 = vmatmul.f32.gmra.mxu0 %v5455
    %v5457 = vpop.f32.mrf.mxu0
    %v5458 = vadd.f32 %v5065, %v5457
    %v5459 = vand.u32 %v3897, 4294901760
    %v5460 = vsub.f32 %v3897, %v5459
    %v5461 = vand.u32 %v5460, 4294901760
    %5462 = vmatmul.f32.gmra.mxu0 %v5461
    %v5463 = vpop.f32.mrf.mxu0
    %v5464 = vadd.f32 %v5070, %v5463
    %v5465 = vand.u32 %v3900, 4294901760
    %v5466 = vsub.f32 %v3900, %v5465
    %v5467 = vand.u32 %v5466, 4294901760
    %5468 = vmatmul.f32.gmra.mxu0 %v5467
    %v5469 = vpop.f32.mrf.mxu0
    %v5470 = vadd.f32 %v5075, %v5469
    %v5471 = vand.u32 %v3903, 4294901760
    %v5472 = vsub.f32 %v3903, %v5471
    %v5473 = vand.u32 %v5472, 4294901760
    %5474 = vmatmul.f32.gmra.mxu0 %v5473
    %v5475 = vpop.f32.mrf.mxu0
    %v5476 = vadd.f32 %v5080, %v5475
    %v5477 = vand.u32 %v3906, 4294901760
    %v5478 = vsub.f32 %v3906, %v5477
    %v5479 = vand.u32 %v5478, 4294901760
    %5480 = vmatmul.f32.gmra.mxu0 %v5479
    %v5481 = vpop.f32.mrf.mxu0
    %v5482 = vadd.f32 %v5085, %v5481
    %v5483 = vand.u32 %v3909, 4294901760
    %v5484 = vsub.f32 %v3909, %v5483
    %v5485 = vand.u32 %v5484, 4294901760
    %5486 = vmatmul.f32.gmra.mxu0 %v5485
    %v5487 = vpop.f32.mrf.mxu0
    %v5488 = vadd.f32 %v5090, %v5487
    %v5489 = vand.u32 %v3912, 4294901760
    %v5490 = vsub.f32 %v3912, %v5489
    %v5491 = vand.u32 %v5490, 4294901760
    %5492 = vmatmul.f32.gmra.mxu0 %v5491
    %v5493 = vpop.f32.mrf.mxu0
    %v5494 = vadd.f32 %v5095, %v5493
    %v5495 = vand.u32 %v3915, 4294901760
    %v5496 = vsub.f32 %v3915, %v5495
    %v5497 = vand.u32 %v5496, 4294901760
    %5498 = vmatmul.f32.gmra.mxu0 %v5497
    %v5499 = vpop.f32.mrf.mxu0
    %v5500 = vadd.f32 %v5100, %v5499
    %v5501 = vand.u32 %v3918, 4294901760
    %v5502 = vsub.f32 %v3918, %v5501
    %v5503 = vand.u32 %v5502, 4294901760
    %5504 = vmatmul.f32.gmra.mxu0 %v5503
    %v5505 = vpop.f32.mrf.mxu0
    %v5506 = vadd.f32 %v5105, %v5505
    %v5507 = vand.u32 %v3921, 4294901760
    %v5508 = vsub.f32 %v3921, %v5507
    %v5509 = vand.u32 %v5508, 4294901760
    %5510 = vmatmul.f32.gmra.mxu0 %v5509
    %v5511 = vpop.f32.mrf.mxu0
    %v5512 = vadd.f32 %v5110, %v5511
    %v5513 = vand.u32 %v3924, 4294901760
    %v5514 = vsub.f32 %v3924, %v5513
    %v5515 = vand.u32 %v5514, 4294901760
    %5516 = vmatmul.f32.gmra.mxu0 %v5515
    %v5517 = vpop.f32.mrf.mxu0
    %v5518 = vadd.f32 %v5115, %v5517
    %v5519 = vand.u32 %v3927, 4294901760
    %v5520 = vsub.f32 %v3927, %v5519
    %v5521 = vand.u32 %v5520, 4294901760
    %5522 = vmatmul.f32.gmra.mxu0 %v5521
    %v5523 = vpop.f32.mrf.mxu0
    %v5524 = vadd.f32 %v5120, %v5523
    %v5525 = vand.u32 %v3930, 4294901760
    %v5526 = vsub.f32 %v3930, %v5525
    %v5527 = vand.u32 %v5526, 4294901760
    %5528 = vmatmul.f32.gmra.mxu0 %v5527
    %v5529 = vpop.f32.mrf.mxu0
    %v5530 = vadd.f32 %v5125, %v5529
    %v5531 = vand.u32 %v3933, 4294901760
    %v5532 = vsub.f32 %v3933, %v5531
    %v5533 = vand.u32 %v5532, 4294901760
    %5534 = vmatmul.f32.gmra.mxu0 %v5533
    %v5535 = vpop.f32.mrf.mxu0
    %v5536 = vadd.f32 %v5130, %v5535
    %v5537 = vand.u32 %v3936, 4294901760
    %v5538 = vsub.f32 %v3936, %v5537
    %v5539 = vand.u32 %v5538, 4294901760
    %5540 = vmatmul.f32.gmra.mxu0 %v5539
    %v5541 = vpop.f32.mrf.mxu0
    %v5542 = vadd.f32 %v5135, %v5541
    %v5543 = vand.u32 %v3939, 4294901760
    %v5544 = vsub.f32 %v3939, %v5543
    %v5545 = vand.u32 %v5544, 4294901760
    %5546 = vmatmul.f32.gmra.mxu0 %v5545
    %v5547 = vpop.f32.mrf.mxu0
    %v5548 = vadd.f32 %v5140, %v5547
    %v5549 = vand.u32 %v3942, 4294901760
    %v5550 = vsub.f32 %v3942, %v5549
    %v5551 = vand.u32 %v5550, 4294901760
    %5552 = vmatmul.f32.gmra.mxu0 %v5551
    %v5553 = vpop.f32.mrf.mxu0
    %v5554 = vadd.f32 %v5145, %v5553
    %5555 = vdwg.mxu0
    %5556 = vmatpush.msra.mxu0 0.0
    %5557 = vmatpush.msra.mxu0 0.0
    %5558 = vmatpush.msra.mxu0 0.0
    %5559 = vmatpush.msra.mxu0 0.0
    %5560 = vmatpush.msra.mxu0 0.0
    %5561 = vmatpush.msra.mxu0 0.0
    %5562 = vmatpush.msra.mxu0 0.0
    %5563 = vmatpush.msra.mxu0 0.0
    %v5564 = vand.u32 %v1368, 4294901760
    %v5565 = vsub.f32 %v1368, %v5564
    %v5566 = vand.u32 %v5565, 4294901760
    %5567 = vmatpush.msra.mxu0 %v5566
    %v5568 = vand.u32 %v1367, 4294901760
    %v5569 = vsub.f32 %v1367, %v5568
    %v5570 = vand.u32 %v5569, 4294901760
    %5571 = vmatpush.msra.mxu0 %v5570
    %v5572 = vand.u32 %v1366, 4294901760
    %v5573 = vsub.f32 %v1366, %v5572
    %v5574 = vand.u32 %v5573, 4294901760
    %5575 = vmatpush.msra.mxu0 %v5574
    %v5576 = vand.u32 %v1365, 4294901760
    %v5577 = vsub.f32 %v1365, %v5576
    %v5578 = vand.u32 %v5577, 4294901760
    %5579 = vmatpush.msra.mxu0 %v5578
    %v5580 = vand.u32 %v1364, 4294901760
    %v5581 = vsub.f32 %v1364, %v5580
    %v5582 = vand.u32 %v5581, 4294901760
    %5583 = vmatpush.msra.mxu0 %v5582
    %v5584 = vand.u32 %v1363, 4294901760
    %v5585 = vsub.f32 %v1363, %v5584
    %v5586 = vand.u32 %v5585, 4294901760
    %5587 = vmatpush.msra.mxu0 %v5586
    %v5588 = vand.u32 %v1362, 4294901760
    %v5589 = vsub.f32 %v1362, %v5588
    %v5590 = vand.u32 %v5589, 4294901760
    %5591 = vmatpush.msra.mxu0 %v5590
    %v5592 = vand.u32 %v1361, 4294901760
    %v5593 = vsub.f32 %v1361, %v5592
    %v5594 = vand.u32 %v5593, 4294901760
    %5595 = vmatpush.msra.mxu0 %v5594
    %v5596 = vand.u32 %v3753, 4294901760
    %5597 = vmatmul.f32.gmra.mxu0 %v5596
    %v5598 = vpop.f32.mrf.mxu0
    %v5599 = vadd.f32 %v5176, %v5598
    %v5600 = vand.u32 %v3756, 4294901760
    %5601 = vmatmul.f32.gmra.mxu0 %v5600
    %v5602 = vpop.f32.mrf.mxu0
    %v5603 = vadd.f32 %v5182, %v5602
    %v5604 = vand.u32 %v3759, 4294901760
    %5605 = vmatmul.f32.gmra.mxu0 %v5604
    %v5606 = vpop.f32.mrf.mxu0
    %v5607 = vadd.f32 %v5188, %v5606
    %v5608 = vand.u32 %v3762, 4294901760
    %5609 = vmatmul.f32.gmra.mxu0 %v5608
    %v5610 = vpop.f32.mrf.mxu0
    %v5611 = vadd.f32 %v5194, %v5610
    %v5612 = vand.u32 %v3765, 4294901760
    %5613 = vmatmul.f32.gmra.mxu0 %v5612
    %v5614 = vpop.f32.mrf.mxu0
    %v5615 = vadd.f32 %v5200, %v5614
    %v5616 = vand.u32 %v3768, 4294901760
    %5617 = vmatmul.f32.gmra.mxu0 %v5616
    %v5618 = vpop.f32.mrf.mxu0
    %v5619 = vadd.f32 %v5206, %v5618
    %v5620 = vand.u32 %v3771, 4294901760
    %5621 = vmatmul.f32.gmra.mxu0 %v5620
    %v5622 = vpop.f32.mrf.mxu0
    %v5623 = vadd.f32 %v5212, %v5622
    %v5624 = vand.u32 %v3774, 4294901760
    %5625 = vmatmul.f32.gmra.mxu0 %v5624
    %v5626 = vpop.f32.mrf.mxu0
    %v5627 = vadd.f32 %v5218, %v5626
    %v5628 = vand.u32 %v3777, 4294901760
    %5629 = vmatmul.f32.gmra.mxu0 %v5628
    %v5630 = vpop.f32.mrf.mxu0
    %v5631 = vadd.f32 %v5224, %v5630
    %v5632 = vand.u32 %v3780, 4294901760
    %5633 = vmatmul.f32.gmra.mxu0 %v5632
    %v5634 = vpop.f32.mrf.mxu0
    %v5635 = vadd.f32 %v5230, %v5634
    %v5636 = vand.u32 %v3783, 4294901760
    %5637 = vmatmul.f32.gmra.mxu0 %v5636
    %v5638 = vpop.f32.mrf.mxu0
    %v5639 = vadd.f32 %v5236, %v5638
    %v5640 = vand.u32 %v3786, 4294901760
    %5641 = vmatmul.f32.gmra.mxu0 %v5640
    %v5642 = vpop.f32.mrf.mxu0
    %v5643 = vadd.f32 %v5242, %v5642
    %v5644 = vand.u32 %v3789, 4294901760
    %5645 = vmatmul.f32.gmra.mxu0 %v5644
    %v5646 = vpop.f32.mrf.mxu0
    %v5647 = vadd.f32 %v5248, %v5646
    %v5648 = vand.u32 %v3792, 4294901760
    %5649 = vmatmul.f32.gmra.mxu0 %v5648
    %v5650 = vpop.f32.mrf.mxu0
    %v5651 = vadd.f32 %v5254, %v5650
    %v5652 = vand.u32 %v3795, 4294901760
    %5653 = vmatmul.f32.gmra.mxu0 %v5652
    %v5654 = vpop.f32.mrf.mxu0
    %v5655 = vadd.f32 %v5260, %v5654
    %v5656 = vand.u32 %v3798, 4294901760
    %5657 = vmatmul.f32.gmra.mxu0 %v5656
    %v5658 = vpop.f32.mrf.mxu0
    %v5659 = vadd.f32 %v5266, %v5658
    %v5660 = vand.u32 %v3801, 4294901760
    %5661 = vmatmul.f32.gmra.mxu0 %v5660
    %v5662 = vpop.f32.mrf.mxu0
    %v5663 = vadd.f32 %v5272, %v5662
    %v5664 = vand.u32 %v3804, 4294901760
    %5665 = vmatmul.f32.gmra.mxu0 %v5664
    %v5666 = vpop.f32.mrf.mxu0
    %v5667 = vadd.f32 %v5278, %v5666
    %v5668 = vand.u32 %v3807, 4294901760
    %5669 = vmatmul.f32.gmra.mxu0 %v5668
    %v5670 = vpop.f32.mrf.mxu0
    %v5671 = vadd.f32 %v5284, %v5670
    %v5672 = vand.u32 %v3810, 4294901760
    %5673 = vmatmul.f32.gmra.mxu0 %v5672
    %v5674 = vpop.f32.mrf.mxu0
    %v5675 = vadd.f32 %v5290, %v5674
    %v5676 = vand.u32 %v3813, 4294901760
    %5677 = vmatmul.f32.gmra.mxu0 %v5676
    %v5678 = vpop.f32.mrf.mxu0
    %v5679 = vadd.f32 %v5296, %v5678
    %v5680 = vand.u32 %v3816, 4294901760
    %5681 = vmatmul.f32.gmra.mxu0 %v5680
    %v5682 = vpop.f32.mrf.mxu0
    %v5683 = vadd.f32 %v5302, %v5682
    %v5684 = vand.u32 %v3819, 4294901760
    %5685 = vmatmul.f32.gmra.mxu0 %v5684
    %v5686 = vpop.f32.mrf.mxu0
    %v5687 = vadd.f32 %v5308, %v5686
    %v5688 = vand.u32 %v3822, 4294901760
    %5689 = vmatmul.f32.gmra.mxu0 %v5688
    %v5690 = vpop.f32.mrf.mxu0
    %v5691 = vadd.f32 %v5314, %v5690
    %v5692 = vand.u32 %v3825, 4294901760
    %5693 = vmatmul.f32.gmra.mxu0 %v5692
    %v5694 = vpop.f32.mrf.mxu0
    %v5695 = vadd.f32 %v5320, %v5694
    %v5696 = vand.u32 %v3828, 4294901760
    %5697 = vmatmul.f32.gmra.mxu0 %v5696
    %v5698 = vpop.f32.mrf.mxu0
    %v5699 = vadd.f32 %v5326, %v5698
    %v5700 = vand.u32 %v3831, 4294901760
    %5701 = vmatmul.f32.gmra.mxu0 %v5700
    %v5702 = vpop.f32.mrf.mxu0
    %v5703 = vadd.f32 %v5332, %v5702
    %v5704 = vand.u32 %v3834, 4294901760
    %5705 = vmatmul.f32.gmra.mxu0 %v5704
    %v5706 = vpop.f32.mrf.mxu0
    %v5707 = vadd.f32 %v5338, %v5706
    %v5708 = vand.u32 %v3837, 4294901760
    %5709 = vmatmul.f32.gmra.mxu0 %v5708
    %v5710 = vpop.f32.mrf.mxu0
    %v5711 = vadd.f32 %v5344, %v5710
    %v5712 = vand.u32 %v3840, 4294901760
    %5713 = vmatmul.f32.gmra.mxu0 %v5712
    %v5714 = vpop.f32.mrf.mxu0
    %v5715 = vadd.f32 %v5350, %v5714
    %v5716 = vand.u32 %v3843, 4294901760
    %5717 = vmatmul.f32.gmra.mxu0 %v5716
    %v5718 = vpop.f32.mrf.mxu0
    %v5719 = vadd.f32 %v5356, %v5718
    %v5720 = vand.u32 %v3846, 4294901760
    %5721 = vmatmul.f32.gmra.mxu0 %v5720
    %v5722 = vpop.f32.mrf.mxu0
    %v5723 = vadd.f32 %v5362, %v5722
    %v5724 = vand.u32 %v3849, 4294901760
    %5725 = vmatmul.f32.gmra.mxu0 %v5724
    %v5726 = vpop.f32.mrf.mxu0
    %v5727 = vadd.f32 %v5368, %v5726
    %v5728 = vand.u32 %v3852, 4294901760
    %5729 = vmatmul.f32.gmra.mxu0 %v5728
    %v5730 = vpop.f32.mrf.mxu0
    %v5731 = vadd.f32 %v5374, %v5730
    %v5732 = vand.u32 %v3855, 4294901760
    %5733 = vmatmul.f32.gmra.mxu0 %v5732
    %v5734 = vpop.f32.mrf.mxu0
    %v5735 = vadd.f32 %v5380, %v5734
    %v5736 = vand.u32 %v3858, 4294901760
    %5737 = vmatmul.f32.gmra.mxu0 %v5736
    %v5738 = vpop.f32.mrf.mxu0
    %v5739 = vadd.f32 %v5386, %v5738
    %v5740 = vand.u32 %v3861, 4294901760
    %5741 = vmatmul.f32.gmra.mxu0 %v5740
    %v5742 = vpop.f32.mrf.mxu0
    %v5743 = vadd.f32 %v5392, %v5742
    %v5744 = vand.u32 %v3864, 4294901760
    %5745 = vmatmul.f32.gmra.mxu0 %v5744
    %v5746 = vpop.f32.mrf.mxu0
    %v5747 = vadd.f32 %v5398, %v5746
    %v5748 = vand.u32 %v3867, 4294901760
    %5749 = vmatmul.f32.gmra.mxu0 %v5748
    %v5750 = vpop.f32.mrf.mxu0
    %v5751 = vadd.f32 %v5404, %v5750
    %v5752 = vand.u32 %v3870, 4294901760
    %5753 = vmatmul.f32.gmra.mxu0 %v5752
    %v5754 = vpop.f32.mrf.mxu0
    %v5755 = vadd.f32 %v5410, %v5754
    %v5756 = vand.u32 %v3873, 4294901760
    %5757 = vmatmul.f32.gmra.mxu0 %v5756
    %v5758 = vpop.f32.mrf.mxu0
    %v5759 = vadd.f32 %v5416, %v5758
    %v5760 = vand.u32 %v3876, 4294901760
    %5761 = vmatmul.f32.gmra.mxu0 %v5760
    %v5762 = vpop.f32.mrf.mxu0
    %v5763 = vadd.f32 %v5422, %v5762
    %v5764 = vand.u32 %v3879, 4294901760
    %5765 = vmatmul.f32.gmra.mxu0 %v5764
    %v5766 = vpop.f32.mrf.mxu0
    %v5767 = vadd.f32 %v5428, %v5766
    %v5768 = vand.u32 %v3882, 4294901760
    %5769 = vmatmul.f32.gmra.mxu0 %v5768
    %v5770 = vpop.f32.mrf.mxu0
    %v5771 = vadd.f32 %v5434, %v5770
    %v5772 = vand.u32 %v3885, 4294901760
    %5773 = vmatmul.f32.gmra.mxu0 %v5772
    %v5774 = vpop.f32.mrf.mxu0
    %v5775 = vadd.f32 %v5440, %v5774
    %v5776 = vand.u32 %v3888, 4294901760
    %5777 = vmatmul.f32.gmra.mxu0 %v5776
    %v5778 = vpop.f32.mrf.mxu0
    %v5779 = vadd.f32 %v5446, %v5778
    %v5780 = vand.u32 %v3891, 4294901760
    %5781 = vmatmul.f32.gmra.mxu0 %v5780
    %v5782 = vpop.f32.mrf.mxu0
    %v5783 = vadd.f32 %v5452, %v5782
    %v5784 = vand.u32 %v3894, 4294901760
    %5785 = vmatmul.f32.gmra.mxu0 %v5784
    %v5786 = vpop.f32.mrf.mxu0
    %v5787 = vadd.f32 %v5458, %v5786
    %v5788 = vand.u32 %v3897, 4294901760
    %5789 = vmatmul.f32.gmra.mxu0 %v5788
    %v5790 = vpop.f32.mrf.mxu0
    %v5791 = vadd.f32 %v5464, %v5790
    %v5792 = vand.u32 %v3900, 4294901760
    %5793 = vmatmul.f32.gmra.mxu0 %v5792
    %v5794 = vpop.f32.mrf.mxu0
    %v5795 = vadd.f32 %v5470, %v5794
    %v5796 = vand.u32 %v3903, 4294901760
    %5797 = vmatmul.f32.gmra.mxu0 %v5796
    %v5798 = vpop.f32.mrf.mxu0
    %v5799 = vadd.f32 %v5476, %v5798
    %v5800 = vand.u32 %v3906, 4294901760
    %5801 = vmatmul.f32.gmra.mxu0 %v5800
    %v5802 = vpop.f32.mrf.mxu0
    %v5803 = vadd.f32 %v5482, %v5802
    %v5804 = vand.u32 %v3909, 4294901760
    %5805 = vmatmul.f32.gmra.mxu0 %v5804
    %v5806 = vpop.f32.mrf.mxu0
    %v5807 = vadd.f32 %v5488, %v5806
    %v5808 = vand.u32 %v3912, 4294901760
    %5809 = vmatmul.f32.gmra.mxu0 %v5808
    %v5810 = vpop.f32.mrf.mxu0
    %v5811 = vadd.f32 %v5494, %v5810
    %v5812 = vand.u32 %v3915, 4294901760
    %5813 = vmatmul.f32.gmra.mxu0 %v5812
    %v5814 = vpop.f32.mrf.mxu0
    %v5815 = vadd.f32 %v5500, %v5814
    %v5816 = vand.u32 %v3918, 4294901760
    %5817 = vmatmul.f32.gmra.mxu0 %v5816
    %v5818 = vpop.f32.mrf.mxu0
    %v5819 = vadd.f32 %v5506, %v5818
    %v5820 = vand.u32 %v3921, 4294901760
    %5821 = vmatmul.f32.gmra.mxu0 %v5820
    %v5822 = vpop.f32.mrf.mxu0
    %v5823 = vadd.f32 %v5512, %v5822
    %v5824 = vand.u32 %v3924, 4294901760
    %5825 = vmatmul.f32.gmra.mxu0 %v5824
    %v5826 = vpop.f32.mrf.mxu0
    %v5827 = vadd.f32 %v5518, %v5826
    %v5828 = vand.u32 %v3927, 4294901760
    %5829 = vmatmul.f32.gmra.mxu0 %v5828
    %v5830 = vpop.f32.mrf.mxu0
    %v5831 = vadd.f32 %v5524, %v5830
    %v5832 = vand.u32 %v3930, 4294901760
    %5833 = vmatmul.f32.gmra.mxu0 %v5832
    %v5834 = vpop.f32.mrf.mxu0
    %v5835 = vadd.f32 %v5530, %v5834
    %v5836 = vand.u32 %v3933, 4294901760
    %5837 = vmatmul.f32.gmra.mxu0 %v5836
    %v5838 = vpop.f32.mrf.mxu0
    %v5839 = vadd.f32 %v5536, %v5838
    %v5840 = vand.u32 %v3936, 4294901760
    %5841 = vmatmul.f32.gmra.mxu0 %v5840
    %v5842 = vpop.f32.mrf.mxu0
    %v5843 = vadd.f32 %v5542, %v5842
    %v5844 = vand.u32 %v3939, 4294901760
    %5845 = vmatmul.f32.gmra.mxu0 %v5844
    %v5846 = vpop.f32.mrf.mxu0
    %v5847 = vadd.f32 %v5548, %v5846
    %v5848 = vand.u32 %v3942, 4294901760
    %5849 = vmatmul.f32.gmra.mxu0 %v5848
    %v5850 = vpop.f32.mrf.mxu0
    %v5851 = vadd.f32 %v5554, %v5850
    %5852 = vdwg.mxu0
    %5853 = vmatpush.msra.mxu0 0.0
    %5854 = vmatpush.msra.mxu0 0.0
    %5855 = vmatpush.msra.mxu0 0.0
    %5856 = vmatpush.msra.mxu0 0.0
    %5857 = vmatpush.msra.mxu0 0.0
    %5858 = vmatpush.msra.mxu0 0.0
    %5859 = vmatpush.msra.mxu0 0.0
    %5860 = vmatpush.msra.mxu0 0.0
    %v5861 = vand.u32 %v1368, 4294901760
    %5862 = vmatpush.msra.mxu0 %v5861
    %v5863 = vand.u32 %v1367, 4294901760
    %5864 = vmatpush.msra.mxu0 %v5863
    %v5865 = vand.u32 %v1366, 4294901760
    %5866 = vmatpush.msra.mxu0 %v5865
    %v5867 = vand.u32 %v1365, 4294901760
    %5868 = vmatpush.msra.mxu0 %v5867
    %v5869 = vand.u32 %v1364, 4294901760
    %5870 = vmatpush.msra.mxu0 %v5869
    %v5871 = vand.u32 %v1363, 4294901760
    %5872 = vmatpush.msra.mxu0 %v5871
    %v5873 = vand.u32 %v1362, 4294901760
    %5874 = vmatpush.msra.mxu0 %v5873
    %v5875 = vand.u32 %v1361, 4294901760
    %5876 = vmatpush.msra.mxu0 %v5875
    %v5877 = vand.u32 %v3753, 4294901760
    %5878 = vmatmul.f32.gmra.mxu0 %v5877
    %v5879 = vpop.f32.mrf.mxu0
    %v5880 = vadd.f32 %v5599, %v5879
    %v5881 = vand.u32 %v3756, 4294901760
    %5882 = vmatmul.f32.gmra.mxu0 %v5881
    %v5883 = vpop.f32.mrf.mxu0
    %v5884 = vadd.f32 %v5603, %v5883
    %v5885 = vand.u32 %v3759, 4294901760
    %5886 = vmatmul.f32.gmra.mxu0 %v5885
    %v5887 = vpop.f32.mrf.mxu0
    %v5888 = vadd.f32 %v5607, %v5887
    %v5889 = vand.u32 %v3762, 4294901760
    %5890 = vmatmul.f32.gmra.mxu0 %v5889
    %v5891 = vpop.f32.mrf.mxu0
    %v5892 = vadd.f32 %v5611, %v5891
    %v5893 = vand.u32 %v3765, 4294901760
    %5894 = vmatmul.f32.gmra.mxu0 %v5893
    %v5895 = vpop.f32.mrf.mxu0
    %v5896 = vadd.f32 %v5615, %v5895
    %v5897 = vand.u32 %v3768, 4294901760
    %5898 = vmatmul.f32.gmra.mxu0 %v5897
    %v5899 = vpop.f32.mrf.mxu0
    %v5900 = vadd.f32 %v5619, %v5899
    %v5901 = vand.u32 %v3771, 4294901760
    %5902 = vmatmul.f32.gmra.mxu0 %v5901
    %v5903 = vpop.f32.mrf.mxu0
    %v5904 = vadd.f32 %v5623, %v5903
    %v5905 = vand.u32 %v3774, 4294901760
    %5906 = vmatmul.f32.gmra.mxu0 %v5905
    %v5907 = vpop.f32.mrf.mxu0
    %v5908 = vadd.f32 %v5627, %v5907
    %v5909 = vand.u32 %v3777, 4294901760
    %5910 = vmatmul.f32.gmra.mxu0 %v5909
    %v5911 = vpop.f32.mrf.mxu0
    %v5912 = vadd.f32 %v5631, %v5911
    %v5913 = vand.u32 %v3780, 4294901760
    %5914 = vmatmul.f32.gmra.mxu0 %v5913
    %v5915 = vpop.f32.mrf.mxu0
    %v5916 = vadd.f32 %v5635, %v5915
    %v5917 = vand.u32 %v3783, 4294901760
    %5918 = vmatmul.f32.gmra.mxu0 %v5917
    %v5919 = vpop.f32.mrf.mxu0
    %v5920 = vadd.f32 %v5639, %v5919
    %v5921 = vand.u32 %v3786, 4294901760
    %5922 = vmatmul.f32.gmra.mxu0 %v5921
    %v5923 = vpop.f32.mrf.mxu0
    %v5924 = vadd.f32 %v5643, %v5923
    %v5925 = vand.u32 %v3789, 4294901760
    %5926 = vmatmul.f32.gmra.mxu0 %v5925
    %v5927 = vpop.f32.mrf.mxu0
    %v5928 = vadd.f32 %v5647, %v5927
    %v5929 = vand.u32 %v3792, 4294901760
    %5930 = vmatmul.f32.gmra.mxu0 %v5929
    %v5931 = vpop.f32.mrf.mxu0
    %v5932 = vadd.f32 %v5651, %v5931
    %v5933 = vand.u32 %v3795, 4294901760
    %5934 = vmatmul.f32.gmra.mxu0 %v5933
    %v5935 = vpop.f32.mrf.mxu0
    %v5936 = vadd.f32 %v5655, %v5935
    %v5937 = vand.u32 %v3798, 4294901760
    %5938 = vmatmul.f32.gmra.mxu0 %v5937
    %v5939 = vpop.f32.mrf.mxu0
    %v5940 = vadd.f32 %v5659, %v5939
    %v5941 = vand.u32 %v3801, 4294901760
    %5942 = vmatmul.f32.gmra.mxu0 %v5941
    %v5943 = vpop.f32.mrf.mxu0
    %v5944 = vadd.f32 %v5663, %v5943
    %v5945 = vand.u32 %v3804, 4294901760
    %5946 = vmatmul.f32.gmra.mxu0 %v5945
    %v5947 = vpop.f32.mrf.mxu0
    %v5948 = vadd.f32 %v5667, %v5947
    %v5949 = vand.u32 %v3807, 4294901760
    %5950 = vmatmul.f32.gmra.mxu0 %v5949
    %v5951 = vpop.f32.mrf.mxu0
    %v5952 = vadd.f32 %v5671, %v5951
    %v5953 = vand.u32 %v3810, 4294901760
    %5954 = vmatmul.f32.gmra.mxu0 %v5953
    %v5955 = vpop.f32.mrf.mxu0
    %v5956 = vadd.f32 %v5675, %v5955
    %v5957 = vand.u32 %v3813, 4294901760
    %5958 = vmatmul.f32.gmra.mxu0 %v5957
    %v5959 = vpop.f32.mrf.mxu0
    %v5960 = vadd.f32 %v5679, %v5959
    %v5961 = vand.u32 %v3816, 4294901760
    %5962 = vmatmul.f32.gmra.mxu0 %v5961
    %v5963 = vpop.f32.mrf.mxu0
    %v5964 = vadd.f32 %v5683, %v5963
    %v5965 = vand.u32 %v3819, 4294901760
    %5966 = vmatmul.f32.gmra.mxu0 %v5965
    %v5967 = vpop.f32.mrf.mxu0
    %v5968 = vadd.f32 %v5687, %v5967
    %v5969 = vand.u32 %v3822, 4294901760
    %5970 = vmatmul.f32.gmra.mxu0 %v5969
    %v5971 = vpop.f32.mrf.mxu0
    %v5972 = vadd.f32 %v5691, %v5971
    %v5973 = vand.u32 %v3825, 4294901760
    %5974 = vmatmul.f32.gmra.mxu0 %v5973
    %v5975 = vpop.f32.mrf.mxu0
    %v5976 = vadd.f32 %v5695, %v5975
    %v5977 = vand.u32 %v3828, 4294901760
    %5978 = vmatmul.f32.gmra.mxu0 %v5977
    %v5979 = vpop.f32.mrf.mxu0
    %v5980 = vadd.f32 %v5699, %v5979
    %v5981 = vand.u32 %v3831, 4294901760
    %5982 = vmatmul.f32.gmra.mxu0 %v5981
    %v5983 = vpop.f32.mrf.mxu0
    %v5984 = vadd.f32 %v5703, %v5983
    %v5985 = vand.u32 %v3834, 4294901760
    %5986 = vmatmul.f32.gmra.mxu0 %v5985
    %v5987 = vpop.f32.mrf.mxu0
    %v5988 = vadd.f32 %v5707, %v5987
    %v5989 = vand.u32 %v3837, 4294901760
    %5990 = vmatmul.f32.gmra.mxu0 %v5989
    %v5991 = vpop.f32.mrf.mxu0
    %v5992 = vadd.f32 %v5711, %v5991
    %v5993 = vand.u32 %v3840, 4294901760
    %5994 = vmatmul.f32.gmra.mxu0 %v5993
    %v5995 = vpop.f32.mrf.mxu0
    %v5996 = vadd.f32 %v5715, %v5995
    %v5997 = vand.u32 %v3843, 4294901760
    %5998 = vmatmul.f32.gmra.mxu0 %v5997
    %v5999 = vpop.f32.mrf.mxu0
    %v6000 = vadd.f32 %v5719, %v5999
    %v6001 = vand.u32 %v3846, 4294901760
    %6002 = vmatmul.f32.gmra.mxu0 %v6001
    %v6003 = vpop.f32.mrf.mxu0
    %v6004 = vadd.f32 %v5723, %v6003
    %v6005 = vand.u32 %v3849, 4294901760
    %6006 = vmatmul.f32.gmra.mxu0 %v6005
    %v6007 = vpop.f32.mrf.mxu0
    %v6008 = vadd.f32 %v5727, %v6007
    %v6009 = vand.u32 %v3852, 4294901760
    %6010 = vmatmul.f32.gmra.mxu0 %v6009
    %v6011 = vpop.f32.mrf.mxu0
    %v6012 = vadd.f32 %v5731, %v6011
    %v6013 = vand.u32 %v3855, 4294901760
    %6014 = vmatmul.f32.gmra.mxu0 %v6013
    %v6015 = vpop.f32.mrf.mxu0
    %v6016 = vadd.f32 %v5735, %v6015
    %v6017 = vand.u32 %v3858, 4294901760
    %6018 = vmatmul.f32.gmra.mxu0 %v6017
    %v6019 = vpop.f32.mrf.mxu0
    %v6020 = vadd.f32 %v5739, %v6019
    %v6021 = vand.u32 %v3861, 4294901760
    %6022 = vmatmul.f32.gmra.mxu0 %v6021
    %v6023 = vpop.f32.mrf.mxu0
    %v6024 = vadd.f32 %v5743, %v6023
    %v6025 = vand.u32 %v3864, 4294901760
    %6026 = vmatmul.f32.gmra.mxu0 %v6025
    %v6027 = vpop.f32.mrf.mxu0
    %v6028 = vadd.f32 %v5747, %v6027
    %v6029 = vand.u32 %v3867, 4294901760
    %6030 = vmatmul.f32.gmra.mxu0 %v6029
    %v6031 = vpop.f32.mrf.mxu0
    %v6032 = vadd.f32 %v5751, %v6031
    %v6033 = vand.u32 %v3870, 4294901760
    %6034 = vmatmul.f32.gmra.mxu0 %v6033
    %v6035 = vpop.f32.mrf.mxu0
    %v6036 = vadd.f32 %v5755, %v6035
    %v6037 = vand.u32 %v3873, 4294901760
    %6038 = vmatmul.f32.gmra.mxu0 %v6037
    %v6039 = vpop.f32.mrf.mxu0
    %v6040 = vadd.f32 %v5759, %v6039
    %v6041 = vand.u32 %v3876, 4294901760
    %6042 = vmatmul.f32.gmra.mxu0 %v6041
    %v6043 = vpop.f32.mrf.mxu0
    %v6044 = vadd.f32 %v5763, %v6043
    %v6045 = vand.u32 %v3879, 4294901760
    %6046 = vmatmul.f32.gmra.mxu0 %v6045
    %v6047 = vpop.f32.mrf.mxu0
    %v6048 = vadd.f32 %v5767, %v6047
    %v6049 = vand.u32 %v3882, 4294901760
    %6050 = vmatmul.f32.gmra.mxu0 %v6049
    %v6051 = vpop.f32.mrf.mxu0
    %v6052 = vadd.f32 %v5771, %v6051
    %v6053 = vand.u32 %v3885, 4294901760
    %6054 = vmatmul.f32.gmra.mxu0 %v6053
    %v6055 = vpop.f32.mrf.mxu0
    %v6056 = vadd.f32 %v5775, %v6055
    %v6057 = vand.u32 %v3888, 4294901760
    %6058 = vmatmul.f32.gmra.mxu0 %v6057
    %v6059 = vpop.f32.mrf.mxu0
    %v6060 = vadd.f32 %v5779, %v6059
    %v6061 = vand.u32 %v3891, 4294901760
    %6062 = vmatmul.f32.gmra.mxu0 %v6061
    %v6063 = vpop.f32.mrf.mxu0
    %v6064 = vadd.f32 %v5783, %v6063
    %v6065 = vand.u32 %v3894, 4294901760
    %6066 = vmatmul.f32.gmra.mxu0 %v6065
    %v6067 = vpop.f32.mrf.mxu0
    %v6068 = vadd.f32 %v5787, %v6067
    %v6069 = vand.u32 %v3897, 4294901760
    %6070 = vmatmul.f32.gmra.mxu0 %v6069
    %v6071 = vpop.f32.mrf.mxu0
    %v6072 = vadd.f32 %v5791, %v6071
    %v6073 = vand.u32 %v3900, 4294901760
    %6074 = vmatmul.f32.gmra.mxu0 %v6073
    %v6075 = vpop.f32.mrf.mxu0
    %v6076 = vadd.f32 %v5795, %v6075
    %v6077 = vand.u32 %v3903, 4294901760
    %6078 = vmatmul.f32.gmra.mxu0 %v6077
    %v6079 = vpop.f32.mrf.mxu0
    %v6080 = vadd.f32 %v5799, %v6079
    %v6081 = vand.u32 %v3906, 4294901760
    %6082 = vmatmul.f32.gmra.mxu0 %v6081
    %v6083 = vpop.f32.mrf.mxu0
    %v6084 = vadd.f32 %v5803, %v6083
    %v6085 = vand.u32 %v3909, 4294901760
    %6086 = vmatmul.f32.gmra.mxu0 %v6085
    %v6087 = vpop.f32.mrf.mxu0
    %v6088 = vadd.f32 %v5807, %v6087
    %v6089 = vand.u32 %v3912, 4294901760
    %6090 = vmatmul.f32.gmra.mxu0 %v6089
    %v6091 = vpop.f32.mrf.mxu0
    %v6092 = vadd.f32 %v5811, %v6091
    %v6093 = vand.u32 %v3915, 4294901760
    %6094 = vmatmul.f32.gmra.mxu0 %v6093
    %v6095 = vpop.f32.mrf.mxu0
    %v6096 = vadd.f32 %v5815, %v6095
    %v6097 = vand.u32 %v3918, 4294901760
    %6098 = vmatmul.f32.gmra.mxu0 %v6097
    %v6099 = vpop.f32.mrf.mxu0
    %v6100 = vadd.f32 %v5819, %v6099
    %v6101 = vand.u32 %v3921, 4294901760
    %6102 = vmatmul.f32.gmra.mxu0 %v6101
    %v6103 = vpop.f32.mrf.mxu0
    %v6104 = vadd.f32 %v5823, %v6103
    %v6105 = vand.u32 %v3924, 4294901760
    %6106 = vmatmul.f32.gmra.mxu0 %v6105
    %v6107 = vpop.f32.mrf.mxu0
    %v6108 = vadd.f32 %v5827, %v6107
    %v6109 = vand.u32 %v3927, 4294901760
    %6110 = vmatmul.f32.gmra.mxu0 %v6109
    %v6111 = vpop.f32.mrf.mxu0
    %v6112 = vadd.f32 %v5831, %v6111
    %v6113 = vand.u32 %v3930, 4294901760
    %6114 = vmatmul.f32.gmra.mxu0 %v6113
    %v6115 = vpop.f32.mrf.mxu0
    %v6116 = vadd.f32 %v5835, %v6115
    %v6117 = vand.u32 %v3933, 4294901760
    %6118 = vmatmul.f32.gmra.mxu0 %v6117
    %v6119 = vpop.f32.mrf.mxu0
    %v6120 = vadd.f32 %v5839, %v6119
    %v6121 = vand.u32 %v3936, 4294901760
    %6122 = vmatmul.f32.gmra.mxu0 %v6121
    %v6123 = vpop.f32.mrf.mxu0
    %v6124 = vadd.f32 %v5843, %v6123
    %v6125 = vand.u32 %v3939, 4294901760
    %6126 = vmatmul.f32.gmra.mxu0 %v6125
    %v6127 = vpop.f32.mrf.mxu0
    %v6128 = vadd.f32 %v5847, %v6127
    %v6129 = vand.u32 %v3942, 4294901760
    %6130 = vmatmul.f32.gmra.mxu0 %v6129
    %v6131 = vpop.f32.mrf.mxu0
    %v6132 = vadd.f32 %v5851, %v6131
    %6133 = vdwg.mxu0
    %v6134 = vmul.f32 %v3498, %v3498
    %v6135 = vmul.f32 %v3502, %v3502
    %v6136 = vmul.f32 %v3506, %v3506
    %v6137 = vmul.f32 %v3510, %v3510
    %v6138 = vmul.f32 %v3514, %v3514
    %v6139 = vmul.f32 %v3518, %v3518
    %v6140 = vmul.f32 %v3522, %v3522
    %v6141 = vmul.f32 %v3526, %v3526
    %v6142 = vmul.f32 %v3530, %v3530
    %v6143 = vmul.f32 %v3534, %v3534
    %v6144 = vmul.f32 %v3538, %v3538
    %v6145 = vmul.f32 %v3542, %v3542
    %v6146 = vmul.f32 %v3546, %v3546
    %v6147 = vmul.f32 %v3550, %v3550
    %v6148 = vmul.f32 %v3554, %v3554
    %v6149 = vmul.f32 %v3558, %v3558
    %v6150 = vmul.f32 %v3562, %v3562
    %v6151 = vmul.f32 %v3566, %v3566
    %v6152 = vmul.f32 %v3570, %v3570
    %v6153 = vmul.f32 %v3574, %v3574
    %v6154 = vmul.f32 %v3578, %v3578
    %v6155 = vmul.f32 %v3582, %v3582
    %v6156 = vmul.f32 %v3586, %v3586
    %v6157 = vmul.f32 %v3590, %v3590
    %v6158 = vmul.f32 %v3594, %v3594
    %v6159 = vmul.f32 %v3598, %v3598
    %v6160 = vmul.f32 %v3602, %v3602
    %v6161 = vmul.f32 %v3606, %v3606
    %v6162 = vmul.f32 %v3610, %v3610
    %v6163 = vmul.f32 %v3614, %v3614
    %v6164 = vmul.f32 %v3618, %v3618
    %v6165 = vmul.f32 %v3622, %v3622
    %v6166 = vmul.f32 %v3626, %v3626
    %v6167 = vmul.f32 %v3630, %v3630
    %v6168 = vmul.f32 %v3634, %v3634
    %v6169 = vmul.f32 %v3638, %v3638
    %v6170 = vmul.f32 %v3642, %v3642
    %v6171 = vmul.f32 %v3646, %v3646
    %v6172 = vmul.f32 %v3650, %v3650
    %v6173 = vmul.f32 %v3654, %v3654
    %v6174 = vmul.f32 %v3658, %v3658
    %v6175 = vmul.f32 %v3662, %v3662
    %v6176 = vmul.f32 %v3666, %v3666
    %v6177 = vmul.f32 %v3670, %v3670
    %v6178 = vmul.f32 %v3674, %v3674
    %v6179 = vmul.f32 %v3678, %v3678
    %v6180 = vmul.f32 %v3682, %v3682
    %v6181 = vmul.f32 %v3686, %v3686
    %v6182 = vmul.f32 %v3690, %v3690
    %v6183 = vmul.f32 %v3694, %v3694
    %v6184 = vmul.f32 %v3698, %v3698
    %v6185 = vmul.f32 %v3702, %v3702
    %v6186 = vmul.f32 %v3706, %v3706
    %v6187 = vmul.f32 %v3710, %v3710
    %v6188 = vmul.f32 %v3714, %v3714
    %v6189 = vmul.f32 %v3718, %v3718
    %v6190 = vmul.f32 %v3722, %v3722
    %v6191 = vmul.f32 %v3726, %v3726
    %v6192 = vmul.f32 %v3730, %v3730
    %v6193 = vmul.f32 %v3734, %v3734
    %v6194 = vmul.f32 %v3738, %v3738
    %v6195 = vmul.f32 %v3742, %v3742
    %v6196 = vmul.f32 %v3746, %v3746
    %v6197 = vmul.f32 %v3750, %v3750
    %6198 = vadd.xlane.f32.xlu0 %v6134
    %v6199 = vpop.xlane.xlu0 %6198
    %6200 = vadd.xlane.f32.xlu0 %v6135
    %v6201 = vpop.xlane.xlu0 %6200
    %6202 = vadd.xlane.f32.xlu0 %v6136
    %v6203 = vpop.xlane.xlu0 %6202
    %6204 = vadd.xlane.f32.xlu0 %v6137
    %v6205 = vpop.xlane.xlu0 %6204
    %6206 = vadd.xlane.f32.xlu0 %v6138
    %v6207 = vpop.xlane.xlu0 %6206
    %6208 = vadd.xlane.f32.xlu0 %v6139
    %v6209 = vpop.xlane.xlu0 %6208
    %6210 = vadd.xlane.f32.xlu0 %v6140
    %v6211 = vpop.xlane.xlu0 %6210
    %6212 = vadd.xlane.f32.xlu0 %v6141
    %v6213 = vpop.xlane.xlu0 %6212
    %6214 = vadd.xlane.f32.xlu0 %v6142
    %v6215 = vpop.xlane.xlu0 %6214
    %6216 = vadd.xlane.f32.xlu0 %v6143
    %v6217 = vpop.xlane.xlu0 %6216
    %6218 = vadd.xlane.f32.xlu0 %v6144
    %v6219 = vpop.xlane.xlu0 %6218
    %6220 = vadd.xlane.f32.xlu0 %v6145
    %v6221 = vpop.xlane.xlu0 %6220
    %6222 = vadd.xlane.f32.xlu0 %v6146
    %v6223 = vpop.xlane.xlu0 %6222
    %6224 = vadd.xlane.f32.xlu0 %v6147
    %v6225 = vpop.xlane.xlu0 %6224
    %6226 = vadd.xlane.f32.xlu0 %v6148
    %v6227 = vpop.xlane.xlu0 %6226
    %6228 = vadd.xlane.f32.xlu0 %v6149
    %v6229 = vpop.xlane.xlu0 %6228
    %6230 = vadd.xlane.f32.xlu0 %v6150
    %v6231 = vpop.xlane.xlu0 %6230
    %6232 = vadd.xlane.f32.xlu0 %v6151
    %v6233 = vpop.xlane.xlu0 %6232
    %6234 = vadd.xlane.f32.xlu0 %v6152
    %v6235 = vpop.xlane.xlu0 %6234
    %6236 = vadd.xlane.f32.xlu0 %v6153
    %v6237 = vpop.xlane.xlu0 %6236
    %6238 = vadd.xlane.f32.xlu0 %v6154
    %v6239 = vpop.xlane.xlu0 %6238
    %6240 = vadd.xlane.f32.xlu0 %v6155
    %v6241 = vpop.xlane.xlu0 %6240
    %6242 = vadd.xlane.f32.xlu0 %v6156
    %v6243 = vpop.xlane.xlu0 %6242
    %6244 = vadd.xlane.f32.xlu0 %v6157
    %v6245 = vpop.xlane.xlu0 %6244
    %6246 = vadd.xlane.f32.xlu0 %v6158
    %v6247 = vpop.xlane.xlu0 %6246
    %6248 = vadd.xlane.f32.xlu0 %v6159
    %v6249 = vpop.xlane.xlu0 %6248
    %6250 = vadd.xlane.f32.xlu0 %v6160
    %v6251 = vpop.xlane.xlu0 %6250
    %6252 = vadd.xlane.f32.xlu0 %v6161
    %v6253 = vpop.xlane.xlu0 %6252
    %6254 = vadd.xlane.f32.xlu0 %v6162
    %v6255 = vpop.xlane.xlu0 %6254
    %6256 = vadd.xlane.f32.xlu0 %v6163
    %v6257 = vpop.xlane.xlu0 %6256
    %6258 = vadd.xlane.f32.xlu0 %v6164
    %v6259 = vpop.xlane.xlu0 %6258
    %6260 = vadd.xlane.f32.xlu0 %v6165
    %v6261 = vpop.xlane.xlu0 %6260
    %6262 = vadd.xlane.f32.xlu0 %v6166
    %v6263 = vpop.xlane.xlu0 %6262
    %6264 = vadd.xlane.f32.xlu0 %v6167
    %v6265 = vpop.xlane.xlu0 %6264
    %6266 = vadd.xlane.f32.xlu0 %v6168
    %v6267 = vpop.xlane.xlu0 %6266
    %6268 = vadd.xlane.f32.xlu0 %v6169
    %v6269 = vpop.xlane.xlu0 %6268
    %6270 = vadd.xlane.f32.xlu0 %v6170
    %v6271 = vpop.xlane.xlu0 %6270
    %6272 = vadd.xlane.f32.xlu0 %v6171
    %v6273 = vpop.xlane.xlu0 %6272
    %6274 = vadd.xlane.f32.xlu0 %v6172
    %v6275 = vpop.xlane.xlu0 %6274
    %6276 = vadd.xlane.f32.xlu0 %v6173
    %v6277 = vpop.xlane.xlu0 %6276
    %6278 = vadd.xlane.f32.xlu0 %v6174
    %v6279 = vpop.xlane.xlu0 %6278
    %6280 = vadd.xlane.f32.xlu0 %v6175
    %v6281 = vpop.xlane.xlu0 %6280
    %6282 = vadd.xlane.f32.xlu0 %v6176
    %v6283 = vpop.xlane.xlu0 %6282
    %6284 = vadd.xlane.f32.xlu0 %v6177
    %v6285 = vpop.xlane.xlu0 %6284
    %6286 = vadd.xlane.f32.xlu0 %v6178
    %v6287 = vpop.xlane.xlu0 %6286
    %6288 = vadd.xlane.f32.xlu0 %v6179
    %v6289 = vpop.xlane.xlu0 %6288
    %6290 = vadd.xlane.f32.xlu0 %v6180
    %v6291 = vpop.xlane.xlu0 %6290
    %6292 = vadd.xlane.f32.xlu0 %v6181
    %v6293 = vpop.xlane.xlu0 %6292
    %6294 = vadd.xlane.f32.xlu0 %v6182
    %v6295 = vpop.xlane.xlu0 %6294
    %6296 = vadd.xlane.f32.xlu0 %v6183
    %v6297 = vpop.xlane.xlu0 %6296
    %6298 = vadd.xlane.f32.xlu0 %v6184
    %v6299 = vpop.xlane.xlu0 %6298
    %6300 = vadd.xlane.f32.xlu0 %v6185
    %v6301 = vpop.xlane.xlu0 %6300
    %6302 = vadd.xlane.f32.xlu0 %v6186
    %v6303 = vpop.xlane.xlu0 %6302
    %6304 = vadd.xlane.f32.xlu0 %v6187
    %v6305 = vpop.xlane.xlu0 %6304
    %6306 = vadd.xlane.f32.xlu0 %v6188
    %v6307 = vpop.xlane.xlu0 %6306
    %6308 = vadd.xlane.f32.xlu0 %v6189
    %v6309 = vpop.xlane.xlu0 %6308
    %6310 = vadd.xlane.f32.xlu0 %v6190
    %v6311 = vpop.xlane.xlu0 %6310
    %6312 = vadd.xlane.f32.xlu0 %v6191
    %v6313 = vpop.xlane.xlu0 %6312
    %6314 = vadd.xlane.f32.xlu0 %v6192
    %v6315 = vpop.xlane.xlu0 %6314
    %6316 = vadd.xlane.f32.xlu0 %v6193
    %v6317 = vpop.xlane.xlu0 %6316
    %6318 = vadd.xlane.f32.xlu0 %v6194
    %v6319 = vpop.xlane.xlu0 %6318
    %6320 = vadd.xlane.f32.xlu0 %v6195
    %v6321 = vpop.xlane.xlu0 %6320
    %6322 = vadd.xlane.f32.xlu0 %v6196
    %v6323 = vpop.xlane.xlu0 %6322
    %6324 = vadd.xlane.f32.xlu0 %v6197
    %v6325 = vpop.xlane.xlu0 %6324
    %v6326 = vmul.f32 %v5880, %v5880
    %v6327 = vmul.f32 %v5884, %v5884
    %v6328 = vmul.f32 %v5888, %v5888
    %v6329 = vmul.f32 %v5892, %v5892
    %v6330 = vmul.f32 %v5896, %v5896
    %v6331 = vmul.f32 %v5900, %v5900
    %v6332 = vmul.f32 %v5904, %v5904
    %v6333 = vmul.f32 %v5908, %v5908
    %v6334 = vmul.f32 %v5912, %v5912
    %v6335 = vmul.f32 %v5916, %v5916
    %v6336 = vmul.f32 %v5920, %v5920
    %v6337 = vmul.f32 %v5924, %v5924
    %v6338 = vmul.f32 %v5928, %v5928
    %v6339 = vmul.f32 %v5932, %v5932
    %v6340 = vmul.f32 %v5936, %v5936
    %v6341 = vmul.f32 %v5940, %v5940
    %v6342 = vmul.f32 %v5944, %v5944
    %v6343 = vmul.f32 %v5948, %v5948
    %v6344 = vmul.f32 %v5952, %v5952
    %v6345 = vmul.f32 %v5956, %v5956
    %v6346 = vmul.f32 %v5960, %v5960
    %v6347 = vmul.f32 %v5964, %v5964
    %v6348 = vmul.f32 %v5968, %v5968
    %v6349 = vmul.f32 %v5972, %v5972
    %v6350 = vmul.f32 %v5976, %v5976
    %v6351 = vmul.f32 %v5980, %v5980
    %v6352 = vmul.f32 %v5984, %v5984
    %v6353 = vmul.f32 %v5988, %v5988
    %v6354 = vmul.f32 %v5992, %v5992
    %v6355 = vmul.f32 %v5996, %v5996
    %v6356 = vmul.f32 %v6000, %v6000
    %v6357 = vmul.f32 %v6004, %v6004
    %v6358 = vmul.f32 %v6008, %v6008
    %v6359 = vmul.f32 %v6012, %v6012
    %v6360 = vmul.f32 %v6016, %v6016
    %v6361 = vmul.f32 %v6020, %v6020
    %v6362 = vmul.f32 %v6024, %v6024
    %v6363 = vmul.f32 %v6028, %v6028
    %v6364 = vmul.f32 %v6032, %v6032
    %v6365 = vmul.f32 %v6036, %v6036
    %v6366 = vmul.f32 %v6040, %v6040
    %v6367 = vmul.f32 %v6044, %v6044
    %v6368 = vmul.f32 %v6048, %v6048
    %v6369 = vmul.f32 %v6052, %v6052
    %v6370 = vmul.f32 %v6056, %v6056
    %v6371 = vmul.f32 %v6060, %v6060
    %v6372 = vmul.f32 %v6064, %v6064
    %v6373 = vmul.f32 %v6068, %v6068
    %v6374 = vmul.f32 %v6072, %v6072
    %v6375 = vmul.f32 %v6076, %v6076
    %v6376 = vmul.f32 %v6080, %v6080
    %v6377 = vmul.f32 %v6084, %v6084
    %v6378 = vmul.f32 %v6088, %v6088
    %v6379 = vmul.f32 %v6092, %v6092
    %v6380 = vmul.f32 %v6096, %v6096
    %v6381 = vmul.f32 %v6100, %v6100
    %v6382 = vmul.f32 %v6104, %v6104
    %v6383 = vmul.f32 %v6108, %v6108
    %v6384 = vmul.f32 %v6112, %v6112
    %v6385 = vmul.f32 %v6116, %v6116
    %v6386 = vmul.f32 %v6120, %v6120
    %v6387 = vmul.f32 %v6124, %v6124
    %v6388 = vmul.f32 %v6128, %v6128
    %v6389 = vmul.f32 %v6132, %v6132
    %6390 = vadd.xlane.f32.xlu0 %v6326
    %v6391 = vpop.xlane.xlu0 %6390
    %6392 = vadd.xlane.f32.xlu0 %v6327
    %v6393 = vpop.xlane.xlu0 %6392
    %6394 = vadd.xlane.f32.xlu0 %v6328
    %v6395 = vpop.xlane.xlu0 %6394
    %6396 = vadd.xlane.f32.xlu0 %v6329
    %v6397 = vpop.xlane.xlu0 %6396
    %6398 = vadd.xlane.f32.xlu0 %v6330
    %v6399 = vpop.xlane.xlu0 %6398
    %6400 = vadd.xlane.f32.xlu0 %v6331
    %v6401 = vpop.xlane.xlu0 %6400
    %6402 = vadd.xlane.f32.xlu0 %v6332
    %v6403 = vpop.xlane.xlu0 %6402
    %6404 = vadd.xlane.f32.xlu0 %v6333
    %v6405 = vpop.xlane.xlu0 %6404
    %6406 = vadd.xlane.f32.xlu0 %v6334
    %v6407 = vpop.xlane.xlu0 %6406
    %6408 = vadd.xlane.f32.xlu0 %v6335
    %v6409 = vpop.xlane.xlu0 %6408
    %6410 = vadd.xlane.f32.xlu0 %v6336
    %v6411 = vpop.xlane.xlu0 %6410
    %6412 = vadd.xlane.f32.xlu0 %v6337
    %v6413 = vpop.xlane.xlu0 %6412
    %6414 = vadd.xlane.f32.xlu0 %v6338
    %v6415 = vpop.xlane.xlu0 %6414
    %6416 = vadd.xlane.f32.xlu0 %v6339
    %v6417 = vpop.xlane.xlu0 %6416
    %6418 = vadd.xlane.f32.xlu0 %v6340
    %v6419 = vpop.xlane.xlu0 %6418
    %6420 = vadd.xlane.f32.xlu0 %v6341
    %v6421 = vpop.xlane.xlu0 %6420
    %6422 = vadd.xlane.f32.xlu0 %v6342
    %v6423 = vpop.xlane.xlu0 %6422
    %6424 = vadd.xlane.f32.xlu0 %v6343
    %v6425 = vpop.xlane.xlu0 %6424
    %6426 = vadd.xlane.f32.xlu0 %v6344
    %v6427 = vpop.xlane.xlu0 %6426
    %6428 = vadd.xlane.f32.xlu0 %v6345
    %v6429 = vpop.xlane.xlu0 %6428
    %6430 = vadd.xlane.f32.xlu0 %v6346
    %v6431 = vpop.xlane.xlu0 %6430
    %6432 = vadd.xlane.f32.xlu0 %v6347
    %v6433 = vpop.xlane.xlu0 %6432
    %6434 = vadd.xlane.f32.xlu0 %v6348
    %v6435 = vpop.xlane.xlu0 %6434
    %6436 = vadd.xlane.f32.xlu0 %v6349
    %v6437 = vpop.xlane.xlu0 %6436
    %6438 = vadd.xlane.f32.xlu0 %v6350
    %v6439 = vpop.xlane.xlu0 %6438
    %6440 = vadd.xlane.f32.xlu0 %v6351
    %v6441 = vpop.xlane.xlu0 %6440
    %6442 = vadd.xlane.f32.xlu0 %v6352
    %v6443 = vpop.xlane.xlu0 %6442
    %6444 = vadd.xlane.f32.xlu0 %v6353
    %v6445 = vpop.xlane.xlu0 %6444
    %6446 = vadd.xlane.f32.xlu0 %v6354
    %v6447 = vpop.xlane.xlu0 %6446
    %6448 = vadd.xlane.f32.xlu0 %v6355
    %v6449 = vpop.xlane.xlu0 %6448
    %6450 = vadd.xlane.f32.xlu0 %v6356
    %v6451 = vpop.xlane.xlu0 %6450
    %6452 = vadd.xlane.f32.xlu0 %v6357
    %v6453 = vpop.xlane.xlu0 %6452
    %6454 = vadd.xlane.f32.xlu0 %v6358
    %v6455 = vpop.xlane.xlu0 %6454
    %6456 = vadd.xlane.f32.xlu0 %v6359
    %v6457 = vpop.xlane.xlu0 %6456
    %6458 = vadd.xlane.f32.xlu0 %v6360
    %v6459 = vpop.xlane.xlu0 %6458
    %6460 = vadd.xlane.f32.xlu0 %v6361
    %v6461 = vpop.xlane.xlu0 %6460
    %6462 = vadd.xlane.f32.xlu0 %v6362
    %v6463 = vpop.xlane.xlu0 %6462
    %6464 = vadd.xlane.f32.xlu0 %v6363
    %v6465 = vpop.xlane.xlu0 %6464
    %6466 = vadd.xlane.f32.xlu0 %v6364
    %v6467 = vpop.xlane.xlu0 %6466
    %6468 = vadd.xlane.f32.xlu0 %v6365
    %v6469 = vpop.xlane.xlu0 %6468
    %6470 = vadd.xlane.f32.xlu0 %v6366
    %v6471 = vpop.xlane.xlu0 %6470
    %6472 = vadd.xlane.f32.xlu0 %v6367
    %v6473 = vpop.xlane.xlu0 %6472
    %6474 = vadd.xlane.f32.xlu0 %v6368
    %v6475 = vpop.xlane.xlu0 %6474
    %6476 = vadd.xlane.f32.xlu0 %v6369
    %v6477 = vpop.xlane.xlu0 %6476
    %6478 = vadd.xlane.f32.xlu0 %v6370
    %v6479 = vpop.xlane.xlu0 %6478
    %6480 = vadd.xlane.f32.xlu0 %v6371
    %v6481 = vpop.xlane.xlu0 %6480
    %6482 = vadd.xlane.f32.xlu0 %v6372
    %v6483 = vpop.xlane.xlu0 %6482
    %6484 = vadd.xlane.f32.xlu0 %v6373
    %v6485 = vpop.xlane.xlu0 %6484
    %6486 = vadd.xlane.f32.xlu0 %v6374
    %v6487 = vpop.xlane.xlu0 %6486
    %6488 = vadd.xlane.f32.xlu0 %v6375
    %v6489 = vpop.xlane.xlu0 %6488
    %6490 = vadd.xlane.f32.xlu0 %v6376
    %v6491 = vpop.xlane.xlu0 %6490
    %6492 = vadd.xlane.f32.xlu0 %v6377
    %v6493 = vpop.xlane.xlu0 %6492
    %6494 = vadd.xlane.f32.xlu0 %v6378
    %v6495 = vpop.xlane.xlu0 %6494
    %6496 = vadd.xlane.f32.xlu0 %v6379
    %v6497 = vpop.xlane.xlu0 %6496
    %6498 = vadd.xlane.f32.xlu0 %v6380
    %v6499 = vpop.xlane.xlu0 %6498
    %6500 = vadd.xlane.f32.xlu0 %v6381
    %v6501 = vpop.xlane.xlu0 %6500
    %6502 = vadd.xlane.f32.xlu0 %v6382
    %v6503 = vpop.xlane.xlu0 %6502
    %6504 = vadd.xlane.f32.xlu0 %v6383
    %v6505 = vpop.xlane.xlu0 %6504
    %6506 = vadd.xlane.f32.xlu0 %v6384
    %v6507 = vpop.xlane.xlu0 %6506
    %6508 = vadd.xlane.f32.xlu0 %v6385
    %v6509 = vpop.xlane.xlu0 %6508
    %6510 = vadd.xlane.f32.xlu0 %v6386
    %v6511 = vpop.xlane.xlu0 %6510
    %6512 = vadd.xlane.f32.xlu0 %v6387
    %v6513 = vpop.xlane.xlu0 %6512
    %6514 = vadd.xlane.f32.xlu0 %v6388
    %v6515 = vpop.xlane.xlu0 %6514
    %6516 = vadd.xlane.f32.xlu0 %v6389
    %v6517 = vpop.xlane.xlu0 %6516
    %s6518 = smul.u32 0, 512
    %v6519 = vlaneseq
    %v6520 = vshrl.u32 %v6519, 7
    %v6521 = vadd.s32 %v6520, 8
    %v6522 = vadd.s32 %v6520, 16
    %v6523 = vadd.s32 %v6520, 24
    %v6524 = vadd.s32 %v6520, 32
    %v6525 = vadd.s32 %v6520, 40
    %v6526 = vadd.s32 %v6520, 48
    %v6527 = vadd.s32 %v6520, 56
    %v6528 = vadd.s32 %v6520, 64
    %v6529 = vadd.s32 %v6520, 72
    %v6530 = vadd.s32 %v6520, 80
    %v6531 = vadd.s32 %v6520, 88
    %v6532 = vadd.s32 %v6520, 96
    %v6533 = vadd.s32 %v6520, 104
    %v6534 = vadd.s32 %v6520, 112
    %v6535 = vadd.s32 %v6520, 120
    %v6536 = vadd.s32 %v6520, 128
    %v6537 = vadd.s32 %v6520, 136
    %v6538 = vadd.s32 %v6520, 144
    %v6539 = vadd.s32 %v6520, 152
    %v6540 = vadd.s32 %v6520, 160
    %v6541 = vadd.s32 %v6520, 168
    %v6542 = vadd.s32 %v6520, 176
    %v6543 = vadd.s32 %v6520, 184
    %v6544 = vadd.s32 %v6520, 192
    %v6545 = vadd.s32 %v6520, 200
    %v6546 = vadd.s32 %v6520, 208
    %v6547 = vadd.s32 %v6520, 216
    %v6548 = vadd.s32 %v6520, 224
    %v6549 = vadd.s32 %v6520, 232
    %v6550 = vadd.s32 %v6520, 240
    %v6551 = vadd.s32 %v6520, 248
    %v6552 = vadd.s32 %v6520, 256
    %v6553 = vadd.s32 %v6520, 264
    %v6554 = vadd.s32 %v6520, 272
    %v6555 = vadd.s32 %v6520, 280
    %v6556 = vadd.s32 %v6520, 288
    %v6557 = vadd.s32 %v6520, 296
    %v6558 = vadd.s32 %v6520, 304
    %v6559 = vadd.s32 %v6520, 312
    %v6560 = vadd.s32 %v6520, 320
    %v6561 = vadd.s32 %v6520, 328
    %v6562 = vadd.s32 %v6520, 336
    %v6563 = vadd.s32 %v6520, 344
    %v6564 = vadd.s32 %v6520, 352
    %v6565 = vadd.s32 %v6520, 360
    %v6566 = vadd.s32 %v6520, 368
    %v6567 = vadd.s32 %v6520, 376
    %v6568 = vadd.s32 %v6520, 384
    %v6569 = vadd.s32 %v6520, 392
    %v6570 = vadd.s32 %v6520, 400
    %v6571 = vadd.s32 %v6520, 408
    %v6572 = vadd.s32 %v6520, 416
    %v6573 = vadd.s32 %v6520, 424
    %v6574 = vadd.s32 %v6520, 432
    %v6575 = vadd.s32 %v6520, 440
    %v6576 = vadd.s32 %v6520, 448
    %v6577 = vadd.s32 %v6520, 456
    %v6578 = vadd.s32 %v6520, 464
    %v6579 = vadd.s32 %v6520, 472
    %v6580 = vadd.s32 %v6520, 480
    %v6581 = vadd.s32 %v6520, 488
    %v6582 = vadd.s32 %v6520, 496
    %v6583 = vadd.s32 %v6520, 504
    %v6584 = vstv %s6518
    %v6585 = vadd.s32 %v6584, %v6520
    %v6586 = vadd.s32 %v6584, %v6521
    %v6587 = vadd.s32 %v6584, %v6522
    %v6588 = vadd.s32 %v6584, %v6523
    %v6589 = vadd.s32 %v6584, %v6524
    %v6590 = vadd.s32 %v6584, %v6525
    %v6591 = vadd.s32 %v6584, %v6526
    %v6592 = vadd.s32 %v6584, %v6527
    %v6593 = vadd.s32 %v6584, %v6528
    %v6594 = vadd.s32 %v6584, %v6529
    %v6595 = vadd.s32 %v6584, %v6530
    %v6596 = vadd.s32 %v6584, %v6531
    %v6597 = vadd.s32 %v6584, %v6532
    %v6598 = vadd.s32 %v6584, %v6533
    %v6599 = vadd.s32 %v6584, %v6534
    %v6600 = vadd.s32 %v6584, %v6535
    %v6601 = vadd.s32 %v6584, %v6536
    %v6602 = vadd.s32 %v6584, %v6537
    %v6603 = vadd.s32 %v6584, %v6538
    %v6604 = vadd.s32 %v6584, %v6539
    %v6605 = vadd.s32 %v6584, %v6540
    %v6606 = vadd.s32 %v6584, %v6541
    %v6607 = vadd.s32 %v6584, %v6542
    %v6608 = vadd.s32 %v6584, %v6543
    %v6609 = vadd.s32 %v6584, %v6544
    %v6610 = vadd.s32 %v6584, %v6545
    %v6611 = vadd.s32 %v6584, %v6546
    %v6612 = vadd.s32 %v6584, %v6547
    %v6613 = vadd.s32 %v6584, %v6548
    %v6614 = vadd.s32 %v6584, %v6549
    %v6615 = vadd.s32 %v6584, %v6550
    %v6616 = vadd.s32 %v6584, %v6551
    %v6617 = vadd.s32 %v6584, %v6552
    %v6618 = vadd.s32 %v6584, %v6553
    %v6619 = vadd.s32 %v6584, %v6554
    %v6620 = vadd.s32 %v6584, %v6555
    %v6621 = vadd.s32 %v6584, %v6556
    %v6622 = vadd.s32 %v6584, %v6557
    %v6623 = vadd.s32 %v6584, %v6558
    %v6624 = vadd.s32 %v6584, %v6559
    %v6625 = vadd.s32 %v6584, %v6560
    %v6626 = vadd.s32 %v6584, %v6561
    %v6627 = vadd.s32 %v6584, %v6562
    %v6628 = vadd.s32 %v6584, %v6563
    %v6629 = vadd.s32 %v6584, %v6564
    %v6630 = vadd.s32 %v6584, %v6565
    %v6631 = vadd.s32 %v6584, %v6566
    %v6632 = vadd.s32 %v6584, %v6567
    %v6633 = vadd.s32 %v6584, %v6568
    %v6634 = vadd.s32 %v6584, %v6569
    %v6635 = vadd.s32 %v6584, %v6570
    %v6636 = vadd.s32 %v6584, %v6571
    %v6637 = vadd.s32 %v6584, %v6572
    %v6638 = vadd.s32 %v6584, %v6573
    %v6639 = vadd.s32 %v6584, %v6574
    %v6640 = vadd.s32 %v6584, %v6575
    %v6641 = vadd.s32 %v6584, %v6576
    %v6642 = vadd.s32 %v6584, %v6577
    %v6643 = vadd.s32 %v6584, %v6578
    %v6644 = vadd.s32 %v6584, %v6579
    %v6645 = vadd.s32 %v6584, %v6580
    %v6646 = vadd.s32 %v6584, %v6581
    %v6647 = vadd.s32 %v6584, %v6582
    %v6648 = vadd.s32 %v6584, %v6583
    %v6649 = vstv %s14
    %vm6650 = vcmp.lt.s32.totalorder %v6585, %v6649
    %vm6651 = vcmp.lt.s32.totalorder %v6586, %v6649
    %vm6652 = vcmp.lt.s32.totalorder %v6587, %v6649
    %vm6653 = vcmp.lt.s32.totalorder %v6588, %v6649
    %vm6654 = vcmp.lt.s32.totalorder %v6589, %v6649
    %vm6655 = vcmp.lt.s32.totalorder %v6590, %v6649
    %vm6656 = vcmp.lt.s32.totalorder %v6591, %v6649
    %vm6657 = vcmp.lt.s32.totalorder %v6592, %v6649
    %vm6658 = vcmp.lt.s32.totalorder %v6593, %v6649
    %vm6659 = vcmp.lt.s32.totalorder %v6594, %v6649
    %vm6660 = vcmp.lt.s32.totalorder %v6595, %v6649
    %vm6661 = vcmp.lt.s32.totalorder %v6596, %v6649
    %vm6662 = vcmp.lt.s32.totalorder %v6597, %v6649
    %vm6663 = vcmp.lt.s32.totalorder %v6598, %v6649
    %vm6664 = vcmp.lt.s32.totalorder %v6599, %v6649
    %vm6665 = vcmp.lt.s32.totalorder %v6600, %v6649
    %vm6666 = vcmp.lt.s32.totalorder %v6601, %v6649
    %vm6667 = vcmp.lt.s32.totalorder %v6602, %v6649
    %vm6668 = vcmp.lt.s32.totalorder %v6603, %v6649
    %vm6669 = vcmp.lt.s32.totalorder %v6604, %v6649
    %vm6670 = vcmp.lt.s32.totalorder %v6605, %v6649
    %vm6671 = vcmp.lt.s32.totalorder %v6606, %v6649
    %vm6672 = vcmp.lt.s32.totalorder %v6607, %v6649
    %vm6673 = vcmp.lt.s32.totalorder %v6608, %v6649
    %vm6674 = vcmp.lt.s32.totalorder %v6609, %v6649
    %vm6675 = vcmp.lt.s32.totalorder %v6610, %v6649
    %vm6676 = vcmp.lt.s32.totalorder %v6611, %v6649
    %vm6677 = vcmp.lt.s32.totalorder %v6612, %v6649
    %vm6678 = vcmp.lt.s32.totalorder %v6613, %v6649
    %vm6679 = vcmp.lt.s32.totalorder %v6614, %v6649
    %vm6680 = vcmp.lt.s32.totalorder %v6615, %v6649
    %vm6681 = vcmp.lt.s32.totalorder %v6616, %v6649
    %vm6682 = vcmp.lt.s32.totalorder %v6617, %v6649
    %vm6683 = vcmp.lt.s32.totalorder %v6618, %v6649
    %vm6684 = vcmp.lt.s32.totalorder %v6619, %v6649
    %vm6685 = vcmp.lt.s32.totalorder %v6620, %v6649
    %vm6686 = vcmp.lt.s32.totalorder %v6621, %v6649
    %vm6687 = vcmp.lt.s32.totalorder %v6622, %v6649
    %vm6688 = vcmp.lt.s32.totalorder %v6623, %v6649
    %vm6689 = vcmp.lt.s32.totalorder %v6624, %v6649
    %vm6690 = vcmp.lt.s32.totalorder %v6625, %v6649
    %vm6691 = vcmp.lt.s32.totalorder %v6626, %v6649
    %vm6692 = vcmp.lt.s32.totalorder %v6627, %v6649
    %vm6693 = vcmp.lt.s32.totalorder %v6628, %v6649
    %vm6694 = vcmp.lt.s32.totalorder %v6629, %v6649
    %vm6695 = vcmp.lt.s32.totalorder %v6630, %v6649
    %vm6696 = vcmp.lt.s32.totalorder %v6631, %v6649
    %vm6697 = vcmp.lt.s32.totalorder %v6632, %v6649
    %vm6698 = vcmp.lt.s32.totalorder %v6633, %v6649
    %vm6699 = vcmp.lt.s32.totalorder %v6634, %v6649
    %vm6700 = vcmp.lt.s32.totalorder %v6635, %v6649
    %vm6701 = vcmp.lt.s32.totalorder %v6636, %v6649
    %vm6702 = vcmp.lt.s32.totalorder %v6637, %v6649
    %vm6703 = vcmp.lt.s32.totalorder %v6638, %v6649
    %vm6704 = vcmp.lt.s32.totalorder %v6639, %v6649
    %vm6705 = vcmp.lt.s32.totalorder %v6640, %v6649
    %vm6706 = vcmp.lt.s32.totalorder %v6641, %v6649
    %vm6707 = vcmp.lt.s32.totalorder %v6642, %v6649
    %vm6708 = vcmp.lt.s32.totalorder %v6643, %v6649
    %vm6709 = vcmp.lt.s32.totalorder %v6644, %v6649
    %vm6710 = vcmp.lt.s32.totalorder %v6645, %v6649
    %vm6711 = vcmp.lt.s32.totalorder %v6646, %v6649
    %vm6712 = vcmp.lt.s32.totalorder %v6647, %v6649
    %vm6713 = vcmp.lt.s32.totalorder %v6648, %v6649
    %v6714 = vsub.f32 %v6199, %v6391
    %v6715 = vsub.f32 %v6201, %v6393
    %v6716 = vsub.f32 %v6203, %v6395
    %v6717 = vsub.f32 %v6205, %v6397
    %v6718 = vsub.f32 %v6207, %v6399
    %v6719 = vsub.f32 %v6209, %v6401
    %v6720 = vsub.f32 %v6211, %v6403
    %v6721 = vsub.f32 %v6213, %v6405
    %v6722 = vsub.f32 %v6215, %v6407
    %v6723 = vsub.f32 %v6217, %v6409
    %v6724 = vsub.f32 %v6219, %v6411
    %v6725 = vsub.f32 %v6221, %v6413
    %v6726 = vsub.f32 %v6223, %v6415
    %v6727 = vsub.f32 %v6225, %v6417
    %v6728 = vsub.f32 %v6227, %v6419
    %v6729 = vsub.f32 %v6229, %v6421
    %v6730 = vsub.f32 %v6231, %v6423
    %v6731 = vsub.f32 %v6233, %v6425
    %v6732 = vsub.f32 %v6235, %v6427
    %v6733 = vsub.f32 %v6237, %v6429
    %v6734 = vsub.f32 %v6239, %v6431
    %v6735 = vsub.f32 %v6241, %v6433
    %v6736 = vsub.f32 %v6243, %v6435
    %v6737 = vsub.f32 %v6245, %v6437
    %v6738 = vsub.f32 %v6247, %v6439
    %v6739 = vsub.f32 %v6249, %v6441
    %v6740 = vsub.f32 %v6251, %v6443
    %v6741 = vsub.f32 %v6253, %v6445
    %v6742 = vsub.f32 %v6255, %v6447
    %v6743 = vsub.f32 %v6257, %v6449
    %v6744 = vsub.f32 %v6259, %v6451
    %v6745 = vsub.f32 %v6261, %v6453
    %v6746 = vsub.f32 %v6263, %v6455
    %v6747 = vsub.f32 %v6265, %v6457
    %v6748 = vsub.f32 %v6267, %v6459
    %v6749 = vsub.f32 %v6269, %v6461
    %v6750 = vsub.f32 %v6271, %v6463
    %v6751 = vsub.f32 %v6273, %v6465
    %v6752 = vsub.f32 %v6275, %v6467
    %v6753 = vsub.f32 %v6277, %v6469
    %v6754 = vsub.f32 %v6279, %v6471
    %v6755 = vsub.f32 %v6281, %v6473
    %v6756 = vsub.f32 %v6283, %v6475
    %v6757 = vsub.f32 %v6285, %v6477
    %v6758 = vsub.f32 %v6287, %v6479
    %v6759 = vsub.f32 %v6289, %v6481
    %v6760 = vsub.f32 %v6291, %v6483
    %v6761 = vsub.f32 %v6293, %v6485
    %v6762 = vsub.f32 %v6295, %v6487
    %v6763 = vsub.f32 %v6297, %v6489
    %v6764 = vsub.f32 %v6299, %v6491
    %v6765 = vsub.f32 %v6301, %v6493
    %v6766 = vsub.f32 %v6303, %v6495
    %v6767 = vsub.f32 %v6305, %v6497
    %v6768 = vsub.f32 %v6307, %v6499
    %v6769 = vsub.f32 %v6309, %v6501
    %v6770 = vsub.f32 %v6311, %v6503
    %v6771 = vsub.f32 %v6313, %v6505
    %v6772 = vsub.f32 %v6315, %v6507
    %v6773 = vsub.f32 %v6317, %v6509
    %v6774 = vsub.f32 %v6319, %v6511
    %v6775 = vsub.f32 %v6321, %v6513
    %v6776 = vsub.f32 %v6323, %v6515
    %v6777 = vsub.f32 %v6325, %v6517
    %v6778 = vadd.f32 %v6714, 1.0
    %v6779 = vadd.f32 %v6715, 1.0
    %v6780 = vadd.f32 %v6716, 1.0
    %v6781 = vadd.f32 %v6717, 1.0
    %v6782 = vadd.f32 %v6718, 1.0
    %v6783 = vadd.f32 %v6719, 1.0
    %v6784 = vadd.f32 %v6720, 1.0
    %v6785 = vadd.f32 %v6721, 1.0
    %v6786 = vadd.f32 %v6722, 1.0
    %v6787 = vadd.f32 %v6723, 1.0
    %v6788 = vadd.f32 %v6724, 1.0
    %v6789 = vadd.f32 %v6725, 1.0
    %v6790 = vadd.f32 %v6726, 1.0
    %v6791 = vadd.f32 %v6727, 1.0
    %v6792 = vadd.f32 %v6728, 1.0
    %v6793 = vadd.f32 %v6729, 1.0
    %v6794 = vadd.f32 %v6730, 1.0
    %v6795 = vadd.f32 %v6731, 1.0
    %v6796 = vadd.f32 %v6732, 1.0
    %v6797 = vadd.f32 %v6733, 1.0
    %v6798 = vadd.f32 %v6734, 1.0
    %v6799 = vadd.f32 %v6735, 1.0
    %v6800 = vadd.f32 %v6736, 1.0
    %v6801 = vadd.f32 %v6737, 1.0
    %v6802 = vadd.f32 %v6738, 1.0
    %v6803 = vadd.f32 %v6739, 1.0
    %v6804 = vadd.f32 %v6740, 1.0
    %v6805 = vadd.f32 %v6741, 1.0
    %v6806 = vadd.f32 %v6742, 1.0
    %v6807 = vadd.f32 %v6743, 1.0
    %v6808 = vadd.f32 %v6744, 1.0
    %v6809 = vadd.f32 %v6745, 1.0
    %v6810 = vadd.f32 %v6746, 1.0
    %v6811 = vadd.f32 %v6747, 1.0
    %v6812 = vadd.f32 %v6748, 1.0
    %v6813 = vadd.f32 %v6749, 1.0
    %v6814 = vadd.f32 %v6750, 1.0
    %v6815 = vadd.f32 %v6751, 1.0
    %v6816 = vadd.f32 %v6752, 1.0
    %v6817 = vadd.f32 %v6753, 1.0
    %v6818 = vadd.f32 %v6754, 1.0
    %v6819 = vadd.f32 %v6755, 1.0
    %v6820 = vadd.f32 %v6756, 1.0
    %v6821 = vadd.f32 %v6757, 1.0
    %v6822 = vadd.f32 %v6758, 1.0
    %v6823 = vadd.f32 %v6759, 1.0
    %v6824 = vadd.f32 %v6760, 1.0
    %v6825 = vadd.f32 %v6761, 1.0
    %v6826 = vadd.f32 %v6762, 1.0
    %v6827 = vadd.f32 %v6763, 1.0
    %v6828 = vadd.f32 %v6764, 1.0
    %v6829 = vadd.f32 %v6765, 1.0
    %v6830 = vadd.f32 %v6766, 1.0
    %v6831 = vadd.f32 %v6767, 1.0
    %v6832 = vadd.f32 %v6768, 1.0
    %v6833 = vadd.f32 %v6769, 1.0
    %v6834 = vadd.f32 %v6770, 1.0
    %v6835 = vadd.f32 %v6771, 1.0
    %v6836 = vadd.f32 %v6772, 1.0
    %v6837 = vadd.f32 %v6773, 1.0
    %v6838 = vadd.f32 %v6774, 1.0
    %v6839 = vadd.f32 %v6775, 1.0
    %v6840 = vadd.f32 %v6776, 1.0
    %v6841 = vadd.f32 %v6777, 1.0
    %v6842 = vmax.f32 %v6778, 0.0
    %v6843 = vmax.f32 %v6779, 0.0
    %v6844 = vmax.f32 %v6780, 0.0
    %v6845 = vmax.f32 %v6781, 0.0
    %v6846 = vmax.f32 %v6782, 0.0
    %v6847 = vmax.f32 %v6783, 0.0
    %v6848 = vmax.f32 %v6784, 0.0
    %v6849 = vmax.f32 %v6785, 0.0
    %v6850 = vmax.f32 %v6786, 0.0
    %v6851 = vmax.f32 %v6787, 0.0
    %v6852 = vmax.f32 %v6788, 0.0
    %v6853 = vmax.f32 %v6789, 0.0
    %v6854 = vmax.f32 %v6790, 0.0
    %v6855 = vmax.f32 %v6791, 0.0
    %v6856 = vmax.f32 %v6792, 0.0
    %v6857 = vmax.f32 %v6793, 0.0
    %v6858 = vmax.f32 %v6794, 0.0
    %v6859 = vmax.f32 %v6795, 0.0
    %v6860 = vmax.f32 %v6796, 0.0
    %v6861 = vmax.f32 %v6797, 0.0
    %v6862 = vmax.f32 %v6798, 0.0
    %v6863 = vmax.f32 %v6799, 0.0
    %v6864 = vmax.f32 %v6800, 0.0
    %v6865 = vmax.f32 %v6801, 0.0
    %v6866 = vmax.f32 %v6802, 0.0
    %v6867 = vmax.f32 %v6803, 0.0
    %v6868 = vmax.f32 %v6804, 0.0
    %v6869 = vmax.f32 %v6805, 0.0
    %v6870 = vmax.f32 %v6806, 0.0
    %v6871 = vmax.f32 %v6807, 0.0
    %v6872 = vmax.f32 %v6808, 0.0
    %v6873 = vmax.f32 %v6809, 0.0
    %v6874 = vmax.f32 %v6810, 0.0
    %v6875 = vmax.f32 %v6811, 0.0
    %v6876 = vmax.f32 %v6812, 0.0
    %v6877 = vmax.f32 %v6813, 0.0
    %v6878 = vmax.f32 %v6814, 0.0
    %v6879 = vmax.f32 %v6815, 0.0
    %v6880 = vmax.f32 %v6816, 0.0
    %v6881 = vmax.f32 %v6817, 0.0
    %v6882 = vmax.f32 %v6818, 0.0
    %v6883 = vmax.f32 %v6819, 0.0
    %v6884 = vmax.f32 %v6820, 0.0
    %v6885 = vmax.f32 %v6821, 0.0
    %v6886 = vmax.f32 %v6822, 0.0
    %v6887 = vmax.f32 %v6823, 0.0
    %v6888 = vmax.f32 %v6824, 0.0
    %v6889 = vmax.f32 %v6825, 0.0
    %v6890 = vmax.f32 %v6826, 0.0
    %v6891 = vmax.f32 %v6827, 0.0
    %v6892 = vmax.f32 %v6828, 0.0
    %v6893 = vmax.f32 %v6829, 0.0
    %v6894 = vmax.f32 %v6830, 0.0
    %v6895 = vmax.f32 %v6831, 0.0
    %v6896 = vmax.f32 %v6832, 0.0
    %v6897 = vmax.f32 %v6833, 0.0
    %v6898 = vmax.f32 %v6834, 0.0
    %v6899 = vmax.f32 %v6835, 0.0
    %v6900 = vmax.f32 %v6836, 0.0
    %v6901 = vmax.f32 %v6837, 0.0
    %v6902 = vmax.f32 %v6838, 0.0
    %v6903 = vmax.f32 %v6839, 0.0
    %v6904 = vmax.f32 %v6840, 0.0
    %v6905 = vmax.f32 %v6841, 0.0
    %v6906 = vsel %vm6650, %v6842, 0.0
    %v6907 = vsel %vm6651, %v6843, 0.0
    %v6908 = vsel %vm6652, %v6844, 0.0
    %v6909 = vsel %vm6653, %v6845, 0.0
    %v6910 = vsel %vm6654, %v6846, 0.0
    %v6911 = vsel %vm6655, %v6847, 0.0
    %v6912 = vsel %vm6656, %v6848, 0.0
    %v6913 = vsel %vm6657, %v6849, 0.0
    %v6914 = vsel %vm6658, %v6850, 0.0
    %v6915 = vsel %vm6659, %v6851, 0.0
    %v6916 = vsel %vm6660, %v6852, 0.0
    %v6917 = vsel %vm6661, %v6853, 0.0
    %v6918 = vsel %vm6662, %v6854, 0.0
    %v6919 = vsel %vm6663, %v6855, 0.0
    %v6920 = vsel %vm6664, %v6856, 0.0
    %v6921 = vsel %vm6665, %v6857, 0.0
    %v6922 = vsel %vm6666, %v6858, 0.0
    %v6923 = vsel %vm6667, %v6859, 0.0
    %v6924 = vsel %vm6668, %v6860, 0.0
    %v6925 = vsel %vm6669, %v6861, 0.0
    %v6926 = vsel %vm6670, %v6862, 0.0
    %v6927 = vsel %vm6671, %v6863, 0.0
    %v6928 = vsel %vm6672, %v6864, 0.0
    %v6929 = vsel %vm6673, %v6865, 0.0
    %v6930 = vsel %vm6674, %v6866, 0.0
    %v6931 = vsel %vm6675, %v6867, 0.0
    %v6932 = vsel %vm6676, %v6868, 0.0
    %v6933 = vsel %vm6677, %v6869, 0.0
    %v6934 = vsel %vm6678, %v6870, 0.0
    %v6935 = vsel %vm6679, %v6871, 0.0
    %v6936 = vsel %vm6680, %v6872, 0.0
    %v6937 = vsel %vm6681, %v6873, 0.0
    %v6938 = vsel %vm6682, %v6874, 0.0
    %v6939 = vsel %vm6683, %v6875, 0.0
    %v6940 = vsel %vm6684, %v6876, 0.0
    %v6941 = vsel %vm6685, %v6877, 0.0
    %v6942 = vsel %vm6686, %v6878, 0.0
    %v6943 = vsel %vm6687, %v6879, 0.0
    %v6944 = vsel %vm6688, %v6880, 0.0
    %v6945 = vsel %vm6689, %v6881, 0.0
    %v6946 = vsel %vm6690, %v6882, 0.0
    %v6947 = vsel %vm6691, %v6883, 0.0
    %v6948 = vsel %vm6692, %v6884, 0.0
    %v6949 = vsel %vm6693, %v6885, 0.0
    %v6950 = vsel %vm6694, %v6886, 0.0
    %v6951 = vsel %vm6695, %v6887, 0.0
    %v6952 = vsel %vm6696, %v6888, 0.0
    %v6953 = vsel %vm6697, %v6889, 0.0
    %v6954 = vsel %vm6698, %v6890, 0.0
    %v6955 = vsel %vm6699, %v6891, 0.0
    %v6956 = vsel %vm6700, %v6892, 0.0
    %v6957 = vsel %vm6701, %v6893, 0.0
    %v6958 = vsel %vm6702, %v6894, 0.0
    %v6959 = vsel %vm6703, %v6895, 0.0
    %v6960 = vsel %vm6704, %v6896, 0.0
    %v6961 = vsel %vm6705, %v6897, 0.0
    %v6962 = vsel %vm6706, %v6898, 0.0
    %v6963 = vsel %vm6707, %v6899, 0.0
    %v6964 = vsel %vm6708, %v6900, 0.0
    %v6965 = vsel %vm6709, %v6901, 0.0
    %v6966 = vsel %vm6710, %v6902, 0.0
    %v6967 = vsel %vm6711, %v6903, 0.0
    %v6968 = vsel %vm6712, %v6904, 0.0
    %v6969 = vsel %vm6713, %v6905, 0.0
    %vm6970 = vcmask 7168
    %v6971 = vsel %vm6970, %v6906, 0.0
    %v6972 = vsel %vm6970, %v6907, 0.0
    %v6973 = vadd.f32 %v6971, %v6972
    %v6974 = vsel %vm6970, %v6908, 0.0
    %v6975 = vadd.f32 %v6973, %v6974
    %v6976 = vsel %vm6970, %v6909, 0.0
    %v6977 = vadd.f32 %v6975, %v6976
    %v6978 = vsel %vm6970, %v6910, 0.0
    %v6979 = vadd.f32 %v6977, %v6978
    %v6980 = vsel %vm6970, %v6911, 0.0
    %v6981 = vadd.f32 %v6979, %v6980
    %v6982 = vsel %vm6970, %v6912, 0.0
    %v6983 = vadd.f32 %v6981, %v6982
    %v6984 = vsel %vm6970, %v6913, 0.0
    %v6985 = vadd.f32 %v6983, %v6984
    %v6986 = vsel %vm6970, %v6914, 0.0
    %v6987 = vadd.f32 %v6985, %v6986
    %v6988 = vsel %vm6970, %v6915, 0.0
    %v6989 = vadd.f32 %v6987, %v6988
    %v6990 = vsel %vm6970, %v6916, 0.0
    %v6991 = vadd.f32 %v6989, %v6990
    %v6992 = vsel %vm6970, %v6917, 0.0
    %v6993 = vadd.f32 %v6991, %v6992
    %v6994 = vsel %vm6970, %v6918, 0.0
    %v6995 = vadd.f32 %v6993, %v6994
    %v6996 = vsel %vm6970, %v6919, 0.0
    %v6997 = vadd.f32 %v6995, %v6996
    %v6998 = vsel %vm6970, %v6920, 0.0
    %v6999 = vadd.f32 %v6997, %v6998
    %v7000 = vsel %vm6970, %v6921, 0.0
    %v7001 = vadd.f32 %v6999, %v7000
    %v7002 = vsel %vm6970, %v6922, 0.0
    %v7003 = vadd.f32 %v7001, %v7002
    %v7004 = vsel %vm6970, %v6923, 0.0
    %v7005 = vadd.f32 %v7003, %v7004
    %v7006 = vsel %vm6970, %v6924, 0.0
    %v7007 = vadd.f32 %v7005, %v7006
    %v7008 = vsel %vm6970, %v6925, 0.0
    %v7009 = vadd.f32 %v7007, %v7008
    %v7010 = vsel %vm6970, %v6926, 0.0
    %v7011 = vadd.f32 %v7009, %v7010
    %v7012 = vsel %vm6970, %v6927, 0.0
    %v7013 = vadd.f32 %v7011, %v7012
    %v7014 = vsel %vm6970, %v6928, 0.0
    %v7015 = vadd.f32 %v7013, %v7014
    %v7016 = vsel %vm6970, %v6929, 0.0
    %v7017 = vadd.f32 %v7015, %v7016
    %v7018 = vsel %vm6970, %v6930, 0.0
    %v7019 = vadd.f32 %v7017, %v7018
    %v7020 = vsel %vm6970, %v6931, 0.0
    %v7021 = vadd.f32 %v7019, %v7020
    %v7022 = vsel %vm6970, %v6932, 0.0
    %v7023 = vadd.f32 %v7021, %v7022
    %v7024 = vsel %vm6970, %v6933, 0.0
    %v7025 = vadd.f32 %v7023, %v7024
    %v7026 = vsel %vm6970, %v6934, 0.0
    %v7027 = vadd.f32 %v7025, %v7026
    %v7028 = vsel %vm6970, %v6935, 0.0
    %v7029 = vadd.f32 %v7027, %v7028
    %v7030 = vsel %vm6970, %v6936, 0.0
    %v7031 = vadd.f32 %v7029, %v7030
    %v7032 = vsel %vm6970, %v6937, 0.0
    %v7033 = vadd.f32 %v7031, %v7032
    %v7034 = vsel %vm6970, %v6938, 0.0
    %v7035 = vadd.f32 %v7033, %v7034
    %v7036 = vsel %vm6970, %v6939, 0.0
    %v7037 = vadd.f32 %v7035, %v7036
    %v7038 = vsel %vm6970, %v6940, 0.0
    %v7039 = vadd.f32 %v7037, %v7038
    %v7040 = vsel %vm6970, %v6941, 0.0
    %v7041 = vadd.f32 %v7039, %v7040
    %v7042 = vsel %vm6970, %v6942, 0.0
    %v7043 = vadd.f32 %v7041, %v7042
    %v7044 = vsel %vm6970, %v6943, 0.0
    %v7045 = vadd.f32 %v7043, %v7044
    %v7046 = vsel %vm6970, %v6944, 0.0
    %v7047 = vadd.f32 %v7045, %v7046
    %v7048 = vsel %vm6970, %v6945, 0.0
    %v7049 = vadd.f32 %v7047, %v7048
    %v7050 = vsel %vm6970, %v6946, 0.0
    %v7051 = vadd.f32 %v7049, %v7050
    %v7052 = vsel %vm6970, %v6947, 0.0
    %v7053 = vadd.f32 %v7051, %v7052
    %v7054 = vsel %vm6970, %v6948, 0.0
    %v7055 = vadd.f32 %v7053, %v7054
    %v7056 = vsel %vm6970, %v6949, 0.0
    %v7057 = vadd.f32 %v7055, %v7056
    %v7058 = vsel %vm6970, %v6950, 0.0
    %v7059 = vadd.f32 %v7057, %v7058
    %v7060 = vsel %vm6970, %v6951, 0.0
    %v7061 = vadd.f32 %v7059, %v7060
    %v7062 = vsel %vm6970, %v6952, 0.0
    %v7063 = vadd.f32 %v7061, %v7062
    %v7064 = vsel %vm6970, %v6953, 0.0
    %v7065 = vadd.f32 %v7063, %v7064
    %v7066 = vsel %vm6970, %v6954, 0.0
    %v7067 = vadd.f32 %v7065, %v7066
    %v7068 = vsel %vm6970, %v6955, 0.0
    %v7069 = vadd.f32 %v7067, %v7068
    %v7070 = vsel %vm6970, %v6956, 0.0
    %v7071 = vadd.f32 %v7069, %v7070
    %v7072 = vsel %vm6970, %v6957, 0.0
    %v7073 = vadd.f32 %v7071, %v7072
    %v7074 = vsel %vm6970, %v6958, 0.0
    %v7075 = vadd.f32 %v7073, %v7074
    %v7076 = vsel %vm6970, %v6959, 0.0
    %v7077 = vadd.f32 %v7075, %v7076
    %v7078 = vsel %vm6970, %v6960, 0.0
    %v7079 = vadd.f32 %v7077, %v7078
    %v7080 = vsel %vm6970, %v6961, 0.0
    %v7081 = vadd.f32 %v7079, %v7080
    %v7082 = vsel %vm6970, %v6962, 0.0
    %v7083 = vadd.f32 %v7081, %v7082
    %v7084 = vsel %vm6970, %v6963, 0.0
    %v7085 = vadd.f32 %v7083, %v7084
    %v7086 = vsel %vm6970, %v6964, 0.0
    %v7087 = vadd.f32 %v7085, %v7086
    %v7088 = vsel %vm6970, %v6965, 0.0
    %v7089 = vadd.f32 %v7087, %v7088
    %v7090 = vsel %vm6970, %v6966, 0.0
    %v7091 = vadd.f32 %v7089, %v7090
    %v7092 = vsel %vm6970, %v6967, 0.0
    %v7093 = vadd.f32 %v7091, %v7092
    %v7094 = vsel %vm6970, %v6968, 0.0
    %v7095 = vadd.f32 %v7093, %v7094
    %v7096 = vsel %vm6970, %v6969, 0.0
    %v7097 = vadd.f32 %v7095, %v7096
    %7098 = vadd.xlane.f32.xlu0 %v7097
    %v7099 = vpop.xlane.xlu0 %7098
    %v7100 = vrot.slane %v7099, 4
    %v7101 = vadd.f32 %v7099, %v7100
    %v7102 = vrot.slane %v7101, 2
    %v7103 = vadd.f32 %v7101, %v7102
    %v7104 = vrot.slane %v7103, 1
    %v7105 = vadd.f32 %v7103, %v7104
    %s7106 = vtos %v7105
    %vm7107 = vcmp.eq.s32.totalorder %v80, 0
    %v7108 = vstv %s7106
    %v7109 = vsel %vm7107, %v7108, 0.0
    %7110 = vst [vmem:[#allocation4] sm:$0xff] %v7109
    // Predicated region
    $region10: #{tpu_custom_call.1} parent=1 // pred_check
      _
    $region11: #{tpu_custom_call.1} parent=1 // pred_check_branch
      %7112 = sbr.rel (0) target = $region13
    $region12: #{tpu_custom_call.1} parent=1 // pred_region
      %7114 = vsyncadd [#allocation5], 0
      %s7116 = sshll.u32 [#allocation4], 4
      %s7117 = int_to_ptr.vmem [resolvable:$true] %s7116
      %s7118 = sshll.u32 %s3, 4
      %s7119 = int_to_ptr.hbm [resolvable:$true] %s7118
      %7121 = dma.vmem_to_hbm [thread:$0]  %s7117, 128, %s7119, [#allocation5]
    $region13: #{tpu_custom_call.1} parent=1 // pred_fallthru
      _
    // Predicated region
    $region14: #{tpu_custom_call.1} parent=1 // pred_check
      _
    $region15: #{tpu_custom_call.1} parent=1 // pred_check_branch
      %7123 = sbr.rel (0) target = $region17
    $region16: #{tpu_custom_call.1} parent=1 // pred_region
      %7125 = dma.done [#allocation5], 128
    $region17: #{tpu_custom_call.1} parent=1 // pred_fallthru
      _
    %7126 = vsyncpa [#allocation5], 1

</llo_original>
